<compile_context>
chip_gen: v7x
topology: tpu7x:2x2x1
jax: 0.10.0
libtpu: 0.0.40
codegen_flags: <defaults>
</compile_context>

<pallas_src>
import functools

import jax
import jax.numpy as jnp
from jax import lax
from jax.experimental import pallas as pl
from jax.experimental.pallas import tpu as pltpu


# ------------------------------------------------------------------- in-kernel helpers

def _groupnorm_silu(x3, gamma, beta, gavg, eps):
    """GroupNorm (biased variance, PyTorch semantics) + affine + SiLU.

    x3: (H, W, C) f32.  gamma/beta: (1, C) f32.  gavg: (C, C) f32 host-precomputed
    block-diagonal averaging matrix (gavg[c', c] = 1/(H*W*Cg) iff c', c share a group),
    so per-group statistics are one tiny (1,C)x(C,C) matmul instead of an O(C^2)
    in-kernel build.  Centered two-pass variance (group-mean of squared deviations) is
    a sum of non-negative terms -> never negative, no catastrophic cancellation, so
    rsqrt(var + eps) cannot NaN."""
    H, W, C = x3.shape
    s = jnp.sum(jnp.sum(x3, axis=0), axis=0).reshape(1, C)            # per-channel sum
    mean = jnp.dot(s, gavg, preferred_element_type=jnp.float32)       # per-group mean
    d = x3 - mean.reshape(1, 1, C)
    ssd = jnp.sum(jnp.sum(d * d, axis=0), axis=0).reshape(1, C)
    var = jnp.maximum(jnp.dot(ssd, gavg, preferred_element_type=jnp.float32), 0.0)
    y = (d * lax.rsqrt(var + eps).reshape(1, 1, C) * gamma.reshape(1, 1, C)
         + beta.reshape(1, 1, C))
    return y * jax.nn.sigmoid(y)                                      # SiLU / swish


def _fill_padded(pad_ref, a3):
    """Write the activated (H, W, C) image into the row-flattened zero-padded layout.

    pad_ref: ((H+3)*(W+2), C) bf16.  Padded pixel (ph, pw) lives at flat row ph*(W+2)+pw,
    image pixel (h, w) at (h+1)*(W+2) + (w+1).  One contiguous interior store (the
    left/right zero columns are part of the stored block); only the thin top/bottom
    border row bands are re-zeroed."""
    H, W, C = a3.shape
    Wp = W + 2
    dt = pad_ref.dtype
    zc = jnp.zeros((H, 1, C), dt)
    interior = jnp.concatenate([zc, a3.astype(dt), zc], axis=1).reshape(H * Wp, C)
    pad_ref[0:Wp, :] = jnp.zeros((Wp, C), dt)                          # top padded row
    pad_ref[Wp:(H + 1) * Wp, :] = interior                             # one dense store
    pad_ref[(H + 1) * Wp:(H + 3) * Wp, :] = jnp.zeros((2 * Wp, C), dt)  # bottom + tail


def _conv3x3_taps(pad_ref, w_ref, H, W):
    """3x3 conv (stride 1, pad 1) on the flattened padded activation.

    pad_ref: ((H+3)*(W+2), Cin) bf16; w_ref: (3, 3, Cin, Cout_tile) bf16 with
    w[ky, kx, i, o].  Each tap is a contiguous (static-offset) sublane shift of the flat
    layout -> 9 MXU matmuls, no materialized wide operand.  Returns the wide accumulator
    (H*(W+2), Cout_tile) f32; valid output pixel (h, w) is row h*(W+2) + w."""
    Wp = W + 2
    rout = H * Wp
    cout = w_ref.shape[-1]
    acc = jnp.zeros((rout, cout), jnp.float32)
    for ky in range(3):
        for kx in range(3):
            off = ky * Wp + kx
            xt = pad_ref[off:off + rout, :]                            # (rout, Cin) bf16
            acc = acc + jnp.dot(xt, w_ref[ky, kx],
                                preferred_element_type=jnp.float32)
    return acc


# ----------------------------------------------------------------------------- kernels

def _gn_silu_conv1_kernel(x_ref, g_ref, b_ref, gavg_ref, w_ref, cb_ref,
                          o_ref, pad_ref, *, eps):
    """Fused GroupNorm1 + SiLU + conv1(3x3).  Grid = (batch, Cout tiles).

    The GN+SiLU+padded-fill runs only at the first Cout tile of each image; the padded
    bf16 activation persists in VMEM scratch across the remaining Cout tiles."""
    _, H, W, _ = x_ref.shape
    co_t = o_ref.shape[-1]
    Wp = W + 2

    @pl.when(pl.program_id(1) == 0)
    def _():
        x3 = x_ref[0].astype(jnp.float32)                              # (H, W, Cin)
        a3 = _groupnorm_silu(x3, g_ref[...], b_ref[...], gavg_ref[...], eps)
        _fill_padded(pad_ref, a3)

    acc = _conv3x3_taps(pad_ref, w_ref, H, W)
    out3 = acc.reshape(H, Wp, co_t)[:, :W, :] + cb_ref[...].reshape(1, 1, co_t)
    o_ref[0] = out3.astype(o_ref.dtype)                                # single dense store


def _gn_silu_conv2_shortcut_kernel(h_ref, g_ref, b_ref, gavg_ref, w_ref, cb_ref,
                                   x_ref, ws_ref, bs_ref, o_ref, pad_ref, *,
                                   eps, inv_scale):
    """Fused GroupNorm2 + SiLU + dropout(id) + conv2(3x3) + 1x1 shortcut + residual + scale."""
    _, H, W, _ = h_ref.shape
    Cin = x_ref.shape[-1]
    co_t = o_ref.shape[-1]
    Wp = W + 2

    @pl.when(pl.program_id(1) == 0)
    def _():
        h3 = h_ref[0].astype(jnp.float32)                              # bf16 -> f32 stats
        a3 = _groupnorm_silu(h3, g_ref[...], b_ref[...], gavg_ref[...], eps)
        # dropout(p=0.0), eval mode -> identity
        _fill_padded(pad_ref, a3)

    acc = _conv3x3_taps(pad_ref, w_ref, H, W)
    # 1x1 shortcut on the (bf16) original input rides in the epilogue (otherwise-idle MXU)
    xs2 = x_ref[0].reshape(H * W, Cin)
    sc = jnp.dot(xs2, ws_ref[...], preferred_element_type=jnp.float32) + bs_ref[...]
    out3 = (acc.reshape(H, Wp, co_t)[:, :W, :]
            + cb_ref[...].reshape(1, 1, co_t)
            + sc.reshape(H, W, co_t)) * inv_scale
    o_ref[0] = out3.astype(o_ref.dtype)


# ---------------------------------------------------------------------------- wrappers

def _co_tile(cout):
    """Cout tile: full MXU N width where possible (256 on v6e/v7x), else full Cout."""
    if cout <= 256:
        return cout
    for t in (256, 128):
        if cout % t == 0:
            return t
    return cout


def _vmem_limit_bytes(per_step_block_bytes, scratch_bytes):
    """Explicit scoped-VMEM budget: double-buffered pipeline blocks + persistent scratch
    + transient/relayout headroom, clamped to v7x's physical 64 MiB."""
    budget = 2 * (2 * per_step_block_bytes + scratch_bytes)
    return int(max(32 * 1024 * 1024, min(budget, 64 * 1024 * 1024)))


def _group_avg_matrix(C, groups, hw):
    """Host-precomputed block-diagonal group-averaging matrix (C, C) f32."""
    cg = C // groups
    gi = jnp.arange(C) // cg
    m = (gi[:, None] == gi[None, :]).astype(jnp.float32)
    return m / jnp.float32(hw * cg)


def gn_silu_conv3x3(x, g, b, gavg, w_pk, cb, *, eps):
    """x: (N,H,W,Cin) f32 -> (N,H,W,Cout) bf16 (fused GN + SiLU + 3x3 conv)."""
    N, H, W, Cin = x.shape
    Cout = w_pk.shape[-1]
    co_t = _co_tile(Cout)
    n_co = Cout // co_t
    Wp = W + 2

    blk = (H * W * Cin * 4 + 2 * Cin * 4 + Cin * Cin * 4
           + 9 * Cin * co_t * 2 + co_t * 4 + H * W * co_t * 2)
    scratch = (H + 3) * Wp * Cin * 2

    kern = functools.partial(_gn_silu_conv1_kernel, eps=eps)
    return pl.pallas_call(
        kern,
        out_shape=jax.ShapeDtypeStruct((N, H, W, Cout), jnp.bfloat16),
        grid=(N, n_co),
        in_specs=[
            pl.BlockSpec((1, H, W, Cin), lambda n, co: (n, 0, 0, 0)),
            pl.BlockSpec((1, Cin), lambda n, co: (0, 0)),
            pl.BlockSpec((1, Cin), lambda n, co: (0, 0)),
            pl.BlockSpec((Cin, Cin), lambda n, co: (0, 0)),
            pl.BlockSpec((3, 3, Cin, co_t), lambda n, co: (0, 0, 0, co)),
            pl.BlockSpec((1, co_t), lambda n, co: (0, co)),
        ],
        out_specs=pl.BlockSpec((1, H, W, co_t), lambda n, co: (n, 0, 0, co)),
        scratch_shapes=[pltpu.VMEM(((H + 3) * Wp, Cin), jnp.bfloat16)],
        compiler_params=pltpu.CompilerParams(
            dimension_semantics=("parallel", "arbitrary"),
            vmem_limit_bytes=_vmem_limit_bytes(blk, scratch)),
    )(x, g, b, gavg, w_pk, cb)


def gn_silu_conv3x3_shortcut_add(h, g, b, gavg, w_pk, cb, x_bf, ws, bs, *,
                                 eps, inv_scale):
    """h: (N,H,W,Cmid) bf16, x_bf: (N,H,W,Cin) bf16 -> (N,H,W,Cout) f32
    (fused GN + SiLU + conv2 + 1x1 shortcut + residual + scale)."""
    N, H, W, Cmid = h.shape
    Cout = w_pk.shape[-1]
    Cin = x_bf.shape[-1]
    co_t = _co_tile(Cout)
    n_co = Cout // co_t
    Wp = W + 2

    blk = (H * W * Cmid * 2 + 2 * Cmid * 4 + Cmid * Cmid * 4
           + 9 * Cmid * co_t * 2 + co_t * 4
           + H * W * Cin * 2 + Cin * co_t * 2 + co_t * 4 + H * W * co_t * 4)
    scratch = (H + 3) * Wp * Cmid * 2

    kern = functools.partial(_gn_silu_conv2_shortcut_kernel, eps=eps,
                             inv_scale=inv_scale)
    return pl.pallas_call(
        kern,
        out_shape=jax.ShapeDtypeStruct((N, H, W, Cout), jnp.float32),
        grid=(N, n_co),
        in_specs=[
            pl.BlockSpec((1, H, W, Cmid), lambda n, co: (n, 0, 0, 0)),
            pl.BlockSpec((1, Cmid), lambda n, co: (0, 0)),
            pl.BlockSpec((1, Cmid), lambda n, co: (0, 0)),
            pl.BlockSpec((Cmid, Cmid), lambda n, co: (0, 0)),
            pl.BlockSpec((3, 3, Cmid, co_t), lambda n, co: (0, 0, 0, co)),
            pl.BlockSpec((1, co_t), lambda n, co: (0, co)),
            pl.BlockSpec((1, H, W, Cin), lambda n, co: (n, 0, 0, 0)),
            pl.BlockSpec((Cin, co_t), lambda n, co: (0, co)),
            pl.BlockSpec((1, co_t), lambda n, co: (0, co)),
        ],
        out_specs=pl.BlockSpec((1, H, W, co_t), lambda n, co: (n, 0, 0, co)),
        scratch_shapes=[pltpu.VMEM(((H + 3) * Wp, Cmid), jnp.bfloat16)],
        compiler_params=pltpu.CompilerParams(
            dimension_semantics=("parallel", "arbitrary"),
            vmem_limit_bytes=_vmem_limit_bytes(blk, scratch)),
    )(h, g, b, gavg, w_pk, cb, x_bf, ws, bs)


# ----------------------------------------------------------------------------- forward

def _pack_conv3x3(w_oihw):
    """OIHW (O, I, 3, 3) -> (ky, kx, I, O) bf16 for the flat-shift per-tap matmuls."""
    return jnp.transpose(w_oihw, (2, 3, 1, 0)).astype(jnp.bfloat16)


def resnet_block_forward(x_nchw, params, *, groups, groups_out, eps,
                         output_scale_factor):
    N, Cin, H, W = x_nchw.shape
    x = jnp.transpose(x_nchw.astype(jnp.float32), (0, 2, 3, 1))    # NCHW -> NHWC once

    w1 = _pack_conv3x3(params["conv1_w_oihw"])                     # (3,3,Cin,Cmid)
    w2 = _pack_conv3x3(params["conv2_w_oihw"])                     # (3,3,Cmid,Cout)
    ws = jnp.transpose(params["convs_w_oihw"][:, :, 0, 0], (1, 0)).astype(jnp.bfloat16)
    Cmid = w1.shape[-1]
    Cout = w2.shape[-1]

    gavg1 = _group_avg_matrix(Cin, groups, H * W)
    gavg2 = _group_avg_matrix(Cmid, groups_out, H * W)

    # --- fused: norm1 + swish + conv1 (intermediate h emitted in bf16) ---
    h = gn_silu_conv3x3(
        x,
        params["gn1_w"].reshape(1, Cin).astype(jnp.float32),
        params["gn1_b"].reshape(1, Cin).astype(jnp.float32),
        gavg1, w1,
        params["conv1_b"].reshape(1, Cmid).astype(jnp.float32),
        eps=eps)                                                    # (N,H,W,Cmid) bf16

    # --- fused: norm2 + swish + dropout(id) + conv2 + 1x1 shortcut + add + scale ---
    x_bf = x.astype(jnp.bfloat16)        # shortcut operand cast once (halves its DMA)
    out = gn_silu_conv3x3_shortcut_add(
        h,
        params["gn2_w"].reshape(1, Cmid).astype(jnp.float32),
        params["gn2_b"].reshape(1, Cmid).astype(jnp.float32),
        gavg2, w2,
        params["conv2_b"].reshape(1, Cout).astype(jnp.float32),
        x_bf, ws,
        params["convs_b"].reshape(1, Cout).astype(jnp.float32),
        eps=eps, inv_scale=float(1.0 / output_scale_factor))        # (N,H,W,Cout) f32

    return jnp.transpose(out, (0, 3, 1, 2))                         # NHWC -> NCHW once


# --------------------------------------------------------------------------- reference

def _ref_groupnorm(x, gamma, beta, groups, eps):
    N, C, H, W = x.shape
    xg = x.reshape(N, groups, C // groups, H * W)
    mean = xg.mean(axis=(2, 3), keepdims=True)
    var = ((xg - mean) ** 2).mean(axis=(2, 3), keepdims=True)
    xn = ((xg - mean) / jnp.sqrt(var + eps)).reshape(N, C, H, W)
    return xn * gamma[None, :, None, None] + beta[None, :, None, None]


def _ref_conv(x, w_oihw, bias, pad):
    y = lax.conv_general_dilated(x, w_oihw, (1, 1), [(pad, pad), (pad, pad)],
                                 dimension_numbers=("NCHW", "OIHW", "NCHW"))
    return y + bias[None, :, None, None]


def ref_forward(x, p, *, groups, groups_out, eps, output_scale_factor):
    silu = lambda v: v * jax.nn.sigmoid(v)
    h = silu(_ref_groupnorm(x, p["gn1_w"], p["gn1_b"], groups, eps))
    h = _ref_conv(h, p["conv1_w_oihw"], p["conv1_b"], 1)
    h = silu(_ref_groupnorm(h, p["gn2_w"], p["gn2_b"], groups_out, eps))
    h = _ref_conv(h, p["conv2_w_oihw"], p["conv2_b"], 1)
    sc = _ref_conv(x, p["convs_w_oihw"], p["convs_b"], 0)
    return (sc + h) / output_scale_factor


# -------------------------------------------------------------------------------- main

if __name__ == "__main__":
    # small shapes consistent with the module (groups reduced from 32 so they divide C)
    N, Cin, H, W = 2, 8, 16, 16
    Cout = 16                     # out_channels != in_channels -> use_in_shortcut=True
    C2out = Cout                  # conv_2d_out_channels defaults to out_channels
    groups, groups_out = 4, 4
    eps = 1e-6
    output_scale_factor = 1.0

    key = jax.random.PRNGKey(0)
    ks = jax.random.split(key, 11)

    params = {
        "gn1_w": jax.random.normal(ks[0], (Cin,), jnp.float32) * 0.1 + 1.0,
        "gn1_b": jax.random.normal(ks[1], (Cin,), jnp.float32) * 0.1,
        "conv1_w_oihw": jax.random.normal(ks[2], (Cout, Cin, 3, 3), jnp.float32) * 0.1,
        "conv1_b": jax.random.normal(ks[3], (Cout,), jnp.float32) * 0.1,
        "gn2_w": jax.random.normal(ks[4], (Cout,), jnp.float32) * 0.1 + 1.0,
        "gn2_b": jax.random.normal(ks[5], (Cout,), jnp.float32) * 0.1,
        "conv2_w_oihw": jax.random.normal(ks[6], (C2out, Cout, 3, 3), jnp.float32) * 0.1,
        "conv2_b": jax.random.normal(ks[7], (C2out,), jnp.float32) * 0.1,
        "convs_w_oihw": jax.random.normal(ks[8], (C2out, Cin, 1, 1), jnp.float32) * 0.1,
        "convs_b": jax.random.normal(ks[9], (C2out,), jnp.float32) * 0.1,
    }
    x = jax.random.normal(ks[10], (N, Cin, H, W), jnp.float32)

    out = resnet_block_forward(x, params, groups=groups, groups_out=groups_out,
                               eps=eps, output_scale_factor=output_scale_factor)
    out = jax.block_until_ready(out)

    ref = ref_forward(x, params, groups=groups, groups_out=groups_out,
                      eps=eps, output_scale_factor=output_scale_factor)
    ref = jax.block_until_ready(ref)

    assert out.shape == (N, C2out, H, W), out.shape
    # Matmul operands and the intermediate h / shortcut x are bf16 (accumulation and
    # GroupNorm statistics in f32), so compare against the pure-f32 reference with a
    # correspondingly loosened tolerance.
    max_err = float(jnp.max(jnp.abs(out - ref)))
    assert jnp.allclose(out, ref, rtol=4e-2, atol=4e-2), max_err

    print("KERNEL_OK")
</pallas_src>

<mosaic_0001>
module attributes {stable_mosaic.version = 11 : i64} {
  func.func @_gn_silu_conv1_kernel(%arg0: i32, %arg1: i32, %arg2: memref<1x16x16x8xf32, #tpu.memory_space<vmem>>, %arg3: memref<1x8xf32, #tpu.memory_space<vmem>>, %arg4: memref<1x8xf32, #tpu.memory_space<vmem>>, %arg5: memref<8x8xf32, #tpu.memory_space<vmem>>, %arg6: memref<3x3x8x16xbf16, #tpu.memory_space<vmem>>, %arg7: memref<1x16xf32, #tpu.memory_space<vmem>>, %arg8: memref<1x16x16x16xbf16, #tpu.memory_space<vmem>>, %arg9: memref<342x8xbf16, #tpu.memory_space<vmem>>) attributes {dimension_semantics = [#tpu.dimension_semantics<parallel>, #tpu.dimension_semantics<arbitrary>], iteration_bounds = array<i64: 2, 1>, scalar_prefetch = 0 : i64, scratch_operands = 1 : i64, tpu.core_type = #tpu.core_type<tc>, window_params = [{transform_indices = @transform_0, window_bounds = array<i64: 1, 16, 16, 8>}, {pipeline_mode = #tpu.pipeline_mode<synchronous>, transform_indices = @transform_1, window_bounds = array<i64: 1, 8>}, {pipeline_mode = #tpu.pipeline_mode<synchronous>, transform_indices = @transform_2, window_bounds = array<i64: 1, 8>}, {pipeline_mode = #tpu.pipeline_mode<synchronous>, transform_indices = @transform_3, window_bounds = array<i64: 8, 8>}, {transform_indices = @transform_4, window_bounds = array<i64: 3, 3, 8, 16>}, {transform_indices = @transform_5, window_bounds = array<i64: 1, 16>}, {transform_indices = @transform_6, window_bounds = array<i64: 1, 16, 16, 16>}]} {
    %c0_i32 = arith.constant 0 : i32
    %0 = arith.cmpi eq, %arg1, %c0_i32 : i32
    %1 = arith.extui %0 : i1 to i32
    %c0_i32_0 = arith.constant 0 : i32
    %2 = arith.cmpi ne, %1, %c0_i32_0 : i32
    scf.if %2 {
      %c0_61 = arith.constant 0 : index
      %c0_62 = arith.constant 0 : index
      %c0_63 = arith.constant 0 : index
      %c0_64 = arith.constant 0 : index
      %59 = vector.load %arg2[%c0_61, %c0_62, %c0_63, %c0_64] : memref<1x16x16x8xf32, #tpu.memory_space<vmem>>, vector<1x16x16x8xf32>
      %60 = vector.shape_cast %59 : vector<1x16x16x8xf32> to vector<16x16x8xf32>
      %c0_65 = arith.constant 0 : index
      %c0_66 = arith.constant 0 : index
      %61 = vector.load %arg3[%c0_65, %c0_66] : memref<1x8xf32, #tpu.memory_space<vmem>>, vector<1x8xf32>
      %c0_67 = arith.constant 0 : index
      %c0_68 = arith.constant 0 : index
      %62 = vector.load %arg4[%c0_67, %c0_68] : memref<1x8xf32, #tpu.memory_space<vmem>>, vector<1x8xf32>
      %c0_69 = arith.constant 0 : index
      %c0_70 = arith.constant 0 : index
      %63 = vector.load %arg5[%c0_69, %c0_70] : memref<8x8xf32, #tpu.memory_space<vmem>>, vector<8x8xf32>
      %cst_71 = arith.constant dense<0.000000e+00> : vector<16x8xf32>
      %64 = vector.multi_reduction <add>, %60, %cst_71 [0] : vector<16x16x8xf32> to vector<16x8xf32>
      %cst_72 = arith.constant dense<0.000000e+00> : vector<8xf32>
      %65 = vector.multi_reduction <add>, %64, %cst_72 [0] : vector<16x8xf32> to vector<8xf32>
      %66 = vector.shape_cast %65 : vector<8xf32> to vector<1x8xf32>
      %cst_73 = arith.constant dense<0.000000e+00> : vector<1x8xf32>
      %67 = tpu.matmul %66, %63, %cst_73 {dimension_numbers = #tpu.dot_dimension_numbers<[1], [0], [0], [1], [0, 0, 1, 1], [], []>} : vector<1x8xf32>, vector<8x8xf32>, vector<1x8xf32> -> vector<1x8xf32>
      %68 = vector.shape_cast %67 : vector<1x8xf32> to vector<1x1x8xf32>
      %69 = vector.broadcast %68 : vector<1x1x8xf32> to vector<16x16x8xf32>
      %70 = arith.subf %60, %69 : vector<16x16x8xf32>
      %71 = arith.mulf %70, %70 : vector<16x16x8xf32>
      %cst_74 = arith.constant dense<0.000000e+00> : vector<16x8xf32>
      %72 = vector.multi_reduction <add>, %71, %cst_74 [0] : vector<16x16x8xf32> to vector<16x8xf32>
      %cst_75 = arith.constant dense<0.000000e+00> : vector<8xf32>
      %73 = vector.multi_reduction <add>, %72, %cst_75 [0] : vector<16x8xf32> to vector<8xf32>
      %74 = vector.shape_cast %73 : vector<8xf32> to vector<1x8xf32>
      %cst_76 = arith.constant dense<0.000000e+00> : vector<1x8xf32>
      %75 = tpu.matmul %74, %63, %cst_76 {dimension_numbers = #tpu.dot_dimension_numbers<[1], [0], [0], [1], [0, 0, 1, 1], [], []>} : vector<1x8xf32>, vector<8x8xf32>, vector<1x8xf32> -> vector<1x8xf32>
      %cst_77 = arith.constant 0.000000e+00 : f32
      %76 = vector.broadcast %cst_77 : f32 to vector<1x8xf32>
      %77 = arith.maximumf %75, %76 : vector<1x8xf32>
      %cst_78 = arith.constant 9.99999997E-7 : f32
      %78 = vector.broadcast %cst_78 : f32 to vector<1x8xf32>
      %79 = arith.addf %77, %78 : vector<1x8xf32>
      %80 = math.rsqrt %79 : vector<1x8xf32>
      %81 = vector.shape_cast %80 : vector<1x8xf32> to vector<1x1x8xf32>
      %82 = vector.broadcast %81 : vector<1x1x8xf32> to vector<16x16x8xf32>
      %83 = arith.mulf %70, %82 : vector<16x16x8xf32>
      %84 = vector.shape_cast %61 : vector<1x8xf32> to vector<1x1x8xf32>
      %85 = vector.broadcast %84 : vector<1x1x8xf32> to vector<16x16x8xf32>
      %86 = arith.mulf %83, %85 : vector<16x16x8xf32>
      %87 = vector.shape_cast %62 : vector<1x8xf32> to vector<1x1x8xf32>
      %88 = vector.broadcast %87 : vector<1x1x8xf32> to vector<16x16x8xf32>
      %89 = arith.addf %86, %88 : vector<16x16x8xf32>
      %90 = arith.negf %89 : vector<16x16x8xf32>
      %91 = math.exp %90 : vector<16x16x8xf32>
      %cst_79 = arith.constant 1.000000e+00 : f32
      %92 = vector.broadcast %cst_79 : f32 to vector<16x16x8xf32>
      %93 = arith.addf %92, %91 : vector<16x16x8xf32>
      %94 = arith.divf %92, %93 : vector<16x16x8xf32>
      %95 = arith.mulf %89, %94 : vector<16x16x8xf32>
      %cst_80 = arith.constant 0.000000e+00 : bf16
      %96 = vector.broadcast %cst_80 : bf16 to vector<16x1x8xbf16>
      %97 = arith.truncf %95 : vector<16x16x8xf32> to vector<16x16x8xbf16>
      %98 = tpu.concatenate %96, %97, %96 in 1 : vector<16x1x8xbf16>, vector<16x16x8xbf16>, vector<16x1x8xbf16> -> vector<16x18x8xbf16>
      %99 = vector.shape_cast %98 : vector<16x18x8xbf16> to vector<288x8xbf16>
      %cst_81 = arith.constant 0.000000e+00 : bf16
      %100 = vector.broadcast %cst_81 : bf16 to vector<18x8xbf16>
      %c0_82 = arith.constant 0 : index
      %c0_83 = arith.constant 0 : index
      %101 = vector.load %arg9[%c0_82, %c0_83] : memref<342x8xbf16, #tpu.memory_space<vmem>>, vector<18x8xbf16>
      tpu.vector_store %arg9[%c0_82, %c0_83], %100 {strides = array<i32>} : memref<342x8xbf16, #tpu.memory_space<vmem>>, vector<18x8xbf16>,
      %c18_84 = arith.constant 18 : index
      %c0_85 = arith.constant 0 : index
      %102 = vector.load %arg9[%c18_84, %c0_85] : memref<342x8xbf16, #tpu.memory_space<vmem>>, vector<288x8xbf16>
      tpu.vector_store %arg9[%c18_84, %c0_85], %99 {strides = array<i32>} : memref<342x8xbf16, #tpu.memory_space<vmem>>, vector<288x8xbf16>,
      %cst_86 = arith.constant 0.000000e+00 : bf16
      %103 = vector.broadcast %cst_86 : bf16 to vector<36x8xbf16>
      %c306 = arith.constant 306 : index
      %c0_87 = arith.constant 0 : index
      %104 = vector.load %arg9[%c306, %c0_87] : memref<342x8xbf16, #tpu.memory_space<vmem>>, vector<36x8xbf16>
      tpu.vector_store %arg9[%c306, %c0_87], %103 {strides = array<i32>} : memref<342x8xbf16, #tpu.memory_space<vmem>>, vector<36x8xbf16>,
    } else {
    }
    %cst = arith.constant 0.000000e+00 : f32
    %3 = vector.broadcast %cst : f32 to vector<288x16xf32>
    %c0 = arith.constant 0 : index
    %c0_1 = arith.constant 0 : index
    %4 = vector.load %arg9[%c0, %c0_1] : memref<342x8xbf16, #tpu.memory_space<vmem>>, vector<288x8xbf16>
    %c0_2 = arith.constant 0 : index
    %c0_3 = arith.constant 0 : index
    %c0_4 = arith.constant 0 : index
    %c0_5 = arith.constant 0 : index
    %5 = vector.load %arg6[%c0_2, %c0_3, %c0_4, %c0_5] : memref<3x3x8x16xbf16, #tpu.memory_space<vmem>>, vector<1x1x8x16xbf16>
    %6 = vector.shape_cast %5 : vector<1x1x8x16xbf16> to vector<8x16xbf16>
    %cst_6 = arith.constant dense<0.000000e+00> : vector<288x16xf32>
    %7 = tpu.matmul %4, %6, %cst_6 {dimension_numbers = #tpu.dot_dimension_numbers<[1], [0], [0], [1], [0, 0, 1, 1], [], []>} : vector<288x8xbf16>, vector<8x16xbf16>, vector<288x16xf32> -> vector<288x16xf32>
    %8 = arith.addf %3, %7 : vector<288x16xf32>
    %c1 = arith.constant 1 : index
    %c0_7 = arith.constant 0 : index
    %9 = vector.load %arg9[%c1, %c0_7] : memref<342x8xbf16, #tpu.memory_space<vmem>>, vector<288x8xbf16>
    %c0_8 = arith.constant 0 : index
    %c1_9 = arith.constant 1 : index
    %c0_10 = arith.constant 0 : index
    %c0_11 = arith.constant 0 : index
    %10 = vector.load %arg6[%c0_8, %c1_9, %c0_10, %c0_11] : memref<3x3x8x16xbf16, #tpu.memory_space<vmem>>, vector<1x1x8x16xbf16>
    %11 = vector.shape_cast %10 : vector<1x1x8x16xbf16> to vector<8x16xbf16>
    %cst_12 = arith.constant dense<0.000000e+00> : vector<288x16xf32>
    %12 = tpu.matmul %9, %11, %cst_12 {dimension_numbers = #tpu.dot_dimension_numbers<[1], [0], [0], [1], [0, 0, 1, 1], [], []>} : vector<288x8xbf16>, vector<8x16xbf16>, vector<288x16xf32> -> vector<288x16xf32>
    %13 = arith.addf %8, %12 : vector<288x16xf32>
    %c2 = arith.constant 2 : index
    %c0_13 = arith.constant 0 : index
    %14 = vector.load %arg9[%c2, %c0_13] : memref<342x8xbf16, #tpu.memory_space<vmem>>, vector<288x8xbf16>
    %c0_14 = arith.constant 0 : index
    %c2_15 = arith.constant 2 : index
    %c0_16 = arith.constant 0 : index
    %c0_17 = arith.constant 0 : index
    %15 = vector.load %arg6[%c0_14, %c2_15, %c0_16, %c0_17] : memref<3x3x8x16xbf16, #tpu.memory_space<vmem>>, vector<1x1x8x16xbf16>
    %16 = vector.shape_cast %15 : vector<1x1x8x16xbf16> to vector<8x16xbf16>
    %cst_18 = arith.constant dense<0.000000e+00> : vector<288x16xf32>
    %17 = tpu.matmul %14, %16, %cst_18 {dimension_numbers = #tpu.dot_dimension_numbers<[1], [0], [0], [1], [0, 0, 1, 1], [], []>} : vector<288x8xbf16>, vector<8x16xbf16>, vector<288x16xf32> -> vector<288x16xf32>
    %18 = arith.addf %13, %17 : vector<288x16xf32>
    %c18 = arith.constant 18 : index
    %c0_19 = arith.constant 0 : index
    %19 = vector.load %arg9[%c18, %c0_19] : memref<342x8xbf16, #tpu.memory_space<vmem>>, vector<288x8xbf16>
    %c1_20 = arith.constant 1 : index
    %c0_21 = arith.constant 0 : index
    %c0_22 = arith.constant 0 : index
    %c0_23 = arith.constant 0 : index
    %20 = vector.load %arg6[%c1_20, %c0_21, %c0_22, %c0_23] : memref<3x3x8x16xbf16, #tpu.memory_space<vmem>>, vector<1x1x8x16xbf16>
    %21 = vector.shape_cast %20 : vector<1x1x8x16xbf16> to vector<8x16xbf16>
    %cst_24 = arith.constant dense<0.000000e+00> : vector<288x16xf32>
    %22 = tpu.matmul %19, %21, %cst_24 {dimension_numbers = #tpu.dot_dimension_numbers<[1], [0], [0], [1], [0, 0, 1, 1], [], []>} : vector<288x8xbf16>, vector<8x16xbf16>, vector<288x16xf32> -> vector<288x16xf32>
    %23 = arith.addf %18, %22 : vector<288x16xf32>
    %c19 = arith.constant 19 : index
    %c0_25 = arith.constant 0 : index
    %24 = vector.load %arg9[%c19, %c0_25] : memref<342x8xbf16, #tpu.memory_space<vmem>>, vector<288x8xbf16>
    %c1_26 = arith.constant 1 : index
    %c1_27 = arith.constant 1 : index
    %c0_28 = arith.constant 0 : index
    %c0_29 = arith.constant 0 : index
    %25 = vector.load %arg6[%c1_26, %c1_27, %c0_28, %c0_29] : memref<3x3x8x16xbf16, #tpu.memory_space<vmem>>, vector<1x1x8x16xbf16>
    %26 = vector.shape_cast %25 : vector<1x1x8x16xbf16> to vector<8x16xbf16>
    %cst_30 = arith.constant dense<0.000000e+00> : vector<288x16xf32>
    %27 = tpu.matmul %24, %26, %cst_30 {dimension_numbers = #tpu.dot_dimension_numbers<[1], [0], [0], [1], [0, 0, 1, 1], [], []>} : vector<288x8xbf16>, vector<8x16xbf16>, vector<288x16xf32> -> vector<288x16xf32>
    %28 = arith.addf %23, %27 : vector<288x16xf32>
    %c20 = arith.constant 20 : index
    %c0_31 = arith.constant 0 : index
    %29 = vector.load %arg9[%c20, %c0_31] : memref<342x8xbf16, #tpu.memory_space<vmem>>, vector<288x8xbf16>
    %c1_32 = arith.constant 1 : index
    %c2_33 = arith.constant 2 : index
    %c0_34 = arith.constant 0 : index
    %c0_35 = arith.constant 0 : index
    %30 = vector.load %arg6[%c1_32, %c2_33, %c0_34, %c0_35] : memref<3x3x8x16xbf16, #tpu.memory_space<vmem>>, vector<1x1x8x16xbf16>
    %31 = vector.shape_cast %30 : vector<1x1x8x16xbf16> to vector<8x16xbf16>
    %cst_36 = arith.constant dense<0.000000e+00> : vector<288x16xf32>
    %32 = tpu.matmul %29, %31, %cst_36 {dimension_numbers = #tpu.dot_dimension_numbers<[1], [0], [0], [1], [0, 0, 1, 1], [], []>} : vector<288x8xbf16>, vector<8x16xbf16>, vector<288x16xf32> -> vector<288x16xf32>
    %33 = arith.addf %28, %32 : vector<288x16xf32>
    %c36 = arith.constant 36 : index
    %c0_37 = arith.constant 0 : index
    %34 = vector.load %arg9[%c36, %c0_37] : memref<342x8xbf16, #tpu.memory_space<vmem>>, vector<288x8xbf16>
    %c2_38 = arith.constant 2 : index
    %c0_39 = arith.constant 0 : index
    %c0_40 = arith.constant 0 : index
    %c0_41 = arith.constant 0 : index
    %35 = vector.load %arg6[%c2_38, %c0_39, %c0_40, %c0_41] : memref<3x3x8x16xbf16, #tpu.memory_space<vmem>>, vector<1x1x8x16xbf16>
    %36 = vector.shape_cast %35 : vector<1x1x8x16xbf16> to vector<8x16xbf16>
    %cst_42 = arith.constant dense<0.000000e+00> : vector<288x16xf32>
    %37 = tpu.matmul %34, %36, %cst_42 {dimension_numbers = #tpu.dot_dimension_numbers<[1], [0], [0], [1], [0, 0, 1, 1], [], []>} : vector<288x8xbf16>, vector<8x16xbf16>, vector<288x16xf32> -> vector<288x16xf32>
    %38 = arith.addf %33, %37 : vector<288x16xf32>
    %c37 = arith.constant 37 : index
    %c0_43 = arith.constant 0 : index
    %39 = vector.load %arg9[%c37, %c0_43] : memref<342x8xbf16, #tpu.memory_space<vmem>>, vector<288x8xbf16>
    %c2_44 = arith.constant 2 : index
    %c1_45 = arith.constant 1 : index
    %c0_46 = arith.constant 0 : index
    %c0_47 = arith.constant 0 : index
    %40 = vector.load %arg6[%c2_44, %c1_45, %c0_46, %c0_47] : memref<3x3x8x16xbf16, #tpu.memory_space<vmem>>, vector<1x1x8x16xbf16>
    %41 = vector.shape_cast %40 : vector<1x1x8x16xbf16> to vector<8x16xbf16>
    %cst_48 = arith.constant dense<0.000000e+00> : vector<288x16xf32>
    %42 = tpu.matmul %39, %41, %cst_48 {dimension_numbers = #tpu.dot_dimension_numbers<[1], [0], [0], [1], [0, 0, 1, 1], [], []>} : vector<288x8xbf16>, vector<8x16xbf16>, vector<288x16xf32> -> vector<288x16xf32>
    %43 = arith.addf %38, %42 : vector<288x16xf32>
    %c38 = arith.constant 38 : index
    %c0_49 = arith.constant 0 : index
    %44 = vector.load %arg9[%c38, %c0_49] : memref<342x8xbf16, #tpu.memory_space<vmem>>, vector<288x8xbf16>
    %c2_50 = arith.constant 2 : index
    %c2_51 = arith.constant 2 : index
    %c0_52 = arith.constant 0 : index
    %c0_53 = arith.constant 0 : index
    %45 = vector.load %arg6[%c2_50, %c2_51, %c0_52, %c0_53] : memref<3x3x8x16xbf16, #tpu.memory_space<vmem>>, vector<1x1x8x16xbf16>
    %46 = vector.shape_cast %45 : vector<1x1x8x16xbf16> to vector<8x16xbf16>
    %cst_54 = arith.constant dense<0.000000e+00> : vector<288x16xf32>
    %47 = tpu.matmul %44, %46, %cst_54 {dimension_numbers = #tpu.dot_dimension_numbers<[1], [0], [0], [1], [0, 0, 1, 1], [], []>} : vector<288x8xbf16>, vector<8x16xbf16>, vector<288x16xf32> -> vector<288x16xf32>
    %48 = arith.addf %43, %47 : vector<288x16xf32>
    %49 = vector.shape_cast %48 : vector<288x16xf32> to vector<16x18x16xf32>
    %50 = vector.extract_strided_slice %49 {offsets = [0, 0, 0], sizes = [16, 16, 16], strides = [1, 1, 1]} : vector<16x18x16xf32> to vector<16x16x16xf32>
    %c0_55 = arith.constant 0 : index
    %c0_56 = arith.constant 0 : index
    %51 = vector.load %arg7[%c0_55, %c0_56] : memref<1x16xf32, #tpu.memory_space<vmem>>, vector<1x16xf32>
    %52 = vector.shape_cast %51 : vector<1x16xf32> to vector<1x1x16xf32>
    %53 = vector.broadcast %52 : vector<1x1x16xf32> to vector<16x16x16xf32>
    %54 = arith.addf %50, %53 : vector<16x16x16xf32>
    %55 = arith.truncf %54 : vector<16x16x16xf32> to vector<16x16x16xbf16>
    %c0_57 = arith.constant 0 : index
    %c0_58 = arith.constant 0 : index
    %c0_59 = arith.constant 0 : index
    %c0_60 = arith.constant 0 : index
    %56 = vector.load %arg8[%c0_57, %c0_58, %c0_59, %c0_60] : memref<1x16x16x16xbf16, #tpu.memory_space<vmem>>, vector<1x16x16x16xbf16>
    %57 = vector.shape_cast %56 : vector<1x16x16x16xbf16> to vector<16x16x16xbf16>
    %58 = vector.shape_cast %55 : vector<16x16x16xbf16> to vector<1x16x16x16xbf16>
    tpu.vector_store %arg8[%c0_57, %c0_58, %c0_59, %c0_60], %58 {strides = array<i32>} : memref<1x16x16x16xbf16, #tpu.memory_space<vmem>>, vector<1x16x16x16xbf16>,
    return
  }
  func.func @transform_0(%arg0: i32, %arg1: i32) -> (i32, i32, i32, i32) {
    %c0_i32 = arith.constant 0 : i32
    %c0_i32_0 = arith.constant 0 : i32
    %c0_i32_1 = arith.constant 0 : i32
    %c0_i32_2 = arith.constant 0 : i32
    return %arg0, %c0_i32, %c0_i32_0, %c0_i32_1 : i32, i32, i32, i32
  }
  func.func @transform_1(%arg0: i32, %arg1: i32) -> (i32, i32) {
    %c0_i32 = arith.constant 0 : i32
    %c0_i32_0 = arith.constant 0 : i32
    %c0_i32_1 = arith.constant 0 : i32
    return %c0_i32, %c0_i32_0 : i32, i32
  }
  func.func @transform_2(%arg0: i32, %arg1: i32) -> (i32, i32) {
    %c0_i32 = arith.constant 0 : i32
    %c0_i32_0 = arith.constant 0 : i32
    %c0_i32_1 = arith.constant 0 : i32
    return %c0_i32, %c0_i32_0 : i32, i32
  }
  func.func @transform_3(%arg0: i32, %arg1: i32) -> (i32, i32) {
    %c0_i32 = arith.constant 0 : i32
    %c0_i32_0 = arith.constant 0 : i32
    %c0_i32_1 = arith.constant 0 : i32
    return %c0_i32, %c0_i32_0 : i32, i32
  }
  func.func @transform_4(%arg0: i32, %arg1: i32) -> (i32, i32, i32, i32) {
    %c0_i32 = arith.constant 0 : i32
    %c0_i32_0 = arith.constant 0 : i32
    %c0_i32_1 = arith.constant 0 : i32
    %c0_i32_2 = arith.constant 0 : i32
    return %c0_i32, %c0_i32_0, %c0_i32_1, %arg1 : i32, i32, i32, i32
  }
  func.func @transform_5(%arg0: i32, %arg1: i32) -> (i32, i32) {
    %c0_i32 = arith.constant 0 : i32
    %c0_i32_0 = arith.constant 0 : i32
    return %c0_i32, %arg1 : i32, i32
  }
  func.func @transform_6(%arg0: i32, %arg1: i32) -> (i32, i32, i32, i32) {
    %c0_i32 = arith.constant 0 : i32
    %c0_i32_0 = arith.constant 0 : i32
    %c0_i32_1 = arith.constant 0 : i32
    return %arg0, %c0_i32, %c0_i32_0, %arg1 : i32, i32, i32, i32
  }
}

</mosaic_0001>

<llo_original>
// kernel: tpu_custom_call.1
$region0: #{tpu_custom_call.1}
  #allocation0 [shape = 'u32[]', space=smem, size = 0x4, offset = 0x4, fixed_abs, tag = 'smem constant byte address 0x4 - core index']
  #allocation1 [shape = 'u32[144,128]{1,0:T(1,128)}', space=vmem, size = 0x12000, scoped, tag = 'internal scratch']
  #allocation2 [shape = 'bf16[342,8]{1,0:T(8,128)(2,1)}', space=vmem, size = 0x15800, scoped, tag = 'scratch operand']
  %s0 = inlined_call_operand.vmem [shape: f32[2,16,16,8], index: 0, kind: input, shape index: {}]
  %s1 = inlined_call_operand.vmem [shape: f32[1,8], index: 1, kind: input, shape index: {}]
  %s2 = inlined_call_operand.vmem [shape: f32[1,8], index: 2, kind: input, shape index: {}]
  %s3 = inlined_call_operand.vmem [shape: f32[8,8], index: 3, kind: input, shape index: {}]
  %s4 = inlined_call_operand.vmem [shape: bf16[3,3,8,16], index: 4, kind: input, shape index: {}]
  %s5 = inlined_call_operand.vmem [shape: f32[1,16], index: 5, kind: input, shape index: {}]
  %s6 = inlined_call_operand.hbm [shape: bf16[2,16,16,16], index: 6, kind: output, shape index: {}]
  %s7 = sld [smem:[#allocation0]]
  $region61: #{tpu_custom_call.1} parent=0
    _
  %s9 = ssub.s32 1, %s7
  %s10 = scalar_select 0, %s9, %s7
  $region1: #{tpu_custom_call.1} parent=0
    #allocation3 [shape = 'u8[131072]{0}', space=vmem, size = 0x20000, scoped, tag = 'output window, operand 0']
    #allocation4 [shape = 's32[2]{0}', space=sflag, size = 0x8, scoped, tag = 'scoped memory for tpu_custom_call.1']
    %11 = vsyncpa [#allocation4], 0
    %s12 = scalar_lea.sflag [#allocation4], 1
    %13 = vsyncpa %s12, 0
    loop: start=0, step=1, limit=4
    $region2: #{tpu_custom_call.1} parent=1 // loop_pre_header
      _
    $region3: #{tpu_custom_call.1} parent=1 // loop_header
      %s15 = sphi 0, %s19
      %p16 = scmp.ge.s32.totalorder %s15, 4
      %s22 = sphi 0, %s34
      %s23 = sphi 0, %s30
      %s24 = sphi 0, %s22
      %s25 = sphi 0, %s23
      %s26 = sphi 0, %s24
      %s27 = sphi 0, %s25
      %s37 = sphi 0, %s39
      %s40 = sphi 0, %s37
      %s41 = sphi 0, %s40
      %s57 = sphi 0, %s41
      %s61 = sphi 0, %s61
      %s63 = sphi 0, %s61
      %s64 = sphi 0, %s63
      %s78 = sphi 0, %s64
      %s82 = sphi 0, %s82
      %s84 = sphi 0, %s82
      %s85 = sphi 0, %s84
      %s99 = sphi 0, %s85
      %s103 = sphi 0, %s103
      %s105 = sphi 0, %s103
      %s106 = sphi 0, %s105
      %s120 = sphi 0, %s106
      %s126 = sphi 0, %s128
      %s129 = sphi 0, %s126
      %s130 = sphi 0, %s129
      %s146 = sphi 0, %s130
      %s152 = sphi 0, %s154
      %s155 = sphi 0, %s152
      %s156 = sphi 0, %s155
      %s172 = sphi 0, %s156
      %s180 = sphi 0, %s182
      %s183 = sphi 0, %s180
      %s184 = sphi 0, %s183
      %s200 = sphi 0, %s184
    $region4: #{tpu_custom_call.1} parent=1 // loop_header_branch
      %18 = sbr.rel (%p16) target = $region8
    $region5: #{tpu_custom_call.1} parent=1 // loop_body
      %s20 = ssub.s32 %s15, 1
      %s21 = ssub.s32 %s15, 2
      %s28 = sadd.s32 1, %s23
      %p29 = scmp.ge.s32.totalorder %s28, 1
      %s30 = scalar_select %p29, 0, %s28
      %s31 = sadd.s32 1, %s22
      %s32 = scalar_select %p29, %s31, %s22
      %p33 = scmp.ge.s32.totalorder %s32, 2
      %s34 = scalar_select %p33, 0, %s32
      %s35 = ssub.s32 %s22, %s34
      %p36 = scmp.eq.s32.totalorder %s35, 0
      %s38 = sadd.s32 %s37, 1
      %s39 = scalar_select %p36, %s37, %s38
      %p42 = pneg %p36
      %p43 = scmp.eq.s32.totalorder %s15, 1
      %p44 = por %p42, %p43
      %p45 = scmp.ne.s32.totalorder %s37, %s40
      %p46 = scmp.eq.s32.totalorder %s15, 0
      %p47 = por %p45, %p46
      %p48 = scmp.ne.s32.totalorder %s37, %s40
      %p49 = scmp.eq.s32.totalorder %s20, 1
      %p50 = por %p48, %p49
      %p51 = scmp.ne.s32.totalorder %s40, %s41
      %p52 = scmp.eq.s32.totalorder %s20, 0
      %p53 = por %p51, %p52
      %p54 = scmp.ne.s32.totalorder %s40, %s41
      %p55 = scmp.eq.s32.totalorder %s21, 1
      %p56 = por %p54, %p55
      %p58 = scmp.ne.s32.totalorder %s41, %s57
      %p59 = scmp.eq.s32.totalorder %s21, 0
      %p60 = por %p58, %p59
      %s62 = sadd.s32 %s61, 1
      %p65 = scmp.eq.s32.totalorder %s15, 1
      %p66 = scmp.ne.s32.totalorder %s61, %s63
      %p67 = scmp.eq.s32.totalorder %s15, 0
      %p68 = por %p66, %p67
      %p69 = scmp.ne.s32.totalorder %s61, %s63
      %p70 = scmp.eq.s32.totalorder %s20, 1
      %p71 = por %p69, %p70
      %p72 = scmp.ne.s32.totalorder %s63, %s64
      %p73 = scmp.eq.s32.totalorder %s20, 0
      %p74 = por %p72, %p73
      %p75 = scmp.ne.s32.totalorder %s63, %s64
      %p76 = scmp.eq.s32.totalorder %s21, 1
      %p77 = por %p75, %p76
      %p79 = scmp.ne.s32.totalorder %s64, %s78
      %p80 = scmp.eq.s32.totalorder %s21, 0
      %p81 = por %p79, %p80
      %s83 = sadd.s32 %s82, 1
      %p86 = scmp.eq.s32.totalorder %s15, 1
      %p87 = scmp.ne.s32.totalorder %s82, %s84
      %p88 = scmp.eq.s32.totalorder %s15, 0
      %p89 = por %p87, %p88
      %p90 = scmp.ne.s32.totalorder %s82, %s84
      %p91 = scmp.eq.s32.totalorder %s20, 1
      %p92 = por %p90, %p91
      %p93 = scmp.ne.s32.totalorder %s84, %s85
      %p94 = scmp.eq.s32.totalorder %s20, 0
      %p95 = por %p93, %p94
      %p96 = scmp.ne.s32.totalorder %s84, %s85
      %p97 = scmp.eq.s32.totalorder %s21, 1
      %p98 = por %p96, %p97
      %p100 = scmp.ne.s32.totalorder %s85, %s99
      %p101 = scmp.eq.s32.totalorder %s21, 0
      %p102 = por %p100, %p101
      %s104 = sadd.s32 %s103, 1
      %p107 = scmp.eq.s32.totalorder %s15, 1
      %p108 = scmp.ne.s32.totalorder %s103, %s105
      %p109 = scmp.eq.s32.totalorder %s15, 0
      %p110 = por %p108, %p109
      %p111 = scmp.ne.s32.totalorder %s103, %s105
      %p112 = scmp.eq.s32.totalorder %s20, 1
      %p113 = por %p111, %p112
      %p114 = scmp.ne.s32.totalorder %s105, %s106
      %p115 = scmp.eq.s32.totalorder %s20, 0
      %p116 = por %p114, %p115
      %p117 = scmp.ne.s32.totalorder %s105, %s106
      %p118 = scmp.eq.s32.totalorder %s21, 1
      %p119 = por %p117, %p118
      %p121 = scmp.ne.s32.totalorder %s106, %s120
      %p122 = scmp.eq.s32.totalorder %s21, 0
      %p123 = por %p121, %p122
      %s124 = ssub.s32 %s23, %s30
      %p125 = scmp.eq.s32.totalorder %s124, 0
      %s127 = sadd.s32 %s126, 1
      %s128 = scalar_select %p125, %s126, %s127
      %p131 = pneg %p125
      %p132 = scmp.eq.s32.totalorder %s15, 1
      %p133 = por %p131, %p132
      %p134 = scmp.ne.s32.totalorder %s126, %s129
      %p135 = scmp.eq.s32.totalorder %s15, 0
      %p136 = por %p134, %p135
      %p137 = scmp.ne.s32.totalorder %s126, %s129
      %p138 = scmp.eq.s32.totalorder %s20, 1
      %p139 = por %p137, %p138
      %p140 = scmp.ne.s32.totalorder %s129, %s130
      %p141 = scmp.eq.s32.totalorder %s20, 0
      %p142 = por %p140, %p141
      %p143 = scmp.ne.s32.totalorder %s129, %s130
      %p144 = scmp.eq.s32.totalorder %s21, 1
      %p145 = por %p143, %p144
      %p147 = scmp.ne.s32.totalorder %s130, %s146
      %p148 = scmp.eq.s32.totalorder %s21, 0
      %p149 = por %p147, %p148
      %s150 = ssub.s32 %s23, %s30
      %p151 = scmp.eq.s32.totalorder %s150, 0
      %s153 = sadd.s32 %s152, 1
      %s154 = scalar_select %p151, %s152, %s153
      %p157 = pneg %p151
      %p158 = scmp.eq.s32.totalorder %s15, 1
      %p159 = por %p157, %p158
      %p160 = scmp.ne.s32.totalorder %s152, %s155
      %p161 = scmp.eq.s32.totalorder %s15, 0
      %p162 = por %p160, %p161
      %p163 = scmp.ne.s32.totalorder %s152, %s155
      %p164 = scmp.eq.s32.totalorder %s20, 1
      %p165 = por %p163, %p164
      %p166 = scmp.ne.s32.totalorder %s155, %s156
      %p167 = scmp.eq.s32.totalorder %s20, 0
      %p168 = por %p166, %p167
      %p169 = scmp.ne.s32.totalorder %s155, %s156
      %p170 = scmp.eq.s32.totalorder %s21, 1
      %p171 = por %p169, %p170
      %p173 = scmp.ne.s32.totalorder %s156, %s172
      %p174 = scmp.eq.s32.totalorder %s21, 0
      %p175 = por %p173, %p174
      %s176 = ssub.s32 %s22, %s34
      %s177 = ssub.s32 %s23, %s30
      %s178 = sor.u32 %s176, %s177
      %p179 = scmp.eq.s32.totalorder %s178, 0
      %s181 = sadd.s32 %s180, 1
      %s182 = scalar_select %p179, %s180, %s181
      %p185 = pneg %p179
      %p186 = scmp.eq.s32.totalorder %s15, 1
      %p187 = por %p185, %p186
      %p188 = scmp.ne.s32.totalorder %s180, %s183
      %p189 = scmp.eq.s32.totalorder %s15, 0
      %p190 = por %p188, %p189
      %p191 = scmp.ne.s32.totalorder %s180, %s183
      %p192 = scmp.eq.s32.totalorder %s20, 1
      %p193 = por %p191, %p192
      %p194 = scmp.ne.s32.totalorder %s183, %s184
      %p195 = scmp.eq.s32.totalorder %s20, 0
      %p196 = por %p194, %p195
      %p197 = scmp.ne.s32.totalorder %s183, %s184
      %p198 = scmp.eq.s32.totalorder %s21, 1
      %p199 = por %p197, %p198
      %p201 = scmp.ne.s32.totalorder %s184, %s200
      %p202 = scmp.eq.s32.totalorder %s21, 0
      %p203 = por %p201, %p202
      %p204 = scmp.le.s32.totalorder 1, %s15
      %p205 = scmp.lt.s32.totalorder %s15, 3
      %p206 = pnand %p204, %p205
      %p207 = pneg %p206
      // Predicated region
      $region9: #{tpu_custom_call.1} parent=5 // pred_check
        _
      $region10: #{tpu_custom_call.1} parent=5 // pred_check_branch
        %209 = sbr.rel (%p206) target = $region12
      $region11: #{tpu_custom_call.1} parent=5 // pred_region
        %s210 = ssub.s32 %s15, 1
        // Predicated region
        $region13: #{tpu_custom_call.1} parent=11 // pred_check
          %p211 = pneg %p74
        $region14: #{tpu_custom_call.1} parent=11 // pred_check_branch
          %213 = sbr.rel (%p211) target = $region16
        $region15: #{tpu_custom_call.1} parent=11 // pred_region
          _
        $region16: #{tpu_custom_call.1} parent=11 // pred_fallthru
          _
        // Predicated region
        $region17: #{tpu_custom_call.1} parent=11 // pred_check
          %p214 = pneg %p95
        $region18: #{tpu_custom_call.1} parent=11 // pred_check_branch
          %216 = sbr.rel (%p214) target = $region20
        $region19: #{tpu_custom_call.1} parent=11 // pred_region
          _
        $region20: #{tpu_custom_call.1} parent=11 // pred_fallthru
          _
        // Predicated region
        $region21: #{tpu_custom_call.1} parent=11 // pred_check
          %p217 = pneg %p116
        $region22: #{tpu_custom_call.1} parent=11 // pred_check_branch
          %219 = sbr.rel (%p217) target = $region24
        $region23: #{tpu_custom_call.1} parent=11 // pred_region
          _
        $region24: #{tpu_custom_call.1} parent=11 // pred_fallthru
          _
        // Predicated region
        $region25: #{tpu_custom_call.1} parent=11 // pred_check
          %p220 = pneg %p142
        $region26: #{tpu_custom_call.1} parent=11 // pred_check_branch
          %222 = sbr.rel (%p220) target = $region28
        $region27: #{tpu_custom_call.1} parent=11 // pred_region
          %p223 = scmp.lt.s32.totalorder %s25, 0
          %s224 = scalar_select %p223, %s25, 0
          %s225 = smul.addr %s224, 4
          %s226 = scalar_lea.vmem %s4, %s225
        $region28: #{tpu_custom_call.1} parent=11 // pred_fallthru
          _
        // Predicated region
        $region29: #{tpu_custom_call.1} parent=11 // pred_check
          %p227 = pneg %p168
        $region30: #{tpu_custom_call.1} parent=11 // pred_check_branch
          %229 = sbr.rel (%p227) target = $region32
        $region31: #{tpu_custom_call.1} parent=11 // pred_region
          %p230 = scmp.lt.s32.totalorder %s25, 0
          %s231 = scalar_select %p230, %s25, 0
          %s232 = scalar_lea.vmem %s5, %s231
        $region32: #{tpu_custom_call.1} parent=11 // pred_fallthru
          _
      $region12: #{tpu_custom_call.1} parent=5 // pred_fallthru
        _
      %p233 = scmp.lt.s32.totalorder %s15, 2
      // Predicated region
      $region33: #{tpu_custom_call.1} parent=5 // pred_check
        %p234 = pneg %p233
      $region34: #{tpu_custom_call.1} parent=5 // pred_check_branch
        %236 = sbr.rel (%p234) target = $region36
      $region35: #{tpu_custom_call.1} parent=5 // pred_region
        // Predicated region
        $region37: #{tpu_custom_call.1} parent=35 // pred_check
          %p237 = pneg %p47
        $region38: #{tpu_custom_call.1} parent=35 // pred_check_branch
          %239 = sbr.rel (%p237) target = $region40
        $region39: #{tpu_custom_call.1} parent=35 // pred_region
          %p240 = scmp.lt.s32.totalorder %s22, 1
          %s241 = scalar_select %p240, %s22, 1
          %s242 = smul.addr %s241, 32
          %s243 = smul.addr %s242, 8
          %s244 = scalar_lea.vmem %s0, %s243
        $region40: #{tpu_custom_call.1} parent=35 // pred_fallthru
          _
      $region36: #{tpu_custom_call.1} parent=5 // pred_fallthru
        _
      %p245 = scmp.le.s32.totalorder 1, %s15
      %p246 = scmp.lt.s32.totalorder %s15, 3
      %p247 = pnand %p245, %p246
      %p248 = pneg %p247
      // Predicated region
      $region41: #{tpu_custom_call.1} parent=5 // pred_check
        _
      $region42: #{tpu_custom_call.1} parent=5 // pred_check_branch
        %250 = sbr.rel (%p247) target = $region44
      $region43: #{tpu_custom_call.1} parent=5 // pred_region
        %s251 = ssub.s32 %s15, 1
        %p252 = scmp.lt.s32.totalorder %s24, 1
        %s253 = scalar_select %p252, %s24, 1
        %s254 = smul.addr %s253, 32
        %s255 = smul.addr %s254, 8
        %s256 = scalar_lea.vmem %s0, %s255
        %p257 = pneg %p53
        %p258 = pneg %p50
        %p259 = pneg %p74
        %p260 = pneg %p71
        %p261 = pneg %p95
        %p262 = pneg %p92
        %p263 = pneg %p116
        %p264 = pneg %p113
        %p265 = scmp.lt.s32.totalorder %s25, 0
        %s266 = scalar_select %p265, %s25, 0
        %s267 = smul.addr %s266, 4
        %s268 = scalar_lea.vmem %s4, %s267
        %p269 = pneg %p142
        %p270 = pneg %p139
        %p271 = scmp.lt.s32.totalorder %s25, 0
        %s272 = scalar_select %p271, %s25, 0
        %s273 = scalar_lea.vmem %s5, %s272
        %p274 = pneg %p168
        %p275 = pneg %p165
        %p276 = pneg %p196
        %p277 = pneg %p193
        %s278 = sand.u32 %s183, 1
        %s279 = scalar_lea.sflag [#allocation4], %s278
        %s280 = sand.u32 %s183, 1
        %s281 = smul.addr %s280, 128
        %s282 = scalar_lea.vmem [#allocation3], %s281
        %p283 = scmp.lt.s32.totalorder %s24, 1
        %s284 = scalar_select %p283, %s24, 1
        %s285 = smul.addr %s284, 32
        %s286 = smul.addr %s285, 8
        %s287 = scalar_lea.vmem %s0, %s286
        %p288 = scmp.lt.s32.totalorder %s25, 0
        %s289 = scalar_select %p288, %s25, 0
        %s290 = smul.addr %s289, 4
        %s291 = scalar_lea.vmem %s4, %s290
        %p292 = scmp.lt.s32.totalorder %s25, 0
        %s293 = scalar_select %p292, %s25, 0
        %s294 = scalar_lea.vmem %s5, %s293
        %p296 = scmp.eq.s32.totalorder %s25, 0
        // Predicated region
        $region45: #{tpu_custom_call.1} parent=43 // pred_check
          %p297 = pneg %p296
        $region46: #{tpu_custom_call.1} parent=43 // pred_check_branch
          %299 = sbr.rel (%p297) target = $region48
        $region47: #{tpu_custom_call.1} parent=43 // pred_region
          %v300 = vld [vmem:[%s287] sm:$0xff]
          %v301 = vld [vmem:[%s287 + $0x8] sm:$0xff]
          %v302 = vld [vmem:[%s287 + $0x10] sm:$0xff]
          %v303 = vld [vmem:[%s287 + $0x18] sm:$0xff]
          %v304 = vld [vmem:[%s287 + $0x20] sm:$0xff]
          %v305 = vld [vmem:[%s287 + $0x28] sm:$0xff]
          %v306 = vld [vmem:[%s287 + $0x30] sm:$0xff]
          %v307 = vld [vmem:[%s287 + $0x38] sm:$0xff]
          %v308 = vld [vmem:[%s287 + $0x40] sm:$0xff]
          %v309 = vld [vmem:[%s287 + $0x48] sm:$0xff]
          %v310 = vld [vmem:[%s287 + $0x50] sm:$0xff]
          %v311 = vld [vmem:[%s287 + $0x58] sm:$0xff]
          %v312 = vld [vmem:[%s287 + $0x60] sm:$0xff]
          %v313 = vld [vmem:[%s287 + $0x68] sm:$0xff]
          %v314 = vld [vmem:[%s287 + $0x70] sm:$0xff]
          %v315 = vld [vmem:[%s287 + $0x78] sm:$0xff]
          %v316 = vld [vmem:[%s287 + $0x80] sm:$0xff]
          %v317 = vld [vmem:[%s287 + $0x88] sm:$0xff]
          %v318 = vld [vmem:[%s287 + $0x90] sm:$0xff]
          %v319 = vld [vmem:[%s287 + $0x98] sm:$0xff]
          %v320 = vld [vmem:[%s287 + $0xa0] sm:$0xff]
          %v321 = vld [vmem:[%s287 + $0xa8] sm:$0xff]
          %v322 = vld [vmem:[%s287 + $0xb0] sm:$0xff]
          %v323 = vld [vmem:[%s287 + $0xb8] sm:$0xff]
          %v324 = vld [vmem:[%s287 + $0xc0] sm:$0xff]
          %v325 = vld [vmem:[%s287 + $0xc8] sm:$0xff]
          %v326 = vld [vmem:[%s287 + $0xd0] sm:$0xff]
          %v327 = vld [vmem:[%s287 + $0xd8] sm:$0xff]
          %v328 = vld [vmem:[%s287 + $0xe0] sm:$0xff]
          %v329 = vld [vmem:[%s287 + $0xe8] sm:$0xff]
          %v330 = vld [vmem:[%s287 + $0xf0] sm:$0xff]
          %v331 = vld [vmem:[%s287 + $0xf8] sm:$0xff]
          %v332 = vld [vmem:[%s1] sm:$0x1]
          %v333 = vld [vmem:[%s2] sm:$0x1]
          %v334 = vld [vmem:[%s3] sm:$0xff]
          %vm335 = vcmask 64512
          %v336 = vsel %vm335, %v300, 0.0
          %v337 = vsel %vm335, %v302, 0.0
          %v338 = vadd.f32 %v336, %v337
          %v339 = vsel %vm335, %v304, 0.0
          %v340 = vadd.f32 %v338, %v339
          %v341 = vsel %vm335, %v306, 0.0
          %v342 = vadd.f32 %v340, %v341
          %v343 = vsel %vm335, %v308, 0.0
          %v344 = vadd.f32 %v342, %v343
          %v345 = vsel %vm335, %v310, 0.0
          %v346 = vadd.f32 %v344, %v345
          %v347 = vsel %vm335, %v312, 0.0
          %v348 = vadd.f32 %v346, %v347
          %v349 = vsel %vm335, %v314, 0.0
          %v350 = vadd.f32 %v348, %v349
          %v351 = vsel %vm335, %v316, 0.0
          %v352 = vadd.f32 %v350, %v351
          %v353 = vsel %vm335, %v318, 0.0
          %v354 = vadd.f32 %v352, %v353
          %v355 = vsel %vm335, %v320, 0.0
          %v356 = vadd.f32 %v354, %v355
          %v357 = vsel %vm335, %v322, 0.0
          %v358 = vadd.f32 %v356, %v357
          %v359 = vsel %vm335, %v324, 0.0
          %v360 = vadd.f32 %v358, %v359
          %v361 = vsel %vm335, %v326, 0.0
          %v362 = vadd.f32 %v360, %v361
          %v363 = vsel %vm335, %v328, 0.0
          %v364 = vadd.f32 %v362, %v363
          %v365 = vsel %vm335, %v330, 0.0
          %v366 = vadd.f32 %v364, %v365
          %v367 = vsel %vm335, %v301, 0.0
          %v368 = vsel %vm335, %v303, 0.0
          %v369 = vadd.f32 %v367, %v368
          %v370 = vsel %vm335, %v305, 0.0
          %v371 = vadd.f32 %v369, %v370
          %v372 = vsel %vm335, %v307, 0.0
          %v373 = vadd.f32 %v371, %v372
          %v374 = vsel %vm335, %v309, 0.0
          %v375 = vadd.f32 %v373, %v374
          %v376 = vsel %vm335, %v311, 0.0
          %v377 = vadd.f32 %v375, %v376
          %v378 = vsel %vm335, %v313, 0.0
          %v379 = vadd.f32 %v377, %v378
          %v380 = vsel %vm335, %v315, 0.0
          %v381 = vadd.f32 %v379, %v380
          %v382 = vsel %vm335, %v317, 0.0
          %v383 = vadd.f32 %v381, %v382
          %v384 = vsel %vm335, %v319, 0.0
          %v385 = vadd.f32 %v383, %v384
          %v386 = vsel %vm335, %v321, 0.0
          %v387 = vadd.f32 %v385, %v386
          %v388 = vsel %vm335, %v323, 0.0
          %v389 = vadd.f32 %v387, %v388
          %v390 = vsel %vm335, %v325, 0.0
          %v391 = vadd.f32 %v389, %v390
          %v392 = vsel %vm335, %v327, 0.0
          %v393 = vadd.f32 %v391, %v392
          %v394 = vsel %vm335, %v329, 0.0
          %v395 = vadd.f32 %v393, %v394
          %v396 = vsel %vm335, %v331, 0.0
          %v397 = vadd.f32 %v395, %v396
          %v398 = vsel %vm335, %v366, 0.0
          %v399 = vsel %vm335, %v397, 0.0
          %v400 = vadd.f32 %v398, %v399
          %v401 = vrot.slane %v400, 4
          %v402 = vadd.f32 %v400, %v401
          %v403 = vrot.slane %v402, 2
          %v404 = vadd.f32 %v402, %v403
          %v405 = vrot.slane %v404, 1
          %v406 = vadd.f32 %v404, %v405
          %v408 = vsel %vm335, %v406, 0
          %410 = vmatprep.subr.mxu0 0.0
          %411 = vmatpush1.msra.mxu0 %v334
          %412 = vmatprep.subr.mxu0 0.0
          %413 = vmatpush1.msra.mxu0 0.0
          %414 = vmatprep.subr.mxu0 0.0
          %415 = vmatpush1.msra.mxu0 0.0
          %416 = vmatprep.subr.mxu0 0.0
          %417 = vmatpush1.msra.mxu0 0.0
          %418 = vmatprep.subr.mxu0 0.0
          %419 = vmatpush1.msra.mxu0 0.0
          %420 = vmatprep.subr.mxu0 0.0
          %421 = vmatpush1.msra.mxu0 0.0
          %422 = vmatprep.subr.mxu0 0.0
          %423 = vmatpush1.msra.mxu0 0.0
          %424 = vmatprep.subr.mxu0 0.0
          %425 = vmatpush1.msra.mxu0 0.0
          %426 = vmatprep.subr.mxu0 0.0
          %427 = vmatpush1.msra.mxu0 0.0
          %428 = vmatprep.subr.mxu0 0.0
          %429 = vmatpush1.msra.mxu0 0.0
          %430 = vmatprep.subr.mxu0 0.0
          %431 = vmatpush1.msra.mxu0 0.0
          %432 = vmatprep.subr.mxu0 0.0
          %433 = vmatpush1.msra.mxu0 0.0
          %434 = vmatprep.subr.mxu0 0.0
          %435 = vmatpush1.msra.mxu0 0.0
          %436 = vmatprep.subr.mxu0 0.0
          %437 = vmatpush1.msra.mxu0 0.0
          %438 = vmatprep.subr.mxu0 0.0
          %439 = vmatpush1.msra.mxu0 0.0
          %440 = vmatprep.subr.mxu0 0.0
          %441 = vmatpush1.msra.mxu0 0.0
          %442 = vmatprep.subr.mxu0 0.0
          %443 = vmatpush1.msra.mxu0 0.0
          %444 = vmatprep.subr.mxu0 0.0
          %445 = vmatpush1.msra.mxu0 0.0
          %446 = vmatprep.subr.mxu0 0.0
          %447 = vmatpush1.msra.mxu0 0.0
          %448 = vmatprep.subr.mxu0 0.0
          %449 = vmatpush1.msra.mxu0 0.0
          %450 = vmatprep.subr.mxu0 0.0
          %451 = vmatpush1.msra.mxu0 0.0
          %452 = vmatprep.subr.mxu0 0.0
          %453 = vmatpush1.msra.mxu0 0.0
          %454 = vmatprep.subr.mxu0 0.0
          %455 = vmatpush1.msra.mxu0 0.0
          %456 = vmatprep.subr.mxu0 0.0
          %457 = vmatpush1.msra.mxu0 0.0
          %458 = vmatprep.subr.mxu0 0.0
          %459 = vmatpush1.msra.mxu0 0.0
          %460 = vmatprep.subr.mxu0 0.0
          %461 = vmatpush1.msra.mxu0 0.0
          %462 = vmatprep.subr.mxu0 0.0
          %463 = vmatpush1.msra.mxu0 0.0
          %464 = vmatprep.subr.mxu0 0.0
          %465 = vmatpush1.msra.mxu0 0.0
          %466 = vmatprep.subr.mxu0 0.0
          %467 = vmatpush1.msra.mxu0 0.0
          %468 = vmatprep.subr.mxu0 0.0
          %469 = vmatpush1.msra.mxu0 0.0
          %470 = vmatprep.subr.mxu0 0.0
          %471 = vmatpush1.msra.mxu0 0.0
          %472 = vmatprep.subr.mxu0 0.0
          %473 = vmatpush1.msra.mxu0 0.0
          %474 = vmatprep.mubr.f32.mxu0 0.0
          %475 = vmatmul.mubr.f32.gmra.mrb[0].mxu0 %v408
          %v476 = vpop.f32.mrb[0].mxu0
          %v477 = vadd.f32 0.0, %v476
          %v478 = vpop.f32.mrb[0].mxu0
          %479 = vdwg.mxu0
          %v480 = vlaneseq
          %v481 = vshrl.u32 %v480, 7
          %v482 = vsub.s32 0, %v481
          %v483 = vrot.slane %v477, %v482
          %v484 = vsub.f32 %v300, %v483
          %v485 = vsub.f32 %v301, %v483
          %v486 = vsub.f32 %v302, %v483
          %v487 = vsub.f32 %v303, %v483
          %v488 = vsub.f32 %v304, %v483
          %v489 = vsub.f32 %v305, %v483
          %v490 = vsub.f32 %v306, %v483
          %v491 = vsub.f32 %v307, %v483
          %v492 = vsub.f32 %v308, %v483
          %v493 = vsub.f32 %v309, %v483
          %v494 = vsub.f32 %v310, %v483
          %v495 = vsub.f32 %v311, %v483
          %v496 = vsub.f32 %v312, %v483
          %v497 = vsub.f32 %v313, %v483
          %v498 = vsub.f32 %v314, %v483
          %v499 = vsub.f32 %v315, %v483
          %v500 = vsub.f32 %v316, %v483
          %v501 = vsub.f32 %v317, %v483
          %v502 = vsub.f32 %v318, %v483
          %v503 = vsub.f32 %v319, %v483
          %v504 = vsub.f32 %v320, %v483
          %v505 = vsub.f32 %v321, %v483
          %v506 = vsub.f32 %v322, %v483
          %v507 = vsub.f32 %v323, %v483
          %v508 = vsub.f32 %v324, %v483
          %v509 = vsub.f32 %v325, %v483
          %v510 = vsub.f32 %v326, %v483
          %v511 = vsub.f32 %v327, %v483
          %v512 = vsub.f32 %v328, %v483
          %v513 = vsub.f32 %v329, %v483
          %v514 = vsub.f32 %v330, %v483
          %v515 = vsub.f32 %v331, %v483
          %v516 = vmul.f32 %v484, %v484
          %v517 = vmul.f32 %v485, %v485
          %v518 = vmul.f32 %v486, %v486
          %v519 = vmul.f32 %v487, %v487
          %v520 = vmul.f32 %v488, %v488
          %v521 = vmul.f32 %v489, %v489
          %v522 = vmul.f32 %v490, %v490
          %v523 = vmul.f32 %v491, %v491
          %v524 = vmul.f32 %v492, %v492
          %v525 = vmul.f32 %v493, %v493
          %v526 = vmul.f32 %v494, %v494
          %v527 = vmul.f32 %v495, %v495
          %v528 = vmul.f32 %v496, %v496
          %v529 = vmul.f32 %v497, %v497
          %v530 = vmul.f32 %v498, %v498
          %v531 = vmul.f32 %v499, %v499
          %v532 = vmul.f32 %v500, %v500
          %v533 = vmul.f32 %v501, %v501
          %v534 = vmul.f32 %v502, %v502
          %v535 = vmul.f32 %v503, %v503
          %v536 = vmul.f32 %v504, %v504
          %v537 = vmul.f32 %v505, %v505
          %v538 = vmul.f32 %v506, %v506
          %v539 = vmul.f32 %v507, %v507
          %v540 = vmul.f32 %v508, %v508
          %v541 = vmul.f32 %v509, %v509
          %v542 = vmul.f32 %v510, %v510
          %v543 = vmul.f32 %v511, %v511
          %v544 = vmul.f32 %v512, %v512
          %v545 = vmul.f32 %v513, %v513
          %v546 = vmul.f32 %v514, %v514
          %v547 = vmul.f32 %v515, %v515
          %v548 = vsel %vm335, %v516, 0.0
          %v549 = vsel %vm335, %v518, 0.0
          %v550 = vadd.f32 %v548, %v549
          %v551 = vsel %vm335, %v520, 0.0
          %v552 = vadd.f32 %v550, %v551
          %v553 = vsel %vm335, %v522, 0.0
          %v554 = vadd.f32 %v552, %v553
          %v555 = vsel %vm335, %v524, 0.0
          %v556 = vadd.f32 %v554, %v555
          %v557 = vsel %vm335, %v526, 0.0
          %v558 = vadd.f32 %v556, %v557
          %v559 = vsel %vm335, %v528, 0.0
          %v560 = vadd.f32 %v558, %v559
          %v561 = vsel %vm335, %v530, 0.0
          %v562 = vadd.f32 %v560, %v561
          %v563 = vsel %vm335, %v532, 0.0
          %v564 = vadd.f32 %v562, %v563
          %v565 = vsel %vm335, %v534, 0.0
          %v566 = vadd.f32 %v564, %v565
          %v567 = vsel %vm335, %v536, 0.0
          %v568 = vadd.f32 %v566, %v567
          %v569 = vsel %vm335, %v538, 0.0
          %v570 = vadd.f32 %v568, %v569
          %v571 = vsel %vm335, %v540, 0.0
          %v572 = vadd.f32 %v570, %v571
          %v573 = vsel %vm335, %v542, 0.0
          %v574 = vadd.f32 %v572, %v573
          %v575 = vsel %vm335, %v544, 0.0
          %v576 = vadd.f32 %v574, %v575
          %v577 = vsel %vm335, %v546, 0.0
          %v578 = vadd.f32 %v576, %v577
          %v579 = vsel %vm335, %v517, 0.0
          %v580 = vsel %vm335, %v519, 0.0
          %v581 = vadd.f32 %v579, %v580
          %v582 = vsel %vm335, %v521, 0.0
          %v583 = vadd.f32 %v581, %v582
          %v584 = vsel %vm335, %v523, 0.0
          %v585 = vadd.f32 %v583, %v584
          %v586 = vsel %vm335, %v525, 0.0
          %v587 = vadd.f32 %v585, %v586
          %v588 = vsel %vm335, %v527, 0.0
          %v589 = vadd.f32 %v587, %v588
          %v590 = vsel %vm335, %v529, 0.0
          %v591 = vadd.f32 %v589, %v590
          %v592 = vsel %vm335, %v531, 0.0
          %v593 = vadd.f32 %v591, %v592
          %v594 = vsel %vm335, %v533, 0.0
          %v595 = vadd.f32 %v593, %v594
          %v596 = vsel %vm335, %v535, 0.0
          %v597 = vadd.f32 %v595, %v596
          %v598 = vsel %vm335, %v537, 0.0
          %v599 = vadd.f32 %v597, %v598
          %v600 = vsel %vm335, %v539, 0.0
          %v601 = vadd.f32 %v599, %v600
          %v602 = vsel %vm335, %v541, 0.0
          %v603 = vadd.f32 %v601, %v602
          %v604 = vsel %vm335, %v543, 0.0
          %v605 = vadd.f32 %v603, %v604
          %v606 = vsel %vm335, %v545, 0.0
          %v607 = vadd.f32 %v605, %v606
          %v608 = vsel %vm335, %v547, 0.0
          %v609 = vadd.f32 %v607, %v608
          %v610 = vsel %vm335, %v578, 0.0
          %v611 = vsel %vm335, %v609, 0.0
          %v612 = vadd.f32 %v610, %v611
          %v613 = vrot.slane %v612, 4
          %v614 = vadd.f32 %v612, %v613
          %v615 = vrot.slane %v614, 2
          %v616 = vadd.f32 %v614, %v615
          %v617 = vrot.slane %v616, 1
          %v618 = vadd.f32 %v616, %v617
          %v620 = vsel %vm335, %v618, 0
          %622 = vmatprep.subr.mxu0 0.0
          %623 = vmatpush1.msra.mxu0 %v334
          %624 = vmatprep.subr.mxu0 0.0
          %625 = vmatpush1.msra.mxu0 0.0
          %626 = vmatprep.subr.mxu0 0.0
          %627 = vmatpush1.msra.mxu0 0.0
          %628 = vmatprep.subr.mxu0 0.0
          %629 = vmatpush1.msra.mxu0 0.0
          %630 = vmatprep.subr.mxu0 0.0
          %631 = vmatpush1.msra.mxu0 0.0
          %632 = vmatprep.subr.mxu0 0.0
          %633 = vmatpush1.msra.mxu0 0.0
          %634 = vmatprep.subr.mxu0 0.0
          %635 = vmatpush1.msra.mxu0 0.0
          %636 = vmatprep.subr.mxu0 0.0
          %637 = vmatpush1.msra.mxu0 0.0
          %638 = vmatprep.subr.mxu0 0.0
          %639 = vmatpush1.msra.mxu0 0.0
          %640 = vmatprep.subr.mxu0 0.0
          %641 = vmatpush1.msra.mxu0 0.0
          %642 = vmatprep.subr.mxu0 0.0
          %643 = vmatpush1.msra.mxu0 0.0
          %644 = vmatprep.subr.mxu0 0.0
          %645 = vmatpush1.msra.mxu0 0.0
          %646 = vmatprep.subr.mxu0 0.0
          %647 = vmatpush1.msra.mxu0 0.0
          %648 = vmatprep.subr.mxu0 0.0
          %649 = vmatpush1.msra.mxu0 0.0
          %650 = vmatprep.subr.mxu0 0.0
          %651 = vmatpush1.msra.mxu0 0.0
          %652 = vmatprep.subr.mxu0 0.0
          %653 = vmatpush1.msra.mxu0 0.0
          %654 = vmatprep.subr.mxu0 0.0
          %655 = vmatpush1.msra.mxu0 0.0
          %656 = vmatprep.subr.mxu0 0.0
          %657 = vmatpush1.msra.mxu0 0.0
          %658 = vmatprep.subr.mxu0 0.0
          %659 = vmatpush1.msra.mxu0 0.0
          %660 = vmatprep.subr.mxu0 0.0
          %661 = vmatpush1.msra.mxu0 0.0
          %662 = vmatprep.subr.mxu0 0.0
          %663 = vmatpush1.msra.mxu0 0.0
          %664 = vmatprep.subr.mxu0 0.0
          %665 = vmatpush1.msra.mxu0 0.0
          %666 = vmatprep.subr.mxu0 0.0
          %667 = vmatpush1.msra.mxu0 0.0
          %668 = vmatprep.subr.mxu0 0.0
          %669 = vmatpush1.msra.mxu0 0.0
          %670 = vmatprep.subr.mxu0 0.0
          %671 = vmatpush1.msra.mxu0 0.0
          %672 = vmatprep.subr.mxu0 0.0
          %673 = vmatpush1.msra.mxu0 0.0
          %674 = vmatprep.subr.mxu0 0.0
          %675 = vmatpush1.msra.mxu0 0.0
          %676 = vmatprep.subr.mxu0 0.0
          %677 = vmatpush1.msra.mxu0 0.0
          %678 = vmatprep.subr.mxu0 0.0
          %679 = vmatpush1.msra.mxu0 0.0
          %680 = vmatprep.subr.mxu0 0.0
          %681 = vmatpush1.msra.mxu0 0.0
          %682 = vmatprep.subr.mxu0 0.0
          %683 = vmatpush1.msra.mxu0 0.0
          %684 = vmatprep.subr.mxu0 0.0
          %685 = vmatpush1.msra.mxu0 0.0
          %686 = vmatprep.mubr.f32.mxu0 0.0
          %687 = vmatmul.mubr.f32.gmra.mrb[0].mxu0 %v620
          %v688 = vpop.f32.mrb[0].mxu0
          %v689 = vadd.f32 0.0, %v688
          %v690 = vpop.f32.mrb[0].mxu0
          %691 = vdwg.mxu0
          %v692 = vmax.f32 %v689, 0.0
          %v693 = vadd.f32 %v692, 1e-06
          %v694 = vrsqrt.pop %v693
          %v695 = vlaneseq
          %v696 = vshrl.u32 %v695, 7
          %v697 = vsub.s32 0, %v696
          %v698 = vrot.slane %v694, %v697
          %v699 = vmul.f32 %v484, %v698
          %v700 = vmul.f32 %v485, %v698
          %v701 = vmul.f32 %v486, %v698
          %v702 = vmul.f32 %v487, %v698
          %v703 = vmul.f32 %v488, %v698
          %v704 = vmul.f32 %v489, %v698
          %v705 = vmul.f32 %v490, %v698
          %v706 = vmul.f32 %v491, %v698
          %v707 = vmul.f32 %v492, %v698
          %v708 = vmul.f32 %v493, %v698
          %v709 = vmul.f32 %v494, %v698
          %v710 = vmul.f32 %v495, %v698
          %v711 = vmul.f32 %v496, %v698
          %v712 = vmul.f32 %v497, %v698
          %v713 = vmul.f32 %v498, %v698
          %v714 = vmul.f32 %v499, %v698
          %v715 = vmul.f32 %v500, %v698
          %v716 = vmul.f32 %v501, %v698
          %v717 = vmul.f32 %v502, %v698
          %v718 = vmul.f32 %v503, %v698
          %v719 = vmul.f32 %v504, %v698
          %v720 = vmul.f32 %v505, %v698
          %v721 = vmul.f32 %v506, %v698
          %v722 = vmul.f32 %v507, %v698
          %v723 = vmul.f32 %v508, %v698
          %v724 = vmul.f32 %v509, %v698
          %v725 = vmul.f32 %v510, %v698
          %v726 = vmul.f32 %v511, %v698
          %v727 = vmul.f32 %v512, %v698
          %v728 = vmul.f32 %v513, %v698
          %v729 = vmul.f32 %v514, %v698
          %v730 = vmul.f32 %v515, %v698
          %v732 = vlaneseq
          %v733 = vshrl.u32 %v732, 7
          %v734 = vsub.s32 0, %v733
          %v735 = vrot.slane %v332, %v734
          %v737 = vmul.f32 %v699, %v735
          %v738 = vmul.f32 %v700, %v735
          %v739 = vmul.f32 %v701, %v735
          %v740 = vmul.f32 %v702, %v735
          %v741 = vmul.f32 %v703, %v735
          %v742 = vmul.f32 %v704, %v735
          %v743 = vmul.f32 %v705, %v735
          %v744 = vmul.f32 %v706, %v735
          %v745 = vmul.f32 %v707, %v735
          %v746 = vmul.f32 %v708, %v735
          %v747 = vmul.f32 %v709, %v735
          %v748 = vmul.f32 %v710, %v735
          %v749 = vmul.f32 %v711, %v735
          %v750 = vmul.f32 %v712, %v735
          %v751 = vmul.f32 %v713, %v735
          %v752 = vmul.f32 %v714, %v735
          %v753 = vmul.f32 %v715, %v735
          %v754 = vmul.f32 %v716, %v735
          %v755 = vmul.f32 %v717, %v735
          %v756 = vmul.f32 %v718, %v735
          %v757 = vmul.f32 %v719, %v735
          %v758 = vmul.f32 %v720, %v735
          %v759 = vmul.f32 %v721, %v735
          %v760 = vmul.f32 %v722, %v735
          %v761 = vmul.f32 %v723, %v735
          %v762 = vmul.f32 %v724, %v735
          %v763 = vmul.f32 %v725, %v735
          %v764 = vmul.f32 %v726, %v735
          %v765 = vmul.f32 %v727, %v735
          %v766 = vmul.f32 %v728, %v735
          %v767 = vmul.f32 %v729, %v735
          %v768 = vmul.f32 %v730, %v735
          %v770 = vlaneseq
          %v771 = vshrl.u32 %v770, 7
          %v772 = vsub.s32 0, %v771
          %v773 = vrot.slane %v333, %v772
          %v775 = vadd.f32 %v737, %v773
          %v776 = vadd.f32 %v738, %v773
          %v777 = vadd.f32 %v739, %v773
          %v778 = vadd.f32 %v740, %v773
          %v779 = vadd.f32 %v741, %v773
          %v780 = vadd.f32 %v742, %v773
          %v781 = vadd.f32 %v743, %v773
          %v782 = vadd.f32 %v744, %v773
          %v783 = vadd.f32 %v745, %v773
          %v784 = vadd.f32 %v746, %v773
          %v785 = vadd.f32 %v747, %v773
          %v786 = vadd.f32 %v748, %v773
          %v787 = vadd.f32 %v749, %v773
          %v788 = vadd.f32 %v750, %v773
          %v789 = vadd.f32 %v751, %v773
          %v790 = vadd.f32 %v752, %v773
          %v791 = vadd.f32 %v753, %v773
          %v792 = vadd.f32 %v754, %v773
          %v793 = vadd.f32 %v755, %v773
          %v794 = vadd.f32 %v756, %v773
          %v795 = vadd.f32 %v757, %v773
          %v796 = vadd.f32 %v758, %v773
          %v797 = vadd.f32 %v759, %v773
          %v798 = vadd.f32 %v760, %v773
          %v799 = vadd.f32 %v761, %v773
          %v800 = vadd.f32 %v762, %v773
          %v801 = vadd.f32 %v763, %v773
          %v802 = vadd.f32 %v764, %v773
          %v803 = vadd.f32 %v765, %v773
          %v804 = vadd.f32 %v766, %v773
          %v805 = vadd.f32 %v767, %v773
          %v806 = vadd.f32 %v768, %v773
          %v807 = vxor.u32 %v775, 2147483648
          %v808 = vxor.u32 %v776, 2147483648
          %v809 = vxor.u32 %v777, 2147483648
          %v810 = vxor.u32 %v778, 2147483648
          %v811 = vxor.u32 %v779, 2147483648
          %v812 = vxor.u32 %v780, 2147483648
          %v813 = vxor.u32 %v781, 2147483648
          %v814 = vxor.u32 %v782, 2147483648
          %v815 = vxor.u32 %v783, 2147483648
          %v816 = vxor.u32 %v784, 2147483648
          %v817 = vxor.u32 %v785, 2147483648
          %v818 = vxor.u32 %v786, 2147483648
          %v819 = vxor.u32 %v787, 2147483648
          %v820 = vxor.u32 %v788, 2147483648
          %v821 = vxor.u32 %v789, 2147483648
          %v822 = vxor.u32 %v790, 2147483648
          %v823 = vxor.u32 %v791, 2147483648
          %v824 = vxor.u32 %v792, 2147483648
          %v825 = vxor.u32 %v793, 2147483648
          %v826 = vxor.u32 %v794, 2147483648
          %v827 = vxor.u32 %v795, 2147483648
          %v828 = vxor.u32 %v796, 2147483648
          %v829 = vxor.u32 %v797, 2147483648
          %v830 = vxor.u32 %v798, 2147483648
          %v831 = vxor.u32 %v799, 2147483648
          %v832 = vxor.u32 %v800, 2147483648
          %v833 = vxor.u32 %v801, 2147483648
          %v834 = vxor.u32 %v802, 2147483648
          %v835 = vxor.u32 %v803, 2147483648
          %v836 = vxor.u32 %v804, 2147483648
          %v837 = vxor.u32 %v805, 2147483648
          %v838 = vxor.u32 %v806, 2147483648
          %v839 = vmul.f32 %v807, 1.442695
          %v840 = vpow.pop %v839
          %v841 = vmul.f32 %v808, 1.442695
          %v842 = vpow.pop %v841
          %v843 = vmul.f32 %v809, 1.442695
          %v844 = vpow.pop %v843
          %v845 = vmul.f32 %v810, 1.442695
          %v846 = vpow.pop %v845
          %v847 = vmul.f32 %v811, 1.442695
          %v848 = vpow.pop %v847
          %v849 = vmul.f32 %v812, 1.442695
          %v850 = vpow.pop %v849
          %v851 = vmul.f32 %v813, 1.442695
          %v852 = vpow.pop %v851
          %v853 = vmul.f32 %v814, 1.442695
          %v854 = vpow.pop %v853
          %v855 = vmul.f32 %v815, 1.442695
          %v856 = vpow.pop %v855
          %v857 = vmul.f32 %v816, 1.442695
          %v858 = vpow.pop %v857
          %v859 = vmul.f32 %v817, 1.442695
          %v860 = vpow.pop %v859
          %v861 = vmul.f32 %v818, 1.442695
          %v862 = vpow.pop %v861
          %v863 = vmul.f32 %v819, 1.442695
          %v864 = vpow.pop %v863
          %v865 = vmul.f32 %v820, 1.442695
          %v866 = vpow.pop %v865
          %v867 = vmul.f32 %v821, 1.442695
          %v868 = vpow.pop %v867
          %v869 = vmul.f32 %v822, 1.442695
          %v870 = vpow.pop %v869
          %v871 = vmul.f32 %v823, 1.442695
          %v872 = vpow.pop %v871
          %v873 = vmul.f32 %v824, 1.442695
          %v874 = vpow.pop %v873
          %v875 = vmul.f32 %v825, 1.442695
          %v876 = vpow.pop %v875
          %v877 = vmul.f32 %v826, 1.442695
          %v878 = vpow.pop %v877
          %v879 = vmul.f32 %v827, 1.442695
          %v880 = vpow.pop %v879
          %v881 = vmul.f32 %v828, 1.442695
          %v882 = vpow.pop %v881
          %v883 = vmul.f32 %v829, 1.442695
          %v884 = vpow.pop %v883
          %v885 = vmul.f32 %v830, 1.442695
          %v886 = vpow.pop %v885
          %v887 = vmul.f32 %v831, 1.442695
          %v888 = vpow.pop %v887
          %v889 = vmul.f32 %v832, 1.442695
          %v890 = vpow.pop %v889
          %v891 = vmul.f32 %v833, 1.442695
          %v892 = vpow.pop %v891
          %v893 = vmul.f32 %v834, 1.442695
          %v894 = vpow.pop %v893
          %v895 = vmul.f32 %v835, 1.442695
          %v896 = vpow.pop %v895
          %v897 = vmul.f32 %v836, 1.442695
          %v898 = vpow.pop %v897
          %v899 = vmul.f32 %v837, 1.442695
          %v900 = vpow.pop %v899
          %v901 = vmul.f32 %v838, 1.442695
          %v902 = vpow.pop %v901
          %v903 = vadd.f32 %v840, 1.0
          %v904 = vadd.f32 %v842, 1.0
          %v905 = vadd.f32 %v844, 1.0
          %v906 = vadd.f32 %v846, 1.0
          %v907 = vadd.f32 %v848, 1.0
          %v908 = vadd.f32 %v850, 1.0
          %v909 = vadd.f32 %v852, 1.0
          %v910 = vadd.f32 %v854, 1.0
          %v911 = vadd.f32 %v856, 1.0
          %v912 = vadd.f32 %v858, 1.0
          %v913 = vadd.f32 %v860, 1.0
          %v914 = vadd.f32 %v862, 1.0
          %v915 = vadd.f32 %v864, 1.0
          %v916 = vadd.f32 %v866, 1.0
          %v917 = vadd.f32 %v868, 1.0
          %v918 = vadd.f32 %v870, 1.0
          %v919 = vadd.f32 %v872, 1.0
          %v920 = vadd.f32 %v874, 1.0
          %v921 = vadd.f32 %v876, 1.0
          %v922 = vadd.f32 %v878, 1.0
          %v923 = vadd.f32 %v880, 1.0
          %v924 = vadd.f32 %v882, 1.0
          %v925 = vadd.f32 %v884, 1.0
          %v926 = vadd.f32 %v886, 1.0
          %v927 = vadd.f32 %v888, 1.0
          %v928 = vadd.f32 %v890, 1.0
          %v929 = vadd.f32 %v892, 1.0
          %v930 = vadd.f32 %v894, 1.0
          %v931 = vadd.f32 %v896, 1.0
          %v932 = vadd.f32 %v898, 1.0
          %v933 = vadd.f32 %v900, 1.0
          %v934 = vadd.f32 %v902, 1.0
          %v935 = vrcp.pop %v903
          %v936 = vmul.f32 1.0, %v935
          %v937 = vrcp.pop %v904
          %v938 = vmul.f32 1.0, %v937
          %v939 = vrcp.pop %v905
          %v940 = vmul.f32 1.0, %v939
          %v941 = vrcp.pop %v906
          %v942 = vmul.f32 1.0, %v941
          %v943 = vrcp.pop %v907
          %v944 = vmul.f32 1.0, %v943
          %v945 = vrcp.pop %v908
          %v946 = vmul.f32 1.0, %v945
          %v947 = vrcp.pop %v909
          %v948 = vmul.f32 1.0, %v947
          %v949 = vrcp.pop %v910
          %v950 = vmul.f32 1.0, %v949
          %v951 = vrcp.pop %v911
          %v952 = vmul.f32 1.0, %v951
          %v953 = vrcp.pop %v912
          %v954 = vmul.f32 1.0, %v953
          %v955 = vrcp.pop %v913
          %v956 = vmul.f32 1.0, %v955
          %v957 = vrcp.pop %v914
          %v958 = vmul.f32 1.0, %v957
          %v959 = vrcp.pop %v915
          %v960 = vmul.f32 1.0, %v959
          %v961 = vrcp.pop %v916
          %v962 = vmul.f32 1.0, %v961
          %v963 = vrcp.pop %v917
          %v964 = vmul.f32 1.0, %v963
          %v965 = vrcp.pop %v918
          %v966 = vmul.f32 1.0, %v965
          %v967 = vrcp.pop %v919
          %v968 = vmul.f32 1.0, %v967
          %v969 = vrcp.pop %v920
          %v970 = vmul.f32 1.0, %v969
          %v971 = vrcp.pop %v921
          %v972 = vmul.f32 1.0, %v971
          %v973 = vrcp.pop %v922
          %v974 = vmul.f32 1.0, %v973
          %v975 = vrcp.pop %v923
          %v976 = vmul.f32 1.0, %v975
          %v977 = vrcp.pop %v924
          %v978 = vmul.f32 1.0, %v977
          %v979 = vrcp.pop %v925
          %v980 = vmul.f32 1.0, %v979
          %v981 = vrcp.pop %v926
          %v982 = vmul.f32 1.0, %v981
          %v983 = vrcp.pop %v927
          %v984 = vmul.f32 1.0, %v983
          %v985 = vrcp.pop %v928
          %v986 = vmul.f32 1.0, %v985
          %v987 = vrcp.pop %v929
          %v988 = vmul.f32 1.0, %v987
          %v989 = vrcp.pop %v930
          %v990 = vmul.f32 1.0, %v989
          %v991 = vrcp.pop %v931
          %v992 = vmul.f32 1.0, %v991
          %v993 = vrcp.pop %v932
          %v994 = vmul.f32 1.0, %v993
          %v995 = vrcp.pop %v933
          %v996 = vmul.f32 1.0, %v995
          %v997 = vrcp.pop %v934
          %v998 = vmul.f32 1.0, %v997
          %v999 = vmul.f32 %v775, %v936
          %v1000 = vmul.f32 %v776, %v938
          %v1001 = vmul.f32 %v777, %v940
          %v1002 = vmul.f32 %v778, %v942
          %v1003 = vmul.f32 %v779, %v944
          %v1004 = vmul.f32 %v780, %v946
          %v1005 = vmul.f32 %v781, %v948
          %v1006 = vmul.f32 %v782, %v950
          %v1007 = vmul.f32 %v783, %v952
          %v1008 = vmul.f32 %v784, %v954
          %v1009 = vmul.f32 %v785, %v956
          %v1010 = vmul.f32 %v786, %v958
          %v1011 = vmul.f32 %v787, %v960
          %v1012 = vmul.f32 %v788, %v962
          %v1013 = vmul.f32 %v789, %v964
          %v1014 = vmul.f32 %v790, %v966
          %v1015 = vmul.f32 %v791, %v968
          %v1016 = vmul.f32 %v792, %v970
          %v1017 = vmul.f32 %v793, %v972
          %v1018 = vmul.f32 %v794, %v974
          %v1019 = vmul.f32 %v795, %v976
          %v1020 = vmul.f32 %v796, %v978
          %v1021 = vmul.f32 %v797, %v980
          %v1022 = vmul.f32 %v798, %v982
          %v1023 = vmul.f32 %v799, %v984
          %v1024 = vmul.f32 %v800, %v986
          %v1025 = vmul.f32 %v801, %v988
          %v1026 = vmul.f32 %v802, %v990
          %v1027 = vmul.f32 %v803, %v992
          %v1028 = vmul.f32 %v804, %v994
          %v1029 = vmul.f32 %v805, %v996
          %v1030 = vmul.f32 %v806, %v998
          %v1031 = vpack.c.bf16 %v1000, %v999
          %v1032 = vpack.c.bf16 %v1002, %v1001
          %v1033 = vpack.c.bf16 %v1004, %v1003
          %v1034 = vpack.c.bf16 %v1006, %v1005
          %v1035 = vpack.c.bf16 %v1008, %v1007
          %v1036 = vpack.c.bf16 %v1010, %v1009
          %v1037 = vpack.c.bf16 %v1012, %v1011
          %v1038 = vpack.c.bf16 %v1014, %v1013
          %v1039 = vpack.c.bf16 %v1016, %v1015
          %v1040 = vpack.c.bf16 %v1018, %v1017
          %v1041 = vpack.c.bf16 %v1020, %v1019
          %v1042 = vpack.c.bf16 %v1022, %v1021
          %v1043 = vpack.c.bf16 %v1024, %v1023
          %v1044 = vpack.c.bf16 %v1026, %v1025
          %v1045 = vpack.c.bf16 %v1028, %v1027
          %v1046 = vpack.c.bf16 %v1030, %v1029
          %v1048 = vshrl.u32 %v1031, 16
          %v1050 = vrot.slane %v1048, 7
          %v1051 = vshll.u32 %v1031, 16
          %v1053 = vor.u32 %v1050, %v1051
          %v1055 = vshrl.u32 %v1032, 16
          %v1057 = vrot.slane %v1055, 7
          %v1058 = vshll.u32 %v1032, 16
          %v1060 = vor.u32 %v1057, %v1058
          %v1062 = vshrl.u32 %v1033, 16
          %v1064 = vrot.slane %v1062, 7
          %v1065 = vshll.u32 %v1033, 16
          %v1067 = vor.u32 %v1064, %v1065
          %v1069 = vshrl.u32 %v1034, 16
          %v1071 = vrot.slane %v1069, 7
          %v1072 = vshll.u32 %v1034, 16
          %v1074 = vor.u32 %v1071, %v1072
          %v1076 = vshrl.u32 %v1035, 16
          %v1078 = vrot.slane %v1076, 7
          %v1079 = vshll.u32 %v1035, 16
          %v1081 = vor.u32 %v1078, %v1079
          %v1083 = vshrl.u32 %v1036, 16
          %v1085 = vrot.slane %v1083, 7
          %v1086 = vshll.u32 %v1036, 16
          %v1088 = vor.u32 %v1085, %v1086
          %v1090 = vshrl.u32 %v1037, 16
          %v1092 = vrot.slane %v1090, 7
          %v1093 = vshll.u32 %v1037, 16
          %v1095 = vor.u32 %v1092, %v1093
          %v1097 = vshrl.u32 %v1038, 16
          %v1099 = vrot.slane %v1097, 7
          %v1100 = vshll.u32 %v1038, 16
          %v1102 = vor.u32 %v1099, %v1100
          %v1104 = vshrl.u32 %v1039, 16
          %v1106 = vrot.slane %v1104, 7
          %v1107 = vshll.u32 %v1039, 16
          %v1109 = vor.u32 %v1106, %v1107
          %v1111 = vshrl.u32 %v1040, 16
          %v1113 = vrot.slane %v1111, 7
          %v1114 = vshll.u32 %v1040, 16
          %v1116 = vor.u32 %v1113, %v1114
          %v1118 = vshrl.u32 %v1041, 16
          %v1120 = vrot.slane %v1118, 7
          %v1121 = vshll.u32 %v1041, 16
          %v1123 = vor.u32 %v1120, %v1121
          %v1125 = vshrl.u32 %v1042, 16
          %v1127 = vrot.slane %v1125, 7
          %v1128 = vshll.u32 %v1042, 16
          %v1130 = vor.u32 %v1127, %v1128
          %v1132 = vshrl.u32 %v1043, 16
          %v1134 = vrot.slane %v1132, 7
          %v1135 = vshll.u32 %v1043, 16
          %v1137 = vor.u32 %v1134, %v1135
          %v1139 = vshrl.u32 %v1044, 16
          %v1141 = vrot.slane %v1139, 7
          %v1142 = vshll.u32 %v1044, 16
          %v1144 = vor.u32 %v1141, %v1142
          %v1146 = vshrl.u32 %v1045, 16
          %v1148 = vrot.slane %v1146, 7
          %v1149 = vshll.u32 %v1045, 16
          %v1151 = vor.u32 %v1148, %v1149
          %v1153 = vshrl.u32 %v1046, 16
          %v1155 = vrot.slane %v1153, 7
          %v1156 = vshll.u32 %v1046, 16
          %v1158 = vor.u32 %v1155, %v1156
          %vm1191 = vcmask 1040384
          %vm1192 = vsmask.f32 256
          %vm1193 = vmand %vm1191, %vm1192
          %v1194 = vsel %vm1193, 0, %v1053
          %v1195 = vsel %vm1193, 0, %v1060
          %v1196 = vsel %vm1193, 0, %v1067
          %v1197 = vsel %vm1193, 0, %v1074
          %v1198 = vsel %vm1193, 0, %v1081
          %v1199 = vsel %vm1193, 0, %v1088
          %v1200 = vsel %vm1193, 0, %v1095
          %v1201 = vsel %vm1193, 0, %v1102
          %v1202 = vsel %vm1193, 0, %v1109
          %v1203 = vsel %vm1193, 0, %v1116
          %v1204 = vsel %vm1193, 0, %v1123
          %v1205 = vsel %vm1193, 0, %v1130
          %v1206 = vsel %vm1193, 0, %v1137
          %v1207 = vsel %vm1193, 0, %v1144
          %v1208 = vsel %vm1193, 0, %v1151
          %v1209 = vsel %vm1193, 0, %v1158
          %v1210 = vsel %vm1193, %v1050, 0
          %v1211 = vsel %vm1193, %v1057, 0
          %v1212 = vsel %vm1193, %v1064, 0
          %v1213 = vsel %vm1193, %v1071, 0
          %v1214 = vsel %vm1193, %v1078, 0
          %v1215 = vsel %vm1193, %v1085, 0
          %v1216 = vsel %vm1193, %v1092, 0
          %v1217 = vsel %vm1193, %v1099, 0
          %v1218 = vsel %vm1193, %v1106, 0
          %v1219 = vsel %vm1193, %v1113, 0
          %v1220 = vsel %vm1193, %v1120, 0
          %v1221 = vsel %vm1193, %v1127, 0
          %v1222 = vsel %vm1193, %v1134, 0
          %v1223 = vsel %vm1193, %v1141, 0
          %v1224 = vsel %vm1193, %v1148, 0
          %v1225 = vsel %vm1193, %v1155, 0
          %v1258 = vcombine.high %v1194, %v1194
          %v1260 = vunpack.c.l.s4 1966171168
          %v1261 = vunpack.c.0.s8 %v1260
          %v1262 = vlaneseq
          %v1263 = vshrl.u32 %v1262, 7
          %v1264 = vsub.s32 %v1261, %v1263
          %v1265 = vrot.slane %v1194, %v1264
          %v1267 = vunpack.c.l.s4 1966171168
          %v1268 = vunpack.c.0.s8 %v1267
          %v1269 = vlaneseq
          %v1270 = vshrl.u32 %v1269, 7
          %v1271 = vsub.s32 %v1268, %v1270
          %v1272 = vrot.slane %v1258, %v1271
          %v1273 = vcombine.high %v1265, %v1265
          %v1274 = vcombine.high %v1272, %v1272
          %v1276 = vunpack.c.l.s4 1966171168
          %v1277 = vunpack.c.0.s8 %v1276
          %v1278 = vlaneseq
          %v1279 = vshrl.u32 %v1278, 7
          %v1280 = vsub.s32 %v1277, %v1279
          %v1281 = vrot.slane %v1265, %v1280
          %v1283 = vunpack.c.l.s4 1966171168
          %v1284 = vunpack.c.0.s8 %v1283
          %v1285 = vlaneseq
          %v1286 = vshrl.u32 %v1285, 7
          %v1287 = vsub.s32 %v1284, %v1286
          %v1288 = vrot.slane %v1272, %v1287
          %v1290 = vunpack.c.l.s4 1966171168
          %v1291 = vunpack.c.0.s8 %v1290
          %v1292 = vlaneseq
          %v1293 = vshrl.u32 %v1292, 7
          %v1294 = vsub.s32 %v1291, %v1293
          %v1295 = vrot.slane %v1273, %v1294
          %v1297 = vunpack.c.l.s4 1966171168
          %v1298 = vunpack.c.0.s8 %v1297
          %v1299 = vlaneseq
          %v1300 = vshrl.u32 %v1299, 7
          %v1301 = vsub.s32 %v1298, %v1300
          %v1302 = vrot.slane %v1274, %v1301
          %v1303 = vcombine.high %v1281, %v1281
          %v1304 = vcombine.high %v1288, %v1288
          %v1305 = vcombine.high %v1295, %v1295
          %v1306 = vcombine.high %v1302, %v1302
          %v1308 = vunpack.c.l.s4 1966171168
          %v1309 = vunpack.c.0.s8 %v1308
          %v1310 = vlaneseq
          %v1311 = vshrl.u32 %v1310, 7
          %v1312 = vsub.s32 %v1309, %v1311
          %v1313 = vrot.slane %v1210, %v1312
          %v1315 = vunpack.c.l.s4 1966171168
          %v1316 = vunpack.c.0.s8 %v1315
          %v1317 = vlaneseq
          %v1318 = vshrl.u32 %v1317, 7
          %v1319 = vsub.s32 %v1316, %v1318
          %v1320 = vrot.slane %v1313, %v1319
          %v1321 = vcombine.high %v1195, %v1195
          %v1323 = vunpack.c.l.s4 1966171168
          %v1324 = vunpack.c.0.s8 %v1323
          %v1325 = vlaneseq
          %v1326 = vshrl.u32 %v1325, 7
          %v1327 = vsub.s32 %v1324, %v1326
          %v1328 = vrot.slane %v1195, %v1327
          %v1330 = vunpack.c.l.s4 1966171168
          %v1331 = vunpack.c.0.s8 %v1330
          %v1332 = vlaneseq
          %v1333 = vshrl.u32 %v1332, 7
          %v1334 = vsub.s32 %v1331, %v1333
          %v1335 = vrot.slane %v1321, %v1334
          %v1336 = vcombine.high %v1328, %v1328
          %v1337 = vcombine.high %v1335, %v1335
          %v1339 = vunpack.c.l.s4 1966171168
          %v1340 = vunpack.c.0.s8 %v1339
          %v1341 = vlaneseq
          %v1342 = vshrl.u32 %v1341, 7
          %v1343 = vsub.s32 %v1340, %v1342
          %v1344 = vrot.slane %v1328, %v1343
          %v1346 = vunpack.c.l.s4 1966171168
          %v1347 = vunpack.c.0.s8 %v1346
          %v1348 = vlaneseq
          %v1349 = vshrl.u32 %v1348, 7
          %v1350 = vsub.s32 %v1347, %v1349
          %v1351 = vrot.slane %v1335, %v1350
          %v1353 = vunpack.c.l.s4 1966171168
          %v1354 = vunpack.c.0.s8 %v1353
          %v1355 = vlaneseq
          %v1356 = vshrl.u32 %v1355, 7
          %v1357 = vsub.s32 %v1354, %v1356
          %v1358 = vrot.slane %v1336, %v1357
          %v1360 = vunpack.c.l.s4 1966171168
          %v1361 = vunpack.c.0.s8 %v1360
          %v1362 = vlaneseq
          %v1363 = vshrl.u32 %v1362, 7
          %v1364 = vsub.s32 %v1361, %v1363
          %v1365 = vrot.slane %v1337, %v1364
          %v1366 = vcombine.high %v1344, %v1344
          %v1367 = vcombine.high %v1351, %v1351
          %v1368 = vcombine.high %v1358, %v1358
          %v1369 = vcombine.high %v1365, %v1365
          %v1371 = vunpack.c.l.s4 1966171168
          %v1372 = vunpack.c.0.s8 %v1371
          %v1373 = vlaneseq
          %v1374 = vshrl.u32 %v1373, 7
          %v1375 = vsub.s32 %v1372, %v1374
          %v1376 = vrot.slane %v1211, %v1375
          %v1378 = vunpack.c.l.s4 1966171168
          %v1379 = vunpack.c.0.s8 %v1378
          %v1380 = vlaneseq
          %v1381 = vshrl.u32 %v1380, 7
          %v1382 = vsub.s32 %v1379, %v1381
          %v1383 = vrot.slane %v1376, %v1382
          %v1384 = vcombine.high %v1196, %v1196
          %v1386 = vunpack.c.l.s4 1966171168
          %v1387 = vunpack.c.0.s8 %v1386
          %v1388 = vlaneseq
          %v1389 = vshrl.u32 %v1388, 7
          %v1390 = vsub.s32 %v1387, %v1389
          %v1391 = vrot.slane %v1196, %v1390
          %v1393 = vunpack.c.l.s4 1966171168
          %v1394 = vunpack.c.0.s8 %v1393
          %v1395 = vlaneseq
          %v1396 = vshrl.u32 %v1395, 7
          %v1397 = vsub.s32 %v1394, %v1396
          %v1398 = vrot.slane %v1384, %v1397
          %v1399 = vcombine.high %v1391, %v1391
          %v1400 = vcombine.high %v1398, %v1398
          %v1402 = vunpack.c.l.s4 1966171168
          %v1403 = vunpack.c.0.s8 %v1402
          %v1404 = vlaneseq
          %v1405 = vshrl.u32 %v1404, 7
          %v1406 = vsub.s32 %v1403, %v1405
          %v1407 = vrot.slane %v1391, %v1406
          %v1409 = vunpack.c.l.s4 1966171168
          %v1410 = vunpack.c.0.s8 %v1409
          %v1411 = vlaneseq
          %v1412 = vshrl.u32 %v1411, 7
          %v1413 = vsub.s32 %v1410, %v1412
          %v1414 = vrot.slane %v1398, %v1413
          %v1416 = vunpack.c.l.s4 1966171168
          %v1417 = vunpack.c.0.s8 %v1416
          %v1418 = vlaneseq
          %v1419 = vshrl.u32 %v1418, 7
          %v1420 = vsub.s32 %v1417, %v1419
          %v1421 = vrot.slane %v1399, %v1420
          %v1423 = vunpack.c.l.s4 1966171168
          %v1424 = vunpack.c.0.s8 %v1423
          %v1425 = vlaneseq
          %v1426 = vshrl.u32 %v1425, 7
          %v1427 = vsub.s32 %v1424, %v1426
          %v1428 = vrot.slane %v1400, %v1427
          %v1429 = vcombine.high %v1407, %v1407
          %v1430 = vcombine.high %v1414, %v1414
          %v1431 = vcombine.high %v1421, %v1421
          %v1432 = vcombine.high %v1428, %v1428
          %v1434 = vunpack.c.l.s4 1966171168
          %v1435 = vunpack.c.0.s8 %v1434
          %v1436 = vlaneseq
          %v1437 = vshrl.u32 %v1436, 7
          %v1438 = vsub.s32 %v1435, %v1437
          %v1439 = vrot.slane %v1212, %v1438
          %v1441 = vunpack.c.l.s4 1966171168
          %v1442 = vunpack.c.0.s8 %v1441
          %v1443 = vlaneseq
          %v1444 = vshrl.u32 %v1443, 7
          %v1445 = vsub.s32 %v1442, %v1444
          %v1446 = vrot.slane %v1439, %v1445
          %v1447 = vcombine.high %v1197, %v1197
          %v1449 = vunpack.c.l.s4 1966171168
          %v1450 = vunpack.c.0.s8 %v1449
          %v1451 = vlaneseq
          %v1452 = vshrl.u32 %v1451, 7
          %v1453 = vsub.s32 %v1450, %v1452
          %v1454 = vrot.slane %v1197, %v1453
          %v1456 = vunpack.c.l.s4 1966171168
          %v1457 = vunpack.c.0.s8 %v1456
          %v1458 = vlaneseq
          %v1459 = vshrl.u32 %v1458, 7
          %v1460 = vsub.s32 %v1457, %v1459
          %v1461 = vrot.slane %v1447, %v1460
          %v1462 = vcombine.high %v1454, %v1454
          %v1463 = vcombine.high %v1461, %v1461
          %v1465 = vunpack.c.l.s4 1966171168
          %v1466 = vunpack.c.0.s8 %v1465
          %v1467 = vlaneseq
          %v1468 = vshrl.u32 %v1467, 7
          %v1469 = vsub.s32 %v1466, %v1468
          %v1470 = vrot.slane %v1454, %v1469
          %v1472 = vunpack.c.l.s4 1966171168
          %v1473 = vunpack.c.0.s8 %v1472
          %v1474 = vlaneseq
          %v1475 = vshrl.u32 %v1474, 7
          %v1476 = vsub.s32 %v1473, %v1475
          %v1477 = vrot.slane %v1461, %v1476
          %v1479 = vunpack.c.l.s4 1966171168
          %v1480 = vunpack.c.0.s8 %v1479
          %v1481 = vlaneseq
          %v1482 = vshrl.u32 %v1481, 7
          %v1483 = vsub.s32 %v1480, %v1482
          %v1484 = vrot.slane %v1462, %v1483
          %v1486 = vunpack.c.l.s4 1966171168
          %v1487 = vunpack.c.0.s8 %v1486
          %v1488 = vlaneseq
          %v1489 = vshrl.u32 %v1488, 7
          %v1490 = vsub.s32 %v1487, %v1489
          %v1491 = vrot.slane %v1463, %v1490
          %v1492 = vcombine.high %v1470, %v1470
          %v1493 = vcombine.high %v1477, %v1477
          %v1494 = vcombine.high %v1484, %v1484
          %v1495 = vcombine.high %v1491, %v1491
          %v1497 = vunpack.c.l.s4 1966171168
          %v1498 = vunpack.c.0.s8 %v1497
          %v1499 = vlaneseq
          %v1500 = vshrl.u32 %v1499, 7
          %v1501 = vsub.s32 %v1498, %v1500
          %v1502 = vrot.slane %v1213, %v1501
          %v1504 = vunpack.c.l.s4 1966171168
          %v1505 = vunpack.c.0.s8 %v1504
          %v1506 = vlaneseq
          %v1507 = vshrl.u32 %v1506, 7
          %v1508 = vsub.s32 %v1505, %v1507
          %v1509 = vrot.slane %v1502, %v1508
          %v1510 = vcombine.high %v1198, %v1198
          %v1512 = vunpack.c.l.s4 1966171168
          %v1513 = vunpack.c.0.s8 %v1512
          %v1514 = vlaneseq
          %v1515 = vshrl.u32 %v1514, 7
          %v1516 = vsub.s32 %v1513, %v1515
          %v1517 = vrot.slane %v1198, %v1516
          %v1519 = vunpack.c.l.s4 1966171168
          %v1520 = vunpack.c.0.s8 %v1519
          %v1521 = vlaneseq
          %v1522 = vshrl.u32 %v1521, 7
          %v1523 = vsub.s32 %v1520, %v1522
          %v1524 = vrot.slane %v1510, %v1523
          %v1525 = vcombine.high %v1517, %v1517
          %v1526 = vcombine.high %v1524, %v1524
          %v1528 = vunpack.c.l.s4 1966171168
          %v1529 = vunpack.c.0.s8 %v1528
          %v1530 = vlaneseq
          %v1531 = vshrl.u32 %v1530, 7
          %v1532 = vsub.s32 %v1529, %v1531
          %v1533 = vrot.slane %v1517, %v1532
          %v1535 = vunpack.c.l.s4 1966171168
          %v1536 = vunpack.c.0.s8 %v1535
          %v1537 = vlaneseq
          %v1538 = vshrl.u32 %v1537, 7
          %v1539 = vsub.s32 %v1536, %v1538
          %v1540 = vrot.slane %v1524, %v1539
          %v1542 = vunpack.c.l.s4 1966171168
          %v1543 = vunpack.c.0.s8 %v1542
          %v1544 = vlaneseq
          %v1545 = vshrl.u32 %v1544, 7
          %v1546 = vsub.s32 %v1543, %v1545
          %v1547 = vrot.slane %v1525, %v1546
          %v1549 = vunpack.c.l.s4 1966171168
          %v1550 = vunpack.c.0.s8 %v1549
          %v1551 = vlaneseq
          %v1552 = vshrl.u32 %v1551, 7
          %v1553 = vsub.s32 %v1550, %v1552
          %v1554 = vrot.slane %v1526, %v1553
          %v1555 = vcombine.high %v1533, %v1533
          %v1556 = vcombine.high %v1540, %v1540
          %v1557 = vcombine.high %v1547, %v1547
          %v1558 = vcombine.high %v1554, %v1554
          %v1560 = vunpack.c.l.s4 1966171168
          %v1561 = vunpack.c.0.s8 %v1560
          %v1562 = vlaneseq
          %v1563 = vshrl.u32 %v1562, 7
          %v1564 = vsub.s32 %v1561, %v1563
          %v1565 = vrot.slane %v1214, %v1564
          %v1567 = vunpack.c.l.s4 1966171168
          %v1568 = vunpack.c.0.s8 %v1567
          %v1569 = vlaneseq
          %v1570 = vshrl.u32 %v1569, 7
          %v1571 = vsub.s32 %v1568, %v1570
          %v1572 = vrot.slane %v1565, %v1571
          %v1573 = vcombine.high %v1199, %v1199
          %v1575 = vunpack.c.l.s4 1966171168
          %v1576 = vunpack.c.0.s8 %v1575
          %v1577 = vlaneseq
          %v1578 = vshrl.u32 %v1577, 7
          %v1579 = vsub.s32 %v1576, %v1578
          %v1580 = vrot.slane %v1199, %v1579
          %v1582 = vunpack.c.l.s4 1966171168
          %v1583 = vunpack.c.0.s8 %v1582
          %v1584 = vlaneseq
          %v1585 = vshrl.u32 %v1584, 7
          %v1586 = vsub.s32 %v1583, %v1585
          %v1587 = vrot.slane %v1573, %v1586
          %v1588 = vcombine.high %v1580, %v1580
          %v1589 = vcombine.high %v1587, %v1587
          %v1591 = vunpack.c.l.s4 1966171168
          %v1592 = vunpack.c.0.s8 %v1591
          %v1593 = vlaneseq
          %v1594 = vshrl.u32 %v1593, 7
          %v1595 = vsub.s32 %v1592, %v1594
          %v1596 = vrot.slane %v1580, %v1595
          %v1598 = vunpack.c.l.s4 1966171168
          %v1599 = vunpack.c.0.s8 %v1598
          %v1600 = vlaneseq
          %v1601 = vshrl.u32 %v1600, 7
          %v1602 = vsub.s32 %v1599, %v1601
          %v1603 = vrot.slane %v1587, %v1602
          %v1605 = vunpack.c.l.s4 1966171168
          %v1606 = vunpack.c.0.s8 %v1605
          %v1607 = vlaneseq
          %v1608 = vshrl.u32 %v1607, 7
          %v1609 = vsub.s32 %v1606, %v1608
          %v1610 = vrot.slane %v1588, %v1609
          %v1612 = vunpack.c.l.s4 1966171168
          %v1613 = vunpack.c.0.s8 %v1612
          %v1614 = vlaneseq
          %v1615 = vshrl.u32 %v1614, 7
          %v1616 = vsub.s32 %v1613, %v1615
          %v1617 = vrot.slane %v1589, %v1616
          %v1618 = vcombine.high %v1596, %v1596
          %v1619 = vcombine.high %v1603, %v1603
          %v1620 = vcombine.high %v1610, %v1610
          %v1621 = vcombine.high %v1617, %v1617
          %v1623 = vunpack.c.l.s4 1966171168
          %v1624 = vunpack.c.0.s8 %v1623
          %v1625 = vlaneseq
          %v1626 = vshrl.u32 %v1625, 7
          %v1627 = vsub.s32 %v1624, %v1626
          %v1628 = vrot.slane %v1215, %v1627
          %v1630 = vunpack.c.l.s4 1966171168
          %v1631 = vunpack.c.0.s8 %v1630
          %v1632 = vlaneseq
          %v1633 = vshrl.u32 %v1632, 7
          %v1634 = vsub.s32 %v1631, %v1633
          %v1635 = vrot.slane %v1628, %v1634
          %v1636 = vcombine.high %v1200, %v1200
          %v1638 = vunpack.c.l.s4 1966171168
          %v1639 = vunpack.c.0.s8 %v1638
          %v1640 = vlaneseq
          %v1641 = vshrl.u32 %v1640, 7
          %v1642 = vsub.s32 %v1639, %v1641
          %v1643 = vrot.slane %v1200, %v1642
          %v1645 = vunpack.c.l.s4 1966171168
          %v1646 = vunpack.c.0.s8 %v1645
          %v1647 = vlaneseq
          %v1648 = vshrl.u32 %v1647, 7
          %v1649 = vsub.s32 %v1646, %v1648
          %v1650 = vrot.slane %v1636, %v1649
          %v1651 = vcombine.high %v1643, %v1643
          %v1652 = vcombine.high %v1650, %v1650
          %v1654 = vunpack.c.l.s4 1966171168
          %v1655 = vunpack.c.0.s8 %v1654
          %v1656 = vlaneseq
          %v1657 = vshrl.u32 %v1656, 7
          %v1658 = vsub.s32 %v1655, %v1657
          %v1659 = vrot.slane %v1643, %v1658
          %v1661 = vunpack.c.l.s4 1966171168
          %v1662 = vunpack.c.0.s8 %v1661
          %v1663 = vlaneseq
          %v1664 = vshrl.u32 %v1663, 7
          %v1665 = vsub.s32 %v1662, %v1664
          %v1666 = vrot.slane %v1650, %v1665
          %v1668 = vunpack.c.l.s4 1966171168
          %v1669 = vunpack.c.0.s8 %v1668
          %v1670 = vlaneseq
          %v1671 = vshrl.u32 %v1670, 7
          %v1672 = vsub.s32 %v1669, %v1671
          %v1673 = vrot.slane %v1651, %v1672
          %v1675 = vunpack.c.l.s4 1966171168
          %v1676 = vunpack.c.0.s8 %v1675
          %v1677 = vlaneseq
          %v1678 = vshrl.u32 %v1677, 7
          %v1679 = vsub.s32 %v1676, %v1678
          %v1680 = vrot.slane %v1652, %v1679
          %v1681 = vcombine.high %v1659, %v1659
          %v1682 = vcombine.high %v1666, %v1666
          %v1683 = vcombine.high %v1673, %v1673
          %v1684 = vcombine.high %v1680, %v1680
          %v1686 = vunpack.c.l.s4 1966171168
          %v1687 = vunpack.c.0.s8 %v1686
          %v1688 = vlaneseq
          %v1689 = vshrl.u32 %v1688, 7
          %v1690 = vsub.s32 %v1687, %v1689
          %v1691 = vrot.slane %v1216, %v1690
          %v1693 = vunpack.c.l.s4 1966171168
          %v1694 = vunpack.c.0.s8 %v1693
          %v1695 = vlaneseq
          %v1696 = vshrl.u32 %v1695, 7
          %v1697 = vsub.s32 %v1694, %v1696
          %v1698 = vrot.slane %v1691, %v1697
          %v1699 = vcombine.high %v1201, %v1201
          %v1701 = vunpack.c.l.s4 1966171168
          %v1702 = vunpack.c.0.s8 %v1701
          %v1703 = vlaneseq
          %v1704 = vshrl.u32 %v1703, 7
          %v1705 = vsub.s32 %v1702, %v1704
          %v1706 = vrot.slane %v1201, %v1705
          %v1708 = vunpack.c.l.s4 1966171168
          %v1709 = vunpack.c.0.s8 %v1708
          %v1710 = vlaneseq
          %v1711 = vshrl.u32 %v1710, 7
          %v1712 = vsub.s32 %v1709, %v1711
          %v1713 = vrot.slane %v1699, %v1712
          %v1714 = vcombine.high %v1706, %v1706
          %v1715 = vcombine.high %v1713, %v1713
          %v1717 = vunpack.c.l.s4 1966171168
          %v1718 = vunpack.c.0.s8 %v1717
          %v1719 = vlaneseq
          %v1720 = vshrl.u32 %v1719, 7
          %v1721 = vsub.s32 %v1718, %v1720
          %v1722 = vrot.slane %v1706, %v1721
          %v1724 = vunpack.c.l.s4 1966171168
          %v1725 = vunpack.c.0.s8 %v1724
          %v1726 = vlaneseq
          %v1727 = vshrl.u32 %v1726, 7
          %v1728 = vsub.s32 %v1725, %v1727
          %v1729 = vrot.slane %v1713, %v1728
          %v1731 = vunpack.c.l.s4 1966171168
          %v1732 = vunpack.c.0.s8 %v1731
          %v1733 = vlaneseq
          %v1734 = vshrl.u32 %v1733, 7
          %v1735 = vsub.s32 %v1732, %v1734
          %v1736 = vrot.slane %v1714, %v1735
          %v1738 = vunpack.c.l.s4 1966171168
          %v1739 = vunpack.c.0.s8 %v1738
          %v1740 = vlaneseq
          %v1741 = vshrl.u32 %v1740, 7
          %v1742 = vsub.s32 %v1739, %v1741
          %v1743 = vrot.slane %v1715, %v1742
          %v1744 = vcombine.high %v1722, %v1722
          %v1745 = vcombine.high %v1729, %v1729
          %v1746 = vcombine.high %v1736, %v1736
          %v1747 = vcombine.high %v1743, %v1743
          %v1749 = vunpack.c.l.s4 1966171168
          %v1750 = vunpack.c.0.s8 %v1749
          %v1751 = vlaneseq
          %v1752 = vshrl.u32 %v1751, 7
          %v1753 = vsub.s32 %v1750, %v1752
          %v1754 = vrot.slane %v1217, %v1753
          %v1756 = vunpack.c.l.s4 1966171168
          %v1757 = vunpack.c.0.s8 %v1756
          %v1758 = vlaneseq
          %v1759 = vshrl.u32 %v1758, 7
          %v1760 = vsub.s32 %v1757, %v1759
          %v1761 = vrot.slane %v1754, %v1760
          %v1762 = vcombine.high %v1202, %v1202
          %v1764 = vunpack.c.l.s4 1966171168
          %v1765 = vunpack.c.0.s8 %v1764
          %v1766 = vlaneseq
          %v1767 = vshrl.u32 %v1766, 7
          %v1768 = vsub.s32 %v1765, %v1767
          %v1769 = vrot.slane %v1202, %v1768
          %v1771 = vunpack.c.l.s4 1966171168
          %v1772 = vunpack.c.0.s8 %v1771
          %v1773 = vlaneseq
          %v1774 = vshrl.u32 %v1773, 7
          %v1775 = vsub.s32 %v1772, %v1774
          %v1776 = vrot.slane %v1762, %v1775
          %v1777 = vcombine.high %v1769, %v1769
          %v1778 = vcombine.high %v1776, %v1776
          %v1780 = vunpack.c.l.s4 1966171168
          %v1781 = vunpack.c.0.s8 %v1780
          %v1782 = vlaneseq
          %v1783 = vshrl.u32 %v1782, 7
          %v1784 = vsub.s32 %v1781, %v1783
          %v1785 = vrot.slane %v1769, %v1784
          %v1787 = vunpack.c.l.s4 1966171168
          %v1788 = vunpack.c.0.s8 %v1787
          %v1789 = vlaneseq
          %v1790 = vshrl.u32 %v1789, 7
          %v1791 = vsub.s32 %v1788, %v1790
          %v1792 = vrot.slane %v1776, %v1791
          %v1794 = vunpack.c.l.s4 1966171168
          %v1795 = vunpack.c.0.s8 %v1794
          %v1796 = vlaneseq
          %v1797 = vshrl.u32 %v1796, 7
          %v1798 = vsub.s32 %v1795, %v1797
          %v1799 = vrot.slane %v1777, %v1798
          %v1801 = vunpack.c.l.s4 1966171168
          %v1802 = vunpack.c.0.s8 %v1801
          %v1803 = vlaneseq
          %v1804 = vshrl.u32 %v1803, 7
          %v1805 = vsub.s32 %v1802, %v1804
          %v1806 = vrot.slane %v1778, %v1805
          %v1807 = vcombine.high %v1785, %v1785
          %v1808 = vcombine.high %v1792, %v1792
          %v1809 = vcombine.high %v1799, %v1799
          %v1810 = vcombine.high %v1806, %v1806
          %v1812 = vunpack.c.l.s4 1966171168
          %v1813 = vunpack.c.0.s8 %v1812
          %v1814 = vlaneseq
          %v1815 = vshrl.u32 %v1814, 7
          %v1816 = vsub.s32 %v1813, %v1815
          %v1817 = vrot.slane %v1218, %v1816
          %v1819 = vunpack.c.l.s4 1966171168
          %v1820 = vunpack.c.0.s8 %v1819
          %v1821 = vlaneseq
          %v1822 = vshrl.u32 %v1821, 7
          %v1823 = vsub.s32 %v1820, %v1822
          %v1824 = vrot.slane %v1817, %v1823
          %v1825 = vcombine.high %v1203, %v1203
          %v1827 = vunpack.c.l.s4 1966171168
          %v1828 = vunpack.c.0.s8 %v1827
          %v1829 = vlaneseq
          %v1830 = vshrl.u32 %v1829, 7
          %v1831 = vsub.s32 %v1828, %v1830
          %v1832 = vrot.slane %v1203, %v1831
          %v1834 = vunpack.c.l.s4 1966171168
          %v1835 = vunpack.c.0.s8 %v1834
          %v1836 = vlaneseq
          %v1837 = vshrl.u32 %v1836, 7
          %v1838 = vsub.s32 %v1835, %v1837
          %v1839 = vrot.slane %v1825, %v1838
          %v1840 = vcombine.high %v1832, %v1832
          %v1841 = vcombine.high %v1839, %v1839
          %v1843 = vunpack.c.l.s4 1966171168
          %v1844 = vunpack.c.0.s8 %v1843
          %v1845 = vlaneseq
          %v1846 = vshrl.u32 %v1845, 7
          %v1847 = vsub.s32 %v1844, %v1846
          %v1848 = vrot.slane %v1832, %v1847
          %v1850 = vunpack.c.l.s4 1966171168
          %v1851 = vunpack.c.0.s8 %v1850
          %v1852 = vlaneseq
          %v1853 = vshrl.u32 %v1852, 7
          %v1854 = vsub.s32 %v1851, %v1853
          %v1855 = vrot.slane %v1839, %v1854
          %v1857 = vunpack.c.l.s4 1966171168
          %v1858 = vunpack.c.0.s8 %v1857
          %v1859 = vlaneseq
          %v1860 = vshrl.u32 %v1859, 7
          %v1861 = vsub.s32 %v1858, %v1860
          %v1862 = vrot.slane %v1840, %v1861
          %v1864 = vunpack.c.l.s4 1966171168
          %v1865 = vunpack.c.0.s8 %v1864
          %v1866 = vlaneseq
          %v1867 = vshrl.u32 %v1866, 7
          %v1868 = vsub.s32 %v1865, %v1867
          %v1869 = vrot.slane %v1841, %v1868
          %v1870 = vcombine.high %v1848, %v1848
          %v1871 = vcombine.high %v1855, %v1855
          %v1872 = vcombine.high %v1862, %v1862
          %v1873 = vcombine.high %v1869, %v1869
          %v1875 = vunpack.c.l.s4 1966171168
          %v1876 = vunpack.c.0.s8 %v1875
          %v1877 = vlaneseq
          %v1878 = vshrl.u32 %v1877, 7
          %v1879 = vsub.s32 %v1876, %v1878
          %v1880 = vrot.slane %v1219, %v1879
          %v1882 = vunpack.c.l.s4 1966171168
          %v1883 = vunpack.c.0.s8 %v1882
          %v1884 = vlaneseq
          %v1885 = vshrl.u32 %v1884, 7
          %v1886 = vsub.s32 %v1883, %v1885
          %v1887 = vrot.slane %v1880, %v1886
          %v1888 = vcombine.high %v1204, %v1204
          %v1890 = vunpack.c.l.s4 1966171168
          %v1891 = vunpack.c.0.s8 %v1890
          %v1892 = vlaneseq
          %v1893 = vshrl.u32 %v1892, 7
          %v1894 = vsub.s32 %v1891, %v1893
          %v1895 = vrot.slane %v1204, %v1894
          %v1897 = vunpack.c.l.s4 1966171168
          %v1898 = vunpack.c.0.s8 %v1897
          %v1899 = vlaneseq
          %v1900 = vshrl.u32 %v1899, 7
          %v1901 = vsub.s32 %v1898, %v1900
          %v1902 = vrot.slane %v1888, %v1901
          %v1903 = vcombine.high %v1895, %v1895
          %v1904 = vcombine.high %v1902, %v1902
          %v1906 = vunpack.c.l.s4 1966171168
          %v1907 = vunpack.c.0.s8 %v1906
          %v1908 = vlaneseq
          %v1909 = vshrl.u32 %v1908, 7
          %v1910 = vsub.s32 %v1907, %v1909
          %v1911 = vrot.slane %v1895, %v1910
          %v1913 = vunpack.c.l.s4 1966171168
          %v1914 = vunpack.c.0.s8 %v1913
          %v1915 = vlaneseq
          %v1916 = vshrl.u32 %v1915, 7
          %v1917 = vsub.s32 %v1914, %v1916
          %v1918 = vrot.slane %v1902, %v1917
          %v1920 = vunpack.c.l.s4 1966171168
          %v1921 = vunpack.c.0.s8 %v1920
          %v1922 = vlaneseq
          %v1923 = vshrl.u32 %v1922, 7
          %v1924 = vsub.s32 %v1921, %v1923
          %v1925 = vrot.slane %v1903, %v1924
          %v1927 = vunpack.c.l.s4 1966171168
          %v1928 = vunpack.c.0.s8 %v1927
          %v1929 = vlaneseq
          %v1930 = vshrl.u32 %v1929, 7
          %v1931 = vsub.s32 %v1928, %v1930
          %v1932 = vrot.slane %v1904, %v1931
          %v1933 = vcombine.high %v1911, %v1911
          %v1934 = vcombine.high %v1918, %v1918
          %v1935 = vcombine.high %v1925, %v1925
          %v1936 = vcombine.high %v1932, %v1932
          %v1938 = vunpack.c.l.s4 1966171168
          %v1939 = vunpack.c.0.s8 %v1938
          %v1940 = vlaneseq
          %v1941 = vshrl.u32 %v1940, 7
          %v1942 = vsub.s32 %v1939, %v1941
          %v1943 = vrot.slane %v1220, %v1942
          %v1945 = vunpack.c.l.s4 1966171168
          %v1946 = vunpack.c.0.s8 %v1945
          %v1947 = vlaneseq
          %v1948 = vshrl.u32 %v1947, 7
          %v1949 = vsub.s32 %v1946, %v1948
          %v1950 = vrot.slane %v1943, %v1949
          %v1951 = vcombine.high %v1205, %v1205
          %v1953 = vunpack.c.l.s4 1966171168
          %v1954 = vunpack.c.0.s8 %v1953
          %v1955 = vlaneseq
          %v1956 = vshrl.u32 %v1955, 7
          %v1957 = vsub.s32 %v1954, %v1956
          %v1958 = vrot.slane %v1205, %v1957
          %v1960 = vunpack.c.l.s4 1966171168
          %v1961 = vunpack.c.0.s8 %v1960
          %v1962 = vlaneseq
          %v1963 = vshrl.u32 %v1962, 7
          %v1964 = vsub.s32 %v1961, %v1963
          %v1965 = vrot.slane %v1951, %v1964
          %v1966 = vcombine.high %v1958, %v1958
          %v1967 = vcombine.high %v1965, %v1965
          %v1969 = vunpack.c.l.s4 1966171168
          %v1970 = vunpack.c.0.s8 %v1969
          %v1971 = vlaneseq
          %v1972 = vshrl.u32 %v1971, 7
          %v1973 = vsub.s32 %v1970, %v1972
          %v1974 = vrot.slane %v1958, %v1973
          %v1976 = vunpack.c.l.s4 1966171168
          %v1977 = vunpack.c.0.s8 %v1976
          %v1978 = vlaneseq
          %v1979 = vshrl.u32 %v1978, 7
          %v1980 = vsub.s32 %v1977, %v1979
          %v1981 = vrot.slane %v1965, %v1980
          %v1983 = vunpack.c.l.s4 1966171168
          %v1984 = vunpack.c.0.s8 %v1983
          %v1985 = vlaneseq
          %v1986 = vshrl.u32 %v1985, 7
          %v1987 = vsub.s32 %v1984, %v1986
          %v1988 = vrot.slane %v1966, %v1987
          %v1990 = vunpack.c.l.s4 1966171168
          %v1991 = vunpack.c.0.s8 %v1990
          %v1992 = vlaneseq
          %v1993 = vshrl.u32 %v1992, 7
          %v1994 = vsub.s32 %v1991, %v1993
          %v1995 = vrot.slane %v1967, %v1994
          %v1996 = vcombine.high %v1974, %v1974
          %v1997 = vcombine.high %v1981, %v1981
          %v1998 = vcombine.high %v1988, %v1988
          %v1999 = vcombine.high %v1995, %v1995
          %v2001 = vunpack.c.l.s4 1966171168
          %v2002 = vunpack.c.0.s8 %v2001
          %v2003 = vlaneseq
          %v2004 = vshrl.u32 %v2003, 7
          %v2005 = vsub.s32 %v2002, %v2004
          %v2006 = vrot.slane %v1221, %v2005
          %v2008 = vunpack.c.l.s4 1966171168
          %v2009 = vunpack.c.0.s8 %v2008
          %v2010 = vlaneseq
          %v2011 = vshrl.u32 %v2010, 7
          %v2012 = vsub.s32 %v2009, %v2011
          %v2013 = vrot.slane %v2006, %v2012
          %v2014 = vcombine.high %v1206, %v1206
          %v2016 = vunpack.c.l.s4 1966171168
          %v2017 = vunpack.c.0.s8 %v2016
          %v2018 = vlaneseq
          %v2019 = vshrl.u32 %v2018, 7
          %v2020 = vsub.s32 %v2017, %v2019
          %v2021 = vrot.slane %v1206, %v2020
          %v2023 = vunpack.c.l.s4 1966171168
          %v2024 = vunpack.c.0.s8 %v2023
          %v2025 = vlaneseq
          %v2026 = vshrl.u32 %v2025, 7
          %v2027 = vsub.s32 %v2024, %v2026
          %v2028 = vrot.slane %v2014, %v2027
          %v2029 = vcombine.high %v2021, %v2021
          %v2030 = vcombine.high %v2028, %v2028
          %v2032 = vunpack.c.l.s4 1966171168
          %v2033 = vunpack.c.0.s8 %v2032
          %v2034 = vlaneseq
          %v2035 = vshrl.u32 %v2034, 7
          %v2036 = vsub.s32 %v2033, %v2035
          %v2037 = vrot.slane %v2021, %v2036
          %v2039 = vunpack.c.l.s4 1966171168
          %v2040 = vunpack.c.0.s8 %v2039
          %v2041 = vlaneseq
          %v2042 = vshrl.u32 %v2041, 7
          %v2043 = vsub.s32 %v2040, %v2042
          %v2044 = vrot.slane %v2028, %v2043
          %v2046 = vunpack.c.l.s4 1966171168
          %v2047 = vunpack.c.0.s8 %v2046
          %v2048 = vlaneseq
          %v2049 = vshrl.u32 %v2048, 7
          %v2050 = vsub.s32 %v2047, %v2049
          %v2051 = vrot.slane %v2029, %v2050
          %v2053 = vunpack.c.l.s4 1966171168
          %v2054 = vunpack.c.0.s8 %v2053
          %v2055 = vlaneseq
          %v2056 = vshrl.u32 %v2055, 7
          %v2057 = vsub.s32 %v2054, %v2056
          %v2058 = vrot.slane %v2030, %v2057
          %v2059 = vcombine.high %v2037, %v2037
          %v2060 = vcombine.high %v2044, %v2044
          %v2061 = vcombine.high %v2051, %v2051
          %v2062 = vcombine.high %v2058, %v2058
          %v2064 = vunpack.c.l.s4 1966171168
          %v2065 = vunpack.c.0.s8 %v2064
          %v2066 = vlaneseq
          %v2067 = vshrl.u32 %v2066, 7
          %v2068 = vsub.s32 %v2065, %v2067
          %v2069 = vrot.slane %v1222, %v2068
          %v2071 = vunpack.c.l.s4 1966171168
          %v2072 = vunpack.c.0.s8 %v2071
          %v2073 = vlaneseq
          %v2074 = vshrl.u32 %v2073, 7
          %v2075 = vsub.s32 %v2072, %v2074
          %v2076 = vrot.slane %v2069, %v2075
          %v2077 = vcombine.high %v1207, %v1207
          %v2079 = vunpack.c.l.s4 1966171168
          %v2080 = vunpack.c.0.s8 %v2079
          %v2081 = vlaneseq
          %v2082 = vshrl.u32 %v2081, 7
          %v2083 = vsub.s32 %v2080, %v2082
          %v2084 = vrot.slane %v1207, %v2083
          %v2086 = vunpack.c.l.s4 1966171168
          %v2087 = vunpack.c.0.s8 %v2086
          %v2088 = vlaneseq
          %v2089 = vshrl.u32 %v2088, 7
          %v2090 = vsub.s32 %v2087, %v2089
          %v2091 = vrot.slane %v2077, %v2090
          %v2092 = vcombine.high %v2084, %v2084
          %v2093 = vcombine.high %v2091, %v2091
          %v2095 = vunpack.c.l.s4 1966171168
          %v2096 = vunpack.c.0.s8 %v2095
          %v2097 = vlaneseq
          %v2098 = vshrl.u32 %v2097, 7
          %v2099 = vsub.s32 %v2096, %v2098
          %v2100 = vrot.slane %v2084, %v2099
          %v2102 = vunpack.c.l.s4 1966171168
          %v2103 = vunpack.c.0.s8 %v2102
          %v2104 = vlaneseq
          %v2105 = vshrl.u32 %v2104, 7
          %v2106 = vsub.s32 %v2103, %v2105
          %v2107 = vrot.slane %v2091, %v2106
          %v2109 = vunpack.c.l.s4 1966171168
          %v2110 = vunpack.c.0.s8 %v2109
          %v2111 = vlaneseq
          %v2112 = vshrl.u32 %v2111, 7
          %v2113 = vsub.s32 %v2110, %v2112
          %v2114 = vrot.slane %v2092, %v2113
          %v2116 = vunpack.c.l.s4 1966171168
          %v2117 = vunpack.c.0.s8 %v2116
          %v2118 = vlaneseq
          %v2119 = vshrl.u32 %v2118, 7
          %v2120 = vsub.s32 %v2117, %v2119
          %v2121 = vrot.slane %v2093, %v2120
          %v2122 = vcombine.high %v2100, %v2100
          %v2123 = vcombine.high %v2107, %v2107
          %v2124 = vcombine.high %v2114, %v2114
          %v2125 = vcombine.high %v2121, %v2121
          %v2127 = vunpack.c.l.s4 1966171168
          %v2128 = vunpack.c.0.s8 %v2127
          %v2129 = vlaneseq
          %v2130 = vshrl.u32 %v2129, 7
          %v2131 = vsub.s32 %v2128, %v2130
          %v2132 = vrot.slane %v1223, %v2131
          %v2134 = vunpack.c.l.s4 1966171168
          %v2135 = vunpack.c.0.s8 %v2134
          %v2136 = vlaneseq
          %v2137 = vshrl.u32 %v2136, 7
          %v2138 = vsub.s32 %v2135, %v2137
          %v2139 = vrot.slane %v2132, %v2138
          %v2140 = vcombine.high %v1208, %v1208
          %v2142 = vunpack.c.l.s4 1966171168
          %v2143 = vunpack.c.0.s8 %v2142
          %v2144 = vlaneseq
          %v2145 = vshrl.u32 %v2144, 7
          %v2146 = vsub.s32 %v2143, %v2145
          %v2147 = vrot.slane %v1208, %v2146
          %v2149 = vunpack.c.l.s4 1966171168
          %v2150 = vunpack.c.0.s8 %v2149
          %v2151 = vlaneseq
          %v2152 = vshrl.u32 %v2151, 7
          %v2153 = vsub.s32 %v2150, %v2152
          %v2154 = vrot.slane %v2140, %v2153
          %v2155 = vcombine.high %v2147, %v2147
          %v2156 = vcombine.high %v2154, %v2154
          %v2158 = vunpack.c.l.s4 1966171168
          %v2159 = vunpack.c.0.s8 %v2158
          %v2160 = vlaneseq
          %v2161 = vshrl.u32 %v2160, 7
          %v2162 = vsub.s32 %v2159, %v2161
          %v2163 = vrot.slane %v2147, %v2162
          %v2165 = vunpack.c.l.s4 1966171168
          %v2166 = vunpack.c.0.s8 %v2165
          %v2167 = vlaneseq
          %v2168 = vshrl.u32 %v2167, 7
          %v2169 = vsub.s32 %v2166, %v2168
          %v2170 = vrot.slane %v2154, %v2169
          %v2172 = vunpack.c.l.s4 1966171168
          %v2173 = vunpack.c.0.s8 %v2172
          %v2174 = vlaneseq
          %v2175 = vshrl.u32 %v2174, 7
          %v2176 = vsub.s32 %v2173, %v2175
          %v2177 = vrot.slane %v2155, %v2176
          %v2179 = vunpack.c.l.s4 1966171168
          %v2180 = vunpack.c.0.s8 %v2179
          %v2181 = vlaneseq
          %v2182 = vshrl.u32 %v2181, 7
          %v2183 = vsub.s32 %v2180, %v2182
          %v2184 = vrot.slane %v2156, %v2183
          %v2185 = vcombine.high %v2163, %v2163
          %v2186 = vcombine.high %v2170, %v2170
          %v2187 = vcombine.high %v2177, %v2177
          %v2188 = vcombine.high %v2184, %v2184
          %v2190 = vunpack.c.l.s4 1966171168
          %v2191 = vunpack.c.0.s8 %v2190
          %v2192 = vlaneseq
          %v2193 = vshrl.u32 %v2192, 7
          %v2194 = vsub.s32 %v2191, %v2193
          %v2195 = vrot.slane %v1224, %v2194
          %v2197 = vunpack.c.l.s4 1966171168
          %v2198 = vunpack.c.0.s8 %v2197
          %v2199 = vlaneseq
          %v2200 = vshrl.u32 %v2199, 7
          %v2201 = vsub.s32 %v2198, %v2200
          %v2202 = vrot.slane %v2195, %v2201
          %v2203 = vcombine.high %v1209, %v1209
          %v2205 = vunpack.c.l.s4 1966171168
          %v2206 = vunpack.c.0.s8 %v2205
          %v2207 = vlaneseq
          %v2208 = vshrl.u32 %v2207, 7
          %v2209 = vsub.s32 %v2206, %v2208
          %v2210 = vrot.slane %v1209, %v2209
          %v2212 = vunpack.c.l.s4 1966171168
          %v2213 = vunpack.c.0.s8 %v2212
          %v2214 = vlaneseq
          %v2215 = vshrl.u32 %v2214, 7
          %v2216 = vsub.s32 %v2213, %v2215
          %v2217 = vrot.slane %v2203, %v2216
          %v2218 = vcombine.high %v2210, %v2210
          %v2219 = vcombine.high %v2217, %v2217
          %v2221 = vunpack.c.l.s4 1966171168
          %v2222 = vunpack.c.0.s8 %v2221
          %v2223 = vlaneseq
          %v2224 = vshrl.u32 %v2223, 7
          %v2225 = vsub.s32 %v2222, %v2224
          %v2226 = vrot.slane %v2210, %v2225
          %v2228 = vunpack.c.l.s4 1966171168
          %v2229 = vunpack.c.0.s8 %v2228
          %v2230 = vlaneseq
          %v2231 = vshrl.u32 %v2230, 7
          %v2232 = vsub.s32 %v2229, %v2231
          %v2233 = vrot.slane %v2217, %v2232
          %v2235 = vunpack.c.l.s4 1966171168
          %v2236 = vunpack.c.0.s8 %v2235
          %v2237 = vlaneseq
          %v2238 = vshrl.u32 %v2237, 7
          %v2239 = vsub.s32 %v2236, %v2238
          %v2240 = vrot.slane %v2218, %v2239
          %v2242 = vunpack.c.l.s4 1966171168
          %v2243 = vunpack.c.0.s8 %v2242
          %v2244 = vlaneseq
          %v2245 = vshrl.u32 %v2244, 7
          %v2246 = vsub.s32 %v2243, %v2245
          %v2247 = vrot.slane %v2219, %v2246
          %v2248 = vcombine.high %v2226, %v2226
          %v2249 = vcombine.high %v2233, %v2233
          %v2250 = vcombine.high %v2240, %v2240
          %v2251 = vcombine.high %v2247, %v2247
          %v2253 = vunpack.c.l.s4 1966171168
          %v2254 = vunpack.c.0.s8 %v2253
          %v2255 = vlaneseq
          %v2256 = vshrl.u32 %v2255, 7
          %v2257 = vsub.s32 %v2254, %v2256
          %v2258 = vrot.slane %v1225, %v2257
          %v2260 = vunpack.c.l.s4 1966171168
          %v2261 = vunpack.c.0.s8 %v2260
          %v2262 = vlaneseq
          %v2263 = vshrl.u32 %v2262, 7
          %v2264 = vsub.s32 %v2261, %v2263
          %v2265 = vrot.slane %v2258, %v2264
          %vm2266 = vcmask 60416
          %2267 = vst.msk [vmem:[#allocation2] sm:$0xf] %vm2266, 0
          %2268 = vst.msk [vmem:[#allocation2 + $0x4] sm:$0xf] %vm2266, 0
          %vm2269 = vcmask 57344
          %2270 = vst.msk [vmem:[#allocation2 + $0x8] sm:$0x1] %vm2269, 0
          %v2271 = vcombine.low %v1295, %v1295
          %v2272 = vcombine.low %v1281, %v1303
          %v2274 = vunpack.c.l.s4 1935823168
          %v2275 = vunpack.c.0.s8 %v2274
          %v2276 = vlaneseq
          %v2277 = vshrl.u32 %v2276, 7
          %v2278 = vsub.s32 %v2275, %v2277
          %v2279 = vrot.slane %v2271, %v2278
          %v2281 = vunpack.c.l.s4 1935823168
          %v2282 = vunpack.c.0.s8 %v2281
          %v2283 = vlaneseq
          %v2284 = vshrl.u32 %v2283, 7
          %v2285 = vsub.s32 %v2282, %v2284
          %v2286 = vrot.slane %v2272, %v2285
          %v2287 = vcombine.low %v2279, %v2286
          %v2289 = vunpack.c.l.s4 1935823168
          %v2290 = vunpack.c.0.s8 %v2289
          %v2291 = vlaneseq
          %v2292 = vshrl.u32 %v2291, 7
          %v2293 = vsub.s32 %v2290, %v2292
          %v2294 = vrot.slane %v2287, %v2293
          %v2295 = vcombine.low %v1305, %v1302
          %v2296 = vcombine.low %v1288, %v1304
          %v2298 = vunpack.c.l.s4 1935823168
          %v2299 = vunpack.c.0.s8 %v2298
          %v2300 = vlaneseq
          %v2301 = vshrl.u32 %v2300, 7
          %v2302 = vsub.s32 %v2299, %v2301
          %v2303 = vrot.slane %v2295, %v2302
          %v2305 = vunpack.c.l.s4 1935823168
          %v2306 = vunpack.c.0.s8 %v2305
          %v2307 = vlaneseq
          %v2308 = vshrl.u32 %v2307, 7
          %v2309 = vsub.s32 %v2306, %v2308
          %v2310 = vrot.slane %v2296, %v2309
          %v2311 = vcombine.low %v2303, %v2310
          %v2313 = vunpack.c.l.s4 1935823168
          %v2314 = vunpack.c.0.s8 %v2313
          %v2315 = vlaneseq
          %v2316 = vshrl.u32 %v2315, 7
          %v2317 = vsub.s32 %v2314, %v2316
          %v2318 = vrot.slane %v2311, %v2317
          %v2319 = vcombine.low %v1306, %v1344
          %v2320 = vcombine.low %v1320, %v1358
          %v2322 = vunpack.c.l.s4 1935823168
          %v2323 = vunpack.c.0.s8 %v2322
          %v2324 = vlaneseq
          %v2325 = vshrl.u32 %v2324, 7
          %v2326 = vsub.s32 %v2323, %v2325
          %v2327 = vrot.slane %v2319, %v2326
          %v2329 = vunpack.c.l.s4 1935823168
          %v2330 = vunpack.c.0.s8 %v2329
          %v2331 = vlaneseq
          %v2332 = vshrl.u32 %v2331, 7
          %v2333 = vsub.s32 %v2330, %v2332
          %v2334 = vrot.slane %v2320, %v2333
          %v2335 = vcombine.low %v2327, %v2334
          %v2337 = vunpack.c.l.s4 1935823168
          %v2338 = vunpack.c.0.s8 %v2337
          %v2339 = vlaneseq
          %v2340 = vshrl.u32 %v2339, 7
          %v2341 = vsub.s32 %v2338, %v2340
          %v2342 = vrot.slane %v2335, %v2341
          %v2343 = vcombine.low %v1366, %v1351
          %v2344 = vcombine.low %v1368, %v1365
          %v2346 = vunpack.c.l.s4 1935823168
          %v2347 = vunpack.c.0.s8 %v2346
          %v2348 = vlaneseq
          %v2349 = vshrl.u32 %v2348, 7
          %v2350 = vsub.s32 %v2347, %v2349
          %v2351 = vrot.slane %v2343, %v2350
          %v2353 = vunpack.c.l.s4 1935823168
          %v2354 = vunpack.c.0.s8 %v2353
          %v2355 = vlaneseq
          %v2356 = vshrl.u32 %v2355, 7
          %v2357 = vsub.s32 %v2354, %v2356
          %v2358 = vrot.slane %v2344, %v2357
          %v2359 = vcombine.low %v2351, %v2358
          %v2361 = vunpack.c.l.s4 1935823168
          %v2362 = vunpack.c.0.s8 %v2361
          %v2363 = vlaneseq
          %v2364 = vshrl.u32 %v2363, 7
          %v2365 = vsub.s32 %v2362, %v2364
          %v2366 = vrot.slane %v2359, %v2365
          %v2367 = vcombine.low %v1367, %v1383
          %v2368 = vcombine.low %v1369, %v1407
          %v2370 = vunpack.c.l.s4 1935823168
          %v2371 = vunpack.c.0.s8 %v2370
          %v2372 = vlaneseq
          %v2373 = vshrl.u32 %v2372, 7
          %v2374 = vsub.s32 %v2371, %v2373
          %v2375 = vrot.slane %v2367, %v2374
          %v2377 = vunpack.c.l.s4 1935823168
          %v2378 = vunpack.c.0.s8 %v2377
          %v2379 = vlaneseq
          %v2380 = vshrl.u32 %v2379, 7
          %v2381 = vsub.s32 %v2378, %v2380
          %v2382 = vrot.slane %v2368, %v2381
          %v2383 = vcombine.low %v2375, %v2382
          %v2385 = vunpack.c.l.s4 1935823168
          %v2386 = vunpack.c.0.s8 %v2385
          %v2387 = vlaneseq
          %v2388 = vshrl.u32 %v2387, 7
          %v2389 = vsub.s32 %v2386, %v2388
          %v2390 = vrot.slane %v2383, %v2389
          %v2391 = vcombine.low %v1421, %v1431
          %v2392 = vcombine.low %v1429, %v1414
          %v2394 = vunpack.c.l.s4 1935823168
          %v2395 = vunpack.c.0.s8 %v2394
          %v2396 = vlaneseq
          %v2397 = vshrl.u32 %v2396, 7
          %v2398 = vsub.s32 %v2395, %v2397
          %v2399 = vrot.slane %v2391, %v2398
          %v2401 = vunpack.c.l.s4 1935823168
          %v2402 = vunpack.c.0.s8 %v2401
          %v2403 = vlaneseq
          %v2404 = vshrl.u32 %v2403, 7
          %v2405 = vsub.s32 %v2402, %v2404
          %v2406 = vrot.slane %v2392, %v2405
          %v2407 = vcombine.low %v2399, %v2406
          %v2409 = vunpack.c.l.s4 1935823168
          %v2410 = vunpack.c.0.s8 %v2409
          %v2411 = vlaneseq
          %v2412 = vshrl.u32 %v2411, 7
          %v2413 = vsub.s32 %v2410, %v2412
          %v2414 = vrot.slane %v2407, %v2413
          %v2415 = vcombine.low %v1428, %v1432
          %v2416 = vcombine.low %v1430, %v1446
          %v2418 = vunpack.c.l.s4 1935823168
          %v2419 = vunpack.c.0.s8 %v2418
          %v2420 = vlaneseq
          %v2421 = vshrl.u32 %v2420, 7
          %v2422 = vsub.s32 %v2419, %v2421
          %v2423 = vrot.slane %v2415, %v2422
          %v2425 = vunpack.c.l.s4 1935823168
          %v2426 = vunpack.c.0.s8 %v2425
          %v2427 = vlaneseq
          %v2428 = vshrl.u32 %v2427, 7
          %v2429 = vsub.s32 %v2426, %v2428
          %v2430 = vrot.slane %v2416, %v2429
          %v2431 = vcombine.low %v2423, %v2430
          %v2433 = vunpack.c.l.s4 1935823168
          %v2434 = vunpack.c.0.s8 %v2433
          %v2435 = vlaneseq
          %v2436 = vshrl.u32 %v2435, 7
          %v2437 = vsub.s32 %v2434, %v2436
          %v2438 = vrot.slane %v2431, %v2437
          %v2439 = vcombine.low %v1470, %v1492
          %v2440 = vcombine.low %v1484, %v1494
          %v2442 = vunpack.c.l.s4 1935823168
          %v2443 = vunpack.c.0.s8 %v2442
          %v2444 = vlaneseq
          %v2445 = vshrl.u32 %v2444, 7
          %v2446 = vsub.s32 %v2443, %v2445
          %v2447 = vrot.slane %v2439, %v2446
          %v2449 = vunpack.c.l.s4 1935823168
          %v2450 = vunpack.c.0.s8 %v2449
          %v2451 = vlaneseq
          %v2452 = vshrl.u32 %v2451, 7
          %v2453 = vsub.s32 %v2450, %v2452
          %v2454 = vrot.slane %v2440, %v2453
          %v2455 = vcombine.low %v2447, %v2454
          %v2457 = vunpack.c.l.s4 1935823168
          %v2458 = vunpack.c.0.s8 %v2457
          %v2459 = vlaneseq
          %v2460 = vshrl.u32 %v2459, 7
          %v2461 = vsub.s32 %v2458, %v2460
          %v2462 = vrot.slane %v2455, %v2461
          %v2463 = vcombine.low %v1477, %v1493
          %v2464 = vcombine.low %v1491, %v1495
          %v2466 = vunpack.c.l.s4 1935823168
          %v2467 = vunpack.c.0.s8 %v2466
          %v2468 = vlaneseq
          %v2469 = vshrl.u32 %v2468, 7
          %v2470 = vsub.s32 %v2467, %v2469
          %v2471 = vrot.slane %v2463, %v2470
          %v2473 = vunpack.c.l.s4 1935823168
          %v2474 = vunpack.c.0.s8 %v2473
          %v2475 = vlaneseq
          %v2476 = vshrl.u32 %v2475, 7
          %v2477 = vsub.s32 %v2474, %v2476
          %v2478 = vrot.slane %v2464, %v2477
          %v2479 = vcombine.low %v2471, %v2478
          %v2481 = vunpack.c.l.s4 1935823168
          %v2482 = vunpack.c.0.s8 %v2481
          %v2483 = vlaneseq
          %v2484 = vshrl.u32 %v2483, 7
          %v2485 = vsub.s32 %v2482, %v2484
          %v2486 = vrot.slane %v2479, %v2485
          %v2487 = vcombine.low %v1509, %v1547
          %v2488 = vcombine.low %v1533, %v1555
          %v2490 = vunpack.c.l.s4 1935823168
          %v2491 = vunpack.c.0.s8 %v2490
          %v2492 = vlaneseq
          %v2493 = vshrl.u32 %v2492, 7
          %v2494 = vsub.s32 %v2491, %v2493
          %v2495 = vrot.slane %v2487, %v2494
          %v2497 = vunpack.c.l.s4 1935823168
          %v2498 = vunpack.c.0.s8 %v2497
          %v2499 = vlaneseq
          %v2500 = vshrl.u32 %v2499, 7
          %v2501 = vsub.s32 %v2498, %v2500
          %v2502 = vrot.slane %v2488, %v2501
          %v2503 = vcombine.low %v2495, %v2502
          %v2505 = vunpack.c.l.s4 1935823168
          %v2506 = vunpack.c.0.s8 %v2505
          %v2507 = vlaneseq
          %v2508 = vshrl.u32 %v2507, 7
          %v2509 = vsub.s32 %v2506, %v2508
          %v2510 = vrot.slane %v2503, %v2509
          %v2511 = vcombine.low %v1557, %v1554
          %v2512 = vcombine.low %v1540, %v1556
          %v2514 = vunpack.c.l.s4 1935823168
          %v2515 = vunpack.c.0.s8 %v2514
          %v2516 = vlaneseq
          %v2517 = vshrl.u32 %v2516, 7
          %v2518 = vsub.s32 %v2515, %v2517
          %v2519 = vrot.slane %v2511, %v2518
          %v2521 = vunpack.c.l.s4 1935823168
          %v2522 = vunpack.c.0.s8 %v2521
          %v2523 = vlaneseq
          %v2524 = vshrl.u32 %v2523, 7
          %v2525 = vsub.s32 %v2522, %v2524
          %v2526 = vrot.slane %v2512, %v2525
          %v2527 = vcombine.low %v2519, %v2526
          %v2529 = vunpack.c.l.s4 1935823168
          %v2530 = vunpack.c.0.s8 %v2529
          %v2531 = vlaneseq
          %v2532 = vshrl.u32 %v2531, 7
          %v2533 = vsub.s32 %v2530, %v2532
          %v2534 = vrot.slane %v2527, %v2533
          %v2535 = vcombine.low %v1558, %v1596
          %v2536 = vcombine.low %v1572, %v1610
          %v2538 = vunpack.c.l.s4 1935823168
          %v2539 = vunpack.c.0.s8 %v2538
          %v2540 = vlaneseq
          %v2541 = vshrl.u32 %v2540, 7
          %v2542 = vsub.s32 %v2539, %v2541
          %v2543 = vrot.slane %v2535, %v2542
          %v2545 = vunpack.c.l.s4 1935823168
          %v2546 = vunpack.c.0.s8 %v2545
          %v2547 = vlaneseq
          %v2548 = vshrl.u32 %v2547, 7
          %v2549 = vsub.s32 %v2546, %v2548
          %v2550 = vrot.slane %v2536, %v2549
          %v2551 = vcombine.low %v2543, %v2550
          %v2553 = vunpack.c.l.s4 1935823168
          %v2554 = vunpack.c.0.s8 %v2553
          %v2555 = vlaneseq
          %v2556 = vshrl.u32 %v2555, 7
          %v2557 = vsub.s32 %v2554, %v2556
          %v2558 = vrot.slane %v2551, %v2557
          %v2559 = vcombine.low %v1618, %v1603
          %v2560 = vcombine.low %v1620, %v1617
          %v2562 = vunpack.c.l.s4 1935823168
          %v2563 = vunpack.c.0.s8 %v2562
          %v2564 = vlaneseq
          %v2565 = vshrl.u32 %v2564, 7
          %v2566 = vsub.s32 %v2563, %v2565
          %v2567 = vrot.slane %v2559, %v2566
          %v2569 = vunpack.c.l.s4 1935823168
          %v2570 = vunpack.c.0.s8 %v2569
          %v2571 = vlaneseq
          %v2572 = vshrl.u32 %v2571, 7
          %v2573 = vsub.s32 %v2570, %v2572
          %v2574 = vrot.slane %v2560, %v2573
          %v2575 = vcombine.low %v2567, %v2574
          %v2577 = vunpack.c.l.s4 1935823168
          %v2578 = vunpack.c.0.s8 %v2577
          %v2579 = vlaneseq
          %v2580 = vshrl.u32 %v2579, 7
          %v2581 = vsub.s32 %v2578, %v2580
          %v2582 = vrot.slane %v2575, %v2581
          %v2583 = vcombine.low %v1619, %v1635
          %v2584 = vcombine.low %v1621, %v1659
          %v2586 = vunpack.c.l.s4 1935823168
          %v2587 = vunpack.c.0.s8 %v2586
          %v2588 = vlaneseq
          %v2589 = vshrl.u32 %v2588, 7
          %v2590 = vsub.s32 %v2587, %v2589
          %v2591 = vrot.slane %v2583, %v2590
          %v2593 = vunpack.c.l.s4 1935823168
          %v2594 = vunpack.c.0.s8 %v2593
          %v2595 = vlaneseq
          %v2596 = vshrl.u32 %v2595, 7
          %v2597 = vsub.s32 %v2594, %v2596
          %v2598 = vrot.slane %v2584, %v2597
          %v2599 = vcombine.low %v2591, %v2598
          %v2601 = vunpack.c.l.s4 1935823168
          %v2602 = vunpack.c.0.s8 %v2601
          %v2603 = vlaneseq
          %v2604 = vshrl.u32 %v2603, 7
          %v2605 = vsub.s32 %v2602, %v2604
          %v2606 = vrot.slane %v2599, %v2605
          %v2607 = vcombine.low %v1673, %v1683
          %v2608 = vcombine.low %v1681, %v1666
          %v2610 = vunpack.c.l.s4 1935823168
          %v2611 = vunpack.c.0.s8 %v2610
          %v2612 = vlaneseq
          %v2613 = vshrl.u32 %v2612, 7
          %v2614 = vsub.s32 %v2611, %v2613
          %v2615 = vrot.slane %v2607, %v2614
          %v2617 = vunpack.c.l.s4 1935823168
          %v2618 = vunpack.c.0.s8 %v2617
          %v2619 = vlaneseq
          %v2620 = vshrl.u32 %v2619, 7
          %v2621 = vsub.s32 %v2618, %v2620
          %v2622 = vrot.slane %v2608, %v2621
          %v2623 = vcombine.low %v2615, %v2622
          %v2625 = vunpack.c.l.s4 1935823168
          %v2626 = vunpack.c.0.s8 %v2625
          %v2627 = vlaneseq
          %v2628 = vshrl.u32 %v2627, 7
          %v2629 = vsub.s32 %v2626, %v2628
          %v2630 = vrot.slane %v2623, %v2629
          %v2631 = vcombine.low %v1680, %v1684
          %v2632 = vcombine.low %v1682, %v1698
          %v2634 = vunpack.c.l.s4 1935823168
          %v2635 = vunpack.c.0.s8 %v2634
          %v2636 = vlaneseq
          %v2637 = vshrl.u32 %v2636, 7
          %v2638 = vsub.s32 %v2635, %v2637
          %v2639 = vrot.slane %v2631, %v2638
          %v2641 = vunpack.c.l.s4 1935823168
          %v2642 = vunpack.c.0.s8 %v2641
          %v2643 = vlaneseq
          %v2644 = vshrl.u32 %v2643, 7
          %v2645 = vsub.s32 %v2642, %v2644
          %v2646 = vrot.slane %v2632, %v2645
          %v2647 = vcombine.low %v2639, %v2646
          %v2649 = vunpack.c.l.s4 1935823168
          %v2650 = vunpack.c.0.s8 %v2649
          %v2651 = vlaneseq
          %v2652 = vshrl.u32 %v2651, 7
          %v2653 = vsub.s32 %v2650, %v2652
          %v2654 = vrot.slane %v2647, %v2653
          %v2655 = vcombine.low %v1722, %v1744
          %v2656 = vcombine.low %v1736, %v1746
          %v2658 = vunpack.c.l.s4 1935823168
          %v2659 = vunpack.c.0.s8 %v2658
          %v2660 = vlaneseq
          %v2661 = vshrl.u32 %v2660, 7
          %v2662 = vsub.s32 %v2659, %v2661
          %v2663 = vrot.slane %v2655, %v2662
          %v2665 = vunpack.c.l.s4 1935823168
          %v2666 = vunpack.c.0.s8 %v2665
          %v2667 = vlaneseq
          %v2668 = vshrl.u32 %v2667, 7
          %v2669 = vsub.s32 %v2666, %v2668
          %v2670 = vrot.slane %v2656, %v2669
          %v2671 = vcombine.low %v2663, %v2670
          %v2673 = vunpack.c.l.s4 1935823168
          %v2674 = vunpack.c.0.s8 %v2673
          %v2675 = vlaneseq
          %v2676 = vshrl.u32 %v2675, 7
          %v2677 = vsub.s32 %v2674, %v2676
          %v2678 = vrot.slane %v2671, %v2677
          %v2679 = vcombine.low %v1729, %v1745
          %v2680 = vcombine.low %v1743, %v1747
          %v2682 = vunpack.c.l.s4 1935823168
          %v2683 = vunpack.c.0.s8 %v2682
          %v2684 = vlaneseq
          %v2685 = vshrl.u32 %v2684, 7
          %v2686 = vsub.s32 %v2683, %v2685
          %v2687 = vrot.slane %v2679, %v2686
          %v2689 = vunpack.c.l.s4 1935823168
          %v2690 = vunpack.c.0.s8 %v2689
          %v2691 = vlaneseq
          %v2692 = vshrl.u32 %v2691, 7
          %v2693 = vsub.s32 %v2690, %v2692
          %v2694 = vrot.slane %v2680, %v2693
          %v2695 = vcombine.low %v2687, %v2694
          %v2697 = vunpack.c.l.s4 1935823168
          %v2698 = vunpack.c.0.s8 %v2697
          %v2699 = vlaneseq
          %v2700 = vshrl.u32 %v2699, 7
          %v2701 = vsub.s32 %v2698, %v2700
          %v2702 = vrot.slane %v2695, %v2701
          %v2703 = vcombine.low %v1761, %v1799
          %v2704 = vcombine.low %v1785, %v1807
          %v2706 = vunpack.c.l.s4 1935823168
          %v2707 = vunpack.c.0.s8 %v2706
          %v2708 = vlaneseq
          %v2709 = vshrl.u32 %v2708, 7
          %v2710 = vsub.s32 %v2707, %v2709
          %v2711 = vrot.slane %v2703, %v2710
          %v2713 = vunpack.c.l.s4 1935823168
          %v2714 = vunpack.c.0.s8 %v2713
          %v2715 = vlaneseq
          %v2716 = vshrl.u32 %v2715, 7
          %v2717 = vsub.s32 %v2714, %v2716
          %v2718 = vrot.slane %v2704, %v2717
          %v2719 = vcombine.low %v2711, %v2718
          %v2721 = vunpack.c.l.s4 1935823168
          %v2722 = vunpack.c.0.s8 %v2721
          %v2723 = vlaneseq
          %v2724 = vshrl.u32 %v2723, 7
          %v2725 = vsub.s32 %v2722, %v2724
          %v2726 = vrot.slane %v2719, %v2725
          %v2727 = vcombine.low %v1809, %v1806
          %v2728 = vcombine.low %v1792, %v1808
          %v2730 = vunpack.c.l.s4 1935823168
          %v2731 = vunpack.c.0.s8 %v2730
          %v2732 = vlaneseq
          %v2733 = vshrl.u32 %v2732, 7
          %v2734 = vsub.s32 %v2731, %v2733
          %v2735 = vrot.slane %v2727, %v2734
          %v2737 = vunpack.c.l.s4 1935823168
          %v2738 = vunpack.c.0.s8 %v2737
          %v2739 = vlaneseq
          %v2740 = vshrl.u32 %v2739, 7
          %v2741 = vsub.s32 %v2738, %v2740
          %v2742 = vrot.slane %v2728, %v2741
          %v2743 = vcombine.low %v2735, %v2742
          %v2745 = vunpack.c.l.s4 1935823168
          %v2746 = vunpack.c.0.s8 %v2745
          %v2747 = vlaneseq
          %v2748 = vshrl.u32 %v2747, 7
          %v2749 = vsub.s32 %v2746, %v2748
          %v2750 = vrot.slane %v2743, %v2749
          %v2751 = vcombine.low %v1810, %v1848
          %v2752 = vcombine.low %v1824, %v1862
          %v2754 = vunpack.c.l.s4 1935823168
          %v2755 = vunpack.c.0.s8 %v2754
          %v2756 = vlaneseq
          %v2757 = vshrl.u32 %v2756, 7
          %v2758 = vsub.s32 %v2755, %v2757
          %v2759 = vrot.slane %v2751, %v2758
          %v2761 = vunpack.c.l.s4 1935823168
          %v2762 = vunpack.c.0.s8 %v2761
          %v2763 = vlaneseq
          %v2764 = vshrl.u32 %v2763, 7
          %v2765 = vsub.s32 %v2762, %v2764
          %v2766 = vrot.slane %v2752, %v2765
          %v2767 = vcombine.low %v2759, %v2766
          %v2769 = vunpack.c.l.s4 1935823168
          %v2770 = vunpack.c.0.s8 %v2769
          %v2771 = vlaneseq
          %v2772 = vshrl.u32 %v2771, 7
          %v2773 = vsub.s32 %v2770, %v2772
          %v2774 = vrot.slane %v2767, %v2773
          %v2775 = vcombine.low %v1870, %v1855
          %v2776 = vcombine.low %v1872, %v1869
          %v2778 = vunpack.c.l.s4 1935823168
          %v2779 = vunpack.c.0.s8 %v2778
          %v2780 = vlaneseq
          %v2781 = vshrl.u32 %v2780, 7
          %v2782 = vsub.s32 %v2779, %v2781
          %v2783 = vrot.slane %v2775, %v2782
          %v2785 = vunpack.c.l.s4 1935823168
          %v2786 = vunpack.c.0.s8 %v2785
          %v2787 = vlaneseq
          %v2788 = vshrl.u32 %v2787, 7
          %v2789 = vsub.s32 %v2786, %v2788
          %v2790 = vrot.slane %v2776, %v2789
          %v2791 = vcombine.low %v2783, %v2790
          %v2793 = vunpack.c.l.s4 1935823168
          %v2794 = vunpack.c.0.s8 %v2793
          %v2795 = vlaneseq
          %v2796 = vshrl.u32 %v2795, 7
          %v2797 = vsub.s32 %v2794, %v2796
          %v2798 = vrot.slane %v2791, %v2797
          %v2799 = vcombine.low %v1871, %v1887
          %v2800 = vcombine.low %v1873, %v1911
          %v2802 = vunpack.c.l.s4 1935823168
          %v2803 = vunpack.c.0.s8 %v2802
          %v2804 = vlaneseq
          %v2805 = vshrl.u32 %v2804, 7
          %v2806 = vsub.s32 %v2803, %v2805
          %v2807 = vrot.slane %v2799, %v2806
          %v2809 = vunpack.c.l.s4 1935823168
          %v2810 = vunpack.c.0.s8 %v2809
          %v2811 = vlaneseq
          %v2812 = vshrl.u32 %v2811, 7
          %v2813 = vsub.s32 %v2810, %v2812
          %v2814 = vrot.slane %v2800, %v2813
          %v2815 = vcombine.low %v2807, %v2814
          %v2817 = vunpack.c.l.s4 1935823168
          %v2818 = vunpack.c.0.s8 %v2817
          %v2819 = vlaneseq
          %v2820 = vshrl.u32 %v2819, 7
          %v2821 = vsub.s32 %v2818, %v2820
          %v2822 = vrot.slane %v2815, %v2821
          %v2823 = vcombine.low %v1925, %v1935
          %v2824 = vcombine.low %v1933, %v1918
          %v2826 = vunpack.c.l.s4 1935823168
          %v2827 = vunpack.c.0.s8 %v2826
          %v2828 = vlaneseq
          %v2829 = vshrl.u32 %v2828, 7
          %v2830 = vsub.s32 %v2827, %v2829
          %v2831 = vrot.slane %v2823, %v2830
          %v2833 = vunpack.c.l.s4 1935823168
          %v2834 = vunpack.c.0.s8 %v2833
          %v2835 = vlaneseq
          %v2836 = vshrl.u32 %v2835, 7
          %v2837 = vsub.s32 %v2834, %v2836
          %v2838 = vrot.slane %v2824, %v2837
          %v2839 = vcombine.low %v2831, %v2838
          %v2841 = vunpack.c.l.s4 1935823168
          %v2842 = vunpack.c.0.s8 %v2841
          %v2843 = vlaneseq
          %v2844 = vshrl.u32 %v2843, 7
          %v2845 = vsub.s32 %v2842, %v2844
          %v2846 = vrot.slane %v2839, %v2845
          %v2847 = vcombine.low %v1932, %v1936
          %v2848 = vcombine.low %v1934, %v1950
          %v2850 = vunpack.c.l.s4 1935823168
          %v2851 = vunpack.c.0.s8 %v2850
          %v2852 = vlaneseq
          %v2853 = vshrl.u32 %v2852, 7
          %v2854 = vsub.s32 %v2851, %v2853
          %v2855 = vrot.slane %v2847, %v2854
          %v2857 = vunpack.c.l.s4 1935823168
          %v2858 = vunpack.c.0.s8 %v2857
          %v2859 = vlaneseq
          %v2860 = vshrl.u32 %v2859, 7
          %v2861 = vsub.s32 %v2858, %v2860
          %v2862 = vrot.slane %v2848, %v2861
          %v2863 = vcombine.low %v2855, %v2862
          %v2865 = vunpack.c.l.s4 1935823168
          %v2866 = vunpack.c.0.s8 %v2865
          %v2867 = vlaneseq
          %v2868 = vshrl.u32 %v2867, 7
          %v2869 = vsub.s32 %v2866, %v2868
          %v2870 = vrot.slane %v2863, %v2869
          %v2871 = vcombine.low %v1974, %v1996
          %v2872 = vcombine.low %v1988, %v1998
          %v2874 = vunpack.c.l.s4 1935823168
          %v2875 = vunpack.c.0.s8 %v2874
          %v2876 = vlaneseq
          %v2877 = vshrl.u32 %v2876, 7
          %v2878 = vsub.s32 %v2875, %v2877
          %v2879 = vrot.slane %v2871, %v2878
          %v2881 = vunpack.c.l.s4 1935823168
          %v2882 = vunpack.c.0.s8 %v2881
          %v2883 = vlaneseq
          %v2884 = vshrl.u32 %v2883, 7
          %v2885 = vsub.s32 %v2882, %v2884
          %v2886 = vrot.slane %v2872, %v2885
          %v2887 = vcombine.low %v2879, %v2886
          %v2889 = vunpack.c.l.s4 1935823168
          %v2890 = vunpack.c.0.s8 %v2889
          %v2891 = vlaneseq
          %v2892 = vshrl.u32 %v2891, 7
          %v2893 = vsub.s32 %v2890, %v2892
          %v2894 = vrot.slane %v2887, %v2893
          %v2895 = vcombine.low %v1981, %v1997
          %v2896 = vcombine.low %v1995, %v1999
          %v2898 = vunpack.c.l.s4 1935823168
          %v2899 = vunpack.c.0.s8 %v2898
          %v2900 = vlaneseq
          %v2901 = vshrl.u32 %v2900, 7
          %v2902 = vsub.s32 %v2899, %v2901
          %v2903 = vrot.slane %v2895, %v2902
          %v2905 = vunpack.c.l.s4 1935823168
          %v2906 = vunpack.c.0.s8 %v2905
          %v2907 = vlaneseq
          %v2908 = vshrl.u32 %v2907, 7
          %v2909 = vsub.s32 %v2906, %v2908
          %v2910 = vrot.slane %v2896, %v2909
          %v2911 = vcombine.low %v2903, %v2910
          %v2913 = vunpack.c.l.s4 1935823168
          %v2914 = vunpack.c.0.s8 %v2913
          %v2915 = vlaneseq
          %v2916 = vshrl.u32 %v2915, 7
          %v2917 = vsub.s32 %v2914, %v2916
          %v2918 = vrot.slane %v2911, %v2917
          %v2919 = vcombine.low %v2013, %v2051
          %v2920 = vcombine.low %v2037, %v2059
          %v2922 = vunpack.c.l.s4 1935823168
          %v2923 = vunpack.c.0.s8 %v2922
          %v2924 = vlaneseq
          %v2925 = vshrl.u32 %v2924, 7
          %v2926 = vsub.s32 %v2923, %v2925
          %v2927 = vrot.slane %v2919, %v2926
          %v2929 = vunpack.c.l.s4 1935823168
          %v2930 = vunpack.c.0.s8 %v2929
          %v2931 = vlaneseq
          %v2932 = vshrl.u32 %v2931, 7
          %v2933 = vsub.s32 %v2930, %v2932
          %v2934 = vrot.slane %v2920, %v2933
          %v2935 = vcombine.low %v2927, %v2934
          %v2937 = vunpack.c.l.s4 1935823168
          %v2938 = vunpack.c.0.s8 %v2937
          %v2939 = vlaneseq
          %v2940 = vshrl.u32 %v2939, 7
          %v2941 = vsub.s32 %v2938, %v2940
          %v2942 = vrot.slane %v2935, %v2941
          %v2943 = vcombine.low %v2061, %v2058
          %v2944 = vcombine.low %v2044, %v2060
          %v2946 = vunpack.c.l.s4 1935823168
          %v2947 = vunpack.c.0.s8 %v2946
          %v2948 = vlaneseq
          %v2949 = vshrl.u32 %v2948, 7
          %v2950 = vsub.s32 %v2947, %v2949
          %v2951 = vrot.slane %v2943, %v2950
          %v2953 = vunpack.c.l.s4 1935823168
          %v2954 = vunpack.c.0.s8 %v2953
          %v2955 = vlaneseq
          %v2956 = vshrl.u32 %v2955, 7
          %v2957 = vsub.s32 %v2954, %v2956
          %v2958 = vrot.slane %v2944, %v2957
          %v2959 = vcombine.low %v2951, %v2958
          %v2961 = vunpack.c.l.s4 1935823168
          %v2962 = vunpack.c.0.s8 %v2961
          %v2963 = vlaneseq
          %v2964 = vshrl.u32 %v2963, 7
          %v2965 = vsub.s32 %v2962, %v2964
          %v2966 = vrot.slane %v2959, %v2965
          %v2967 = vcombine.low %v2062, %v2100
          %v2968 = vcombine.low %v2076, %v2114
          %v2970 = vunpack.c.l.s4 1935823168
          %v2971 = vunpack.c.0.s8 %v2970
          %v2972 = vlaneseq
          %v2973 = vshrl.u32 %v2972, 7
          %v2974 = vsub.s32 %v2971, %v2973
          %v2975 = vrot.slane %v2967, %v2974
          %v2977 = vunpack.c.l.s4 1935823168
          %v2978 = vunpack.c.0.s8 %v2977
          %v2979 = vlaneseq
          %v2980 = vshrl.u32 %v2979, 7
          %v2981 = vsub.s32 %v2978, %v2980
          %v2982 = vrot.slane %v2968, %v2981
          %v2983 = vcombine.low %v2975, %v2982
          %v2985 = vunpack.c.l.s4 1935823168
          %v2986 = vunpack.c.0.s8 %v2985
          %v2987 = vlaneseq
          %v2988 = vshrl.u32 %v2987, 7
          %v2989 = vsub.s32 %v2986, %v2988
          %v2990 = vrot.slane %v2983, %v2989
          %v2991 = vcombine.low %v2122, %v2107
          %v2992 = vcombine.low %v2124, %v2121
          %v2994 = vunpack.c.l.s4 1935823168
          %v2995 = vunpack.c.0.s8 %v2994
          %v2996 = vlaneseq
          %v2997 = vshrl.u32 %v2996, 7
          %v2998 = vsub.s32 %v2995, %v2997
          %v2999 = vrot.slane %v2991, %v2998
          %v3001 = vunpack.c.l.s4 1935823168
          %v3002 = vunpack.c.0.s8 %v3001
          %v3003 = vlaneseq
          %v3004 = vshrl.u32 %v3003, 7
          %v3005 = vsub.s32 %v3002, %v3004
          %v3006 = vrot.slane %v2992, %v3005
          %v3007 = vcombine.low %v2999, %v3006
          %v3009 = vunpack.c.l.s4 1935823168
          %v3010 = vunpack.c.0.s8 %v3009
          %v3011 = vlaneseq
          %v3012 = vshrl.u32 %v3011, 7
          %v3013 = vsub.s32 %v3010, %v3012
          %v3014 = vrot.slane %v3007, %v3013
          %v3015 = vcombine.low %v2123, %v2139
          %v3016 = vcombine.low %v2125, %v2163
          %v3018 = vunpack.c.l.s4 1935823168
          %v3019 = vunpack.c.0.s8 %v3018
          %v3020 = vlaneseq
          %v3021 = vshrl.u32 %v3020, 7
          %v3022 = vsub.s32 %v3019, %v3021
          %v3023 = vrot.slane %v3015, %v3022
          %v3025 = vunpack.c.l.s4 1935823168
          %v3026 = vunpack.c.0.s8 %v3025
          %v3027 = vlaneseq
          %v3028 = vshrl.u32 %v3027, 7
          %v3029 = vsub.s32 %v3026, %v3028
          %v3030 = vrot.slane %v3016, %v3029
          %v3031 = vcombine.low %v3023, %v3030
          %v3033 = vunpack.c.l.s4 1935823168
          %v3034 = vunpack.c.0.s8 %v3033
          %v3035 = vlaneseq
          %v3036 = vshrl.u32 %v3035, 7
          %v3037 = vsub.s32 %v3034, %v3036
          %v3038 = vrot.slane %v3031, %v3037
          %v3039 = vcombine.low %v2177, %v2187
          %v3040 = vcombine.low %v2185, %v2170
          %v3042 = vunpack.c.l.s4 1935823168
          %v3043 = vunpack.c.0.s8 %v3042
          %v3044 = vlaneseq
          %v3045 = vshrl.u32 %v3044, 7
          %v3046 = vsub.s32 %v3043, %v3045
          %v3047 = vrot.slane %v3039, %v3046
          %v3049 = vunpack.c.l.s4 1935823168
          %v3050 = vunpack.c.0.s8 %v3049
          %v3051 = vlaneseq
          %v3052 = vshrl.u32 %v3051, 7
          %v3053 = vsub.s32 %v3050, %v3052
          %v3054 = vrot.slane %v3040, %v3053
          %v3055 = vcombine.low %v3047, %v3054
          %v3057 = vunpack.c.l.s4 1935823168
          %v3058 = vunpack.c.0.s8 %v3057
          %v3059 = vlaneseq
          %v3060 = vshrl.u32 %v3059, 7
          %v3061 = vsub.s32 %v3058, %v3060
          %v3062 = vrot.slane %v3055, %v3061
          %v3063 = vcombine.low %v2184, %v2188
          %v3064 = vcombine.low %v2186, %v2202
          %v3066 = vunpack.c.l.s4 1935823168
          %v3067 = vunpack.c.0.s8 %v3066
          %v3068 = vlaneseq
          %v3069 = vshrl.u32 %v3068, 7
          %v3070 = vsub.s32 %v3067, %v3069
          %v3071 = vrot.slane %v3063, %v3070
          %v3073 = vunpack.c.l.s4 1935823168
          %v3074 = vunpack.c.0.s8 %v3073
          %v3075 = vlaneseq
          %v3076 = vshrl.u32 %v3075, 7
          %v3077 = vsub.s32 %v3074, %v3076
          %v3078 = vrot.slane %v3064, %v3077
          %v3079 = vcombine.low %v3071, %v3078
          %v3081 = vunpack.c.l.s4 1935823168
          %v3082 = vunpack.c.0.s8 %v3081
          %v3083 = vlaneseq
          %v3084 = vshrl.u32 %v3083, 7
          %v3085 = vsub.s32 %v3082, %v3084
          %v3086 = vrot.slane %v3079, %v3085
          %v3087 = vcombine.low %v2226, %v2248
          %v3088 = vcombine.low %v2240, %v2250
          %v3090 = vunpack.c.l.s4 1935823168
          %v3091 = vunpack.c.0.s8 %v3090
          %v3092 = vlaneseq
          %v3093 = vshrl.u32 %v3092, 7
          %v3094 = vsub.s32 %v3091, %v3093
          %v3095 = vrot.slane %v3087, %v3094
          %v3097 = vunpack.c.l.s4 1935823168
          %v3098 = vunpack.c.0.s8 %v3097
          %v3099 = vlaneseq
          %v3100 = vshrl.u32 %v3099, 7
          %v3101 = vsub.s32 %v3098, %v3100
          %v3102 = vrot.slane %v3088, %v3101
          %v3103 = vcombine.low %v3095, %v3102
          %v3105 = vunpack.c.l.s4 1935823168
          %v3106 = vunpack.c.0.s8 %v3105
          %v3107 = vlaneseq
          %v3108 = vshrl.u32 %v3107, 7
          %v3109 = vsub.s32 %v3106, %v3108
          %v3110 = vrot.slane %v3103, %v3109
          %v3111 = vcombine.low %v2233, %v2249
          %v3112 = vcombine.low %v2247, %v2251
          %v3114 = vunpack.c.l.s4 1935823168
          %v3115 = vunpack.c.0.s8 %v3114
          %v3116 = vlaneseq
          %v3117 = vshrl.u32 %v3116, 7
          %v3118 = vsub.s32 %v3115, %v3117
          %v3119 = vrot.slane %v3111, %v3118
          %v3121 = vunpack.c.l.s4 1935823168
          %v3122 = vunpack.c.0.s8 %v3121
          %v3123 = vlaneseq
          %v3124 = vshrl.u32 %v3123, 7
          %v3125 = vsub.s32 %v3122, %v3124
          %v3126 = vrot.slane %v3112, %v3125
          %v3127 = vcombine.low %v3119, %v3126
          %v3129 = vunpack.c.l.s4 1935823168
          %v3130 = vunpack.c.0.s8 %v3129
          %v3131 = vlaneseq
          %v3132 = vshrl.u32 %v3131, 7
          %v3133 = vsub.s32 %v3130, %v3132
          %v3134 = vrot.slane %v3127, %v3133
          %v3136 = vunpack.c.l.s4 1935823168
          %v3137 = vunpack.c.0.s8 %v3136
          %v3138 = vlaneseq
          %v3139 = vshrl.u32 %v3138, 7
          %v3140 = vsub.s32 %v3137, %v3139
          %v3141 = vrot.slane %v2265, %v3140
          %v3143 = vunpack.c.l.s4 1935823168
          %v3144 = vunpack.c.0.s8 %v3143
          %v3145 = vlaneseq
          %v3146 = vshrl.u32 %v3145, 7
          %v3147 = vsub.s32 %v3144, %v3146
          %v3148 = vrot.slane %v3141, %v3147
          %vm3186 = vcmask 60417
          %3187 = vst.msk [vmem:[#allocation2 + $0x8] sm:$0xe] %vm3186, %v2294
          %3188 = vst.msk [vmem:[#allocation2 + $0xc] sm:$0xf] %vm2266, %v2318
          %3189 = vst.msk [vmem:[#allocation2 + $0x10] sm:$0xf] %vm2266, %v2342
          %3190 = vst.msk [vmem:[#allocation2 + $0x14] sm:$0xf] %vm2266, %v2366
          %3191 = vst.msk [vmem:[#allocation2 + $0x18] sm:$0xf] %vm2266, %v2390
          %3192 = vst.msk [vmem:[#allocation2 + $0x1c] sm:$0xf] %vm2266, %v2414
          %3193 = vst.msk [vmem:[#allocation2 + $0x20] sm:$0xf] %vm2266, %v2438
          %3194 = vst.msk [vmem:[#allocation2 + $0x24] sm:$0xf] %vm2266, %v2462
          %3195 = vst.msk [vmem:[#allocation2 + $0x28] sm:$0xf] %vm2266, %v2486
          %3196 = vst.msk [vmem:[#allocation2 + $0x2c] sm:$0xf] %vm2266, %v2510
          %3197 = vst.msk [vmem:[#allocation2 + $0x30] sm:$0xf] %vm2266, %v2534
          %3198 = vst.msk [vmem:[#allocation2 + $0x34] sm:$0xf] %vm2266, %v2558
          %3199 = vst.msk [vmem:[#allocation2 + $0x38] sm:$0xf] %vm2266, %v2582
          %3200 = vst.msk [vmem:[#allocation2 + $0x3c] sm:$0xf] %vm2266, %v2606
          %3201 = vst.msk [vmem:[#allocation2 + $0x40] sm:$0xf] %vm2266, %v2630
          %3202 = vst.msk [vmem:[#allocation2 + $0x44] sm:$0xf] %vm2266, %v2654
          %3203 = vst.msk [vmem:[#allocation2 + $0x48] sm:$0xf] %vm2266, %v2678
          %3204 = vst.msk [vmem:[#allocation2 + $0x4c] sm:$0xf] %vm2266, %v2702
          %3205 = vst.msk [vmem:[#allocation2 + $0x50] sm:$0xf] %vm2266, %v2726
          %3206 = vst.msk [vmem:[#allocation2 + $0x54] sm:$0xf] %vm2266, %v2750
          %3207 = vst.msk [vmem:[#allocation2 + $0x58] sm:$0xf] %vm2266, %v2774
          %3208 = vst.msk [vmem:[#allocation2 + $0x5c] sm:$0xf] %vm2266, %v2798
          %3209 = vst.msk [vmem:[#allocation2 + $0x60] sm:$0xf] %vm2266, %v2822
          %3210 = vst.msk [vmem:[#allocation2 + $0x64] sm:$0xf] %vm2266, %v2846
          %3211 = vst.msk [vmem:[#allocation2 + $0x68] sm:$0xf] %vm2266, %v2870
          %3212 = vst.msk [vmem:[#allocation2 + $0x6c] sm:$0xf] %vm2266, %v2894
          %3213 = vst.msk [vmem:[#allocation2 + $0x70] sm:$0xf] %vm2266, %v2918
          %3214 = vst.msk [vmem:[#allocation2 + $0x74] sm:$0xf] %vm2266, %v2942
          %3215 = vst.msk [vmem:[#allocation2 + $0x78] sm:$0xf] %vm2266, %v2966
          %3216 = vst.msk [vmem:[#allocation2 + $0x7c] sm:$0xf] %vm2266, %v2990
          %3217 = vst.msk [vmem:[#allocation2 + $0x80] sm:$0xf] %vm2266, %v3014
          %3218 = vst.msk [vmem:[#allocation2 + $0x84] sm:$0xf] %vm2266, %v3038
          %3219 = vst.msk [vmem:[#allocation2 + $0x88] sm:$0xf] %vm2266, %v3062
          %3220 = vst.msk [vmem:[#allocation2 + $0x8c] sm:$0xf] %vm2266, %v3086
          %3221 = vst.msk [vmem:[#allocation2 + $0x90] sm:$0xf] %vm2266, %v3110
          %3222 = vst.msk [vmem:[#allocation2 + $0x94] sm:$0xf] %vm2266, %v3134
          %3223 = vst.msk [vmem:[#allocation2 + $0x98] sm:$0x1] %vm2269, %v3148
          %3224 = vst.msk [vmem:[#allocation2 + $0x98] sm:$0xe] %vm3186, 0
          %3225 = vst.msk [vmem:[#allocation2 + $0x9c] sm:$0xf] %vm2266, 0
          %3226 = vst.msk [vmem:[#allocation2 + $0xa0] sm:$0xf] %vm2266, 0
          %3227 = vst.msk [vmem:[#allocation2 + $0xa4] sm:$0xf] %vm2266, 0
          %vm3228 = vcmask 59392
          %3229 = vst.msk [vmem:[#allocation2 + $0xa8] sm:$0x7] %vm3228, 0
        $region48: #{tpu_custom_call.1} parent=43 // pred_fallthru
          _
        %v3230 = vld [vmem:[#allocation2] sm:$0xf]
        %v3231 = vld [vmem:[#allocation2 + $0x4] sm:$0xf]
        %v3232 = vld [vmem:[#allocation2 + $0x8] sm:$0xf]
        %v3233 = vld [vmem:[#allocation2 + $0xc] sm:$0xf]
        %v3234 = vld [vmem:[#allocation2 + $0x10] sm:$0xf]
        %v3235 = vld [vmem:[#allocation2 + $0x14] sm:$0xf]
        %v3236 = vld [vmem:[#allocation2 + $0x18] sm:$0xf]
        %v3237 = vld [vmem:[#allocation2 + $0x1c] sm:$0xf]
        %v3238 = vld [vmem:[#allocation2 + $0x20] sm:$0xf]
        %v3239 = vld [vmem:[#allocation2 + $0x24] sm:$0xf]
        %v3240 = vld [vmem:[#allocation2 + $0x28] sm:$0xf]
        %v3241 = vld [vmem:[#allocation2 + $0x2c] sm:$0xf]
        %v3242 = vld [vmem:[#allocation2 + $0x30] sm:$0xf]
        %v3243 = vld [vmem:[#allocation2 + $0x34] sm:$0xf]
        %v3244 = vld [vmem:[#allocation2 + $0x38] sm:$0xf]
        %v3245 = vld [vmem:[#allocation2 + $0x3c] sm:$0xf]
        %v3246 = vld [vmem:[#allocation2 + $0x40] sm:$0xf]
        %v3247 = vld [vmem:[#allocation2 + $0x44] sm:$0xf]
        %v3248 = vld [vmem:[#allocation2 + $0x48] sm:$0xf]
        %v3249 = vld [vmem:[#allocation2 + $0x4c] sm:$0xf]
        %v3250 = vld [vmem:[#allocation2 + $0x50] sm:$0xf]
        %v3251 = vld [vmem:[#allocation2 + $0x54] sm:$0xf]
        %v3252 = vld [vmem:[#allocation2 + $0x58] sm:$0xf]
        %v3253 = vld [vmem:[#allocation2 + $0x5c] sm:$0xf]
        %v3254 = vld [vmem:[#allocation2 + $0x60] sm:$0xf]
        %v3255 = vld [vmem:[#allocation2 + $0x64] sm:$0xf]
        %v3256 = vld [vmem:[#allocation2 + $0x68] sm:$0xf]
        %v3257 = vld [vmem:[#allocation2 + $0x6c] sm:$0xf]
        %v3258 = vld [vmem:[#allocation2 + $0x70] sm:$0xf]
        %v3259 = vld [vmem:[#allocation2 + $0x74] sm:$0xf]
        %v3260 = vld [vmem:[#allocation2 + $0x78] sm:$0xf]
        %v3261 = vld [vmem:[#allocation2 + $0x7c] sm:$0xf]
        %v3262 = vld [vmem:[#allocation2 + $0x80] sm:$0xf]
        %v3263 = vld [vmem:[#allocation2 + $0x84] sm:$0xf]
        %v3264 = vld [vmem:[#allocation2 + $0x88] sm:$0xf]
        %v3265 = vld [vmem:[#allocation2 + $0x8c] sm:$0xf]
        %v3266 = vld [vmem:[%s291] sm:$0xf]
        %v3267 = vld [vmem:[#allocation2 + $0x90] sm:$0x1]
        %s3268 = scalar_lea.vmem %s291, 4
        %v3269 = vld [vmem:[%s3268] sm:$0xf]
        %v3307 = vunpack.c.l.b16 %v3230
        %v3308 = vunpack.c.l.b16 %v3231
        %v3309 = vunpack.c.l.b16 %v3232
        %v3310 = vunpack.c.l.b16 %v3233
        %v3311 = vunpack.c.l.b16 %v3234
        %v3312 = vunpack.c.l.b16 %v3235
        %v3313 = vunpack.c.l.b16 %v3236
        %v3314 = vunpack.c.l.b16 %v3237
        %v3315 = vunpack.c.l.b16 %v3238
        %v3316 = vunpack.c.l.b16 %v3239
        %v3317 = vunpack.c.l.b16 %v3240
        %v3318 = vunpack.c.l.b16 %v3241
        %v3319 = vunpack.c.l.b16 %v3242
        %v3320 = vunpack.c.l.b16 %v3243
        %v3321 = vunpack.c.l.b16 %v3244
        %v3322 = vunpack.c.l.b16 %v3245
        %v3323 = vunpack.c.l.b16 %v3246
        %v3324 = vunpack.c.l.b16 %v3247
        %v3325 = vunpack.c.l.b16 %v3248
        %v3326 = vunpack.c.l.b16 %v3249
        %v3327 = vunpack.c.l.b16 %v3250
        %v3328 = vunpack.c.l.b16 %v3251
        %v3329 = vunpack.c.l.b16 %v3252
        %v3330 = vunpack.c.l.b16 %v3253
        %v3331 = vunpack.c.l.b16 %v3254
        %v3332 = vunpack.c.l.b16 %v3255
        %v3333 = vunpack.c.l.b16 %v3256
        %v3334 = vunpack.c.l.b16 %v3257
        %v3335 = vunpack.c.l.b16 %v3258
        %v3336 = vunpack.c.l.b16 %v3259
        %v3337 = vunpack.c.l.b16 %v3260
        %v3338 = vunpack.c.l.b16 %v3261
        %v3339 = vunpack.c.l.b16 %v3262
        %v3340 = vunpack.c.l.b16 %v3263
        %v3341 = vunpack.c.l.b16 %v3264
        %v3342 = vunpack.c.l.b16 %v3265
        %v3343 = vunpack.c.l.b16 %v3267
        %v3344 = vpack.c.b16 %v3308, %v3307
        %v3345 = vpack.c.b16 %v3310, %v3309
        %v3346 = vpack.c.b16 %v3312, %v3311
        %v3347 = vpack.c.b16 %v3314, %v3313
        %v3348 = vpack.c.b16 %v3316, %v3315
        %v3349 = vpack.c.b16 %v3318, %v3317
        %v3350 = vpack.c.b16 %v3320, %v3319
        %v3351 = vpack.c.b16 %v3322, %v3321
        %v3352 = vpack.c.b16 %v3324, %v3323
        %v3353 = vpack.c.b16 %v3326, %v3325
        %v3354 = vpack.c.b16 %v3328, %v3327
        %v3355 = vpack.c.b16 %v3330, %v3329
        %v3356 = vpack.c.b16 %v3332, %v3331
        %v3357 = vpack.c.b16 %v3334, %v3333
        %v3358 = vpack.c.b16 %v3336, %v3335
        %v3359 = vpack.c.b16 %v3338, %v3337
        %v3360 = vpack.c.b16 %v3340, %v3339
        %v3361 = vpack.c.b16 %v3342, %v3341
        %v3362 = vpack.c.b16 %v3343, %v3343
        %vm3363 = vsmask.f32 7424
        %v3365 = vshrl.u32 %v3344, 16
        %v3367 = vshll.u32 %v3344, 16
        %v3369 = vrot.slane %v3367, 1
        %v3370 = vor.u32 %v3365, %v3369
        %v3372 = vshll.u32 %v3345, 16
        %v3374 = vrot.slane %v3372, 1
        %v3375 = vsel %vm3363, %v3370, %v3374
        %v3376 = vshrl.u32 %v3345, 16
        %v3378 = vor.u32 %v3376, %v3374
        %v3380 = vshll.u32 %v3346, 16
        %v3382 = vrot.slane %v3380, 1
        %v3383 = vsel %vm3363, %v3378, %v3382
        %v3384 = vshrl.u32 %v3346, 16
        %v3386 = vor.u32 %v3384, %v3382
        %v3388 = vshll.u32 %v3347, 16
        %v3390 = vrot.slane %v3388, 1
        %v3391 = vsel %vm3363, %v3386, %v3390
        %v3392 = vshrl.u32 %v3347, 16
        %v3394 = vor.u32 %v3392, %v3390
        %v3396 = vshll.u32 %v3348, 16
        %v3398 = vrot.slane %v3396, 1
        %v3399 = vsel %vm3363, %v3394, %v3398
        %v3400 = vshrl.u32 %v3348, 16
        %v3402 = vor.u32 %v3400, %v3398
        %v3404 = vshll.u32 %v3349, 16
        %v3406 = vrot.slane %v3404, 1
        %v3407 = vsel %vm3363, %v3402, %v3406
        %v3408 = vshrl.u32 %v3349, 16
        %v3410 = vor.u32 %v3408, %v3406
        %v3412 = vshll.u32 %v3350, 16
        %v3414 = vrot.slane %v3412, 1
        %v3415 = vsel %vm3363, %v3410, %v3414
        %v3416 = vshrl.u32 %v3350, 16
        %v3418 = vor.u32 %v3416, %v3414
        %v3420 = vshll.u32 %v3351, 16
        %v3422 = vrot.slane %v3420, 1
        %v3423 = vsel %vm3363, %v3418, %v3422
        %v3424 = vshrl.u32 %v3351, 16
        %v3426 = vor.u32 %v3424, %v3422
        %v3428 = vshll.u32 %v3352, 16
        %v3430 = vrot.slane %v3428, 1
        %v3431 = vsel %vm3363, %v3426, %v3430
        %v3432 = vshrl.u32 %v3352, 16
        %v3434 = vor.u32 %v3432, %v3430
        %v3436 = vshll.u32 %v3353, 16
        %v3438 = vrot.slane %v3436, 1
        %v3439 = vsel %vm3363, %v3434, %v3438
        %v3440 = vshrl.u32 %v3353, 16
        %v3442 = vor.u32 %v3440, %v3438
        %v3444 = vshll.u32 %v3354, 16
        %v3446 = vrot.slane %v3444, 1
        %v3447 = vsel %vm3363, %v3442, %v3446
        %v3448 = vshrl.u32 %v3354, 16
        %v3450 = vor.u32 %v3448, %v3446
        %v3452 = vshll.u32 %v3355, 16
        %v3454 = vrot.slane %v3452, 1
        %v3455 = vsel %vm3363, %v3450, %v3454
        %v3456 = vshrl.u32 %v3355, 16
        %v3458 = vor.u32 %v3456, %v3454
        %v3460 = vshll.u32 %v3356, 16
        %v3462 = vrot.slane %v3460, 1
        %v3463 = vsel %vm3363, %v3458, %v3462
        %v3464 = vshrl.u32 %v3356, 16
        %v3466 = vor.u32 %v3464, %v3462
        %v3468 = vshll.u32 %v3357, 16
        %v3470 = vrot.slane %v3468, 1
        %v3471 = vsel %vm3363, %v3466, %v3470
        %v3472 = vshrl.u32 %v3357, 16
        %v3474 = vor.u32 %v3472, %v3470
        %v3476 = vshll.u32 %v3358, 16
        %v3478 = vrot.slane %v3476, 1
        %v3479 = vsel %vm3363, %v3474, %v3478
        %v3480 = vshrl.u32 %v3358, 16
        %v3482 = vor.u32 %v3480, %v3478
        %v3484 = vshll.u32 %v3359, 16
        %v3486 = vrot.slane %v3484, 1
        %v3487 = vsel %vm3363, %v3482, %v3486
        %v3488 = vshrl.u32 %v3359, 16
        %v3490 = vor.u32 %v3488, %v3486
        %v3492 = vshll.u32 %v3360, 16
        %v3494 = vrot.slane %v3492, 1
        %v3495 = vsel %vm3363, %v3490, %v3494
        %v3496 = vshrl.u32 %v3360, 16
        %v3498 = vor.u32 %v3496, %v3494
        %v3500 = vshll.u32 %v3361, 16
        %v3502 = vrot.slane %v3500, 1
        %v3503 = vsel %vm3363, %v3498, %v3502
        %v3504 = vshrl.u32 %v3361, 16
        %v3506 = vor.u32 %v3504, %v3502
        %v3508 = vshll.u32 %v3362, 16
        %v3510 = vrot.slane %v3508, 1
        %v3511 = vsel %vm3363, %v3506, %v3510
        %vm3512 = vcmask 64512
        %v3514 = vsel %vm3512, %v3375, 0
        %v3517 = vsel %vm3512, %v3383, 0
        %v3520 = vsel %vm3512, %v3391, 0
        %v3523 = vsel %vm3512, %v3399, 0
        %v3526 = vsel %vm3512, %v3407, 0
        %v3529 = vsel %vm3512, %v3415, 0
        %v3532 = vsel %vm3512, %v3423, 0
        %v3535 = vsel %vm3512, %v3431, 0
        %v3538 = vsel %vm3512, %v3439, 0
        %v3541 = vsel %vm3512, %v3447, 0
        %v3544 = vsel %vm3512, %v3455, 0
        %v3547 = vsel %vm3512, %v3463, 0
        %v3550 = vsel %vm3512, %v3471, 0
        %v3553 = vsel %vm3512, %v3479, 0
        %v3556 = vsel %vm3512, %v3487, 0
        %v3559 = vsel %vm3512, %v3495, 0
        %v3562 = vsel %vm3512, %v3503, 0
        %v3565 = vsel %vm3512, %v3511, 0
        %vm3567 = vcmask 1043456
        %v3569 = vsel %vm3567, %v3269, 0
        %3571 = vmatprep.subr.bf16.mxu0 0
        %3572 = vmatpush1.bf16.msra.mxu0 %v3569
        %3573 = vmatprep.subr.bf16.mxu0 0
        %3574 = vmatpush1.bf16.msra.mxu0 0
        %3575 = vmatprep.subr.bf16.mxu0 0
        %3576 = vmatpush1.bf16.msra.mxu0 0
        %3577 = vmatprep.subr.bf16.mxu0 0
        %3578 = vmatpush1.bf16.msra.mxu0 0
        %3579 = vmatprep.subr.bf16.mxu0 0
        %3580 = vmatpush1.bf16.msra.mxu0 0
        %3581 = vmatprep.subr.bf16.mxu0 0
        %3582 = vmatpush1.bf16.msra.mxu0 0
        %3583 = vmatprep.subr.bf16.mxu0 0
        %3584 = vmatpush1.bf16.msra.mxu0 0
        %3585 = vmatprep.subr.bf16.mxu0 0
        %3586 = vmatpush1.bf16.msra.mxu0 0
        %3587 = vmatprep.subr.bf16.mxu0 0
        %3588 = vmatpush1.bf16.msra.mxu0 0
        %3589 = vmatprep.subr.bf16.mxu0 0
        %3590 = vmatpush1.bf16.msra.mxu0 0
        %3591 = vmatprep.subr.bf16.mxu0 0
        %3592 = vmatpush1.bf16.msra.mxu0 0
        %3593 = vmatprep.subr.bf16.mxu0 0
        %3594 = vmatpush1.bf16.msra.mxu0 0
        %3595 = vmatprep.subr.bf16.mxu0 0
        %3596 = vmatpush1.bf16.msra.mxu0 0
        %3597 = vmatprep.subr.bf16.mxu0 0
        %3598 = vmatpush1.bf16.msra.mxu0 0
        %3599 = vmatprep.subr.bf16.mxu0 0
        %3600 = vmatpush1.bf16.msra.mxu0 0
        %3601 = vmatprep.subr.bf16.mxu0 0
        %3602 = vmatpush1.bf16.msra.mxu0 0
        %3603 = vmatprep.mubr.bf16.mxu0 0
        %3604 = vmatmul.mubr.bf16.gmra.mrb[0].mxu0 %v3514
        %v3605 = vpop.f32.mrb[0].mxu0
        %v3606 = vadd.f32 0.0, %v3605
        %v3607 = vpop.f32.mrb[0].mxu0
        %v3608 = vpop.f32.mrb[0].mxu0
        %v3609 = vadd.f32 0.0, %v3608
        %v3610 = vpop.f32.mrb[0].mxu0
        %3611 = vmatprep.mubr.bf16.mxu0 0
        %3612 = vmatmul.mubr.bf16.gmra.mrb[0].mxu0 %v3517
        %v3613 = vpop.f32.mrb[0].mxu0
        %v3614 = vadd.f32 0.0, %v3613
        %v3615 = vpop.f32.mrb[0].mxu0
        %v3616 = vpop.f32.mrb[0].mxu0
        %v3617 = vadd.f32 0.0, %v3616
        %v3618 = vpop.f32.mrb[0].mxu0
        %3619 = vmatprep.mubr.bf16.mxu0 0
        %3620 = vmatmul.mubr.bf16.gmra.mrb[0].mxu0 %v3520
        %v3621 = vpop.f32.mrb[0].mxu0
        %v3622 = vadd.f32 0.0, %v3621
        %v3623 = vpop.f32.mrb[0].mxu0
        %v3624 = vpop.f32.mrb[0].mxu0
        %v3625 = vadd.f32 0.0, %v3624
        %v3626 = vpop.f32.mrb[0].mxu0
        %3627 = vmatprep.mubr.bf16.mxu0 0
        %3628 = vmatmul.mubr.bf16.gmra.mrb[0].mxu0 %v3523
        %v3629 = vpop.f32.mrb[0].mxu0
        %v3630 = vadd.f32 0.0, %v3629
        %v3631 = vpop.f32.mrb[0].mxu0
        %v3632 = vpop.f32.mrb[0].mxu0
        %v3633 = vadd.f32 0.0, %v3632
        %v3634 = vpop.f32.mrb[0].mxu0
        %3635 = vmatprep.mubr.bf16.mxu0 0
        %3636 = vmatmul.mubr.bf16.gmra.mrb[0].mxu0 %v3526
        %v3637 = vpop.f32.mrb[0].mxu0
        %v3638 = vadd.f32 0.0, %v3637
        %v3639 = vpop.f32.mrb[0].mxu0
        %v3640 = vpop.f32.mrb[0].mxu0
        %v3641 = vadd.f32 0.0, %v3640
        %v3642 = vpop.f32.mrb[0].mxu0
        %3643 = vmatprep.mubr.bf16.mxu0 0
        %3644 = vmatmul.mubr.bf16.gmra.mrb[0].mxu0 %v3529
        %v3645 = vpop.f32.mrb[0].mxu0
        %v3646 = vadd.f32 0.0, %v3645
        %v3647 = vpop.f32.mrb[0].mxu0
        %v3648 = vpop.f32.mrb[0].mxu0
        %v3649 = vadd.f32 0.0, %v3648
        %v3650 = vpop.f32.mrb[0].mxu0
        %3651 = vmatprep.mubr.bf16.mxu0 0
        %3652 = vmatmul.mubr.bf16.gmra.mrb[0].mxu0 %v3532
        %v3653 = vpop.f32.mrb[0].mxu0
        %v3654 = vadd.f32 0.0, %v3653
        %v3655 = vpop.f32.mrb[0].mxu0
        %v3656 = vpop.f32.mrb[0].mxu0
        %v3657 = vadd.f32 0.0, %v3656
        %v3658 = vpop.f32.mrb[0].mxu0
        %3659 = vmatprep.mubr.bf16.mxu0 0
        %3660 = vmatmul.mubr.bf16.gmra.mrb[0].mxu0 %v3535
        %v3661 = vpop.f32.mrb[0].mxu0
        %v3662 = vadd.f32 0.0, %v3661
        %v3663 = vpop.f32.mrb[0].mxu0
        %v3664 = vpop.f32.mrb[0].mxu0
        %v3665 = vadd.f32 0.0, %v3664
        %v3666 = vpop.f32.mrb[0].mxu0
        %3667 = vmatprep.mubr.bf16.mxu0 0
        %3668 = vmatmul.mubr.bf16.gmra.mrb[0].mxu0 %v3538
        %v3669 = vpop.f32.mrb[0].mxu0
        %v3670 = vadd.f32 0.0, %v3669
        %v3671 = vpop.f32.mrb[0].mxu0
        %v3672 = vpop.f32.mrb[0].mxu0
        %v3673 = vadd.f32 0.0, %v3672
        %v3674 = vpop.f32.mrb[0].mxu0
        %3675 = vmatprep.mubr.bf16.mxu0 0
        %3676 = vmatmul.mubr.bf16.gmra.mrb[0].mxu0 %v3541
        %v3677 = vpop.f32.mrb[0].mxu0
        %v3678 = vadd.f32 0.0, %v3677
        %v3679 = vpop.f32.mrb[0].mxu0
        %v3680 = vpop.f32.mrb[0].mxu0
        %v3681 = vadd.f32 0.0, %v3680
        %v3682 = vpop.f32.mrb[0].mxu0
        %3683 = vmatprep.mubr.bf16.mxu0 0
        %3684 = vmatmul.mubr.bf16.gmra.mrb[0].mxu0 %v3544
        %v3685 = vpop.f32.mrb[0].mxu0
        %v3686 = vadd.f32 0.0, %v3685
        %v3687 = vpop.f32.mrb[0].mxu0
        %v3688 = vpop.f32.mrb[0].mxu0
        %v3689 = vadd.f32 0.0, %v3688
        %v3690 = vpop.f32.mrb[0].mxu0
        %3691 = vmatprep.mubr.bf16.mxu0 0
        %3692 = vmatmul.mubr.bf16.gmra.mrb[0].mxu0 %v3547
        %v3693 = vpop.f32.mrb[0].mxu0
        %v3694 = vadd.f32 0.0, %v3693
        %v3695 = vpop.f32.mrb[0].mxu0
        %v3696 = vpop.f32.mrb[0].mxu0
        %v3697 = vadd.f32 0.0, %v3696
        %v3698 = vpop.f32.mrb[0].mxu0
        %3699 = vmatprep.mubr.bf16.mxu0 0
        %3700 = vmatmul.mubr.bf16.gmra.mrb[0].mxu0 %v3550
        %v3701 = vpop.f32.mrb[0].mxu0
        %v3702 = vadd.f32 0.0, %v3701
        %v3703 = vpop.f32.mrb[0].mxu0
        %v3704 = vpop.f32.mrb[0].mxu0
        %v3705 = vadd.f32 0.0, %v3704
        %v3706 = vpop.f32.mrb[0].mxu0
        %3707 = vmatprep.mubr.bf16.mxu0 0
        %3708 = vmatmul.mubr.bf16.gmra.mrb[0].mxu0 %v3553
        %v3709 = vpop.f32.mrb[0].mxu0
        %v3710 = vadd.f32 0.0, %v3709
        %v3711 = vpop.f32.mrb[0].mxu0
        %v3712 = vpop.f32.mrb[0].mxu0
        %v3713 = vadd.f32 0.0, %v3712
        %v3714 = vpop.f32.mrb[0].mxu0
        %3715 = vmatprep.mubr.bf16.mxu0 0
        %3716 = vmatmul.mubr.bf16.gmra.mrb[0].mxu0 %v3556
        %v3717 = vpop.f32.mrb[0].mxu0
        %v3718 = vadd.f32 0.0, %v3717
        %v3719 = vpop.f32.mrb[0].mxu0
        %v3720 = vpop.f32.mrb[0].mxu0
        %v3721 = vadd.f32 0.0, %v3720
        %v3722 = vpop.f32.mrb[0].mxu0
        %3723 = vmatprep.mubr.bf16.mxu0 0
        %3724 = vmatmul.mubr.bf16.gmra.mrb[0].mxu0 %v3559
        %v3725 = vpop.f32.mrb[0].mxu0
        %v3726 = vadd.f32 0.0, %v3725
        %v3727 = vpop.f32.mrb[0].mxu0
        %v3728 = vpop.f32.mrb[0].mxu0
        %v3729 = vadd.f32 0.0, %v3728
        %v3730 = vpop.f32.mrb[0].mxu0
        %3731 = vmatprep.mubr.bf16.mxu0 0
        %3732 = vmatmul.mubr.bf16.gmra.mrb[0].mxu0 %v3562
        %v3733 = vpop.f32.mrb[0].mxu0
        %v3734 = vadd.f32 0.0, %v3733
        %v3735 = vpop.f32.mrb[0].mxu0
        %v3736 = vpop.f32.mrb[0].mxu0
        %v3737 = vadd.f32 0.0, %v3736
        %v3738 = vpop.f32.mrb[0].mxu0
        %3739 = vmatprep.mubr.bf16.mxu0 0
        %3740 = vmatmul.mubr.bf16.gmra.mrb[0].mxu0 %v3565
        %v3741 = vpop.f32.mrb[0].mxu0
        %v3742 = vadd.f32 0.0, %v3741
        %v3743 = vpop.f32.mrb[0].mxu0
        %v3744 = vpop.f32.mrb[0].mxu0
        %v3745 = vadd.f32 0.0, %v3744
        %v3746 = vpop.f32.mrb[0].mxu0
        %3747 = vdwg.mxu0
        %v3748 = vsel %vm3512, %v3344, 0
        %v3750 = vsel %vm3512, %v3345, 0
        %v3752 = vsel %vm3512, %v3346, 0
        %v3754 = vsel %vm3512, %v3347, 0
        %v3756 = vsel %vm3512, %v3348, 0
        %v3758 = vsel %vm3512, %v3349, 0
        %v3760 = vsel %vm3512, %v3350, 0
        %v3762 = vsel %vm3512, %v3351, 0
        %v3764 = vsel %vm3512, %v3352, 0
        %v3766 = vsel %vm3512, %v3353, 0
        %v3768 = vsel %vm3512, %v3354, 0
        %v3770 = vsel %vm3512, %v3355, 0
        %v3772 = vsel %vm3512, %v3356, 0
        %v3774 = vsel %vm3512, %v3357, 0
        %v3776 = vsel %vm3512, %v3358, 0
        %v3778 = vsel %vm3512, %v3359, 0
        %v3780 = vsel %vm3512, %v3360, 0
        %v3782 = vsel %vm3512, %v3361, 0
        %v3785 = vsel %vm3567, %v3266, 0
        %3787 = vmatprep.subr.bf16.mxu0 0
        %3788 = vmatpush1.bf16.msra.mxu0 %v3785
        %3789 = vmatprep.subr.bf16.mxu0 0
        %3790 = vmatpush1.bf16.msra.mxu0 0
        %3791 = vmatprep.subr.bf16.mxu0 0
        %3792 = vmatpush1.bf16.msra.mxu0 0
        %3793 = vmatprep.subr.bf16.mxu0 0
        %3794 = vmatpush1.bf16.msra.mxu0 0
        %3795 = vmatprep.subr.bf16.mxu0 0
        %3796 = vmatpush1.bf16.msra.mxu0 0
        %3797 = vmatprep.subr.bf16.mxu0 0
        %3798 = vmatpush1.bf16.msra.mxu0 0
        %3799 = vmatprep.subr.bf16.mxu0 0
        %3800 = vmatpush1.bf16.msra.mxu0 0
        %3801 = vmatprep.subr.bf16.mxu0 0
        %3802 = vmatpush1.bf16.msra.mxu0 0
        %3803 = vmatprep.subr.bf16.mxu0 0
        %3804 = vmatpush1.bf16.msra.mxu0 0
        %3805 = vmatprep.subr.bf16.mxu0 0
        %3806 = vmatpush1.bf16.msra.mxu0 0
        %3807 = vmatprep.subr.bf16.mxu0 0
        %3808 = vmatpush1.bf16.msra.mxu0 0
        %3809 = vmatprep.subr.bf16.mxu0 0
        %3810 = vmatpush1.bf16.msra.mxu0 0
        %3811 = vmatprep.subr.bf16.mxu0 0
        %3812 = vmatpush1.bf16.msra.mxu0 0
        %3813 = vmatprep.subr.bf16.mxu0 0
        %3814 = vmatpush1.bf16.msra.mxu0 0
        %3815 = vmatprep.subr.bf16.mxu0 0
        %3816 = vmatpush1.bf16.msra.mxu0 0
        %3817 = vmatprep.subr.bf16.mxu0 0
        %3818 = vmatpush1.bf16.msra.mxu0 0
        %3819 = vmatprep.mubr.bf16.mxu0 0
        %3820 = vmatmul.mubr.bf16.gmra.mrb[0].mxu0 %v3748
        %v3821 = vpop.f32.mrb[0].mxu0
        %v3822 = vadd.f32 %v3606, %v3821
        %v3823 = vpop.f32.mrb[0].mxu0
        %v3824 = vpop.f32.mrb[0].mxu0
        %v3825 = vadd.f32 %v3609, %v3824
        %v3826 = vpop.f32.mrb[0].mxu0
        %3827 = vmatprep.mubr.bf16.mxu0 0
        %3828 = vmatmul.mubr.bf16.gmra.mrb[0].mxu0 %v3750
        %v3829 = vpop.f32.mrb[0].mxu0
        %v3830 = vadd.f32 %v3614, %v3829
        %v3831 = vpop.f32.mrb[0].mxu0
        %v3832 = vpop.f32.mrb[0].mxu0
        %v3833 = vadd.f32 %v3617, %v3832
        %v3834 = vpop.f32.mrb[0].mxu0
        %3835 = vmatprep.mubr.bf16.mxu0 0
        %3836 = vmatmul.mubr.bf16.gmra.mrb[0].mxu0 %v3752
        %v3837 = vpop.f32.mrb[0].mxu0
        %v3838 = vadd.f32 %v3622, %v3837
        %v3839 = vpop.f32.mrb[0].mxu0
        %v3840 = vpop.f32.mrb[0].mxu0
        %v3841 = vadd.f32 %v3625, %v3840
        %v3842 = vpop.f32.mrb[0].mxu0
        %3843 = vmatprep.mubr.bf16.mxu0 0
        %3844 = vmatmul.mubr.bf16.gmra.mrb[0].mxu0 %v3754
        %v3845 = vpop.f32.mrb[0].mxu0
        %v3846 = vadd.f32 %v3630, %v3845
        %v3847 = vpop.f32.mrb[0].mxu0
        %v3848 = vpop.f32.mrb[0].mxu0
        %v3849 = vadd.f32 %v3633, %v3848
        %v3850 = vpop.f32.mrb[0].mxu0
        %3851 = vmatprep.mubr.bf16.mxu0 0
        %3852 = vmatmul.mubr.bf16.gmra.mrb[0].mxu0 %v3756
        %v3853 = vpop.f32.mrb[0].mxu0
        %v3854 = vadd.f32 %v3638, %v3853
        %v3855 = vpop.f32.mrb[0].mxu0
        %v3856 = vpop.f32.mrb[0].mxu0
        %v3857 = vadd.f32 %v3641, %v3856
        %v3858 = vpop.f32.mrb[0].mxu0
        %3859 = vmatprep.mubr.bf16.mxu0 0
        %3860 = vmatmul.mubr.bf16.gmra.mrb[0].mxu0 %v3758
        %v3861 = vpop.f32.mrb[0].mxu0
        %v3862 = vadd.f32 %v3646, %v3861
        %v3863 = vpop.f32.mrb[0].mxu0
        %v3864 = vpop.f32.mrb[0].mxu0
        %v3865 = vadd.f32 %v3649, %v3864
        %v3866 = vpop.f32.mrb[0].mxu0
        %3867 = vmatprep.mubr.bf16.mxu0 0
        %3868 = vmatmul.mubr.bf16.gmra.mrb[0].mxu0 %v3760
        %v3869 = vpop.f32.mrb[0].mxu0
        %v3870 = vadd.f32 %v3654, %v3869
        %v3871 = vpop.f32.mrb[0].mxu0
        %v3872 = vpop.f32.mrb[0].mxu0
        %v3873 = vadd.f32 %v3657, %v3872
        %v3874 = vpop.f32.mrb[0].mxu0
        %3875 = vmatprep.mubr.bf16.mxu0 0
        %3876 = vmatmul.mubr.bf16.gmra.mrb[0].mxu0 %v3762
        %v3877 = vpop.f32.mrb[0].mxu0
        %v3878 = vadd.f32 %v3662, %v3877
        %v3879 = vpop.f32.mrb[0].mxu0
        %v3880 = vpop.f32.mrb[0].mxu0
        %v3881 = vadd.f32 %v3665, %v3880
        %v3882 = vpop.f32.mrb[0].mxu0
        %3883 = vmatprep.mubr.bf16.mxu0 0
        %3884 = vmatmul.mubr.bf16.gmra.mrb[0].mxu0 %v3764
        %v3885 = vpop.f32.mrb[0].mxu0
        %v3886 = vadd.f32 %v3670, %v3885
        %v3887 = vpop.f32.mrb[0].mxu0
        %v3888 = vpop.f32.mrb[0].mxu0
        %v3889 = vadd.f32 %v3673, %v3888
        %v3890 = vpop.f32.mrb[0].mxu0
        %3891 = vmatprep.mubr.bf16.mxu0 0
        %3892 = vmatmul.mubr.bf16.gmra.mrb[0].mxu0 %v3766
        %v3893 = vpop.f32.mrb[0].mxu0
        %v3894 = vadd.f32 %v3678, %v3893
        %v3895 = vpop.f32.mrb[0].mxu0
        %v3896 = vpop.f32.mrb[0].mxu0
        %v3897 = vadd.f32 %v3681, %v3896
        %v3898 = vpop.f32.mrb[0].mxu0
        %3899 = vmatprep.mubr.bf16.mxu0 0
        %3900 = vmatmul.mubr.bf16.gmra.mrb[0].mxu0 %v3768
        %v3901 = vpop.f32.mrb[0].mxu0
        %v3902 = vadd.f32 %v3686, %v3901
        %v3903 = vpop.f32.mrb[0].mxu0
        %v3904 = vpop.f32.mrb[0].mxu0
        %v3905 = vadd.f32 %v3689, %v3904
        %v3906 = vpop.f32.mrb[0].mxu0
        %3907 = vmatprep.mubr.bf16.mxu0 0
        %3908 = vmatmul.mubr.bf16.gmra.mrb[0].mxu0 %v3770
        %v3909 = vpop.f32.mrb[0].mxu0
        %v3910 = vadd.f32 %v3694, %v3909
        %v3911 = vpop.f32.mrb[0].mxu0
        %v3912 = vpop.f32.mrb[0].mxu0
        %v3913 = vadd.f32 %v3697, %v3912
        %v3914 = vpop.f32.mrb[0].mxu0
        %3915 = vmatprep.mubr.bf16.mxu0 0
        %3916 = vmatmul.mubr.bf16.gmra.mrb[0].mxu0 %v3772
        %v3917 = vpop.f32.mrb[0].mxu0
        %v3918 = vadd.f32 %v3702, %v3917
        %v3919 = vpop.f32.mrb[0].mxu0
        %v3920 = vpop.f32.mrb[0].mxu0
        %v3921 = vadd.f32 %v3705, %v3920
        %v3922 = vpop.f32.mrb[0].mxu0
        %3923 = vmatprep.mubr.bf16.mxu0 0
        %3924 = vmatmul.mubr.bf16.gmra.mrb[0].mxu0 %v3774
        %v3925 = vpop.f32.mrb[0].mxu0
        %v3926 = vadd.f32 %v3710, %v3925
        %v3927 = vpop.f32.mrb[0].mxu0
        %v3928 = vpop.f32.mrb[0].mxu0
        %v3929 = vadd.f32 %v3713, %v3928
        %v3930 = vpop.f32.mrb[0].mxu0
        %3931 = vmatprep.mubr.bf16.mxu0 0
        %3932 = vmatmul.mubr.bf16.gmra.mrb[0].mxu0 %v3776
        %v3933 = vpop.f32.mrb[0].mxu0
        %v3934 = vadd.f32 %v3718, %v3933
        %v3935 = vpop.f32.mrb[0].mxu0
        %v3936 = vpop.f32.mrb[0].mxu0
        %v3937 = vadd.f32 %v3721, %v3936
        %v3938 = vpop.f32.mrb[0].mxu0
        %3939 = vmatprep.mubr.bf16.mxu0 0
        %3940 = vmatmul.mubr.bf16.gmra.mrb[0].mxu0 %v3778
        %v3941 = vpop.f32.mrb[0].mxu0
        %v3942 = vadd.f32 %v3726, %v3941
        %v3943 = vpop.f32.mrb[0].mxu0
        %v3944 = vpop.f32.mrb[0].mxu0
        %v3945 = vadd.f32 %v3729, %v3944
        %v3946 = vpop.f32.mrb[0].mxu0
        %3947 = vmatprep.mubr.bf16.mxu0 0
        %3948 = vmatmul.mubr.bf16.gmra.mrb[0].mxu0 %v3780
        %v3949 = vpop.f32.mrb[0].mxu0
        %v3950 = vadd.f32 %v3734, %v3949
        %v3951 = vpop.f32.mrb[0].mxu0
        %v3952 = vpop.f32.mrb[0].mxu0
        %v3953 = vadd.f32 %v3737, %v3952
        %v3954 = vpop.f32.mrb[0].mxu0
        %3955 = vmatprep.mubr.bf16.mxu0 0
        %3956 = vmatmul.mubr.bf16.gmra.mrb[0].mxu0 %v3782
        %v3957 = vpop.f32.mrb[0].mxu0
        %v3958 = vadd.f32 %v3742, %v3957
        %v3959 = vpop.f32.mrb[0].mxu0
        %v3960 = vpop.f32.mrb[0].mxu0
        %v3961 = vadd.f32 %v3745, %v3960
        %v3962 = vpop.f32.mrb[0].mxu0
        %3963 = vdwg.mxu0
        %v3964 = vld [vmem:[#allocation2] sm:$0xe]
        %s3965 = scalar_lea.vmem %s291, 8
        %v3966 = vld [vmem:[%s3965] sm:$0xf]
        %v3968 = vunpack.c.l.b16 %v3964
        %v3969 = vpack.c.b16 %v3308, %v3968
        %vm3970 = vcmask 1046528
        %v3971 = vrot.slane %v3969, 1
        %v3972 = vrot.slane %v3345, 1
        %v3973 = vsel %vm3970, %v3971, %v3972
        %v3974 = vrot.slane %v3346, 1
        %v3975 = vsel %vm3970, %v3972, %v3974
        %v3976 = vrot.slane %v3347, 1
        %v3977 = vsel %vm3970, %v3974, %v3976
        %v3978 = vrot.slane %v3348, 1
        %v3979 = vsel %vm3970, %v3976, %v3978
        %v3980 = vrot.slane %v3349, 1
        %v3981 = vsel %vm3970, %v3978, %v3980
        %v3982 = vrot.slane %v3350, 1
        %v3983 = vsel %vm3970, %v3980, %v3982
        %v3984 = vrot.slane %v3351, 1
        %v3985 = vsel %vm3970, %v3982, %v3984
        %v3986 = vrot.slane %v3352, 1
        %v3987 = vsel %vm3970, %v3984, %v3986
        %v3988 = vrot.slane %v3353, 1
        %v3989 = vsel %vm3970, %v3986, %v3988
        %v3990 = vrot.slane %v3354, 1
        %v3991 = vsel %vm3970, %v3988, %v3990
        %v3992 = vrot.slane %v3355, 1
        %v3993 = vsel %vm3970, %v3990, %v3992
        %v3994 = vrot.slane %v3356, 1
        %v3995 = vsel %vm3970, %v3992, %v3994
        %v3996 = vrot.slane %v3357, 1
        %v3997 = vsel %vm3970, %v3994, %v3996
        %v3998 = vrot.slane %v3358, 1
        %v3999 = vsel %vm3970, %v3996, %v3998
        %v4000 = vrot.slane %v3359, 1
        %v4001 = vsel %vm3970, %v3998, %v4000
        %v4002 = vrot.slane %v3360, 1
        %v4003 = vsel %vm3970, %v4000, %v4002
        %v4004 = vrot.slane %v3361, 1
        %v4005 = vsel %vm3970, %v4002, %v4004
        %v4006 = vrot.slane %v3362, 1
        %v4007 = vsel %vm3970, %v4004, %v4006
        %v4009 = vsel %vm3512, %v3973, 0
        %v4012 = vsel %vm3512, %v3975, 0
        %v4015 = vsel %vm3512, %v3977, 0
        %v4018 = vsel %vm3512, %v3979, 0
        %v4021 = vsel %vm3512, %v3981, 0
        %v4024 = vsel %vm3512, %v3983, 0
        %v4027 = vsel %vm3512, %v3985, 0
        %v4030 = vsel %vm3512, %v3987, 0
        %v4033 = vsel %vm3512, %v3989, 0
        %v4036 = vsel %vm3512, %v3991, 0
        %v4039 = vsel %vm3512, %v3993, 0
        %v4042 = vsel %vm3512, %v3995, 0
        %v4045 = vsel %vm3512, %v3997, 0
        %v4048 = vsel %vm3512, %v3999, 0
        %v4051 = vsel %vm3512, %v4001, 0
        %v4054 = vsel %vm3512, %v4003, 0
        %v4057 = vsel %vm3512, %v4005, 0
        %v4060 = vsel %vm3512, %v4007, 0
        %v4063 = vsel %vm3567, %v3966, 0
        %4065 = vmatprep.subr.bf16.mxu0 0
        %4066 = vmatpush1.bf16.msra.mxu0 %v4063
        %4067 = vmatprep.subr.bf16.mxu0 0
        %4068 = vmatpush1.bf16.msra.mxu0 0
        %4069 = vmatprep.subr.bf16.mxu0 0
        %4070 = vmatpush1.bf16.msra.mxu0 0
        %4071 = vmatprep.subr.bf16.mxu0 0
        %4072 = vmatpush1.bf16.msra.mxu0 0
        %4073 = vmatprep.subr.bf16.mxu0 0
        %4074 = vmatpush1.bf16.msra.mxu0 0
        %4075 = vmatprep.subr.bf16.mxu0 0
        %4076 = vmatpush1.bf16.msra.mxu0 0
        %4077 = vmatprep.subr.bf16.mxu0 0
        %4078 = vmatpush1.bf16.msra.mxu0 0
        %4079 = vmatprep.subr.bf16.mxu0 0
        %4080 = vmatpush1.bf16.msra.mxu0 0
        %4081 = vmatprep.subr.bf16.mxu0 0
        %4082 = vmatpush1.bf16.msra.mxu0 0
        %4083 = vmatprep.subr.bf16.mxu0 0
        %4084 = vmatpush1.bf16.msra.mxu0 0
        %4085 = vmatprep.subr.bf16.mxu0 0
        %4086 = vmatpush1.bf16.msra.mxu0 0
        %4087 = vmatprep.subr.bf16.mxu0 0
        %4088 = vmatpush1.bf16.msra.mxu0 0
        %4089 = vmatprep.subr.bf16.mxu0 0
        %4090 = vmatpush1.bf16.msra.mxu0 0
        %4091 = vmatprep.subr.bf16.mxu0 0
        %4092 = vmatpush1.bf16.msra.mxu0 0
        %4093 = vmatprep.subr.bf16.mxu0 0
        %4094 = vmatpush1.bf16.msra.mxu0 0
        %4095 = vmatprep.subr.bf16.mxu0 0
        %4096 = vmatpush1.bf16.msra.mxu0 0
        %4097 = vmatprep.mubr.bf16.mxu0 0
        %4098 = vmatmul.mubr.bf16.gmra.mrb[0].mxu0 %v4009
        %v4099 = vpop.f32.mrb[0].mxu0
        %v4100 = vadd.f32 0.0, %v4099
        %v4101 = vpop.f32.mrb[0].mxu0
        %v4102 = vpop.f32.mrb[0].mxu0
        %v4103 = vadd.f32 0.0, %v4102
        %v4104 = vpop.f32.mrb[0].mxu0
        %4105 = vmatprep.mubr.bf16.mxu0 0
        %4106 = vmatmul.mubr.bf16.gmra.mrb[0].mxu0 %v4012
        %v4107 = vpop.f32.mrb[0].mxu0
        %v4108 = vadd.f32 0.0, %v4107
        %v4109 = vpop.f32.mrb[0].mxu0
        %v4110 = vpop.f32.mrb[0].mxu0
        %v4111 = vadd.f32 0.0, %v4110
        %v4112 = vpop.f32.mrb[0].mxu0
        %4113 = vmatprep.mubr.bf16.mxu0 0
        %4114 = vmatmul.mubr.bf16.gmra.mrb[0].mxu0 %v4015
        %v4115 = vpop.f32.mrb[0].mxu0
        %v4116 = vadd.f32 0.0, %v4115
        %v4117 = vpop.f32.mrb[0].mxu0
        %v4118 = vpop.f32.mrb[0].mxu0
        %v4119 = vadd.f32 0.0, %v4118
        %v4120 = vpop.f32.mrb[0].mxu0
        %4121 = vmatprep.mubr.bf16.mxu0 0
        %4122 = vmatmul.mubr.bf16.gmra.mrb[0].mxu0 %v4018
        %v4123 = vpop.f32.mrb[0].mxu0
        %v4124 = vadd.f32 0.0, %v4123
        %v4125 = vpop.f32.mrb[0].mxu0
        %v4126 = vpop.f32.mrb[0].mxu0
        %v4127 = vadd.f32 0.0, %v4126
        %v4128 = vpop.f32.mrb[0].mxu0
        %4129 = vmatprep.mubr.bf16.mxu0 0
        %4130 = vmatmul.mubr.bf16.gmra.mrb[0].mxu0 %v4021
        %v4131 = vpop.f32.mrb[0].mxu0
        %v4132 = vadd.f32 0.0, %v4131
        %v4133 = vpop.f32.mrb[0].mxu0
        %v4134 = vpop.f32.mrb[0].mxu0
        %v4135 = vadd.f32 0.0, %v4134
        %v4136 = vpop.f32.mrb[0].mxu0
        %4137 = vmatprep.mubr.bf16.mxu0 0
        %4138 = vmatmul.mubr.bf16.gmra.mrb[0].mxu0 %v4024
        %v4139 = vpop.f32.mrb[0].mxu0
        %v4140 = vadd.f32 0.0, %v4139
        %v4141 = vpop.f32.mrb[0].mxu0
        %v4142 = vpop.f32.mrb[0].mxu0
        %v4143 = vadd.f32 0.0, %v4142
        %v4144 = vpop.f32.mrb[0].mxu0
        %4145 = vmatprep.mubr.bf16.mxu0 0
        %4146 = vmatmul.mubr.bf16.gmra.mrb[0].mxu0 %v4027
        %v4147 = vpop.f32.mrb[0].mxu0
        %v4148 = vadd.f32 0.0, %v4147
        %v4149 = vpop.f32.mrb[0].mxu0
        %v4150 = vpop.f32.mrb[0].mxu0
        %v4151 = vadd.f32 0.0, %v4150
        %v4152 = vpop.f32.mrb[0].mxu0
        %4153 = vmatprep.mubr.bf16.mxu0 0
        %4154 = vmatmul.mubr.bf16.gmra.mrb[0].mxu0 %v4030
        %v4155 = vpop.f32.mrb[0].mxu0
        %v4156 = vadd.f32 0.0, %v4155
        %v4157 = vpop.f32.mrb[0].mxu0
        %v4158 = vpop.f32.mrb[0].mxu0
        %v4159 = vadd.f32 0.0, %v4158
        %v4160 = vpop.f32.mrb[0].mxu0
        %4161 = vmatprep.mubr.bf16.mxu0 0
        %4162 = vmatmul.mubr.bf16.gmra.mrb[0].mxu0 %v4033
        %v4163 = vpop.f32.mrb[0].mxu0
        %v4164 = vadd.f32 0.0, %v4163
        %v4165 = vpop.f32.mrb[0].mxu0
        %v4166 = vpop.f32.mrb[0].mxu0
        %v4167 = vadd.f32 0.0, %v4166
        %v4168 = vpop.f32.mrb[0].mxu0
        %4169 = vmatprep.mubr.bf16.mxu0 0
        %4170 = vmatmul.mubr.bf16.gmra.mrb[0].mxu0 %v4036
        %v4171 = vpop.f32.mrb[0].mxu0
        %v4172 = vadd.f32 0.0, %v4171
        %v4173 = vpop.f32.mrb[0].mxu0
        %v4174 = vpop.f32.mrb[0].mxu0
        %v4175 = vadd.f32 0.0, %v4174
        %v4176 = vpop.f32.mrb[0].mxu0
        %4177 = vmatprep.mubr.bf16.mxu0 0
        %4178 = vmatmul.mubr.bf16.gmra.mrb[0].mxu0 %v4039
        %v4179 = vpop.f32.mrb[0].mxu0
        %v4180 = vadd.f32 0.0, %v4179
        %v4181 = vpop.f32.mrb[0].mxu0
        %v4182 = vpop.f32.mrb[0].mxu0
        %v4183 = vadd.f32 0.0, %v4182
        %v4184 = vpop.f32.mrb[0].mxu0
        %4185 = vmatprep.mubr.bf16.mxu0 0
        %4186 = vmatmul.mubr.bf16.gmra.mrb[0].mxu0 %v4042
        %v4187 = vpop.f32.mrb[0].mxu0
        %v4188 = vadd.f32 0.0, %v4187
        %v4189 = vpop.f32.mrb[0].mxu0
        %v4190 = vpop.f32.mrb[0].mxu0
        %v4191 = vadd.f32 0.0, %v4190
        %v4192 = vpop.f32.mrb[0].mxu0
        %4193 = vmatprep.mubr.bf16.mxu0 0
        %4194 = vmatmul.mubr.bf16.gmra.mrb[0].mxu0 %v4045
        %v4195 = vpop.f32.mrb[0].mxu0
        %v4196 = vadd.f32 0.0, %v4195
        %v4197 = vpop.f32.mrb[0].mxu0
        %v4198 = vpop.f32.mrb[0].mxu0
        %v4199 = vadd.f32 0.0, %v4198
        %v4200 = vpop.f32.mrb[0].mxu0
        %4201 = vmatprep.mubr.bf16.mxu0 0
        %4202 = vmatmul.mubr.bf16.gmra.mrb[0].mxu0 %v4048
        %v4203 = vpop.f32.mrb[0].mxu0
        %v4204 = vadd.f32 0.0, %v4203
        %v4205 = vpop.f32.mrb[0].mxu0
        %v4206 = vpop.f32.mrb[0].mxu0
        %v4207 = vadd.f32 0.0, %v4206
        %v4208 = vpop.f32.mrb[0].mxu0
        %4209 = vmatprep.mubr.bf16.mxu0 0
        %4210 = vmatmul.mubr.bf16.gmra.mrb[0].mxu0 %v4051
        %v4211 = vpop.f32.mrb[0].mxu0
        %v4212 = vadd.f32 0.0, %v4211
        %v4213 = vpop.f32.mrb[0].mxu0
        %v4214 = vpop.f32.mrb[0].mxu0
        %v4215 = vadd.f32 0.0, %v4214
        %v4216 = vpop.f32.mrb[0].mxu0
        %4217 = vmatprep.mubr.bf16.mxu0 0
        %4218 = vmatmul.mubr.bf16.gmra.mrb[0].mxu0 %v4054
        %v4219 = vpop.f32.mrb[0].mxu0
        %v4220 = vadd.f32 0.0, %v4219
        %v4221 = vpop.f32.mrb[0].mxu0
        %v4222 = vpop.f32.mrb[0].mxu0
        %v4223 = vadd.f32 0.0, %v4222
        %v4224 = vpop.f32.mrb[0].mxu0
        %4225 = vmatprep.mubr.bf16.mxu0 0
        %4226 = vmatmul.mubr.bf16.gmra.mrb[0].mxu0 %v4057
        %v4227 = vpop.f32.mrb[0].mxu0
        %v4228 = vadd.f32 0.0, %v4227
        %v4229 = vpop.f32.mrb[0].mxu0
        %v4230 = vpop.f32.mrb[0].mxu0
        %v4231 = vadd.f32 0.0, %v4230
        %v4232 = vpop.f32.mrb[0].mxu0
        %4233 = vmatprep.mubr.bf16.mxu0 0
        %4234 = vmatmul.mubr.bf16.gmra.mrb[0].mxu0 %v4060
        %v4235 = vpop.f32.mrb[0].mxu0
        %v4236 = vadd.f32 0.0, %v4235
        %v4237 = vpop.f32.mrb[0].mxu0
        %v4238 = vpop.f32.mrb[0].mxu0
        %v4239 = vadd.f32 0.0, %v4238
        %v4240 = vpop.f32.mrb[0].mxu0
        %4241 = vdwg.mxu0
        %v4242 = vadd.f32 %v3822, %v4100
        %v4243 = vadd.f32 %v3825, %v4103
        %v4244 = vadd.f32 %v3830, %v4108
        %v4245 = vadd.f32 %v3833, %v4111
        %v4246 = vadd.f32 %v3838, %v4116
        %v4247 = vadd.f32 %v3841, %v4119
        %v4248 = vadd.f32 %v3846, %v4124
        %v4249 = vadd.f32 %v3849, %v4127
        %v4250 = vadd.f32 %v3854, %v4132
        %v4251 = vadd.f32 %v3857, %v4135
        %v4252 = vadd.f32 %v3862, %v4140
        %v4253 = vadd.f32 %v3865, %v4143
        %v4254 = vadd.f32 %v3870, %v4148
        %v4255 = vadd.f32 %v3873, %v4151
        %v4256 = vadd.f32 %v3878, %v4156
        %v4257 = vadd.f32 %v3881, %v4159
        %v4258 = vadd.f32 %v3886, %v4164
        %v4259 = vadd.f32 %v3889, %v4167
        %v4260 = vadd.f32 %v3894, %v4172
        %v4261 = vadd.f32 %v3897, %v4175
        %v4262 = vadd.f32 %v3902, %v4180
        %v4263 = vadd.f32 %v3905, %v4183
        %v4264 = vadd.f32 %v3910, %v4188
        %v4265 = vadd.f32 %v3913, %v4191
        %v4266 = vadd.f32 %v3918, %v4196
        %v4267 = vadd.f32 %v3921, %v4199
        %v4268 = vadd.f32 %v3926, %v4204
        %v4269 = vadd.f32 %v3929, %v4207
        %v4270 = vadd.f32 %v3934, %v4212
        %v4271 = vadd.f32 %v3937, %v4215
        %v4272 = vadd.f32 %v3942, %v4220
        %v4273 = vadd.f32 %v3945, %v4223
        %v4274 = vadd.f32 %v3950, %v4228
        %v4275 = vadd.f32 %v3953, %v4231
        %v4276 = vadd.f32 %v3958, %v4236
        %v4277 = vadd.f32 %v3961, %v4239
        %v4278 = vld [vmem:[#allocation2 + $0x8] sm:$0xe]
        %v4279 = vld [vmem:[#allocation2 + $0xc] sm:$0xf]
        %v4280 = vld [vmem:[#allocation2 + $0x10] sm:$0xf]
        %v4281 = vld [vmem:[#allocation2 + $0x14] sm:$0xf]
        %v4282 = vld [vmem:[#allocation2 + $0x18] sm:$0xf]
        %v4283 = vld [vmem:[#allocation2 + $0x1c] sm:$0xf]
        %v4284 = vld [vmem:[#allocation2 + $0x20] sm:$0xf]
        %v4285 = vld [vmem:[#allocation2 + $0x24] sm:$0xf]
        %v4286 = vld [vmem:[#allocation2 + $0x28] sm:$0xf]
        %v4287 = vld [vmem:[#allocation2 + $0x2c] sm:$0xf]
        %v4288 = vld [vmem:[#allocation2 + $0x30] sm:$0xf]
        %v4289 = vld [vmem:[#allocation2 + $0x34] sm:$0xf]
        %v4290 = vld [vmem:[#allocation2 + $0x38] sm:$0xf]
        %v4291 = vld [vmem:[#allocation2 + $0x3c] sm:$0xf]
        %v4292 = vld [vmem:[#allocation2 + $0x40] sm:$0xf]
        %v4293 = vld [vmem:[#allocation2 + $0x44] sm:$0xf]
        %v4294 = vld [vmem:[#allocation2 + $0x48] sm:$0xf]
        %v4295 = vld [vmem:[#allocation2 + $0x4c] sm:$0xf]
        %v4296 = vld [vmem:[#allocation2 + $0x50] sm:$0xf]
        %v4297 = vld [vmem:[#allocation2 + $0x54] sm:$0xf]
        %v4298 = vld [vmem:[#allocation2 + $0x58] sm:$0xf]
        %v4299 = vld [vmem:[#allocation2 + $0x5c] sm:$0xf]
        %v4300 = vld [vmem:[#allocation2 + $0x60] sm:$0xf]
        %v4301 = vld [vmem:[#allocation2 + $0x64] sm:$0xf]
        %v4302 = vld [vmem:[#allocation2 + $0x68] sm:$0xf]
        %v4303 = vld [vmem:[#allocation2 + $0x6c] sm:$0xf]
        %v4304 = vld [vmem:[#allocation2 + $0x70] sm:$0xf]
        %v4305 = vld [vmem:[#allocation2 + $0x74] sm:$0xf]
        %v4306 = vld [vmem:[#allocation2 + $0x78] sm:$0xf]
        %v4307 = vld [vmem:[#allocation2 + $0x7c] sm:$0xf]
        %v4308 = vld [vmem:[#allocation2 + $0x80] sm:$0xf]
        %v4309 = vld [vmem:[#allocation2 + $0x84] sm:$0xf]
        %v4310 = vld [vmem:[#allocation2 + $0x88] sm:$0xf]
        %v4311 = vld [vmem:[#allocation2 + $0x8c] sm:$0xf]
        %v4312 = vld [vmem:[#allocation2 + $0x90] sm:$0xf]
        %v4313 = vld [vmem:[#allocation2 + $0x94] sm:$0xf]
        %v4314 = vld [vmem:[#allocation2 + $0x98] sm:$0x1]
        %s4315 = scalar_lea.vmem %s291, 12
        %v4316 = vld [vmem:[%s4315] sm:$0xf]
        %v4354 = vunpack.c.l.b16 %v4278
        %v4355 = vunpack.c.l.b16 %v4279
        %v4356 = vunpack.c.l.b16 %v4280
        %v4357 = vunpack.c.l.b16 %v4281
        %v4358 = vunpack.c.l.b16 %v4282
        %v4359 = vunpack.c.l.b16 %v4283
        %v4360 = vunpack.c.l.b16 %v4284
        %v4361 = vunpack.c.l.b16 %v4285
        %v4362 = vunpack.c.l.b16 %v4286
        %v4363 = vunpack.c.l.b16 %v4287
        %v4364 = vunpack.c.l.b16 %v4288
        %v4365 = vunpack.c.l.b16 %v4289
        %v4366 = vunpack.c.l.b16 %v4290
        %v4367 = vunpack.c.l.b16 %v4291
        %v4368 = vunpack.c.l.b16 %v4292
        %v4369 = vunpack.c.l.b16 %v4293
        %v4370 = vunpack.c.l.b16 %v4294
        %v4371 = vunpack.c.l.b16 %v4295
        %v4372 = vunpack.c.l.b16 %v4296
        %v4373 = vunpack.c.l.b16 %v4297
        %v4374 = vunpack.c.l.b16 %v4298
        %v4375 = vunpack.c.l.b16 %v4299
        %v4376 = vunpack.c.l.b16 %v4300
        %v4377 = vunpack.c.l.b16 %v4301
        %v4378 = vunpack.c.l.b16 %v4302
        %v4379 = vunpack.c.l.b16 %v4303
        %v4380 = vunpack.c.l.b16 %v4304
        %v4381 = vunpack.c.l.b16 %v4305
        %v4382 = vunpack.c.l.b16 %v4306
        %v4383 = vunpack.c.l.b16 %v4307
        %v4384 = vunpack.c.l.b16 %v4308
        %v4385 = vunpack.c.l.b16 %v4309
        %v4386 = vunpack.c.l.b16 %v4310
        %v4387 = vunpack.c.l.b16 %v4311
        %v4388 = vunpack.c.l.b16 %v4312
        %v4389 = vunpack.c.l.b16 %v4313
        %v4390 = vunpack.c.l.b16 %v4314
        %v4391 = vpack.c.b16 %v4355, %v4354
        %v4392 = vpack.c.b16 %v4357, %v4356
        %v4393 = vpack.c.b16 %v4359, %v4358
        %v4394 = vpack.c.b16 %v4361, %v4360
        %v4395 = vpack.c.b16 %v4363, %v4362
        %v4396 = vpack.c.b16 %v4365, %v4364
        %v4397 = vpack.c.b16 %v4367, %v4366
        %v4398 = vpack.c.b16 %v4369, %v4368
        %v4399 = vpack.c.b16 %v4371, %v4370
        %v4400 = vpack.c.b16 %v4373, %v4372
        %v4401 = vpack.c.b16 %v4375, %v4374
        %v4402 = vpack.c.b16 %v4377, %v4376
        %v4403 = vpack.c.b16 %v4379, %v4378
        %v4404 = vpack.c.b16 %v4381, %v4380
        %v4405 = vpack.c.b16 %v4383, %v4382
        %v4406 = vpack.c.b16 %v4385, %v4384
        %v4407 = vpack.c.b16 %v4387, %v4386
        %v4408 = vpack.c.b16 %v4389, %v4388
        %v4409 = vpack.c.b16 %v4390, %v4390
        %v4410 = vrot.slane %v4391, 1
        %v4411 = vrot.slane %v4392, 1
        %v4412 = vsel %vm3970, %v4410, %v4411
        %v4413 = vrot.slane %v4393, 1
        %v4414 = vsel %vm3970, %v4411, %v4413
        %v4415 = vrot.slane %v4394, 1
        %v4416 = vsel %vm3970, %v4413, %v4415
        %v4417 = vrot.slane %v4395, 1
        %v4418 = vsel %vm3970, %v4415, %v4417
        %v4419 = vrot.slane %v4396, 1
        %v4420 = vsel %vm3970, %v4417, %v4419
        %v4421 = vrot.slane %v4397, 1
        %v4422 = vsel %vm3970, %v4419, %v4421
        %v4423 = vrot.slane %v4398, 1
        %v4424 = vsel %vm3970, %v4421, %v4423
        %v4425 = vrot.slane %v4399, 1
        %v4426 = vsel %vm3970, %v4423, %v4425
        %v4427 = vrot.slane %v4400, 1
        %v4428 = vsel %vm3970, %v4425, %v4427
        %v4429 = vrot.slane %v4401, 1
        %v4430 = vsel %vm3970, %v4427, %v4429
        %v4431 = vrot.slane %v4402, 1
        %v4432 = vsel %vm3970, %v4429, %v4431
        %v4433 = vrot.slane %v4403, 1
        %v4434 = vsel %vm3970, %v4431, %v4433
        %v4435 = vrot.slane %v4404, 1
        %v4436 = vsel %vm3970, %v4433, %v4435
        %v4437 = vrot.slane %v4405, 1
        %v4438 = vsel %vm3970, %v4435, %v4437
        %v4439 = vrot.slane %v4406, 1
        %v4440 = vsel %vm3970, %v4437, %v4439
        %v4441 = vrot.slane %v4407, 1
        %v4442 = vsel %vm3970, %v4439, %v4441
        %v4443 = vrot.slane %v4408, 1
        %v4444 = vsel %vm3970, %v4441, %v4443
        %v4445 = vrot.slane %v4409, 1
        %v4446 = vsel %vm3970, %v4443, %v4445
        %v4448 = vsel %vm3512, %v4412, 0
        %v4451 = vsel %vm3512, %v4414, 0
        %v4454 = vsel %vm3512, %v4416, 0
        %v4457 = vsel %vm3512, %v4418, 0
        %v4460 = vsel %vm3512, %v4420, 0
        %v4463 = vsel %vm3512, %v4422, 0
        %v4466 = vsel %vm3512, %v4424, 0
        %v4469 = vsel %vm3512, %v4426, 0
        %v4472 = vsel %vm3512, %v4428, 0
        %v4475 = vsel %vm3512, %v4430, 0
        %v4478 = vsel %vm3512, %v4432, 0
        %v4481 = vsel %vm3512, %v4434, 0
        %v4484 = vsel %vm3512, %v4436, 0
        %v4487 = vsel %vm3512, %v4438, 0
        %v4490 = vsel %vm3512, %v4440, 0
        %v4493 = vsel %vm3512, %v4442, 0
        %v4496 = vsel %vm3512, %v4444, 0
        %v4499 = vsel %vm3512, %v4446, 0
        %v4502 = vsel %vm3567, %v4316, 0
        %4504 = vmatprep.subr.bf16.mxu0 0
        %4505 = vmatpush1.bf16.msra.mxu0 %v4502
        %4506 = vmatprep.subr.bf16.mxu0 0
        %4507 = vmatpush1.bf16.msra.mxu0 0
        %4508 = vmatprep.subr.bf16.mxu0 0
        %4509 = vmatpush1.bf16.msra.mxu0 0
        %4510 = vmatprep.subr.bf16.mxu0 0
        %4511 = vmatpush1.bf16.msra.mxu0 0
        %4512 = vmatprep.subr.bf16.mxu0 0
        %4513 = vmatpush1.bf16.msra.mxu0 0
        %4514 = vmatprep.subr.bf16.mxu0 0
        %4515 = vmatpush1.bf16.msra.mxu0 0
        %4516 = vmatprep.subr.bf16.mxu0 0
        %4517 = vmatpush1.bf16.msra.mxu0 0
        %4518 = vmatprep.subr.bf16.mxu0 0
        %4519 = vmatpush1.bf16.msra.mxu0 0
        %4520 = vmatprep.subr.bf16.mxu0 0
        %4521 = vmatpush1.bf16.msra.mxu0 0
        %4522 = vmatprep.subr.bf16.mxu0 0
        %4523 = vmatpush1.bf16.msra.mxu0 0
        %4524 = vmatprep.subr.bf16.mxu0 0
        %4525 = vmatpush1.bf16.msra.mxu0 0
        %4526 = vmatprep.subr.bf16.mxu0 0
        %4527 = vmatpush1.bf16.msra.mxu0 0
        %4528 = vmatprep.subr.bf16.mxu0 0
        %4529 = vmatpush1.bf16.msra.mxu0 0
        %4530 = vmatprep.subr.bf16.mxu0 0
        %4531 = vmatpush1.bf16.msra.mxu0 0
        %4532 = vmatprep.subr.bf16.mxu0 0
        %4533 = vmatpush1.bf16.msra.mxu0 0
        %4534 = vmatprep.subr.bf16.mxu0 0
        %4535 = vmatpush1.bf16.msra.mxu0 0
        %4536 = vmatprep.mubr.bf16.mxu0 0
        %4537 = vmatmul.mubr.bf16.gmra.mrb[0].mxu0 %v4448
        %v4538 = vpop.f32.mrb[0].mxu0
        %v4539 = vadd.f32 0.0, %v4538
        %v4540 = vpop.f32.mrb[0].mxu0
        %v4541 = vpop.f32.mrb[0].mxu0
        %v4542 = vadd.f32 0.0, %v4541
        %v4543 = vpop.f32.mrb[0].mxu0
        %4544 = vmatprep.mubr.bf16.mxu0 0
        %4545 = vmatmul.mubr.bf16.gmra.mrb[0].mxu0 %v4451
        %v4546 = vpop.f32.mrb[0].mxu0
        %v4547 = vadd.f32 0.0, %v4546
        %v4548 = vpop.f32.mrb[0].mxu0
        %v4549 = vpop.f32.mrb[0].mxu0
        %v4550 = vadd.f32 0.0, %v4549
        %v4551 = vpop.f32.mrb[0].mxu0
        %4552 = vmatprep.mubr.bf16.mxu0 0
        %4553 = vmatmul.mubr.bf16.gmra.mrb[0].mxu0 %v4454
        %v4554 = vpop.f32.mrb[0].mxu0
        %v4555 = vadd.f32 0.0, %v4554
        %v4556 = vpop.f32.mrb[0].mxu0
        %v4557 = vpop.f32.mrb[0].mxu0
        %v4558 = vadd.f32 0.0, %v4557
        %v4559 = vpop.f32.mrb[0].mxu0
        %4560 = vmatprep.mubr.bf16.mxu0 0
        %4561 = vmatmul.mubr.bf16.gmra.mrb[0].mxu0 %v4457
        %v4562 = vpop.f32.mrb[0].mxu0
        %v4563 = vadd.f32 0.0, %v4562
        %v4564 = vpop.f32.mrb[0].mxu0
        %v4565 = vpop.f32.mrb[0].mxu0
        %v4566 = vadd.f32 0.0, %v4565
        %v4567 = vpop.f32.mrb[0].mxu0
        %4568 = vmatprep.mubr.bf16.mxu0 0
        %4569 = vmatmul.mubr.bf16.gmra.mrb[0].mxu0 %v4460
        %v4570 = vpop.f32.mrb[0].mxu0
        %v4571 = vadd.f32 0.0, %v4570
        %v4572 = vpop.f32.mrb[0].mxu0
        %v4573 = vpop.f32.mrb[0].mxu0
        %v4574 = vadd.f32 0.0, %v4573
        %v4575 = vpop.f32.mrb[0].mxu0
        %4576 = vmatprep.mubr.bf16.mxu0 0
        %4577 = vmatmul.mubr.bf16.gmra.mrb[0].mxu0 %v4463
        %v4578 = vpop.f32.mrb[0].mxu0
        %v4579 = vadd.f32 0.0, %v4578
        %v4580 = vpop.f32.mrb[0].mxu0
        %v4581 = vpop.f32.mrb[0].mxu0
        %v4582 = vadd.f32 0.0, %v4581
        %v4583 = vpop.f32.mrb[0].mxu0
        %4584 = vmatprep.mubr.bf16.mxu0 0
        %4585 = vmatmul.mubr.bf16.gmra.mrb[0].mxu0 %v4466
        %v4586 = vpop.f32.mrb[0].mxu0
        %v4587 = vadd.f32 0.0, %v4586
        %v4588 = vpop.f32.mrb[0].mxu0
        %v4589 = vpop.f32.mrb[0].mxu0
        %v4590 = vadd.f32 0.0, %v4589
        %v4591 = vpop.f32.mrb[0].mxu0
        %4592 = vmatprep.mubr.bf16.mxu0 0
        %4593 = vmatmul.mubr.bf16.gmra.mrb[0].mxu0 %v4469
        %v4594 = vpop.f32.mrb[0].mxu0
        %v4595 = vadd.f32 0.0, %v4594
        %v4596 = vpop.f32.mrb[0].mxu0
        %v4597 = vpop.f32.mrb[0].mxu0
        %v4598 = vadd.f32 0.0, %v4597
        %v4599 = vpop.f32.mrb[0].mxu0
        %4600 = vmatprep.mubr.bf16.mxu0 0
        %4601 = vmatmul.mubr.bf16.gmra.mrb[0].mxu0 %v4472
        %v4602 = vpop.f32.mrb[0].mxu0
        %v4603 = vadd.f32 0.0, %v4602
        %v4604 = vpop.f32.mrb[0].mxu0
        %v4605 = vpop.f32.mrb[0].mxu0
        %v4606 = vadd.f32 0.0, %v4605
        %v4607 = vpop.f32.mrb[0].mxu0
        %4608 = vmatprep.mubr.bf16.mxu0 0
        %4609 = vmatmul.mubr.bf16.gmra.mrb[0].mxu0 %v4475
        %v4610 = vpop.f32.mrb[0].mxu0
        %v4611 = vadd.f32 0.0, %v4610
        %v4612 = vpop.f32.mrb[0].mxu0
        %v4613 = vpop.f32.mrb[0].mxu0
        %v4614 = vadd.f32 0.0, %v4613
        %v4615 = vpop.f32.mrb[0].mxu0
        %4616 = vmatprep.mubr.bf16.mxu0 0
        %4617 = vmatmul.mubr.bf16.gmra.mrb[0].mxu0 %v4478
        %v4618 = vpop.f32.mrb[0].mxu0
        %v4619 = vadd.f32 0.0, %v4618
        %v4620 = vpop.f32.mrb[0].mxu0
        %v4621 = vpop.f32.mrb[0].mxu0
        %v4622 = vadd.f32 0.0, %v4621
        %v4623 = vpop.f32.mrb[0].mxu0
        %4624 = vmatprep.mubr.bf16.mxu0 0
        %4625 = vmatmul.mubr.bf16.gmra.mrb[0].mxu0 %v4481
        %v4626 = vpop.f32.mrb[0].mxu0
        %v4627 = vadd.f32 0.0, %v4626
        %v4628 = vpop.f32.mrb[0].mxu0
        %v4629 = vpop.f32.mrb[0].mxu0
        %v4630 = vadd.f32 0.0, %v4629
        %v4631 = vpop.f32.mrb[0].mxu0
        %4632 = vmatprep.mubr.bf16.mxu0 0
        %4633 = vmatmul.mubr.bf16.gmra.mrb[0].mxu0 %v4484
        %v4634 = vpop.f32.mrb[0].mxu0
        %v4635 = vadd.f32 0.0, %v4634
        %v4636 = vpop.f32.mrb[0].mxu0
        %v4637 = vpop.f32.mrb[0].mxu0
        %v4638 = vadd.f32 0.0, %v4637
        %v4639 = vpop.f32.mrb[0].mxu0
        %4640 = vmatprep.mubr.bf16.mxu0 0
        %4641 = vmatmul.mubr.bf16.gmra.mrb[0].mxu0 %v4487
        %v4642 = vpop.f32.mrb[0].mxu0
        %v4643 = vadd.f32 0.0, %v4642
        %v4644 = vpop.f32.mrb[0].mxu0
        %v4645 = vpop.f32.mrb[0].mxu0
        %v4646 = vadd.f32 0.0, %v4645
        %v4647 = vpop.f32.mrb[0].mxu0
        %4648 = vmatprep.mubr.bf16.mxu0 0
        %4649 = vmatmul.mubr.bf16.gmra.mrb[0].mxu0 %v4490
        %v4650 = vpop.f32.mrb[0].mxu0
        %v4651 = vadd.f32 0.0, %v4650
        %v4652 = vpop.f32.mrb[0].mxu0
        %v4653 = vpop.f32.mrb[0].mxu0
        %v4654 = vadd.f32 0.0, %v4653
        %v4655 = vpop.f32.mrb[0].mxu0
        %4656 = vmatprep.mubr.bf16.mxu0 0
        %4657 = vmatmul.mubr.bf16.gmra.mrb[0].mxu0 %v4493
        %v4658 = vpop.f32.mrb[0].mxu0
        %v4659 = vadd.f32 0.0, %v4658
        %v4660 = vpop.f32.mrb[0].mxu0
        %v4661 = vpop.f32.mrb[0].mxu0
        %v4662 = vadd.f32 0.0, %v4661
        %v4663 = vpop.f32.mrb[0].mxu0
        %4664 = vmatprep.mubr.bf16.mxu0 0
        %4665 = vmatmul.mubr.bf16.gmra.mrb[0].mxu0 %v4496
        %v4666 = vpop.f32.mrb[0].mxu0
        %v4667 = vadd.f32 0.0, %v4666
        %v4668 = vpop.f32.mrb[0].mxu0
        %v4669 = vpop.f32.mrb[0].mxu0
        %v4670 = vadd.f32 0.0, %v4669
        %v4671 = vpop.f32.mrb[0].mxu0
        %4672 = vmatprep.mubr.bf16.mxu0 0
        %4673 = vmatmul.mubr.bf16.gmra.mrb[0].mxu0 %v4499
        %v4674 = vpop.f32.mrb[0].mxu0
        %v4675 = vadd.f32 0.0, %v4674
        %v4676 = vpop.f32.mrb[0].mxu0
        %v4677 = vpop.f32.mrb[0].mxu0
        %v4678 = vadd.f32 0.0, %v4677
        %v4679 = vpop.f32.mrb[0].mxu0
        %4680 = vdwg.mxu0
        %v4681 = vadd.f32 %v4242, %v4539
        %v4682 = vadd.f32 %v4243, %v4542
        %v4683 = vadd.f32 %v4244, %v4547
        %v4684 = vadd.f32 %v4245, %v4550
        %v4685 = vadd.f32 %v4246, %v4555
        %v4686 = vadd.f32 %v4247, %v4558
        %v4687 = vadd.f32 %v4248, %v4563
        %v4688 = vadd.f32 %v4249, %v4566
        %v4689 = vadd.f32 %v4250, %v4571
        %v4690 = vadd.f32 %v4251, %v4574
        %v4691 = vadd.f32 %v4252, %v4579
        %v4692 = vadd.f32 %v4253, %v4582
        %v4693 = vadd.f32 %v4254, %v4587
        %v4694 = vadd.f32 %v4255, %v4590
        %v4695 = vadd.f32 %v4256, %v4595
        %v4696 = vadd.f32 %v4257, %v4598
        %v4697 = vadd.f32 %v4258, %v4603
        %v4698 = vadd.f32 %v4259, %v4606
        %v4699 = vadd.f32 %v4260, %v4611
        %v4700 = vadd.f32 %v4261, %v4614
        %v4701 = vadd.f32 %v4262, %v4619
        %v4702 = vadd.f32 %v4263, %v4622
        %v4703 = vadd.f32 %v4264, %v4627
        %v4704 = vadd.f32 %v4265, %v4630
        %v4705 = vadd.f32 %v4266, %v4635
        %v4706 = vadd.f32 %v4267, %v4638
        %v4707 = vadd.f32 %v4268, %v4643
        %v4708 = vadd.f32 %v4269, %v4646
        %v4709 = vadd.f32 %v4270, %v4651
        %v4710 = vadd.f32 %v4271, %v4654
        %v4711 = vadd.f32 %v4272, %v4659
        %v4712 = vadd.f32 %v4273, %v4662
        %v4713 = vadd.f32 %v4274, %v4667
        %v4714 = vadd.f32 %v4275, %v4670
        %v4715 = vadd.f32 %v4276, %v4675
        %v4716 = vadd.f32 %v4277, %v4678
        %v4717 = vld [vmem:[#allocation2 + $0x98] sm:$0x3]
        %s4718 = scalar_lea.vmem %s291, 16
        %v4719 = vld [vmem:[%s4718] sm:$0xf]
        %v4721 = vunpack.c.l.b16 %v4717
        %v4722 = vpack.c.b16 %v4721, %v4721
        %vm4723 = vsmask.f32 6400
        %v4725 = vshrl.u32 %v4391, 16
        %v4727 = vrot.slane %v4725, 1
        %v4728 = vshll.u32 %v4391, 16
        %v4730 = vrot.slane %v4728, 2
        %v4731 = vor.u32 %v4727, %v4730
        %v4733 = vshrl.u32 %v4392, 16
        %v4735 = vrot.slane %v4733, 1
        %v4736 = vshll.u32 %v4392, 16
        %v4738 = vrot.slane %v4736, 2
        %v4739 = vor.u32 %v4735, %v4738
        %v4740 = vsel %vm4723, %v4731, %v4739
        %v4742 = vshrl.u32 %v4393, 16
        %v4744 = vrot.slane %v4742, 1
        %v4745 = vshll.u32 %v4393, 16
        %v4747 = vrot.slane %v4745, 2
        %v4748 = vor.u32 %v4744, %v4747
        %v4749 = vsel %vm4723, %v4739, %v4748
        %v4751 = vshrl.u32 %v4394, 16
        %v4753 = vrot.slane %v4751, 1
        %v4754 = vshll.u32 %v4394, 16
        %v4756 = vrot.slane %v4754, 2
        %v4757 = vor.u32 %v4753, %v4756
        %v4758 = vsel %vm4723, %v4748, %v4757
        %v4760 = vshrl.u32 %v4395, 16
        %v4762 = vrot.slane %v4760, 1
        %v4763 = vshll.u32 %v4395, 16
        %v4765 = vrot.slane %v4763, 2
        %v4766 = vor.u32 %v4762, %v4765
        %v4767 = vsel %vm4723, %v4757, %v4766
        %v4769 = vshrl.u32 %v4396, 16
        %v4771 = vrot.slane %v4769, 1
        %v4772 = vshll.u32 %v4396, 16
        %v4774 = vrot.slane %v4772, 2
        %v4775 = vor.u32 %v4771, %v4774
        %v4776 = vsel %vm4723, %v4766, %v4775
        %v4778 = vshrl.u32 %v4397, 16
        %v4780 = vrot.slane %v4778, 1
        %v4781 = vshll.u32 %v4397, 16
        %v4783 = vrot.slane %v4781, 2
        %v4784 = vor.u32 %v4780, %v4783
        %v4785 = vsel %vm4723, %v4775, %v4784
        %v4787 = vshrl.u32 %v4398, 16
        %v4789 = vrot.slane %v4787, 1
        %v4790 = vshll.u32 %v4398, 16
        %v4792 = vrot.slane %v4790, 2
        %v4793 = vor.u32 %v4789, %v4792
        %v4794 = vsel %vm4723, %v4784, %v4793
        %v4796 = vshrl.u32 %v4399, 16
        %v4798 = vrot.slane %v4796, 1
        %v4799 = vshll.u32 %v4399, 16
        %v4801 = vrot.slane %v4799, 2
        %v4802 = vor.u32 %v4798, %v4801
        %v4803 = vsel %vm4723, %v4793, %v4802
        %v4805 = vshrl.u32 %v4400, 16
        %v4807 = vrot.slane %v4805, 1
        %v4808 = vshll.u32 %v4400, 16
        %v4810 = vrot.slane %v4808, 2
        %v4811 = vor.u32 %v4807, %v4810
        %v4812 = vsel %vm4723, %v4802, %v4811
        %v4814 = vshrl.u32 %v4401, 16
        %v4816 = vrot.slane %v4814, 1
        %v4817 = vshll.u32 %v4401, 16
        %v4819 = vrot.slane %v4817, 2
        %v4820 = vor.u32 %v4816, %v4819
        %v4821 = vsel %vm4723, %v4811, %v4820
        %v4823 = vshrl.u32 %v4402, 16
        %v4825 = vrot.slane %v4823, 1
        %v4826 = vshll.u32 %v4402, 16
        %v4828 = vrot.slane %v4826, 2
        %v4829 = vor.u32 %v4825, %v4828
        %v4830 = vsel %vm4723, %v4820, %v4829
        %v4832 = vshrl.u32 %v4403, 16
        %v4834 = vrot.slane %v4832, 1
        %v4835 = vshll.u32 %v4403, 16
        %v4837 = vrot.slane %v4835, 2
        %v4838 = vor.u32 %v4834, %v4837
        %v4839 = vsel %vm4723, %v4829, %v4838
        %v4841 = vshrl.u32 %v4404, 16
        %v4843 = vrot.slane %v4841, 1
        %v4844 = vshll.u32 %v4404, 16
        %v4846 = vrot.slane %v4844, 2
        %v4847 = vor.u32 %v4843, %v4846
        %v4848 = vsel %vm4723, %v4838, %v4847
        %v4850 = vshrl.u32 %v4405, 16
        %v4852 = vrot.slane %v4850, 1
        %v4853 = vshll.u32 %v4405, 16
        %v4855 = vrot.slane %v4853, 2
        %v4856 = vor.u32 %v4852, %v4855
        %v4857 = vsel %vm4723, %v4847, %v4856
        %v4859 = vshrl.u32 %v4406, 16
        %v4861 = vrot.slane %v4859, 1
        %v4862 = vshll.u32 %v4406, 16
        %v4864 = vrot.slane %v4862, 2
        %v4865 = vor.u32 %v4861, %v4864
        %v4866 = vsel %vm4723, %v4856, %v4865
        %v4868 = vshrl.u32 %v4407, 16
        %v4870 = vrot.slane %v4868, 1
        %v4871 = vshll.u32 %v4407, 16
        %v4873 = vrot.slane %v4871, 2
        %v4874 = vor.u32 %v4870, %v4873
        %v4875 = vsel %vm4723, %v4865, %v4874
        %v4877 = vshrl.u32 %v4408, 16
        %v4879 = vrot.slane %v4877, 1
        %v4880 = vshll.u32 %v4408, 16
        %v4882 = vrot.slane %v4880, 2
        %v4883 = vor.u32 %v4879, %v4882
        %v4884 = vsel %vm4723, %v4874, %v4883
        %v4886 = vshrl.u32 %v4722, 16
        %v4888 = vrot.slane %v4886, 1
        %v4889 = vshll.u32 %v4722, 16
        %v4891 = vrot.slane %v4889, 2
        %v4892 = vor.u32 %v4888, %v4891
        %v4893 = vsel %vm4723, %v4883, %v4892
        %v4895 = vsel %vm3512, %v4740, 0
        %v4898 = vsel %vm3512, %v4749, 0
        %v4901 = vsel %vm3512, %v4758, 0
        %v4904 = vsel %vm3512, %v4767, 0
        %v4907 = vsel %vm3512, %v4776, 0
        %v4910 = vsel %vm3512, %v4785, 0
        %v4913 = vsel %vm3512, %v4794, 0
        %v4916 = vsel %vm3512, %v4803, 0
        %v4919 = vsel %vm3512, %v4812, 0
        %v4922 = vsel %vm3512, %v4821, 0
        %v4925 = vsel %vm3512, %v4830, 0
        %v4928 = vsel %vm3512, %v4839, 0
        %v4931 = vsel %vm3512, %v4848, 0
        %v4934 = vsel %vm3512, %v4857, 0
        %v4937 = vsel %vm3512, %v4866, 0
        %v4940 = vsel %vm3512, %v4875, 0
        %v4943 = vsel %vm3512, %v4884, 0
        %v4946 = vsel %vm3512, %v4893, 0
        %v4949 = vsel %vm3567, %v4719, 0
        %4951 = vmatprep.subr.bf16.mxu0 0
        %4952 = vmatpush1.bf16.msra.mxu0 %v4949
        %4953 = vmatprep.subr.bf16.mxu0 0
        %4954 = vmatpush1.bf16.msra.mxu0 0
        %4955 = vmatprep.subr.bf16.mxu0 0
        %4956 = vmatpush1.bf16.msra.mxu0 0
        %4957 = vmatprep.subr.bf16.mxu0 0
        %4958 = vmatpush1.bf16.msra.mxu0 0
        %4959 = vmatprep.subr.bf16.mxu0 0
        %4960 = vmatpush1.bf16.msra.mxu0 0
        %4961 = vmatprep.subr.bf16.mxu0 0
        %4962 = vmatpush1.bf16.msra.mxu0 0
        %4963 = vmatprep.subr.bf16.mxu0 0
        %4964 = vmatpush1.bf16.msra.mxu0 0
        %4965 = vmatprep.subr.bf16.mxu0 0
        %4966 = vmatpush1.bf16.msra.mxu0 0
        %4967 = vmatprep.subr.bf16.mxu0 0
        %4968 = vmatpush1.bf16.msra.mxu0 0
        %4969 = vmatprep.subr.bf16.mxu0 0
        %4970 = vmatpush1.bf16.msra.mxu0 0
        %4971 = vmatprep.subr.bf16.mxu0 0
        %4972 = vmatpush1.bf16.msra.mxu0 0
        %4973 = vmatprep.subr.bf16.mxu0 0
        %4974 = vmatpush1.bf16.msra.mxu0 0
        %4975 = vmatprep.subr.bf16.mxu0 0
        %4976 = vmatpush1.bf16.msra.mxu0 0
        %4977 = vmatprep.subr.bf16.mxu0 0
        %4978 = vmatpush1.bf16.msra.mxu0 0
        %4979 = vmatprep.subr.bf16.mxu0 0
        %4980 = vmatpush1.bf16.msra.mxu0 0
        %4981 = vmatprep.subr.bf16.mxu0 0
        %4982 = vmatpush1.bf16.msra.mxu0 0
        %4983 = vmatprep.mubr.bf16.mxu0 0
        %4984 = vmatmul.mubr.bf16.gmra.mrb[0].mxu0 %v4895
        %v4985 = vpop.f32.mrb[0].mxu0
        %v4986 = vadd.f32 0.0, %v4985
        %v4987 = vpop.f32.mrb[0].mxu0
        %v4988 = vpop.f32.mrb[0].mxu0
        %v4989 = vadd.f32 0.0, %v4988
        %v4990 = vpop.f32.mrb[0].mxu0
        %4991 = vmatprep.mubr.bf16.mxu0 0
        %4992 = vmatmul.mubr.bf16.gmra.mrb[0].mxu0 %v4898
        %v4993 = vpop.f32.mrb[0].mxu0
        %v4994 = vadd.f32 0.0, %v4993
        %v4995 = vpop.f32.mrb[0].mxu0
        %v4996 = vpop.f32.mrb[0].mxu0
        %v4997 = vadd.f32 0.0, %v4996
        %v4998 = vpop.f32.mrb[0].mxu0
        %4999 = vmatprep.mubr.bf16.mxu0 0
        %5000 = vmatmul.mubr.bf16.gmra.mrb[0].mxu0 %v4901
        %v5001 = vpop.f32.mrb[0].mxu0
        %v5002 = vadd.f32 0.0, %v5001
        %v5003 = vpop.f32.mrb[0].mxu0
        %v5004 = vpop.f32.mrb[0].mxu0
        %v5005 = vadd.f32 0.0, %v5004
        %v5006 = vpop.f32.mrb[0].mxu0
        %5007 = vmatprep.mubr.bf16.mxu0 0
        %5008 = vmatmul.mubr.bf16.gmra.mrb[0].mxu0 %v4904
        %v5009 = vpop.f32.mrb[0].mxu0
        %v5010 = vadd.f32 0.0, %v5009
        %v5011 = vpop.f32.mrb[0].mxu0
        %v5012 = vpop.f32.mrb[0].mxu0
        %v5013 = vadd.f32 0.0, %v5012
        %v5014 = vpop.f32.mrb[0].mxu0
        %5015 = vmatprep.mubr.bf16.mxu0 0
        %5016 = vmatmul.mubr.bf16.gmra.mrb[0].mxu0 %v4907
        %v5017 = vpop.f32.mrb[0].mxu0
        %v5018 = vadd.f32 0.0, %v5017
        %v5019 = vpop.f32.mrb[0].mxu0
        %v5020 = vpop.f32.mrb[0].mxu0
        %v5021 = vadd.f32 0.0, %v5020
        %v5022 = vpop.f32.mrb[0].mxu0
        %5023 = vmatprep.mubr.bf16.mxu0 0
        %5024 = vmatmul.mubr.bf16.gmra.mrb[0].mxu0 %v4910
        %v5025 = vpop.f32.mrb[0].mxu0
        %v5026 = vadd.f32 0.0, %v5025
        %v5027 = vpop.f32.mrb[0].mxu0
        %v5028 = vpop.f32.mrb[0].mxu0
        %v5029 = vadd.f32 0.0, %v5028
        %v5030 = vpop.f32.mrb[0].mxu0
        %5031 = vmatprep.mubr.bf16.mxu0 0
        %5032 = vmatmul.mubr.bf16.gmra.mrb[0].mxu0 %v4913
        %v5033 = vpop.f32.mrb[0].mxu0
        %v5034 = vadd.f32 0.0, %v5033
        %v5035 = vpop.f32.mrb[0].mxu0
        %v5036 = vpop.f32.mrb[0].mxu0
        %v5037 = vadd.f32 0.0, %v5036
        %v5038 = vpop.f32.mrb[0].mxu0
        %5039 = vmatprep.mubr.bf16.mxu0 0
        %5040 = vmatmul.mubr.bf16.gmra.mrb[0].mxu0 %v4916
        %v5041 = vpop.f32.mrb[0].mxu0
        %v5042 = vadd.f32 0.0, %v5041
        %v5043 = vpop.f32.mrb[0].mxu0
        %v5044 = vpop.f32.mrb[0].mxu0
        %v5045 = vadd.f32 0.0, %v5044
        %v5046 = vpop.f32.mrb[0].mxu0
        %5047 = vmatprep.mubr.bf16.mxu0 0
        %5048 = vmatmul.mubr.bf16.gmra.mrb[0].mxu0 %v4919
        %v5049 = vpop.f32.mrb[0].mxu0
        %v5050 = vadd.f32 0.0, %v5049
        %v5051 = vpop.f32.mrb[0].mxu0
        %v5052 = vpop.f32.mrb[0].mxu0
        %v5053 = vadd.f32 0.0, %v5052
        %v5054 = vpop.f32.mrb[0].mxu0
        %5055 = vmatprep.mubr.bf16.mxu0 0
        %5056 = vmatmul.mubr.bf16.gmra.mrb[0].mxu0 %v4922
        %v5057 = vpop.f32.mrb[0].mxu0
        %v5058 = vadd.f32 0.0, %v5057
        %v5059 = vpop.f32.mrb[0].mxu0
        %v5060 = vpop.f32.mrb[0].mxu0
        %v5061 = vadd.f32 0.0, %v5060
        %v5062 = vpop.f32.mrb[0].mxu0
        %5063 = vmatprep.mubr.bf16.mxu0 0
        %5064 = vmatmul.mubr.bf16.gmra.mrb[0].mxu0 %v4925
        %v5065 = vpop.f32.mrb[0].mxu0
        %v5066 = vadd.f32 0.0, %v5065
        %v5067 = vpop.f32.mrb[0].mxu0
        %v5068 = vpop.f32.mrb[0].mxu0
        %v5069 = vadd.f32 0.0, %v5068
        %v5070 = vpop.f32.mrb[0].mxu0
        %5071 = vmatprep.mubr.bf16.mxu0 0
        %5072 = vmatmul.mubr.bf16.gmra.mrb[0].mxu0 %v4928
        %v5073 = vpop.f32.mrb[0].mxu0
        %v5074 = vadd.f32 0.0, %v5073
        %v5075 = vpop.f32.mrb[0].mxu0
        %v5076 = vpop.f32.mrb[0].mxu0
        %v5077 = vadd.f32 0.0, %v5076
        %v5078 = vpop.f32.mrb[0].mxu0
        %5079 = vmatprep.mubr.bf16.mxu0 0
        %5080 = vmatmul.mubr.bf16.gmra.mrb[0].mxu0 %v4931
        %v5081 = vpop.f32.mrb[0].mxu0
        %v5082 = vadd.f32 0.0, %v5081
        %v5083 = vpop.f32.mrb[0].mxu0
        %v5084 = vpop.f32.mrb[0].mxu0
        %v5085 = vadd.f32 0.0, %v5084
        %v5086 = vpop.f32.mrb[0].mxu0
        %5087 = vmatprep.mubr.bf16.mxu0 0
        %5088 = vmatmul.mubr.bf16.gmra.mrb[0].mxu0 %v4934
        %v5089 = vpop.f32.mrb[0].mxu0
        %v5090 = vadd.f32 0.0, %v5089
        %v5091 = vpop.f32.mrb[0].mxu0
        %v5092 = vpop.f32.mrb[0].mxu0
        %v5093 = vadd.f32 0.0, %v5092
        %v5094 = vpop.f32.mrb[0].mxu0
        %5095 = vmatprep.mubr.bf16.mxu0 0
        %5096 = vmatmul.mubr.bf16.gmra.mrb[0].mxu0 %v4937
        %v5097 = vpop.f32.mrb[0].mxu0
        %v5098 = vadd.f32 0.0, %v5097
        %v5099 = vpop.f32.mrb[0].mxu0
        %v5100 = vpop.f32.mrb[0].mxu0
        %v5101 = vadd.f32 0.0, %v5100
        %v5102 = vpop.f32.mrb[0].mxu0
        %5103 = vmatprep.mubr.bf16.mxu0 0
        %5104 = vmatmul.mubr.bf16.gmra.mrb[0].mxu0 %v4940
        %v5105 = vpop.f32.mrb[0].mxu0
        %v5106 = vadd.f32 0.0, %v5105
        %v5107 = vpop.f32.mrb[0].mxu0
        %v5108 = vpop.f32.mrb[0].mxu0
        %v5109 = vadd.f32 0.0, %v5108
        %v5110 = vpop.f32.mrb[0].mxu0
        %5111 = vmatprep.mubr.bf16.mxu0 0
        %5112 = vmatmul.mubr.bf16.gmra.mrb[0].mxu0 %v4943
        %v5113 = vpop.f32.mrb[0].mxu0
        %v5114 = vadd.f32 0.0, %v5113
        %v5115 = vpop.f32.mrb[0].mxu0
        %v5116 = vpop.f32.mrb[0].mxu0
        %v5117 = vadd.f32 0.0, %v5116
        %v5118 = vpop.f32.mrb[0].mxu0
        %5119 = vmatprep.mubr.bf16.mxu0 0
        %5120 = vmatmul.mubr.bf16.gmra.mrb[0].mxu0 %v4946
        %v5121 = vpop.f32.mrb[0].mxu0
        %v5122 = vadd.f32 0.0, %v5121
        %v5123 = vpop.f32.mrb[0].mxu0
        %v5124 = vpop.f32.mrb[0].mxu0
        %v5125 = vadd.f32 0.0, %v5124
        %v5126 = vpop.f32.mrb[0].mxu0
        %5127 = vdwg.mxu0
        %v5128 = vadd.f32 %v4681, %v4986
        %v5129 = vadd.f32 %v4682, %v4989
        %v5130 = vadd.f32 %v4683, %v4994
        %v5131 = vadd.f32 %v4684, %v4997
        %v5132 = vadd.f32 %v4685, %v5002
        %v5133 = vadd.f32 %v4686, %v5005
        %v5134 = vadd.f32 %v4687, %v5010
        %v5135 = vadd.f32 %v4688, %v5013
        %v5136 = vadd.f32 %v4689, %v5018
        %v5137 = vadd.f32 %v4690, %v5021
        %v5138 = vadd.f32 %v4691, %v5026
        %v5139 = vadd.f32 %v4692, %v5029
        %v5140 = vadd.f32 %v4693, %v5034
        %v5141 = vadd.f32 %v4694, %v5037
        %v5142 = vadd.f32 %v4695, %v5042
        %v5143 = vadd.f32 %v4696, %v5045
        %v5144 = vadd.f32 %v4697, %v5050
        %v5145 = vadd.f32 %v4698, %v5053
        %v5146 = vadd.f32 %v4699, %v5058
        %v5147 = vadd.f32 %v4700, %v5061
        %v5148 = vadd.f32 %v4701, %v5066
        %v5149 = vadd.f32 %v4702, %v5069
        %v5150 = vadd.f32 %v4703, %v5074
        %v5151 = vadd.f32 %v4704, %v5077
        %v5152 = vadd.f32 %v4705, %v5082
        %v5153 = vadd.f32 %v4706, %v5085
        %v5154 = vadd.f32 %v4707, %v5090
        %v5155 = vadd.f32 %v4708, %v5093
        %v5156 = vadd.f32 %v4709, %v5098
        %v5157 = vadd.f32 %v4710, %v5101
        %v5158 = vadd.f32 %v4711, %v5106
        %v5159 = vadd.f32 %v4712, %v5109
        %v5160 = vadd.f32 %v4713, %v5114
        %v5161 = vadd.f32 %v4714, %v5117
        %v5162 = vadd.f32 %v4715, %v5122
        %v5163 = vadd.f32 %v4716, %v5125
        %v5164 = vld [vmem:[#allocation2 + $0x8] sm:$0xc]
        %s5165 = scalar_lea.vmem %s291, 20
        %v5166 = vld [vmem:[%s5165] sm:$0xf]
        %v5168 = vunpack.c.l.b16 %v5164
        %v5169 = vpack.c.b16 %v4355, %v5168
        %vm5170 = vcmask 1045504
        %v5171 = vrot.slane %v5169, 2
        %v5172 = vrot.slane %v4392, 2
        %v5173 = vsel %vm5170, %v5171, %v5172
        %v5174 = vrot.slane %v4393, 2
        %v5175 = vsel %vm5170, %v5172, %v5174
        %v5176 = vrot.slane %v4394, 2
        %v5177 = vsel %vm5170, %v5174, %v5176
        %v5178 = vrot.slane %v4395, 2
        %v5179 = vsel %vm5170, %v5176, %v5178
        %v5180 = vrot.slane %v4396, 2
        %v5181 = vsel %vm5170, %v5178, %v5180
        %v5182 = vrot.slane %v4397, 2
        %v5183 = vsel %vm5170, %v5180, %v5182
        %v5184 = vrot.slane %v4398, 2
        %v5185 = vsel %vm5170, %v5182, %v5184
        %v5186 = vrot.slane %v4399, 2
        %v5187 = vsel %vm5170, %v5184, %v5186
        %v5188 = vrot.slane %v4400, 2
        %v5189 = vsel %vm5170, %v5186, %v5188
        %v5190 = vrot.slane %v4401, 2
        %v5191 = vsel %vm5170, %v5188, %v5190
        %v5192 = vrot.slane %v4402, 2
        %v5193 = vsel %vm5170, %v5190, %v5192
        %v5194 = vrot.slane %v4403, 2
        %v5195 = vsel %vm5170, %v5192, %v5194
        %v5196 = vrot.slane %v4404, 2
        %v5197 = vsel %vm5170, %v5194, %v5196
        %v5198 = vrot.slane %v4405, 2
        %v5199 = vsel %vm5170, %v5196, %v5198
        %v5200 = vrot.slane %v4406, 2
        %v5201 = vsel %vm5170, %v5198, %v5200
        %v5202 = vrot.slane %v4407, 2
        %v5203 = vsel %vm5170, %v5200, %v5202
        %v5204 = vrot.slane %v4408, 2
        %v5205 = vsel %vm5170, %v5202, %v5204
        %v5206 = vrot.slane %v4722, 2
        %v5207 = vsel %vm5170, %v5204, %v5206
        %v5209 = vsel %vm3512, %v5173, 0
        %v5212 = vsel %vm3512, %v5175, 0
        %v5215 = vsel %vm3512, %v5177, 0
        %v5218 = vsel %vm3512, %v5179, 0
        %v5221 = vsel %vm3512, %v5181, 0
        %v5224 = vsel %vm3512, %v5183, 0
        %v5227 = vsel %vm3512, %v5185, 0
        %v5230 = vsel %vm3512, %v5187, 0
        %v5233 = vsel %vm3512, %v5189, 0
        %v5236 = vsel %vm3512, %v5191, 0
        %v5239 = vsel %vm3512, %v5193, 0
        %v5242 = vsel %vm3512, %v5195, 0
        %v5245 = vsel %vm3512, %v5197, 0
        %v5248 = vsel %vm3512, %v5199, 0
        %v5251 = vsel %vm3512, %v5201, 0
        %v5254 = vsel %vm3512, %v5203, 0
        %v5257 = vsel %vm3512, %v5205, 0
        %v5260 = vsel %vm3512, %v5207, 0
        %v5263 = vsel %vm3567, %v5166, 0
        %5265 = vmatprep.subr.bf16.mxu0 0
        %5266 = vmatpush1.bf16.msra.mxu0 %v5263
        %5267 = vmatprep.subr.bf16.mxu0 0
        %5268 = vmatpush1.bf16.msra.mxu0 0
        %5269 = vmatprep.subr.bf16.mxu0 0
        %5270 = vmatpush1.bf16.msra.mxu0 0
        %5271 = vmatprep.subr.bf16.mxu0 0
        %5272 = vmatpush1.bf16.msra.mxu0 0
        %5273 = vmatprep.subr.bf16.mxu0 0
        %5274 = vmatpush1.bf16.msra.mxu0 0
        %5275 = vmatprep.subr.bf16.mxu0 0
        %5276 = vmatpush1.bf16.msra.mxu0 0
        %5277 = vmatprep.subr.bf16.mxu0 0
        %5278 = vmatpush1.bf16.msra.mxu0 0
        %5279 = vmatprep.subr.bf16.mxu0 0
        %5280 = vmatpush1.bf16.msra.mxu0 0
        %5281 = vmatprep.subr.bf16.mxu0 0
        %5282 = vmatpush1.bf16.msra.mxu0 0
        %5283 = vmatprep.subr.bf16.mxu0 0
        %5284 = vmatpush1.bf16.msra.mxu0 0
        %5285 = vmatprep.subr.bf16.mxu0 0
        %5286 = vmatpush1.bf16.msra.mxu0 0
        %5287 = vmatprep.subr.bf16.mxu0 0
        %5288 = vmatpush1.bf16.msra.mxu0 0
        %5289 = vmatprep.subr.bf16.mxu0 0
        %5290 = vmatpush1.bf16.msra.mxu0 0
        %5291 = vmatprep.subr.bf16.mxu0 0
        %5292 = vmatpush1.bf16.msra.mxu0 0
        %5293 = vmatprep.subr.bf16.mxu0 0
        %5294 = vmatpush1.bf16.msra.mxu0 0
        %5295 = vmatprep.subr.bf16.mxu0 0
        %5296 = vmatpush1.bf16.msra.mxu0 0
        %5297 = vmatprep.mubr.bf16.mxu0 0
        %5298 = vmatmul.mubr.bf16.gmra.mrb[0].mxu0 %v5209
        %v5299 = vpop.f32.mrb[0].mxu0
        %v5300 = vadd.f32 0.0, %v5299
        %v5301 = vpop.f32.mrb[0].mxu0
        %v5302 = vpop.f32.mrb[0].mxu0
        %v5303 = vadd.f32 0.0, %v5302
        %v5304 = vpop.f32.mrb[0].mxu0
        %5305 = vmatprep.mubr.bf16.mxu0 0
        %5306 = vmatmul.mubr.bf16.gmra.mrb[0].mxu0 %v5212
        %v5307 = vpop.f32.mrb[0].mxu0
        %v5308 = vadd.f32 0.0, %v5307
        %v5309 = vpop.f32.mrb[0].mxu0
        %v5310 = vpop.f32.mrb[0].mxu0
        %v5311 = vadd.f32 0.0, %v5310
        %v5312 = vpop.f32.mrb[0].mxu0
        %5313 = vmatprep.mubr.bf16.mxu0 0
        %5314 = vmatmul.mubr.bf16.gmra.mrb[0].mxu0 %v5215
        %v5315 = vpop.f32.mrb[0].mxu0
        %v5316 = vadd.f32 0.0, %v5315
        %v5317 = vpop.f32.mrb[0].mxu0
        %v5318 = vpop.f32.mrb[0].mxu0
        %v5319 = vadd.f32 0.0, %v5318
        %v5320 = vpop.f32.mrb[0].mxu0
        %5321 = vmatprep.mubr.bf16.mxu0 0
        %5322 = vmatmul.mubr.bf16.gmra.mrb[0].mxu0 %v5218
        %v5323 = vpop.f32.mrb[0].mxu0
        %v5324 = vadd.f32 0.0, %v5323
        %v5325 = vpop.f32.mrb[0].mxu0
        %v5326 = vpop.f32.mrb[0].mxu0
        %v5327 = vadd.f32 0.0, %v5326
        %v5328 = vpop.f32.mrb[0].mxu0
        %5329 = vmatprep.mubr.bf16.mxu0 0
        %5330 = vmatmul.mubr.bf16.gmra.mrb[0].mxu0 %v5221
        %v5331 = vpop.f32.mrb[0].mxu0
        %v5332 = vadd.f32 0.0, %v5331
        %v5333 = vpop.f32.mrb[0].mxu0
        %v5334 = vpop.f32.mrb[0].mxu0
        %v5335 = vadd.f32 0.0, %v5334
        %v5336 = vpop.f32.mrb[0].mxu0
        %5337 = vmatprep.mubr.bf16.mxu0 0
        %5338 = vmatmul.mubr.bf16.gmra.mrb[0].mxu0 %v5224
        %v5339 = vpop.f32.mrb[0].mxu0
        %v5340 = vadd.f32 0.0, %v5339
        %v5341 = vpop.f32.mrb[0].mxu0
        %v5342 = vpop.f32.mrb[0].mxu0
        %v5343 = vadd.f32 0.0, %v5342
        %v5344 = vpop.f32.mrb[0].mxu0
        %5345 = vmatprep.mubr.bf16.mxu0 0
        %5346 = vmatmul.mubr.bf16.gmra.mrb[0].mxu0 %v5227
        %v5347 = vpop.f32.mrb[0].mxu0
        %v5348 = vadd.f32 0.0, %v5347
        %v5349 = vpop.f32.mrb[0].mxu0
        %v5350 = vpop.f32.mrb[0].mxu0
        %v5351 = vadd.f32 0.0, %v5350
        %v5352 = vpop.f32.mrb[0].mxu0
        %5353 = vmatprep.mubr.bf16.mxu0 0
        %5354 = vmatmul.mubr.bf16.gmra.mrb[0].mxu0 %v5230
        %v5355 = vpop.f32.mrb[0].mxu0
        %v5356 = vadd.f32 0.0, %v5355
        %v5357 = vpop.f32.mrb[0].mxu0
        %v5358 = vpop.f32.mrb[0].mxu0
        %v5359 = vadd.f32 0.0, %v5358
        %v5360 = vpop.f32.mrb[0].mxu0
        %5361 = vmatprep.mubr.bf16.mxu0 0
        %5362 = vmatmul.mubr.bf16.gmra.mrb[0].mxu0 %v5233
        %v5363 = vpop.f32.mrb[0].mxu0
        %v5364 = vadd.f32 0.0, %v5363
        %v5365 = vpop.f32.mrb[0].mxu0
        %v5366 = vpop.f32.mrb[0].mxu0
        %v5367 = vadd.f32 0.0, %v5366
        %v5368 = vpop.f32.mrb[0].mxu0
        %5369 = vmatprep.mubr.bf16.mxu0 0
        %5370 = vmatmul.mubr.bf16.gmra.mrb[0].mxu0 %v5236
        %v5371 = vpop.f32.mrb[0].mxu0
        %v5372 = vadd.f32 0.0, %v5371
        %v5373 = vpop.f32.mrb[0].mxu0
        %v5374 = vpop.f32.mrb[0].mxu0
        %v5375 = vadd.f32 0.0, %v5374
        %v5376 = vpop.f32.mrb[0].mxu0
        %5377 = vmatprep.mubr.bf16.mxu0 0
        %5378 = vmatmul.mubr.bf16.gmra.mrb[0].mxu0 %v5239
        %v5379 = vpop.f32.mrb[0].mxu0
        %v5380 = vadd.f32 0.0, %v5379
        %v5381 = vpop.f32.mrb[0].mxu0
        %v5382 = vpop.f32.mrb[0].mxu0
        %v5383 = vadd.f32 0.0, %v5382
        %v5384 = vpop.f32.mrb[0].mxu0
        %5385 = vmatprep.mubr.bf16.mxu0 0
        %5386 = vmatmul.mubr.bf16.gmra.mrb[0].mxu0 %v5242
        %v5387 = vpop.f32.mrb[0].mxu0
        %v5388 = vadd.f32 0.0, %v5387
        %v5389 = vpop.f32.mrb[0].mxu0
        %v5390 = vpop.f32.mrb[0].mxu0
        %v5391 = vadd.f32 0.0, %v5390
        %v5392 = vpop.f32.mrb[0].mxu0
        %5393 = vmatprep.mubr.bf16.mxu0 0
        %5394 = vmatmul.mubr.bf16.gmra.mrb[0].mxu0 %v5245
        %v5395 = vpop.f32.mrb[0].mxu0
        %v5396 = vadd.f32 0.0, %v5395
        %v5397 = vpop.f32.mrb[0].mxu0
        %v5398 = vpop.f32.mrb[0].mxu0
        %v5399 = vadd.f32 0.0, %v5398
        %v5400 = vpop.f32.mrb[0].mxu0
        %5401 = vmatprep.mubr.bf16.mxu0 0
        %5402 = vmatmul.mubr.bf16.gmra.mrb[0].mxu0 %v5248
        %v5403 = vpop.f32.mrb[0].mxu0
        %v5404 = vadd.f32 0.0, %v5403
        %v5405 = vpop.f32.mrb[0].mxu0
        %v5406 = vpop.f32.mrb[0].mxu0
        %v5407 = vadd.f32 0.0, %v5406
        %v5408 = vpop.f32.mrb[0].mxu0
        %5409 = vmatprep.mubr.bf16.mxu0 0
        %5410 = vmatmul.mubr.bf16.gmra.mrb[0].mxu0 %v5251
        %v5411 = vpop.f32.mrb[0].mxu0
        %v5412 = vadd.f32 0.0, %v5411
        %v5413 = vpop.f32.mrb[0].mxu0
        %v5414 = vpop.f32.mrb[0].mxu0
        %v5415 = vadd.f32 0.0, %v5414
        %v5416 = vpop.f32.mrb[0].mxu0
        %5417 = vmatprep.mubr.bf16.mxu0 0
        %5418 = vmatmul.mubr.bf16.gmra.mrb[0].mxu0 %v5254
        %v5419 = vpop.f32.mrb[0].mxu0
        %v5420 = vadd.f32 0.0, %v5419
        %v5421 = vpop.f32.mrb[0].mxu0
        %v5422 = vpop.f32.mrb[0].mxu0
        %v5423 = vadd.f32 0.0, %v5422
        %v5424 = vpop.f32.mrb[0].mxu0
        %5425 = vmatprep.mubr.bf16.mxu0 0
        %5426 = vmatmul.mubr.bf16.gmra.mrb[0].mxu0 %v5257
        %v5427 = vpop.f32.mrb[0].mxu0
        %v5428 = vadd.f32 0.0, %v5427
        %v5429 = vpop.f32.mrb[0].mxu0
        %v5430 = vpop.f32.mrb[0].mxu0
        %v5431 = vadd.f32 0.0, %v5430
        %v5432 = vpop.f32.mrb[0].mxu0
        %5433 = vmatprep.mubr.bf16.mxu0 0
        %5434 = vmatmul.mubr.bf16.gmra.mrb[0].mxu0 %v5260
        %v5435 = vpop.f32.mrb[0].mxu0
        %v5436 = vadd.f32 0.0, %v5435
        %v5437 = vpop.f32.mrb[0].mxu0
        %v5438 = vpop.f32.mrb[0].mxu0
        %v5439 = vadd.f32 0.0, %v5438
        %v5440 = vpop.f32.mrb[0].mxu0
        %5441 = vdwg.mxu0
        %v5442 = vadd.f32 %v5128, %v5300
        %v5443 = vadd.f32 %v5129, %v5303
        %v5444 = vadd.f32 %v5130, %v5308
        %v5445 = vadd.f32 %v5131, %v5311
        %v5446 = vadd.f32 %v5132, %v5316
        %v5447 = vadd.f32 %v5133, %v5319
        %v5448 = vadd.f32 %v5134, %v5324
        %v5449 = vadd.f32 %v5135, %v5327
        %v5450 = vadd.f32 %v5136, %v5332
        %v5451 = vadd.f32 %v5137, %v5335
        %v5452 = vadd.f32 %v5138, %v5340
        %v5453 = vadd.f32 %v5139, %v5343
        %v5454 = vadd.f32 %v5140, %v5348
        %v5455 = vadd.f32 %v5141, %v5351
        %v5456 = vadd.f32 %v5142, %v5356
        %v5457 = vadd.f32 %v5143, %v5359
        %v5458 = vadd.f32 %v5144, %v5364
        %v5459 = vadd.f32 %v5145, %v5367
        %v5460 = vadd.f32 %v5146, %v5372
        %v5461 = vadd.f32 %v5147, %v5375
        %v5462 = vadd.f32 %v5148, %v5380
        %v5463 = vadd.f32 %v5149, %v5383
        %v5464 = vadd.f32 %v5150, %v5388
        %v5465 = vadd.f32 %v5151, %v5391
        %v5466 = vadd.f32 %v5152, %v5396
        %v5467 = vadd.f32 %v5153, %v5399
        %v5468 = vadd.f32 %v5154, %v5404
        %v5469 = vadd.f32 %v5155, %v5407
        %v5470 = vadd.f32 %v5156, %v5412
        %v5471 = vadd.f32 %v5157, %v5415
        %v5472 = vadd.f32 %v5158, %v5420
        %v5473 = vadd.f32 %v5159, %v5423
        %v5474 = vadd.f32 %v5160, %v5428
        %v5475 = vadd.f32 %v5161, %v5431
        %v5476 = vadd.f32 %v5162, %v5436
        %v5477 = vadd.f32 %v5163, %v5439
        %v5478 = vld [vmem:[#allocation2 + $0x10] sm:$0xc]
        %v5479 = vld [vmem:[#allocation2 + $0x14] sm:$0xf]
        %v5480 = vld [vmem:[#allocation2 + $0x18] sm:$0xf]
        %v5481 = vld [vmem:[#allocation2 + $0x1c] sm:$0xf]
        %v5482 = vld [vmem:[#allocation2 + $0x20] sm:$0xf]
        %v5483 = vld [vmem:[#allocation2 + $0x24] sm:$0xf]
        %v5484 = vld [vmem:[#allocation2 + $0x28] sm:$0xf]
        %v5485 = vld [vmem:[#allocation2 + $0x2c] sm:$0xf]
        %v5486 = vld [vmem:[#allocation2 + $0x30] sm:$0xf]
        %v5487 = vld [vmem:[#allocation2 + $0x34] sm:$0xf]
        %v5488 = vld [vmem:[#allocation2 + $0x38] sm:$0xf]
        %v5489 = vld [vmem:[#allocation2 + $0x3c] sm:$0xf]
        %v5490 = vld [vmem:[#allocation2 + $0x40] sm:$0xf]
        %v5491 = vld [vmem:[#allocation2 + $0x44] sm:$0xf]
        %v5492 = vld [vmem:[#allocation2 + $0x48] sm:$0xf]
        %v5493 = vld [vmem:[#allocation2 + $0x4c] sm:$0xf]
        %v5494 = vld [vmem:[#allocation2 + $0x50] sm:$0xf]
        %v5495 = vld [vmem:[#allocation2 + $0x54] sm:$0xf]
        %v5496 = vld [vmem:[#allocation2 + $0x58] sm:$0xf]
        %v5497 = vld [vmem:[#allocation2 + $0x5c] sm:$0xf]
        %v5498 = vld [vmem:[#allocation2 + $0x60] sm:$0xf]
        %v5499 = vld [vmem:[#allocation2 + $0x64] sm:$0xf]
        %v5500 = vld [vmem:[#allocation2 + $0x68] sm:$0xf]
        %v5501 = vld [vmem:[#allocation2 + $0x6c] sm:$0xf]
        %v5502 = vld [vmem:[#allocation2 + $0x70] sm:$0xf]
        %v5503 = vld [vmem:[#allocation2 + $0x74] sm:$0xf]
        %v5504 = vld [vmem:[#allocation2 + $0x78] sm:$0xf]
        %v5505 = vld [vmem:[#allocation2 + $0x7c] sm:$0xf]
        %v5506 = vld [vmem:[#allocation2 + $0x80] sm:$0xf]
        %v5507 = vld [vmem:[#allocation2 + $0x84] sm:$0xf]
        %v5508 = vld [vmem:[#allocation2 + $0x88] sm:$0xf]
        %v5509 = vld [vmem:[#allocation2 + $0x8c] sm:$0xf]
        %v5510 = vld [vmem:[#allocation2 + $0x90] sm:$0xf]
        %v5511 = vld [vmem:[#allocation2 + $0x94] sm:$0xf]
        %v5512 = vld [vmem:[#allocation2 + $0x98] sm:$0xf]
        %v5513 = vld [vmem:[#allocation2 + $0x9c] sm:$0xf]
        %v5514 = vld [vmem:[#allocation2 + $0xa0] sm:$0x3]
        %s5515 = scalar_lea.vmem %s291, 24
        %v5516 = vld [vmem:[%s5515] sm:$0xf]
        %v5554 = vunpack.c.l.b16 %v5478
        %v5555 = vunpack.c.l.b16 %v5479
        %v5556 = vunpack.c.l.b16 %v5480
        %v5557 = vunpack.c.l.b16 %v5481
        %v5558 = vunpack.c.l.b16 %v5482
        %v5559 = vunpack.c.l.b16 %v5483
        %v5560 = vunpack.c.l.b16 %v5484
        %v5561 = vunpack.c.l.b16 %v5485
        %v5562 = vunpack.c.l.b16 %v5486
        %v5563 = vunpack.c.l.b16 %v5487
        %v5564 = vunpack.c.l.b16 %v5488
        %v5565 = vunpack.c.l.b16 %v5489
        %v5566 = vunpack.c.l.b16 %v5490
        %v5567 = vunpack.c.l.b16 %v5491
        %v5568 = vunpack.c.l.b16 %v5492
        %v5569 = vunpack.c.l.b16 %v5493
        %v5570 = vunpack.c.l.b16 %v5494
        %v5571 = vunpack.c.l.b16 %v5495
        %v5572 = vunpack.c.l.b16 %v5496
        %v5573 = vunpack.c.l.b16 %v5497
        %v5574 = vunpack.c.l.b16 %v5498
        %v5575 = vunpack.c.l.b16 %v5499
        %v5576 = vunpack.c.l.b16 %v5500
        %v5577 = vunpack.c.l.b16 %v5501
        %v5578 = vunpack.c.l.b16 %v5502
        %v5579 = vunpack.c.l.b16 %v5503
        %v5580 = vunpack.c.l.b16 %v5504
        %v5581 = vunpack.c.l.b16 %v5505
        %v5582 = vunpack.c.l.b16 %v5506
        %v5583 = vunpack.c.l.b16 %v5507
        %v5584 = vunpack.c.l.b16 %v5508
        %v5585 = vunpack.c.l.b16 %v5509
        %v5586 = vunpack.c.l.b16 %v5510
        %v5587 = vunpack.c.l.b16 %v5511
        %v5588 = vunpack.c.l.b16 %v5512
        %v5589 = vunpack.c.l.b16 %v5513
        %v5590 = vunpack.c.l.b16 %v5514
        %v5591 = vpack.c.b16 %v5555, %v5554
        %v5592 = vpack.c.b16 %v5557, %v5556
        %v5593 = vpack.c.b16 %v5559, %v5558
        %v5594 = vpack.c.b16 %v5561, %v5560
        %v5595 = vpack.c.b16 %v5563, %v5562
        %v5596 = vpack.c.b16 %v5565, %v5564
        %v5597 = vpack.c.b16 %v5567, %v5566
        %v5598 = vpack.c.b16 %v5569, %v5568
        %v5599 = vpack.c.b16 %v5571, %v5570
        %v5600 = vpack.c.b16 %v5573, %v5572
        %v5601 = vpack.c.b16 %v5575, %v5574
        %v5602 = vpack.c.b16 %v5577, %v5576
        %v5603 = vpack.c.b16 %v5579, %v5578
        %v5604 = vpack.c.b16 %v5581, %v5580
        %v5605 = vpack.c.b16 %v5583, %v5582
        %v5606 = vpack.c.b16 %v5585, %v5584
        %v5607 = vpack.c.b16 %v5587, %v5586
        %v5608 = vpack.c.b16 %v5589, %v5588
        %v5609 = vpack.c.b16 %v5590, %v5590
        %v5610 = vrot.slane %v5591, 2
        %v5611 = vrot.slane %v5592, 2
        %v5612 = vsel %vm5170, %v5610, %v5611
        %v5613 = vrot.slane %v5593, 2
        %v5614 = vsel %vm5170, %v5611, %v5613
        %v5615 = vrot.slane %v5594, 2
        %v5616 = vsel %vm5170, %v5613, %v5615
        %v5617 = vrot.slane %v5595, 2
        %v5618 = vsel %vm5170, %v5615, %v5617
        %v5619 = vrot.slane %v5596, 2
        %v5620 = vsel %vm5170, %v5617, %v5619
        %v5621 = vrot.slane %v5597, 2
        %v5622 = vsel %vm5170, %v5619, %v5621
        %v5623 = vrot.slane %v5598, 2
        %v5624 = vsel %vm5170, %v5621, %v5623
        %v5625 = vrot.slane %v5599, 2
        %v5626 = vsel %vm5170, %v5623, %v5625
        %v5627 = vrot.slane %v5600, 2
        %v5628 = vsel %vm5170, %v5625, %v5627
        %v5629 = vrot.slane %v5601, 2
        %v5630 = vsel %vm5170, %v5627, %v5629
        %v5631 = vrot.slane %v5602, 2
        %v5632 = vsel %vm5170, %v5629, %v5631
        %v5633 = vrot.slane %v5603, 2
        %v5634 = vsel %vm5170, %v5631, %v5633
        %v5635 = vrot.slane %v5604, 2
        %v5636 = vsel %vm5170, %v5633, %v5635
        %v5637 = vrot.slane %v5605, 2
        %v5638 = vsel %vm5170, %v5635, %v5637
        %v5639 = vrot.slane %v5606, 2
        %v5640 = vsel %vm5170, %v5637, %v5639
        %v5641 = vrot.slane %v5607, 2
        %v5642 = vsel %vm5170, %v5639, %v5641
        %v5643 = vrot.slane %v5608, 2
        %v5644 = vsel %vm5170, %v5641, %v5643
        %v5645 = vrot.slane %v5609, 2
        %v5646 = vsel %vm5170, %v5643, %v5645
        %v5648 = vsel %vm3512, %v5612, 0
        %v5651 = vsel %vm3512, %v5614, 0
        %v5654 = vsel %vm3512, %v5616, 0
        %v5657 = vsel %vm3512, %v5618, 0
        %v5660 = vsel %vm3512, %v5620, 0
        %v5663 = vsel %vm3512, %v5622, 0
        %v5666 = vsel %vm3512, %v5624, 0
        %v5669 = vsel %vm3512, %v5626, 0
        %v5672 = vsel %vm3512, %v5628, 0
        %v5675 = vsel %vm3512, %v5630, 0
        %v5678 = vsel %vm3512, %v5632, 0
        %v5681 = vsel %vm3512, %v5634, 0
        %v5684 = vsel %vm3512, %v5636, 0
        %v5687 = vsel %vm3512, %v5638, 0
        %v5690 = vsel %vm3512, %v5640, 0
        %v5693 = vsel %vm3512, %v5642, 0
        %v5696 = vsel %vm3512, %v5644, 0
        %v5699 = vsel %vm3512, %v5646, 0
        %v5702 = vsel %vm3567, %v5516, 0
        %5704 = vmatprep.subr.bf16.mxu0 0
        %5705 = vmatpush1.bf16.msra.mxu0 %v5702
        %5706 = vmatprep.subr.bf16.mxu0 0
        %5707 = vmatpush1.bf16.msra.mxu0 0
        %5708 = vmatprep.subr.bf16.mxu0 0
        %5709 = vmatpush1.bf16.msra.mxu0 0
        %5710 = vmatprep.subr.bf16.mxu0 0
        %5711 = vmatpush1.bf16.msra.mxu0 0
        %5712 = vmatprep.subr.bf16.mxu0 0
        %5713 = vmatpush1.bf16.msra.mxu0 0
        %5714 = vmatprep.subr.bf16.mxu0 0
        %5715 = vmatpush1.bf16.msra.mxu0 0
        %5716 = vmatprep.subr.bf16.mxu0 0
        %5717 = vmatpush1.bf16.msra.mxu0 0
        %5718 = vmatprep.subr.bf16.mxu0 0
        %5719 = vmatpush1.bf16.msra.mxu0 0
        %5720 = vmatprep.subr.bf16.mxu0 0
        %5721 = vmatpush1.bf16.msra.mxu0 0
        %5722 = vmatprep.subr.bf16.mxu0 0
        %5723 = vmatpush1.bf16.msra.mxu0 0
        %5724 = vmatprep.subr.bf16.mxu0 0
        %5725 = vmatpush1.bf16.msra.mxu0 0
        %5726 = vmatprep.subr.bf16.mxu0 0
        %5727 = vmatpush1.bf16.msra.mxu0 0
        %5728 = vmatprep.subr.bf16.mxu0 0
        %5729 = vmatpush1.bf16.msra.mxu0 0
        %5730 = vmatprep.subr.bf16.mxu0 0
        %5731 = vmatpush1.bf16.msra.mxu0 0
        %5732 = vmatprep.subr.bf16.mxu0 0
        %5733 = vmatpush1.bf16.msra.mxu0 0
        %5734 = vmatprep.subr.bf16.mxu0 0
        %5735 = vmatpush1.bf16.msra.mxu0 0
        %5736 = vmatprep.mubr.bf16.mxu0 0
        %5737 = vmatmul.mubr.bf16.gmra.mrb[0].mxu0 %v5648
        %v5738 = vpop.f32.mrb[0].mxu0
        %v5739 = vadd.f32 0.0, %v5738
        %v5740 = vpop.f32.mrb[0].mxu0
        %v5741 = vpop.f32.mrb[0].mxu0
        %v5742 = vadd.f32 0.0, %v5741
        %v5743 = vpop.f32.mrb[0].mxu0
        %5744 = vmatprep.mubr.bf16.mxu0 0
        %5745 = vmatmul.mubr.bf16.gmra.mrb[0].mxu0 %v5651
        %v5746 = vpop.f32.mrb[0].mxu0
        %v5747 = vadd.f32 0.0, %v5746
        %v5748 = vpop.f32.mrb[0].mxu0
        %v5749 = vpop.f32.mrb[0].mxu0
        %v5750 = vadd.f32 0.0, %v5749
        %v5751 = vpop.f32.mrb[0].mxu0
        %5752 = vmatprep.mubr.bf16.mxu0 0
        %5753 = vmatmul.mubr.bf16.gmra.mrb[0].mxu0 %v5654
        %v5754 = vpop.f32.mrb[0].mxu0
        %v5755 = vadd.f32 0.0, %v5754
        %v5756 = vpop.f32.mrb[0].mxu0
        %v5757 = vpop.f32.mrb[0].mxu0
        %v5758 = vadd.f32 0.0, %v5757
        %v5759 = vpop.f32.mrb[0].mxu0
        %5760 = vmatprep.mubr.bf16.mxu0 0
        %5761 = vmatmul.mubr.bf16.gmra.mrb[0].mxu0 %v5657
        %v5762 = vpop.f32.mrb[0].mxu0
        %v5763 = vadd.f32 0.0, %v5762
        %v5764 = vpop.f32.mrb[0].mxu0
        %v5765 = vpop.f32.mrb[0].mxu0
        %v5766 = vadd.f32 0.0, %v5765
        %v5767 = vpop.f32.mrb[0].mxu0
        %5768 = vmatprep.mubr.bf16.mxu0 0
        %5769 = vmatmul.mubr.bf16.gmra.mrb[0].mxu0 %v5660
        %v5770 = vpop.f32.mrb[0].mxu0
        %v5771 = vadd.f32 0.0, %v5770
        %v5772 = vpop.f32.mrb[0].mxu0
        %v5773 = vpop.f32.mrb[0].mxu0
        %v5774 = vadd.f32 0.0, %v5773
        %v5775 = vpop.f32.mrb[0].mxu0
        %5776 = vmatprep.mubr.bf16.mxu0 0
        %5777 = vmatmul.mubr.bf16.gmra.mrb[0].mxu0 %v5663
        %v5778 = vpop.f32.mrb[0].mxu0
        %v5779 = vadd.f32 0.0, %v5778
        %v5780 = vpop.f32.mrb[0].mxu0
        %v5781 = vpop.f32.mrb[0].mxu0
        %v5782 = vadd.f32 0.0, %v5781
        %v5783 = vpop.f32.mrb[0].mxu0
        %5784 = vmatprep.mubr.bf16.mxu0 0
        %5785 = vmatmul.mubr.bf16.gmra.mrb[0].mxu0 %v5666
        %v5786 = vpop.f32.mrb[0].mxu0
        %v5787 = vadd.f32 0.0, %v5786
        %v5788 = vpop.f32.mrb[0].mxu0
        %v5789 = vpop.f32.mrb[0].mxu0
        %v5790 = vadd.f32 0.0, %v5789
        %v5791 = vpop.f32.mrb[0].mxu0
        %5792 = vmatprep.mubr.bf16.mxu0 0
        %5793 = vmatmul.mubr.bf16.gmra.mrb[0].mxu0 %v5669
        %v5794 = vpop.f32.mrb[0].mxu0
        %v5795 = vadd.f32 0.0, %v5794
        %v5796 = vpop.f32.mrb[0].mxu0
        %v5797 = vpop.f32.mrb[0].mxu0
        %v5798 = vadd.f32 0.0, %v5797
        %v5799 = vpop.f32.mrb[0].mxu0
        %5800 = vmatprep.mubr.bf16.mxu0 0
        %5801 = vmatmul.mubr.bf16.gmra.mrb[0].mxu0 %v5672
        %v5802 = vpop.f32.mrb[0].mxu0
        %v5803 = vadd.f32 0.0, %v5802
        %v5804 = vpop.f32.mrb[0].mxu0
        %v5805 = vpop.f32.mrb[0].mxu0
        %v5806 = vadd.f32 0.0, %v5805
        %v5807 = vpop.f32.mrb[0].mxu0
        %5808 = vmatprep.mubr.bf16.mxu0 0
        %5809 = vmatmul.mubr.bf16.gmra.mrb[0].mxu0 %v5675
        %v5810 = vpop.f32.mrb[0].mxu0
        %v5811 = vadd.f32 0.0, %v5810
        %v5812 = vpop.f32.mrb[0].mxu0
        %v5813 = vpop.f32.mrb[0].mxu0
        %v5814 = vadd.f32 0.0, %v5813
        %v5815 = vpop.f32.mrb[0].mxu0
        %5816 = vmatprep.mubr.bf16.mxu0 0
        %5817 = vmatmul.mubr.bf16.gmra.mrb[0].mxu0 %v5678
        %v5818 = vpop.f32.mrb[0].mxu0
        %v5819 = vadd.f32 0.0, %v5818
        %v5820 = vpop.f32.mrb[0].mxu0
        %v5821 = vpop.f32.mrb[0].mxu0
        %v5822 = vadd.f32 0.0, %v5821
        %v5823 = vpop.f32.mrb[0].mxu0
        %5824 = vmatprep.mubr.bf16.mxu0 0
        %5825 = vmatmul.mubr.bf16.gmra.mrb[0].mxu0 %v5681
        %v5826 = vpop.f32.mrb[0].mxu0
        %v5827 = vadd.f32 0.0, %v5826
        %v5828 = vpop.f32.mrb[0].mxu0
        %v5829 = vpop.f32.mrb[0].mxu0
        %v5830 = vadd.f32 0.0, %v5829
        %v5831 = vpop.f32.mrb[0].mxu0
        %5832 = vmatprep.mubr.bf16.mxu0 0
        %5833 = vmatmul.mubr.bf16.gmra.mrb[0].mxu0 %v5684
        %v5834 = vpop.f32.mrb[0].mxu0
        %v5835 = vadd.f32 0.0, %v5834
        %v5836 = vpop.f32.mrb[0].mxu0
        %v5837 = vpop.f32.mrb[0].mxu0
        %v5838 = vadd.f32 0.0, %v5837
        %v5839 = vpop.f32.mrb[0].mxu0
        %5840 = vmatprep.mubr.bf16.mxu0 0
        %5841 = vmatmul.mubr.bf16.gmra.mrb[0].mxu0 %v5687
        %v5842 = vpop.f32.mrb[0].mxu0
        %v5843 = vadd.f32 0.0, %v5842
        %v5844 = vpop.f32.mrb[0].mxu0
        %v5845 = vpop.f32.mrb[0].mxu0
        %v5846 = vadd.f32 0.0, %v5845
        %v5847 = vpop.f32.mrb[0].mxu0
        %5848 = vmatprep.mubr.bf16.mxu0 0
        %5849 = vmatmul.mubr.bf16.gmra.mrb[0].mxu0 %v5690
        %v5850 = vpop.f32.mrb[0].mxu0
        %v5851 = vadd.f32 0.0, %v5850
        %v5852 = vpop.f32.mrb[0].mxu0
        %v5853 = vpop.f32.mrb[0].mxu0
        %v5854 = vadd.f32 0.0, %v5853
        %v5855 = vpop.f32.mrb[0].mxu0
        %5856 = vmatprep.mubr.bf16.mxu0 0
        %5857 = vmatmul.mubr.bf16.gmra.mrb[0].mxu0 %v5693
        %v5858 = vpop.f32.mrb[0].mxu0
        %v5859 = vadd.f32 0.0, %v5858
        %v5860 = vpop.f32.mrb[0].mxu0
        %v5861 = vpop.f32.mrb[0].mxu0
        %v5862 = vadd.f32 0.0, %v5861
        %v5863 = vpop.f32.mrb[0].mxu0
        %5864 = vmatprep.mubr.bf16.mxu0 0
        %5865 = vmatmul.mubr.bf16.gmra.mrb[0].mxu0 %v5696
        %v5866 = vpop.f32.mrb[0].mxu0
        %v5867 = vadd.f32 0.0, %v5866
        %v5868 = vpop.f32.mrb[0].mxu0
        %v5869 = vpop.f32.mrb[0].mxu0
        %v5870 = vadd.f32 0.0, %v5869
        %v5871 = vpop.f32.mrb[0].mxu0
        %5872 = vmatprep.mubr.bf16.mxu0 0
        %5873 = vmatmul.mubr.bf16.gmra.mrb[0].mxu0 %v5699
        %v5874 = vpop.f32.mrb[0].mxu0
        %v5875 = vadd.f32 0.0, %v5874
        %v5876 = vpop.f32.mrb[0].mxu0
        %v5877 = vpop.f32.mrb[0].mxu0
        %v5878 = vadd.f32 0.0, %v5877
        %v5879 = vpop.f32.mrb[0].mxu0
        %5880 = vdwg.mxu0
        %v5881 = vadd.f32 %v5442, %v5739
        %v5882 = vadd.f32 %v5443, %v5742
        %v5883 = vadd.f32 %v5444, %v5747
        %v5884 = vadd.f32 %v5445, %v5750
        %v5885 = vadd.f32 %v5446, %v5755
        %v5886 = vadd.f32 %v5447, %v5758
        %v5887 = vadd.f32 %v5448, %v5763
        %v5888 = vadd.f32 %v5449, %v5766
        %v5889 = vadd.f32 %v5450, %v5771
        %v5890 = vadd.f32 %v5451, %v5774
        %v5891 = vadd.f32 %v5452, %v5779
        %v5892 = vadd.f32 %v5453, %v5782
        %v5893 = vadd.f32 %v5454, %v5787
        %v5894 = vadd.f32 %v5455, %v5790
        %v5895 = vadd.f32 %v5456, %v5795
        %v5896 = vadd.f32 %v5457, %v5798
        %v5897 = vadd.f32 %v5458, %v5803
        %v5898 = vadd.f32 %v5459, %v5806
        %v5899 = vadd.f32 %v5460, %v5811
        %v5900 = vadd.f32 %v5461, %v5814
        %v5901 = vadd.f32 %v5462, %v5819
        %v5902 = vadd.f32 %v5463, %v5822
        %v5903 = vadd.f32 %v5464, %v5827
        %v5904 = vadd.f32 %v5465, %v5830
        %v5905 = vadd.f32 %v5466, %v5835
        %v5906 = vadd.f32 %v5467, %v5838
        %v5907 = vadd.f32 %v5468, %v5843
        %v5908 = vadd.f32 %v5469, %v5846
        %v5909 = vadd.f32 %v5470, %v5851
        %v5910 = vadd.f32 %v5471, %v5854
        %v5911 = vadd.f32 %v5472, %v5859
        %v5912 = vadd.f32 %v5473, %v5862
        %v5913 = vadd.f32 %v5474, %v5867
        %v5914 = vadd.f32 %v5475, %v5870
        %v5915 = vadd.f32 %v5476, %v5875
        %v5916 = vadd.f32 %v5477, %v5878
        %v5917 = vld [vmem:[#allocation2 + $0xa0] sm:$0x7]
        %s5918 = scalar_lea.vmem %s291, 28
        %v5919 = vld [vmem:[%s5918] sm:$0xf]
        %v5921 = vunpack.c.l.b16 %v5917
        %v5922 = vpack.c.b16 %v5921, %v5921
        %vm5923 = vsmask.f32 5376
        %v5925 = vshrl.u32 %v5591, 16
        %v5927 = vrot.slane %v5925, 2
        %v5928 = vshll.u32 %v5591, 16
        %v5930 = vrot.slane %v5928, 3
        %v5931 = vor.u32 %v5927, %v5930
        %v5933 = vshrl.u32 %v5592, 16
        %v5935 = vrot.slane %v5933, 2
        %v5936 = vshll.u32 %v5592, 16
        %v5938 = vrot.slane %v5936, 3
        %v5939 = vor.u32 %v5935, %v5938
        %v5940 = vsel %vm5923, %v5931, %v5939
        %v5942 = vshrl.u32 %v5593, 16
        %v5944 = vrot.slane %v5942, 2
        %v5945 = vshll.u32 %v5593, 16
        %v5947 = vrot.slane %v5945, 3
        %v5948 = vor.u32 %v5944, %v5947
        %v5949 = vsel %vm5923, %v5939, %v5948
        %v5951 = vshrl.u32 %v5594, 16
        %v5953 = vrot.slane %v5951, 2
        %v5954 = vshll.u32 %v5594, 16
        %v5956 = vrot.slane %v5954, 3
        %v5957 = vor.u32 %v5953, %v5956
        %v5958 = vsel %vm5923, %v5948, %v5957
        %v5960 = vshrl.u32 %v5595, 16
        %v5962 = vrot.slane %v5960, 2
        %v5963 = vshll.u32 %v5595, 16
        %v5965 = vrot.slane %v5963, 3
        %v5966 = vor.u32 %v5962, %v5965
        %v5967 = vsel %vm5923, %v5957, %v5966
        %v5969 = vshrl.u32 %v5596, 16
        %v5971 = vrot.slane %v5969, 2
        %v5972 = vshll.u32 %v5596, 16
        %v5974 = vrot.slane %v5972, 3
        %v5975 = vor.u32 %v5971, %v5974
        %v5976 = vsel %vm5923, %v5966, %v5975
        %v5978 = vshrl.u32 %v5597, 16
        %v5980 = vrot.slane %v5978, 2
        %v5981 = vshll.u32 %v5597, 16
        %v5983 = vrot.slane %v5981, 3
        %v5984 = vor.u32 %v5980, %v5983
        %v5985 = vsel %vm5923, %v5975, %v5984
        %v5987 = vshrl.u32 %v5598, 16
        %v5989 = vrot.slane %v5987, 2
        %v5990 = vshll.u32 %v5598, 16
        %v5992 = vrot.slane %v5990, 3
        %v5993 = vor.u32 %v5989, %v5992
        %v5994 = vsel %vm5923, %v5984, %v5993
        %v5996 = vshrl.u32 %v5599, 16
        %v5998 = vrot.slane %v5996, 2
        %v5999 = vshll.u32 %v5599, 16
        %v6001 = vrot.slane %v5999, 3
        %v6002 = vor.u32 %v5998, %v6001
        %v6003 = vsel %vm5923, %v5993, %v6002
        %v6005 = vshrl.u32 %v5600, 16
        %v6007 = vrot.slane %v6005, 2
        %v6008 = vshll.u32 %v5600, 16
        %v6010 = vrot.slane %v6008, 3
        %v6011 = vor.u32 %v6007, %v6010
        %v6012 = vsel %vm5923, %v6002, %v6011
        %v6014 = vshrl.u32 %v5601, 16
        %v6016 = vrot.slane %v6014, 2
        %v6017 = vshll.u32 %v5601, 16
        %v6019 = vrot.slane %v6017, 3
        %v6020 = vor.u32 %v6016, %v6019
        %v6021 = vsel %vm5923, %v6011, %v6020
        %v6023 = vshrl.u32 %v5602, 16
        %v6025 = vrot.slane %v6023, 2
        %v6026 = vshll.u32 %v5602, 16
        %v6028 = vrot.slane %v6026, 3
        %v6029 = vor.u32 %v6025, %v6028
        %v6030 = vsel %vm5923, %v6020, %v6029
        %v6032 = vshrl.u32 %v5603, 16
        %v6034 = vrot.slane %v6032, 2
        %v6035 = vshll.u32 %v5603, 16
        %v6037 = vrot.slane %v6035, 3
        %v6038 = vor.u32 %v6034, %v6037
        %v6039 = vsel %vm5923, %v6029, %v6038
        %v6041 = vshrl.u32 %v5604, 16
        %v6043 = vrot.slane %v6041, 2
        %v6044 = vshll.u32 %v5604, 16
        %v6046 = vrot.slane %v6044, 3
        %v6047 = vor.u32 %v6043, %v6046
        %v6048 = vsel %vm5923, %v6038, %v6047
        %v6050 = vshrl.u32 %v5605, 16
        %v6052 = vrot.slane %v6050, 2
        %v6053 = vshll.u32 %v5605, 16
        %v6055 = vrot.slane %v6053, 3
        %v6056 = vor.u32 %v6052, %v6055
        %v6057 = vsel %vm5923, %v6047, %v6056
        %v6059 = vshrl.u32 %v5606, 16
        %v6061 = vrot.slane %v6059, 2
        %v6062 = vshll.u32 %v5606, 16
        %v6064 = vrot.slane %v6062, 3
        %v6065 = vor.u32 %v6061, %v6064
        %v6066 = vsel %vm5923, %v6056, %v6065
        %v6068 = vshrl.u32 %v5607, 16
        %v6070 = vrot.slane %v6068, 2
        %v6071 = vshll.u32 %v5607, 16
        %v6073 = vrot.slane %v6071, 3
        %v6074 = vor.u32 %v6070, %v6073
        %v6075 = vsel %vm5923, %v6065, %v6074
        %v6077 = vshrl.u32 %v5608, 16
        %v6079 = vrot.slane %v6077, 2
        %v6080 = vshll.u32 %v5608, 16
        %v6082 = vrot.slane %v6080, 3
        %v6083 = vor.u32 %v6079, %v6082
        %v6084 = vsel %vm5923, %v6074, %v6083
        %v6086 = vshrl.u32 %v5922, 16
        %v6088 = vrot.slane %v6086, 2
        %v6089 = vshll.u32 %v5922, 16
        %v6091 = vrot.slane %v6089, 3
        %v6092 = vor.u32 %v6088, %v6091
        %v6093 = vsel %vm5923, %v6083, %v6092
        %v6095 = vsel %vm3512, %v5940, 0
        %v6098 = vsel %vm3512, %v5949, 0
        %v6101 = vsel %vm3512, %v5958, 0
        %v6104 = vsel %vm3512, %v5967, 0
        %v6107 = vsel %vm3512, %v5976, 0
        %v6110 = vsel %vm3512, %v5985, 0
        %v6113 = vsel %vm3512, %v5994, 0
        %v6116 = vsel %vm3512, %v6003, 0
        %v6119 = vsel %vm3512, %v6012, 0
        %v6122 = vsel %vm3512, %v6021, 0
        %v6125 = vsel %vm3512, %v6030, 0
        %v6128 = vsel %vm3512, %v6039, 0
        %v6131 = vsel %vm3512, %v6048, 0
        %v6134 = vsel %vm3512, %v6057, 0
        %v6137 = vsel %vm3512, %v6066, 0
        %v6140 = vsel %vm3512, %v6075, 0
        %v6143 = vsel %vm3512, %v6084, 0
        %v6146 = vsel %vm3512, %v6093, 0
        %v6149 = vsel %vm3567, %v5919, 0
        %6151 = vmatprep.subr.bf16.mxu0 0
        %6152 = vmatpush1.bf16.msra.mxu0 %v6149
        %6153 = vmatprep.subr.bf16.mxu0 0
        %6154 = vmatpush1.bf16.msra.mxu0 0
        %6155 = vmatprep.subr.bf16.mxu0 0
        %6156 = vmatpush1.bf16.msra.mxu0 0
        %6157 = vmatprep.subr.bf16.mxu0 0
        %6158 = vmatpush1.bf16.msra.mxu0 0
        %6159 = vmatprep.subr.bf16.mxu0 0
        %6160 = vmatpush1.bf16.msra.mxu0 0
        %6161 = vmatprep.subr.bf16.mxu0 0
        %6162 = vmatpush1.bf16.msra.mxu0 0
        %6163 = vmatprep.subr.bf16.mxu0 0
        %6164 = vmatpush1.bf16.msra.mxu0 0
        %6165 = vmatprep.subr.bf16.mxu0 0
        %6166 = vmatpush1.bf16.msra.mxu0 0
        %6167 = vmatprep.subr.bf16.mxu0 0
        %6168 = vmatpush1.bf16.msra.mxu0 0
        %6169 = vmatprep.subr.bf16.mxu0 0
        %6170 = vmatpush1.bf16.msra.mxu0 0
        %6171 = vmatprep.subr.bf16.mxu0 0
        %6172 = vmatpush1.bf16.msra.mxu0 0
        %6173 = vmatprep.subr.bf16.mxu0 0
        %6174 = vmatpush1.bf16.msra.mxu0 0
        %6175 = vmatprep.subr.bf16.mxu0 0
        %6176 = vmatpush1.bf16.msra.mxu0 0
        %6177 = vmatprep.subr.bf16.mxu0 0
        %6178 = vmatpush1.bf16.msra.mxu0 0
        %6179 = vmatprep.subr.bf16.mxu0 0
        %6180 = vmatpush1.bf16.msra.mxu0 0
        %6181 = vmatprep.subr.bf16.mxu0 0
        %6182 = vmatpush1.bf16.msra.mxu0 0
        %6183 = vmatprep.mubr.bf16.mxu0 0
        %6184 = vmatmul.mubr.bf16.gmra.mrb[0].mxu0 %v6095
        %v6185 = vpop.f32.mrb[0].mxu0
        %v6186 = vadd.f32 0.0, %v6185
        %v6187 = vpop.f32.mrb[0].mxu0
        %v6188 = vpop.f32.mrb[0].mxu0
        %v6189 = vadd.f32 0.0, %v6188
        %v6190 = vpop.f32.mrb[0].mxu0
        %6191 = vmatprep.mubr.bf16.mxu0 0
        %6192 = vmatmul.mubr.bf16.gmra.mrb[0].mxu0 %v6098
        %v6193 = vpop.f32.mrb[0].mxu0
        %v6194 = vadd.f32 0.0, %v6193
        %v6195 = vpop.f32.mrb[0].mxu0
        %v6196 = vpop.f32.mrb[0].mxu0
        %v6197 = vadd.f32 0.0, %v6196
        %v6198 = vpop.f32.mrb[0].mxu0
        %6199 = vmatprep.mubr.bf16.mxu0 0
        %6200 = vmatmul.mubr.bf16.gmra.mrb[0].mxu0 %v6101
        %v6201 = vpop.f32.mrb[0].mxu0
        %v6202 = vadd.f32 0.0, %v6201
        %v6203 = vpop.f32.mrb[0].mxu0
        %v6204 = vpop.f32.mrb[0].mxu0
        %v6205 = vadd.f32 0.0, %v6204
        %v6206 = vpop.f32.mrb[0].mxu0
        %6207 = vmatprep.mubr.bf16.mxu0 0
        %6208 = vmatmul.mubr.bf16.gmra.mrb[0].mxu0 %v6104
        %v6209 = vpop.f32.mrb[0].mxu0
        %v6210 = vadd.f32 0.0, %v6209
        %v6211 = vpop.f32.mrb[0].mxu0
        %v6212 = vpop.f32.mrb[0].mxu0
        %v6213 = vadd.f32 0.0, %v6212
        %v6214 = vpop.f32.mrb[0].mxu0
        %6215 = vmatprep.mubr.bf16.mxu0 0
        %6216 = vmatmul.mubr.bf16.gmra.mrb[0].mxu0 %v6107
        %v6217 = vpop.f32.mrb[0].mxu0
        %v6218 = vadd.f32 0.0, %v6217
        %v6219 = vpop.f32.mrb[0].mxu0
        %v6220 = vpop.f32.mrb[0].mxu0
        %v6221 = vadd.f32 0.0, %v6220
        %v6222 = vpop.f32.mrb[0].mxu0
        %6223 = vmatprep.mubr.bf16.mxu0 0
        %6224 = vmatmul.mubr.bf16.gmra.mrb[0].mxu0 %v6110
        %v6225 = vpop.f32.mrb[0].mxu0
        %v6226 = vadd.f32 0.0, %v6225
        %v6227 = vpop.f32.mrb[0].mxu0
        %v6228 = vpop.f32.mrb[0].mxu0
        %v6229 = vadd.f32 0.0, %v6228
        %v6230 = vpop.f32.mrb[0].mxu0
        %6231 = vmatprep.mubr.bf16.mxu0 0
        %6232 = vmatmul.mubr.bf16.gmra.mrb[0].mxu0 %v6113
        %v6233 = vpop.f32.mrb[0].mxu0
        %v6234 = vadd.f32 0.0, %v6233
        %v6235 = vpop.f32.mrb[0].mxu0
        %v6236 = vpop.f32.mrb[0].mxu0
        %v6237 = vadd.f32 0.0, %v6236
        %v6238 = vpop.f32.mrb[0].mxu0
        %6239 = vmatprep.mubr.bf16.mxu0 0
        %6240 = vmatmul.mubr.bf16.gmra.mrb[0].mxu0 %v6116
        %v6241 = vpop.f32.mrb[0].mxu0
        %v6242 = vadd.f32 0.0, %v6241
        %v6243 = vpop.f32.mrb[0].mxu0
        %v6244 = vpop.f32.mrb[0].mxu0
        %v6245 = vadd.f32 0.0, %v6244
        %v6246 = vpop.f32.mrb[0].mxu0
        %6247 = vmatprep.mubr.bf16.mxu0 0
        %6248 = vmatmul.mubr.bf16.gmra.mrb[0].mxu0 %v6119
        %v6249 = vpop.f32.mrb[0].mxu0
        %v6250 = vadd.f32 0.0, %v6249
        %v6251 = vpop.f32.mrb[0].mxu0
        %v6252 = vpop.f32.mrb[0].mxu0
        %v6253 = vadd.f32 0.0, %v6252
        %v6254 = vpop.f32.mrb[0].mxu0
        %6255 = vmatprep.mubr.bf16.mxu0 0
        %6256 = vmatmul.mubr.bf16.gmra.mrb[0].mxu0 %v6122
        %v6257 = vpop.f32.mrb[0].mxu0
        %v6258 = vadd.f32 0.0, %v6257
        %v6259 = vpop.f32.mrb[0].mxu0
        %v6260 = vpop.f32.mrb[0].mxu0
        %v6261 = vadd.f32 0.0, %v6260
        %v6262 = vpop.f32.mrb[0].mxu0
        %6263 = vmatprep.mubr.bf16.mxu0 0
        %6264 = vmatmul.mubr.bf16.gmra.mrb[0].mxu0 %v6125
        %v6265 = vpop.f32.mrb[0].mxu0
        %v6266 = vadd.f32 0.0, %v6265
        %v6267 = vpop.f32.mrb[0].mxu0
        %v6268 = vpop.f32.mrb[0].mxu0
        %v6269 = vadd.f32 0.0, %v6268
        %v6270 = vpop.f32.mrb[0].mxu0
        %6271 = vmatprep.mubr.bf16.mxu0 0
        %6272 = vmatmul.mubr.bf16.gmra.mrb[0].mxu0 %v6128
        %v6273 = vpop.f32.mrb[0].mxu0
        %v6274 = vadd.f32 0.0, %v6273
        %v6275 = vpop.f32.mrb[0].mxu0
        %v6276 = vpop.f32.mrb[0].mxu0
        %v6277 = vadd.f32 0.0, %v6276
        %v6278 = vpop.f32.mrb[0].mxu0
        %6279 = vmatprep.mubr.bf16.mxu0 0
        %6280 = vmatmul.mubr.bf16.gmra.mrb[0].mxu0 %v6131
        %v6281 = vpop.f32.mrb[0].mxu0
        %v6282 = vadd.f32 0.0, %v6281
        %v6283 = vpop.f32.mrb[0].mxu0
        %v6284 = vpop.f32.mrb[0].mxu0
        %v6285 = vadd.f32 0.0, %v6284
        %v6286 = vpop.f32.mrb[0].mxu0
        %6287 = vmatprep.mubr.bf16.mxu0 0
        %6288 = vmatmul.mubr.bf16.gmra.mrb[0].mxu0 %v6134
        %v6289 = vpop.f32.mrb[0].mxu0
        %v6290 = vadd.f32 0.0, %v6289
        %v6291 = vpop.f32.mrb[0].mxu0
        %v6292 = vpop.f32.mrb[0].mxu0
        %v6293 = vadd.f32 0.0, %v6292
        %v6294 = vpop.f32.mrb[0].mxu0
        %6295 = vmatprep.mubr.bf16.mxu0 0
        %6296 = vmatmul.mubr.bf16.gmra.mrb[0].mxu0 %v6137
        %v6297 = vpop.f32.mrb[0].mxu0
        %v6298 = vadd.f32 0.0, %v6297
        %v6299 = vpop.f32.mrb[0].mxu0
        %v6300 = vpop.f32.mrb[0].mxu0
        %v6301 = vadd.f32 0.0, %v6300
        %v6302 = vpop.f32.mrb[0].mxu0
        %6303 = vmatprep.mubr.bf16.mxu0 0
        %6304 = vmatmul.mubr.bf16.gmra.mrb[0].mxu0 %v6140
        %v6305 = vpop.f32.mrb[0].mxu0
        %v6306 = vadd.f32 0.0, %v6305
        %v6307 = vpop.f32.mrb[0].mxu0
        %v6308 = vpop.f32.mrb[0].mxu0
        %v6309 = vadd.f32 0.0, %v6308
        %v6310 = vpop.f32.mrb[0].mxu0
        %6311 = vmatprep.mubr.bf16.mxu0 0
        %6312 = vmatmul.mubr.bf16.gmra.mrb[0].mxu0 %v6143
        %v6313 = vpop.f32.mrb[0].mxu0
        %v6314 = vadd.f32 0.0, %v6313
        %v6315 = vpop.f32.mrb[0].mxu0
        %v6316 = vpop.f32.mrb[0].mxu0
        %v6317 = vadd.f32 0.0, %v6316
        %v6318 = vpop.f32.mrb[0].mxu0
        %6319 = vmatprep.mubr.bf16.mxu0 0
        %6320 = vmatmul.mubr.bf16.gmra.mrb[0].mxu0 %v6146
        %v6321 = vpop.f32.mrb[0].mxu0
        %v6322 = vadd.f32 0.0, %v6321
        %v6323 = vpop.f32.mrb[0].mxu0
        %v6324 = vpop.f32.mrb[0].mxu0
        %v6325 = vadd.f32 0.0, %v6324
        %v6326 = vpop.f32.mrb[0].mxu0
        %6327 = vdwg.mxu0
        %v6328 = vadd.f32 %v5881, %v6186
        %v6329 = vadd.f32 %v5882, %v6189
        %v6330 = vadd.f32 %v5883, %v6194
        %v6331 = vadd.f32 %v5884, %v6197
        %v6332 = vadd.f32 %v5885, %v6202
        %v6333 = vadd.f32 %v5886, %v6205
        %v6334 = vadd.f32 %v5887, %v6210
        %v6335 = vadd.f32 %v5888, %v6213
        %v6336 = vadd.f32 %v5889, %v6218
        %v6337 = vadd.f32 %v5890, %v6221
        %v6338 = vadd.f32 %v5891, %v6226
        %v6339 = vadd.f32 %v5892, %v6229
        %v6340 = vadd.f32 %v5893, %v6234
        %v6341 = vadd.f32 %v5894, %v6237
        %v6342 = vadd.f32 %v5895, %v6242
        %v6343 = vadd.f32 %v5896, %v6245
        %v6344 = vadd.f32 %v5897, %v6250
        %v6345 = vadd.f32 %v5898, %v6253
        %v6346 = vadd.f32 %v5899, %v6258
        %v6347 = vadd.f32 %v5900, %v6261
        %v6348 = vadd.f32 %v5901, %v6266
        %v6349 = vadd.f32 %v5902, %v6269
        %v6350 = vadd.f32 %v5903, %v6274
        %v6351 = vadd.f32 %v5904, %v6277
        %v6352 = vadd.f32 %v5905, %v6282
        %v6353 = vadd.f32 %v5906, %v6285
        %v6354 = vadd.f32 %v5907, %v6290
        %v6355 = vadd.f32 %v5908, %v6293
        %v6356 = vadd.f32 %v5909, %v6298
        %v6357 = vadd.f32 %v5910, %v6301
        %v6358 = vadd.f32 %v5911, %v6306
        %v6359 = vadd.f32 %v5912, %v6309
        %v6360 = vadd.f32 %v5913, %v6314
        %v6361 = vadd.f32 %v5914, %v6317
        %v6362 = vadd.f32 %v5915, %v6322
        %v6363 = vadd.f32 %v5916, %v6325
        %v6364 = vld [vmem:[#allocation2 + $0x10] sm:$0x8]
        %s6365 = scalar_lea.vmem %s291, 32
        %v6366 = vld [vmem:[%s6365] sm:$0xf]
        %v6368 = vunpack.c.l.b16 %v6364
        %v6369 = vpack.c.b16 %v5555, %v6368
        %vm6370 = vcmask 1044480
        %v6371 = vrot.slane %v6369, 3
        %v6372 = vrot.slane %v5592, 3
        %v6373 = vsel %vm6370, %v6371, %v6372
        %v6374 = vrot.slane %v5593, 3
        %v6375 = vsel %vm6370, %v6372, %v6374
        %v6376 = vrot.slane %v5594, 3
        %v6377 = vsel %vm6370, %v6374, %v6376
        %v6378 = vrot.slane %v5595, 3
        %v6379 = vsel %vm6370, %v6376, %v6378
        %v6380 = vrot.slane %v5596, 3
        %v6381 = vsel %vm6370, %v6378, %v6380
        %v6382 = vrot.slane %v5597, 3
        %v6383 = vsel %vm6370, %v6380, %v6382
        %v6384 = vrot.slane %v5598, 3
        %v6385 = vsel %vm6370, %v6382, %v6384
        %v6386 = vrot.slane %v5599, 3
        %v6387 = vsel %vm6370, %v6384, %v6386
        %v6388 = vrot.slane %v5600, 3
        %v6389 = vsel %vm6370, %v6386, %v6388
        %v6390 = vrot.slane %v5601, 3
        %v6391 = vsel %vm6370, %v6388, %v6390
        %v6392 = vrot.slane %v5602, 3
        %v6393 = vsel %vm6370, %v6390, %v6392
        %v6394 = vrot.slane %v5603, 3
        %v6395 = vsel %vm6370, %v6392, %v6394
        %v6396 = vrot.slane %v5604, 3
        %v6397 = vsel %vm6370, %v6394, %v6396
        %v6398 = vrot.slane %v5605, 3
        %v6399 = vsel %vm6370, %v6396, %v6398
        %v6400 = vrot.slane %v5606, 3
        %v6401 = vsel %vm6370, %v6398, %v6400
        %v6402 = vrot.slane %v5607, 3
        %v6403 = vsel %vm6370, %v6400, %v6402
        %v6404 = vrot.slane %v5608, 3
        %v6405 = vsel %vm6370, %v6402, %v6404
        %v6406 = vrot.slane %v5922, 3
        %v6407 = vsel %vm6370, %v6404, %v6406
        %v6409 = vsel %vm3512, %v6373, 0
        %v6412 = vsel %vm3512, %v6375, 0
        %v6415 = vsel %vm3512, %v6377, 0
        %v6418 = vsel %vm3512, %v6379, 0
        %v6421 = vsel %vm3512, %v6381, 0
        %v6424 = vsel %vm3512, %v6383, 0
        %v6427 = vsel %vm3512, %v6385, 0
        %v6430 = vsel %vm3512, %v6387, 0
        %v6433 = vsel %vm3512, %v6389, 0
        %v6436 = vsel %vm3512, %v6391, 0
        %v6439 = vsel %vm3512, %v6393, 0
        %v6442 = vsel %vm3512, %v6395, 0
        %v6445 = vsel %vm3512, %v6397, 0
        %v6448 = vsel %vm3512, %v6399, 0
        %v6451 = vsel %vm3512, %v6401, 0
        %v6454 = vsel %vm3512, %v6403, 0
        %v6457 = vsel %vm3512, %v6405, 0
        %v6460 = vsel %vm3512, %v6407, 0
        %v6463 = vsel %vm3567, %v6366, 0
        %6465 = vmatprep.subr.bf16.mxu0 0
        %6466 = vmatpush1.bf16.msra.mxu0 %v6463
        %6467 = vmatprep.subr.bf16.mxu0 0
        %6468 = vmatpush1.bf16.msra.mxu0 0
        %6469 = vmatprep.subr.bf16.mxu0 0
        %6470 = vmatpush1.bf16.msra.mxu0 0
        %6471 = vmatprep.subr.bf16.mxu0 0
        %6472 = vmatpush1.bf16.msra.mxu0 0
        %6473 = vmatprep.subr.bf16.mxu0 0
        %6474 = vmatpush1.bf16.msra.mxu0 0
        %6475 = vmatprep.subr.bf16.mxu0 0
        %6476 = vmatpush1.bf16.msra.mxu0 0
        %6477 = vmatprep.subr.bf16.mxu0 0
        %6478 = vmatpush1.bf16.msra.mxu0 0
        %6479 = vmatprep.subr.bf16.mxu0 0
        %6480 = vmatpush1.bf16.msra.mxu0 0
        %6481 = vmatprep.subr.bf16.mxu0 0
        %6482 = vmatpush1.bf16.msra.mxu0 0
        %6483 = vmatprep.subr.bf16.mxu0 0
        %6484 = vmatpush1.bf16.msra.mxu0 0
        %6485 = vmatprep.subr.bf16.mxu0 0
        %6486 = vmatpush1.bf16.msra.mxu0 0
        %6487 = vmatprep.subr.bf16.mxu0 0
        %6488 = vmatpush1.bf16.msra.mxu0 0
        %6489 = vmatprep.subr.bf16.mxu0 0
        %6490 = vmatpush1.bf16.msra.mxu0 0
        %6491 = vmatprep.subr.bf16.mxu0 0
        %6492 = vmatpush1.bf16.msra.mxu0 0
        %6493 = vmatprep.subr.bf16.mxu0 0
        %6494 = vmatpush1.bf16.msra.mxu0 0
        %6495 = vmatprep.subr.bf16.mxu0 0
        %6496 = vmatpush1.bf16.msra.mxu0 0
        %6497 = vmatprep.mubr.bf16.mxu0 0
        %6498 = vmatmul.mubr.bf16.gmra.mrb[0].mxu0 %v6409
        %v6499 = vpop.f32.mrb[0].mxu0
        %v6500 = vadd.f32 0.0, %v6499
        %v6501 = vpop.f32.mrb[0].mxu0
        %v6502 = vpop.f32.mrb[0].mxu0
        %v6503 = vadd.f32 0.0, %v6502
        %v6504 = vpop.f32.mrb[0].mxu0
        %6505 = vmatprep.mubr.bf16.mxu0 0
        %6506 = vmatmul.mubr.bf16.gmra.mrb[0].mxu0 %v6412
        %v6507 = vpop.f32.mrb[0].mxu0
        %v6508 = vadd.f32 0.0, %v6507
        %v6509 = vpop.f32.mrb[0].mxu0
        %v6510 = vpop.f32.mrb[0].mxu0
        %v6511 = vadd.f32 0.0, %v6510
        %v6512 = vpop.f32.mrb[0].mxu0
        %6513 = vmatprep.mubr.bf16.mxu0 0
        %6514 = vmatmul.mubr.bf16.gmra.mrb[0].mxu0 %v6415
        %v6515 = vpop.f32.mrb[0].mxu0
        %v6516 = vadd.f32 0.0, %v6515
        %v6517 = vpop.f32.mrb[0].mxu0
        %v6518 = vpop.f32.mrb[0].mxu0
        %v6519 = vadd.f32 0.0, %v6518
        %v6520 = vpop.f32.mrb[0].mxu0
        %6521 = vmatprep.mubr.bf16.mxu0 0
        %6522 = vmatmul.mubr.bf16.gmra.mrb[0].mxu0 %v6418
        %v6523 = vpop.f32.mrb[0].mxu0
        %v6524 = vadd.f32 0.0, %v6523
        %v6525 = vpop.f32.mrb[0].mxu0
        %v6526 = vpop.f32.mrb[0].mxu0
        %v6527 = vadd.f32 0.0, %v6526
        %v6528 = vpop.f32.mrb[0].mxu0
        %6529 = vmatprep.mubr.bf16.mxu0 0
        %6530 = vmatmul.mubr.bf16.gmra.mrb[0].mxu0 %v6421
        %v6531 = vpop.f32.mrb[0].mxu0
        %v6532 = vadd.f32 0.0, %v6531
        %v6533 = vpop.f32.mrb[0].mxu0
        %v6534 = vpop.f32.mrb[0].mxu0
        %v6535 = vadd.f32 0.0, %v6534
        %v6536 = vpop.f32.mrb[0].mxu0
        %6537 = vmatprep.mubr.bf16.mxu0 0
        %6538 = vmatmul.mubr.bf16.gmra.mrb[0].mxu0 %v6424
        %v6539 = vpop.f32.mrb[0].mxu0
        %v6540 = vadd.f32 0.0, %v6539
        %v6541 = vpop.f32.mrb[0].mxu0
        %v6542 = vpop.f32.mrb[0].mxu0
        %v6543 = vadd.f32 0.0, %v6542
        %v6544 = vpop.f32.mrb[0].mxu0
        %6545 = vmatprep.mubr.bf16.mxu0 0
        %6546 = vmatmul.mubr.bf16.gmra.mrb[0].mxu0 %v6427
        %v6547 = vpop.f32.mrb[0].mxu0
        %v6548 = vadd.f32 0.0, %v6547
        %v6549 = vpop.f32.mrb[0].mxu0
        %v6550 = vpop.f32.mrb[0].mxu0
        %v6551 = vadd.f32 0.0, %v6550
        %v6552 = vpop.f32.mrb[0].mxu0
        %6553 = vmatprep.mubr.bf16.mxu0 0
        %6554 = vmatmul.mubr.bf16.gmra.mrb[0].mxu0 %v6430
        %v6555 = vpop.f32.mrb[0].mxu0
        %v6556 = vadd.f32 0.0, %v6555
        %v6557 = vpop.f32.mrb[0].mxu0
        %v6558 = vpop.f32.mrb[0].mxu0
        %v6559 = vadd.f32 0.0, %v6558
        %v6560 = vpop.f32.mrb[0].mxu0
        %6561 = vmatprep.mubr.bf16.mxu0 0
        %6562 = vmatmul.mubr.bf16.gmra.mrb[0].mxu0 %v6433
        %v6563 = vpop.f32.mrb[0].mxu0
        %v6564 = vadd.f32 0.0, %v6563
        %v6565 = vpop.f32.mrb[0].mxu0
        %v6566 = vpop.f32.mrb[0].mxu0
        %v6567 = vadd.f32 0.0, %v6566
        %v6568 = vpop.f32.mrb[0].mxu0
        %6569 = vmatprep.mubr.bf16.mxu0 0
        %6570 = vmatmul.mubr.bf16.gmra.mrb[0].mxu0 %v6436
        %v6571 = vpop.f32.mrb[0].mxu0
        %v6572 = vadd.f32 0.0, %v6571
        %v6573 = vpop.f32.mrb[0].mxu0
        %v6574 = vpop.f32.mrb[0].mxu0
        %v6575 = vadd.f32 0.0, %v6574
        %v6576 = vpop.f32.mrb[0].mxu0
        %6577 = vmatprep.mubr.bf16.mxu0 0
        %6578 = vmatmul.mubr.bf16.gmra.mrb[0].mxu0 %v6439
        %v6579 = vpop.f32.mrb[0].mxu0
        %v6580 = vadd.f32 0.0, %v6579
        %v6581 = vpop.f32.mrb[0].mxu0
        %v6582 = vpop.f32.mrb[0].mxu0
        %v6583 = vadd.f32 0.0, %v6582
        %v6584 = vpop.f32.mrb[0].mxu0
        %6585 = vmatprep.mubr.bf16.mxu0 0
        %6586 = vmatmul.mubr.bf16.gmra.mrb[0].mxu0 %v6442
        %v6587 = vpop.f32.mrb[0].mxu0
        %v6588 = vadd.f32 0.0, %v6587
        %v6589 = vpop.f32.mrb[0].mxu0
        %v6590 = vpop.f32.mrb[0].mxu0
        %v6591 = vadd.f32 0.0, %v6590
        %v6592 = vpop.f32.mrb[0].mxu0
        %6593 = vmatprep.mubr.bf16.mxu0 0
        %6594 = vmatmul.mubr.bf16.gmra.mrb[0].mxu0 %v6445
        %v6595 = vpop.f32.mrb[0].mxu0
        %v6596 = vadd.f32 0.0, %v6595
        %v6597 = vpop.f32.mrb[0].mxu0
        %v6598 = vpop.f32.mrb[0].mxu0
        %v6599 = vadd.f32 0.0, %v6598
        %v6600 = vpop.f32.mrb[0].mxu0
        %6601 = vmatprep.mubr.bf16.mxu0 0
        %6602 = vmatmul.mubr.bf16.gmra.mrb[0].mxu0 %v6448
        %v6603 = vpop.f32.mrb[0].mxu0
        %v6604 = vadd.f32 0.0, %v6603
        %v6605 = vpop.f32.mrb[0].mxu0
        %v6606 = vpop.f32.mrb[0].mxu0
        %v6607 = vadd.f32 0.0, %v6606
        %v6608 = vpop.f32.mrb[0].mxu0
        %6609 = vmatprep.mubr.bf16.mxu0 0
        %6610 = vmatmul.mubr.bf16.gmra.mrb[0].mxu0 %v6451
        %v6611 = vpop.f32.mrb[0].mxu0
        %v6612 = vadd.f32 0.0, %v6611
        %v6613 = vpop.f32.mrb[0].mxu0
        %v6614 = vpop.f32.mrb[0].mxu0
        %v6615 = vadd.f32 0.0, %v6614
        %v6616 = vpop.f32.mrb[0].mxu0
        %6617 = vmatprep.mubr.bf16.mxu0 0
        %6618 = vmatmul.mubr.bf16.gmra.mrb[0].mxu0 %v6454
        %v6619 = vpop.f32.mrb[0].mxu0
        %v6620 = vadd.f32 0.0, %v6619
        %v6621 = vpop.f32.mrb[0].mxu0
        %v6622 = vpop.f32.mrb[0].mxu0
        %v6623 = vadd.f32 0.0, %v6622
        %v6624 = vpop.f32.mrb[0].mxu0
        %6625 = vmatprep.mubr.bf16.mxu0 0
        %6626 = vmatmul.mubr.bf16.gmra.mrb[0].mxu0 %v6457
        %v6627 = vpop.f32.mrb[0].mxu0
        %v6628 = vadd.f32 0.0, %v6627
        %v6629 = vpop.f32.mrb[0].mxu0
        %v6630 = vpop.f32.mrb[0].mxu0
        %v6631 = vadd.f32 0.0, %v6630
        %v6632 = vpop.f32.mrb[0].mxu0
        %6633 = vmatprep.mubr.bf16.mxu0 0
        %6634 = vmatmul.mubr.bf16.gmra.mrb[0].mxu0 %v6460
        %v6635 = vpop.f32.mrb[0].mxu0
        %v6636 = vadd.f32 0.0, %v6635
        %v6637 = vpop.f32.mrb[0].mxu0
        %v6638 = vpop.f32.mrb[0].mxu0
        %v6639 = vadd.f32 0.0, %v6638
        %v6640 = vpop.f32.mrb[0].mxu0
        %6641 = vdwg.mxu0
        %v6642 = vadd.f32 %v6328, %v6500
        %v6643 = vadd.f32 %v6329, %v6503
        %v6644 = vadd.f32 %v6330, %v6508
        %v6645 = vadd.f32 %v6331, %v6511
        %v6646 = vadd.f32 %v6332, %v6516
        %v6647 = vadd.f32 %v6333, %v6519
        %v6648 = vadd.f32 %v6334, %v6524
        %v6649 = vadd.f32 %v6335, %v6527
        %v6650 = vadd.f32 %v6336, %v6532
        %v6651 = vadd.f32 %v6337, %v6535
        %v6652 = vadd.f32 %v6338, %v6540
        %v6653 = vadd.f32 %v6339, %v6543
        %v6654 = vadd.f32 %v6340, %v6548
        %v6655 = vadd.f32 %v6341, %v6551
        %v6656 = vadd.f32 %v6342, %v6556
        %v6657 = vadd.f32 %v6343, %v6559
        %v6658 = vadd.f32 %v6344, %v6564
        %v6659 = vadd.f32 %v6345, %v6567
        %v6660 = vadd.f32 %v6346, %v6572
        %v6661 = vadd.f32 %v6347, %v6575
        %v6662 = vadd.f32 %v6348, %v6580
        %v6663 = vadd.f32 %v6349, %v6583
        %v6664 = vadd.f32 %v6350, %v6588
        %v6665 = vadd.f32 %v6351, %v6591
        %v6666 = vadd.f32 %v6352, %v6596
        %v6667 = vadd.f32 %v6353, %v6599
        %v6668 = vadd.f32 %v6354, %v6604
        %v6669 = vadd.f32 %v6355, %v6607
        %v6670 = vadd.f32 %v6356, %v6612
        %v6671 = vadd.f32 %v6357, %v6615
        %v6672 = vadd.f32 %v6358, %v6620
        %v6673 = vadd.f32 %v6359, %v6623
        %v6674 = vadd.f32 %v6360, %v6628
        %v6675 = vadd.f32 %v6361, %v6631
        %v6676 = vadd.f32 %v6362, %v6636
        %v6677 = vadd.f32 %v6363, %v6639
        %v6714 = vcombine.high %v6642, %v6642
        %v6716 = vunpack.c.l.s4 1983009808
        %v6717 = vunpack.c.0.s8 %v6716
        %v6718 = vlaneseq
        %v6719 = vshrl.u32 %v6718, 7
        %v6720 = vsub.s32 %v6717, %v6719
        %v6721 = vrot.slane %v6642, %v6720
        %v6723 = vunpack.c.l.s4 1983009808
        %v6724 = vunpack.c.0.s8 %v6723
        %v6725 = vlaneseq
        %v6726 = vshrl.u32 %v6725, 7
        %v6727 = vsub.s32 %v6724, %v6726
        %v6728 = vrot.slane %v6714, %v6727
        %v6729 = vcombine.high %v6721, %v6721
        %v6730 = vcombine.high %v6728, %v6728
        %v6731 = vcombine.high %v6643, %v6643
        %v6733 = vunpack.c.l.s4 1983009808
        %v6734 = vunpack.c.0.s8 %v6733
        %v6735 = vlaneseq
        %v6736 = vshrl.u32 %v6735, 7
        %v6737 = vsub.s32 %v6734, %v6736
        %v6738 = vrot.slane %v6643, %v6737
        %v6740 = vunpack.c.l.s4 1983009808
        %v6741 = vunpack.c.0.s8 %v6740
        %v6742 = vlaneseq
        %v6743 = vshrl.u32 %v6742, 7
        %v6744 = vsub.s32 %v6741, %v6743
        %v6745 = vrot.slane %v6731, %v6744
        %v6746 = vcombine.high %v6738, %v6738
        %v6747 = vcombine.high %v6745, %v6745
        %v6748 = vcombine.high %v6644, %v6644
        %v6750 = vunpack.c.l.s4 1983009808
        %v6751 = vunpack.c.0.s8 %v6750
        %v6752 = vlaneseq
        %v6753 = vshrl.u32 %v6752, 7
        %v6754 = vsub.s32 %v6751, %v6753
        %v6755 = vrot.slane %v6644, %v6754
        %v6757 = vunpack.c.l.s4 1983009808
        %v6758 = vunpack.c.0.s8 %v6757
        %v6759 = vlaneseq
        %v6760 = vshrl.u32 %v6759, 7
        %v6761 = vsub.s32 %v6758, %v6760
        %v6762 = vrot.slane %v6748, %v6761
        %v6763 = vcombine.high %v6755, %v6755
        %v6764 = vcombine.high %v6762, %v6762
        %v6765 = vcombine.high %v6645, %v6645
        %v6767 = vunpack.c.l.s4 1983009808
        %v6768 = vunpack.c.0.s8 %v6767
        %v6769 = vlaneseq
        %v6770 = vshrl.u32 %v6769, 7
        %v6771 = vsub.s32 %v6768, %v6770
        %v6772 = vrot.slane %v6645, %v6771
        %v6774 = vunpack.c.l.s4 1983009808
        %v6775 = vunpack.c.0.s8 %v6774
        %v6776 = vlaneseq
        %v6777 = vshrl.u32 %v6776, 7
        %v6778 = vsub.s32 %v6775, %v6777
        %v6779 = vrot.slane %v6765, %v6778
        %v6780 = vcombine.high %v6772, %v6772
        %v6781 = vcombine.high %v6779, %v6779
        %v6782 = vcombine.high %v6646, %v6646
        %v6784 = vunpack.c.l.s4 1983009808
        %v6785 = vunpack.c.0.s8 %v6784
        %v6786 = vlaneseq
        %v6787 = vshrl.u32 %v6786, 7
        %v6788 = vsub.s32 %v6785, %v6787
        %v6789 = vrot.slane %v6646, %v6788
        %v6791 = vunpack.c.l.s4 1983009808
        %v6792 = vunpack.c.0.s8 %v6791
        %v6793 = vlaneseq
        %v6794 = vshrl.u32 %v6793, 7
        %v6795 = vsub.s32 %v6792, %v6794
        %v6796 = vrot.slane %v6782, %v6795
        %v6797 = vcombine.high %v6796, %v6796
        %v6798 = vcombine.high %v6647, %v6647
        %v6800 = vunpack.c.l.s4 1983009808
        %v6801 = vunpack.c.0.s8 %v6800
        %v6802 = vlaneseq
        %v6803 = vshrl.u32 %v6802, 7
        %v6804 = vsub.s32 %v6801, %v6803
        %v6805 = vrot.slane %v6647, %v6804
        %v6807 = vunpack.c.l.s4 1983009808
        %v6808 = vunpack.c.0.s8 %v6807
        %v6809 = vlaneseq
        %v6810 = vshrl.u32 %v6809, 7
        %v6811 = vsub.s32 %v6808, %v6810
        %v6812 = vrot.slane %v6798, %v6811
        %v6813 = vcombine.high %v6805, %v6805
        %v6814 = vcombine.high %v6812, %v6812
        %v6815 = vcombine.high %v6648, %v6648
        %v6817 = vunpack.c.l.s4 1983009808
        %v6818 = vunpack.c.0.s8 %v6817
        %v6819 = vlaneseq
        %v6820 = vshrl.u32 %v6819, 7
        %v6821 = vsub.s32 %v6818, %v6820
        %v6822 = vrot.slane %v6648, %v6821
        %v6824 = vunpack.c.l.s4 1983009808
        %v6825 = vunpack.c.0.s8 %v6824
        %v6826 = vlaneseq
        %v6827 = vshrl.u32 %v6826, 7
        %v6828 = vsub.s32 %v6825, %v6827
        %v6829 = vrot.slane %v6815, %v6828
        %v6830 = vcombine.high %v6822, %v6822
        %v6831 = vcombine.high %v6829, %v6829
        %v6832 = vcombine.high %v6649, %v6649
        %v6834 = vunpack.c.l.s4 1983009808
        %v6835 = vunpack.c.0.s8 %v6834
        %v6836 = vlaneseq
        %v6837 = vshrl.u32 %v6836, 7
        %v6838 = vsub.s32 %v6835, %v6837
        %v6839 = vrot.slane %v6649, %v6838
        %v6841 = vunpack.c.l.s4 1983009808
        %v6842 = vunpack.c.0.s8 %v6841
        %v6843 = vlaneseq
        %v6844 = vshrl.u32 %v6843, 7
        %v6845 = vsub.s32 %v6842, %v6844
        %v6846 = vrot.slane %v6832, %v6845
        %v6847 = vcombine.high %v6839, %v6839
        %v6848 = vcombine.high %v6846, %v6846
        %v6849 = vcombine.high %v6650, %v6650
        %v6851 = vunpack.c.l.s4 1983009808
        %v6852 = vunpack.c.0.s8 %v6851
        %v6853 = vlaneseq
        %v6854 = vshrl.u32 %v6853, 7
        %v6855 = vsub.s32 %v6852, %v6854
        %v6856 = vrot.slane %v6650, %v6855
        %v6858 = vunpack.c.l.s4 1983009808
        %v6859 = vunpack.c.0.s8 %v6858
        %v6860 = vlaneseq
        %v6861 = vshrl.u32 %v6860, 7
        %v6862 = vsub.s32 %v6859, %v6861
        %v6863 = vrot.slane %v6849, %v6862
        %v6864 = vcombine.high %v6856, %v6856
        %v6865 = vcombine.high %v6651, %v6651
        %v6867 = vunpack.c.l.s4 1983009808
        %v6868 = vunpack.c.0.s8 %v6867
        %v6869 = vlaneseq
        %v6870 = vshrl.u32 %v6869, 7
        %v6871 = vsub.s32 %v6868, %v6870
        %v6872 = vrot.slane %v6651, %v6871
        %v6874 = vunpack.c.l.s4 1983009808
        %v6875 = vunpack.c.0.s8 %v6874
        %v6876 = vlaneseq
        %v6877 = vshrl.u32 %v6876, 7
        %v6878 = vsub.s32 %v6875, %v6877
        %v6879 = vrot.slane %v6865, %v6878
        %v6880 = vcombine.high %v6872, %v6872
        %v6881 = vcombine.high %v6879, %v6879
        %v6882 = vcombine.high %v6652, %v6652
        %v6884 = vunpack.c.l.s4 1983009808
        %v6885 = vunpack.c.0.s8 %v6884
        %v6886 = vlaneseq
        %v6887 = vshrl.u32 %v6886, 7
        %v6888 = vsub.s32 %v6885, %v6887
        %v6889 = vrot.slane %v6652, %v6888
        %v6891 = vunpack.c.l.s4 1983009808
        %v6892 = vunpack.c.0.s8 %v6891
        %v6893 = vlaneseq
        %v6894 = vshrl.u32 %v6893, 7
        %v6895 = vsub.s32 %v6892, %v6894
        %v6896 = vrot.slane %v6882, %v6895
        %v6897 = vcombine.high %v6889, %v6889
        %v6898 = vcombine.high %v6896, %v6896
        %v6899 = vcombine.high %v6653, %v6653
        %v6901 = vunpack.c.l.s4 1983009808
        %v6902 = vunpack.c.0.s8 %v6901
        %v6903 = vlaneseq
        %v6904 = vshrl.u32 %v6903, 7
        %v6905 = vsub.s32 %v6902, %v6904
        %v6906 = vrot.slane %v6653, %v6905
        %v6908 = vunpack.c.l.s4 1983009808
        %v6909 = vunpack.c.0.s8 %v6908
        %v6910 = vlaneseq
        %v6911 = vshrl.u32 %v6910, 7
        %v6912 = vsub.s32 %v6909, %v6911
        %v6913 = vrot.slane %v6899, %v6912
        %v6914 = vcombine.high %v6906, %v6906
        %v6915 = vcombine.high %v6913, %v6913
        %v6916 = vcombine.high %v6654, %v6654
        %v6918 = vunpack.c.l.s4 1983009808
        %v6919 = vunpack.c.0.s8 %v6918
        %v6920 = vlaneseq
        %v6921 = vshrl.u32 %v6920, 7
        %v6922 = vsub.s32 %v6919, %v6921
        %v6923 = vrot.slane %v6654, %v6922
        %v6925 = vunpack.c.l.s4 1983009808
        %v6926 = vunpack.c.0.s8 %v6925
        %v6927 = vlaneseq
        %v6928 = vshrl.u32 %v6927, 7
        %v6929 = vsub.s32 %v6926, %v6928
        %v6930 = vrot.slane %v6916, %v6929
        %v6931 = vcombine.high %v6923, %v6923
        %v6932 = vcombine.high %v6930, %v6930
        %v6933 = vcombine.high %v6655, %v6655
        %v6935 = vunpack.c.l.s4 1983009808
        %v6936 = vunpack.c.0.s8 %v6935
        %v6937 = vlaneseq
        %v6938 = vshrl.u32 %v6937, 7
        %v6939 = vsub.s32 %v6936, %v6938
        %v6940 = vrot.slane %v6655, %v6939
        %v6942 = vunpack.c.l.s4 1983009808
        %v6943 = vunpack.c.0.s8 %v6942
        %v6944 = vlaneseq
        %v6945 = vshrl.u32 %v6944, 7
        %v6946 = vsub.s32 %v6943, %v6945
        %v6947 = vrot.slane %v6933, %v6946
        %v6948 = vcombine.high %v6947, %v6947
        %v6949 = vcombine.high %v6656, %v6656
        %v6951 = vunpack.c.l.s4 1983009808
        %v6952 = vunpack.c.0.s8 %v6951
        %v6953 = vlaneseq
        %v6954 = vshrl.u32 %v6953, 7
        %v6955 = vsub.s32 %v6952, %v6954
        %v6956 = vrot.slane %v6656, %v6955
        %v6958 = vunpack.c.l.s4 1983009808
        %v6959 = vunpack.c.0.s8 %v6958
        %v6960 = vlaneseq
        %v6961 = vshrl.u32 %v6960, 7
        %v6962 = vsub.s32 %v6959, %v6961
        %v6963 = vrot.slane %v6949, %v6962
        %v6964 = vcombine.high %v6956, %v6956
        %v6965 = vcombine.high %v6963, %v6963
        %v6966 = vcombine.high %v6657, %v6657
        %v6968 = vunpack.c.l.s4 1983009808
        %v6969 = vunpack.c.0.s8 %v6968
        %v6970 = vlaneseq
        %v6971 = vshrl.u32 %v6970, 7
        %v6972 = vsub.s32 %v6969, %v6971
        %v6973 = vrot.slane %v6657, %v6972
        %v6975 = vunpack.c.l.s4 1983009808
        %v6976 = vunpack.c.0.s8 %v6975
        %v6977 = vlaneseq
        %v6978 = vshrl.u32 %v6977, 7
        %v6979 = vsub.s32 %v6976, %v6978
        %v6980 = vrot.slane %v6966, %v6979
        %v6981 = vcombine.high %v6973, %v6973
        %v6982 = vcombine.high %v6980, %v6980
        %v6983 = vcombine.high %v6658, %v6658
        %v6985 = vunpack.c.l.s4 1983009808
        %v6986 = vunpack.c.0.s8 %v6985
        %v6987 = vlaneseq
        %v6988 = vshrl.u32 %v6987, 7
        %v6989 = vsub.s32 %v6986, %v6988
        %v6990 = vrot.slane %v6658, %v6989
        %v6992 = vunpack.c.l.s4 1983009808
        %v6993 = vunpack.c.0.s8 %v6992
        %v6994 = vlaneseq
        %v6995 = vshrl.u32 %v6994, 7
        %v6996 = vsub.s32 %v6993, %v6995
        %v6997 = vrot.slane %v6983, %v6996
        %v6998 = vcombine.high %v6990, %v6990
        %v6999 = vcombine.high %v6997, %v6997
        %v7000 = vcombine.high %v6659, %v6659
        %v7002 = vunpack.c.l.s4 1983009808
        %v7003 = vunpack.c.0.s8 %v7002
        %v7004 = vlaneseq
        %v7005 = vshrl.u32 %v7004, 7
        %v7006 = vsub.s32 %v7003, %v7005
        %v7007 = vrot.slane %v6659, %v7006
        %v7009 = vunpack.c.l.s4 1983009808
        %v7010 = vunpack.c.0.s8 %v7009
        %v7011 = vlaneseq
        %v7012 = vshrl.u32 %v7011, 7
        %v7013 = vsub.s32 %v7010, %v7012
        %v7014 = vrot.slane %v7000, %v7013
        %v7015 = vcombine.high %v7007, %v7007
        %v7016 = vcombine.high %v6660, %v6660
        %v7018 = vunpack.c.l.s4 1983009808
        %v7019 = vunpack.c.0.s8 %v7018
        %v7020 = vlaneseq
        %v7021 = vshrl.u32 %v7020, 7
        %v7022 = vsub.s32 %v7019, %v7021
        %v7023 = vrot.slane %v6660, %v7022
        %v7025 = vunpack.c.l.s4 1983009808
        %v7026 = vunpack.c.0.s8 %v7025
        %v7027 = vlaneseq
        %v7028 = vshrl.u32 %v7027, 7
        %v7029 = vsub.s32 %v7026, %v7028
        %v7030 = vrot.slane %v7016, %v7029
        %v7031 = vcombine.high %v7023, %v7023
        %v7032 = vcombine.high %v7030, %v7030
        %v7033 = vcombine.high %v6661, %v6661
        %v7035 = vunpack.c.l.s4 1983009808
        %v7036 = vunpack.c.0.s8 %v7035
        %v7037 = vlaneseq
        %v7038 = vshrl.u32 %v7037, 7
        %v7039 = vsub.s32 %v7036, %v7038
        %v7040 = vrot.slane %v6661, %v7039
        %v7042 = vunpack.c.l.s4 1983009808
        %v7043 = vunpack.c.0.s8 %v7042
        %v7044 = vlaneseq
        %v7045 = vshrl.u32 %v7044, 7
        %v7046 = vsub.s32 %v7043, %v7045
        %v7047 = vrot.slane %v7033, %v7046
        %v7048 = vcombine.high %v7040, %v7040
        %v7049 = vcombine.high %v7047, %v7047
        %v7050 = vcombine.high %v6662, %v6662
        %v7052 = vunpack.c.l.s4 1983009808
        %v7053 = vunpack.c.0.s8 %v7052
        %v7054 = vlaneseq
        %v7055 = vshrl.u32 %v7054, 7
        %v7056 = vsub.s32 %v7053, %v7055
        %v7057 = vrot.slane %v6662, %v7056
        %v7059 = vunpack.c.l.s4 1983009808
        %v7060 = vunpack.c.0.s8 %v7059
        %v7061 = vlaneseq
        %v7062 = vshrl.u32 %v7061, 7
        %v7063 = vsub.s32 %v7060, %v7062
        %v7064 = vrot.slane %v7050, %v7063
        %v7065 = vcombine.high %v7057, %v7057
        %v7066 = vcombine.high %v7064, %v7064
        %v7067 = vcombine.high %v6663, %v6663
        %v7069 = vunpack.c.l.s4 1983009808
        %v7070 = vunpack.c.0.s8 %v7069
        %v7071 = vlaneseq
        %v7072 = vshrl.u32 %v7071, 7
        %v7073 = vsub.s32 %v7070, %v7072
        %v7074 = vrot.slane %v6663, %v7073
        %v7076 = vunpack.c.l.s4 1983009808
        %v7077 = vunpack.c.0.s8 %v7076
        %v7078 = vlaneseq
        %v7079 = vshrl.u32 %v7078, 7
        %v7080 = vsub.s32 %v7077, %v7079
        %v7081 = vrot.slane %v7067, %v7080
        %v7082 = vcombine.high %v7074, %v7074
        %v7083 = vcombine.high %v7081, %v7081
        %v7084 = vcombine.high %v6664, %v6664
        %v7086 = vunpack.c.l.s4 1983009808
        %v7087 = vunpack.c.0.s8 %v7086
        %v7088 = vlaneseq
        %v7089 = vshrl.u32 %v7088, 7
        %v7090 = vsub.s32 %v7087, %v7089
        %v7091 = vrot.slane %v6664, %v7090
        %v7093 = vunpack.c.l.s4 1983009808
        %v7094 = vunpack.c.0.s8 %v7093
        %v7095 = vlaneseq
        %v7096 = vshrl.u32 %v7095, 7
        %v7097 = vsub.s32 %v7094, %v7096
        %v7098 = vrot.slane %v7084, %v7097
        %v7099 = vcombine.high %v7098, %v7098
        %v7100 = vcombine.high %v6665, %v6665
        %v7102 = vunpack.c.l.s4 1983009808
        %v7103 = vunpack.c.0.s8 %v7102
        %v7104 = vlaneseq
        %v7105 = vshrl.u32 %v7104, 7
        %v7106 = vsub.s32 %v7103, %v7105
        %v7107 = vrot.slane %v6665, %v7106
        %v7109 = vunpack.c.l.s4 1983009808
        %v7110 = vunpack.c.0.s8 %v7109
        %v7111 = vlaneseq
        %v7112 = vshrl.u32 %v7111, 7
        %v7113 = vsub.s32 %v7110, %v7112
        %v7114 = vrot.slane %v7100, %v7113
        %v7115 = vcombine.high %v7107, %v7107
        %v7116 = vcombine.high %v7114, %v7114
        %v7117 = vcombine.high %v6666, %v6666
        %v7119 = vunpack.c.l.s4 1983009808
        %v7120 = vunpack.c.0.s8 %v7119
        %v7121 = vlaneseq
        %v7122 = vshrl.u32 %v7121, 7
        %v7123 = vsub.s32 %v7120, %v7122
        %v7124 = vrot.slane %v6666, %v7123
        %v7126 = vunpack.c.l.s4 1983009808
        %v7127 = vunpack.c.0.s8 %v7126
        %v7128 = vlaneseq
        %v7129 = vshrl.u32 %v7128, 7
        %v7130 = vsub.s32 %v7127, %v7129
        %v7131 = vrot.slane %v7117, %v7130
        %v7132 = vcombine.high %v7124, %v7124
        %v7133 = vcombine.high %v7131, %v7131
        %v7134 = vcombine.high %v6667, %v6667
        %v7136 = vunpack.c.l.s4 1983009808
        %v7137 = vunpack.c.0.s8 %v7136
        %v7138 = vlaneseq
        %v7139 = vshrl.u32 %v7138, 7
        %v7140 = vsub.s32 %v7137, %v7139
        %v7141 = vrot.slane %v6667, %v7140
        %v7143 = vunpack.c.l.s4 1983009808
        %v7144 = vunpack.c.0.s8 %v7143
        %v7145 = vlaneseq
        %v7146 = vshrl.u32 %v7145, 7
        %v7147 = vsub.s32 %v7144, %v7146
        %v7148 = vrot.slane %v7134, %v7147
        %v7149 = vcombine.high %v7141, %v7141
        %v7150 = vcombine.high %v7148, %v7148
        %v7151 = vcombine.high %v6668, %v6668
        %v7153 = vunpack.c.l.s4 1983009808
        %v7154 = vunpack.c.0.s8 %v7153
        %v7155 = vlaneseq
        %v7156 = vshrl.u32 %v7155, 7
        %v7157 = vsub.s32 %v7154, %v7156
        %v7158 = vrot.slane %v6668, %v7157
        %v7160 = vunpack.c.l.s4 1983009808
        %v7161 = vunpack.c.0.s8 %v7160
        %v7162 = vlaneseq
        %v7163 = vshrl.u32 %v7162, 7
        %v7164 = vsub.s32 %v7161, %v7163
        %v7165 = vrot.slane %v7151, %v7164
        %v7166 = vcombine.high %v7158, %v7158
        %v7167 = vcombine.high %v6669, %v6669
        %v7169 = vunpack.c.l.s4 1983009808
        %v7170 = vunpack.c.0.s8 %v7169
        %v7171 = vlaneseq
        %v7172 = vshrl.u32 %v7171, 7
        %v7173 = vsub.s32 %v7170, %v7172
        %v7174 = vrot.slane %v6669, %v7173
        %v7176 = vunpack.c.l.s4 1983009808
        %v7177 = vunpack.c.0.s8 %v7176
        %v7178 = vlaneseq
        %v7179 = vshrl.u32 %v7178, 7
        %v7180 = vsub.s32 %v7177, %v7179
        %v7181 = vrot.slane %v7167, %v7180
        %v7182 = vcombine.high %v7174, %v7174
        %v7183 = vcombine.high %v7181, %v7181
        %v7184 = vcombine.high %v6670, %v6670
        %v7186 = vunpack.c.l.s4 1983009808
        %v7187 = vunpack.c.0.s8 %v7186
        %v7188 = vlaneseq
        %v7189 = vshrl.u32 %v7188, 7
        %v7190 = vsub.s32 %v7187, %v7189
        %v7191 = vrot.slane %v6670, %v7190
        %v7193 = vunpack.c.l.s4 1983009808
        %v7194 = vunpack.c.0.s8 %v7193
        %v7195 = vlaneseq
        %v7196 = vshrl.u32 %v7195, 7
        %v7197 = vsub.s32 %v7194, %v7196
        %v7198 = vrot.slane %v7184, %v7197
        %v7199 = vcombine.high %v7191, %v7191
        %v7200 = vcombine.high %v7198, %v7198
        %v7201 = vcombine.high %v6671, %v6671
        %v7203 = vunpack.c.l.s4 1983009808
        %v7204 = vunpack.c.0.s8 %v7203
        %v7205 = vlaneseq
        %v7206 = vshrl.u32 %v7205, 7
        %v7207 = vsub.s32 %v7204, %v7206
        %v7208 = vrot.slane %v6671, %v7207
        %v7210 = vunpack.c.l.s4 1983009808
        %v7211 = vunpack.c.0.s8 %v7210
        %v7212 = vlaneseq
        %v7213 = vshrl.u32 %v7212, 7
        %v7214 = vsub.s32 %v7211, %v7213
        %v7215 = vrot.slane %v7201, %v7214
        %v7216 = vcombine.high %v7208, %v7208
        %v7217 = vcombine.high %v7215, %v7215
        %v7218 = vcombine.high %v6672, %v6672
        %v7220 = vunpack.c.l.s4 1983009808
        %v7221 = vunpack.c.0.s8 %v7220
        %v7222 = vlaneseq
        %v7223 = vshrl.u32 %v7222, 7
        %v7224 = vsub.s32 %v7221, %v7223
        %v7225 = vrot.slane %v6672, %v7224
        %v7227 = vunpack.c.l.s4 1983009808
        %v7228 = vunpack.c.0.s8 %v7227
        %v7229 = vlaneseq
        %v7230 = vshrl.u32 %v7229, 7
        %v7231 = vsub.s32 %v7228, %v7230
        %v7232 = vrot.slane %v7218, %v7231
        %v7233 = vcombine.high %v7225, %v7225
        %v7234 = vcombine.high %v7232, %v7232
        %v7235 = vcombine.high %v6673, %v6673
        %v7237 = vunpack.c.l.s4 1983009808
        %v7238 = vunpack.c.0.s8 %v7237
        %v7239 = vlaneseq
        %v7240 = vshrl.u32 %v7239, 7
        %v7241 = vsub.s32 %v7238, %v7240
        %v7242 = vrot.slane %v6673, %v7241
        %v7244 = vunpack.c.l.s4 1983009808
        %v7245 = vunpack.c.0.s8 %v7244
        %v7246 = vlaneseq
        %v7247 = vshrl.u32 %v7246, 7
        %v7248 = vsub.s32 %v7245, %v7247
        %v7249 = vrot.slane %v7235, %v7248
        %v7250 = vcombine.high %v7249, %v7249
        %v7251 = vcombine.high %v6674, %v6674
        %v7253 = vunpack.c.l.s4 1983009808
        %v7254 = vunpack.c.0.s8 %v7253
        %v7255 = vlaneseq
        %v7256 = vshrl.u32 %v7255, 7
        %v7257 = vsub.s32 %v7254, %v7256
        %v7258 = vrot.slane %v6674, %v7257
        %v7260 = vunpack.c.l.s4 1983009808
        %v7261 = vunpack.c.0.s8 %v7260
        %v7262 = vlaneseq
        %v7263 = vshrl.u32 %v7262, 7
        %v7264 = vsub.s32 %v7261, %v7263
        %v7265 = vrot.slane %v7251, %v7264
        %v7266 = vcombine.high %v7258, %v7258
        %v7267 = vcombine.high %v7265, %v7265
        %v7268 = vcombine.high %v6675, %v6675
        %v7270 = vunpack.c.l.s4 1983009808
        %v7271 = vunpack.c.0.s8 %v7270
        %v7272 = vlaneseq
        %v7273 = vshrl.u32 %v7272, 7
        %v7274 = vsub.s32 %v7271, %v7273
        %v7275 = vrot.slane %v6675, %v7274
        %v7277 = vunpack.c.l.s4 1983009808
        %v7278 = vunpack.c.0.s8 %v7277
        %v7279 = vlaneseq
        %v7280 = vshrl.u32 %v7279, 7
        %v7281 = vsub.s32 %v7278, %v7280
        %v7282 = vrot.slane %v7268, %v7281
        %v7283 = vcombine.high %v7275, %v7275
        %v7284 = vcombine.high %v7282, %v7282
        %v7285 = vcombine.high %v6676, %v6676
        %v7287 = vunpack.c.l.s4 1983009808
        %v7288 = vunpack.c.0.s8 %v7287
        %v7289 = vlaneseq
        %v7290 = vshrl.u32 %v7289, 7
        %v7291 = vsub.s32 %v7288, %v7290
        %v7292 = vrot.slane %v6676, %v7291
        %v7294 = vunpack.c.l.s4 1983009808
        %v7295 = vunpack.c.0.s8 %v7294
        %v7296 = vlaneseq
        %v7297 = vshrl.u32 %v7296, 7
        %v7298 = vsub.s32 %v7295, %v7297
        %v7299 = vrot.slane %v7285, %v7298
        %v7300 = vcombine.high %v7292, %v7292
        %v7301 = vcombine.high %v7299, %v7299
        %v7302 = vcombine.high %v6677, %v6677
        %v7304 = vunpack.c.l.s4 1983009808
        %v7305 = vunpack.c.0.s8 %v7304
        %v7306 = vlaneseq
        %v7307 = vshrl.u32 %v7306, 7
        %v7308 = vsub.s32 %v7305, %v7307
        %v7309 = vrot.slane %v6677, %v7308
        %v7311 = vunpack.c.l.s4 1983009808
        %v7312 = vunpack.c.0.s8 %v7311
        %v7313 = vlaneseq
        %v7314 = vshrl.u32 %v7313, 7
        %v7315 = vsub.s32 %v7312, %v7314
        %v7316 = vrot.slane %v7302, %v7315
        %v7317 = vcombine.high %v7309, %v7309
        %v7446 = vld [vmem:[%s294] sm:$0x1]
        %v7448 = vlaneseq
        %v7449 = vshrl.u32 %v7448, 7
        %v7450 = vsub.s32 0, %v7449
        %v7451 = vrot.slane %v7446, %v7450
        %v7452 = vcombine.high %v7451, %v7451
        %v7454 = vunpack.c.l.s4 1983009808
        %v7455 = vunpack.c.0.s8 %v7454
        %v7456 = vlaneseq
        %v7457 = vshrl.u32 %v7456, 7
        %v7458 = vsub.s32 %v7455, %v7457
        %v7459 = vrot.slane %v7451, %v7458
        %v7461 = vunpack.c.l.s4 1983009808
        %v7462 = vunpack.c.0.s8 %v7461
        %v7463 = vlaneseq
        %v7464 = vshrl.u32 %v7463, 7
        %v7465 = vsub.s32 %v7462, %v7464
        %v7466 = vrot.slane %v7452, %v7465
        %v7467 = vcombine.high %v7459, %v7459
        %v7468 = vcombine.high %v7466, %v7466
        %v7473 = vadd.f32 %v6721, %v7459
        %v7474 = vadd.f32 %v6729, %v7467
        %v7475 = vadd.f32 %v6728, %v7466
        %v7476 = vadd.f32 %v6730, %v7468
        %v7477 = vadd.f32 %v6738, %v7459
        %v7478 = vadd.f32 %v6746, %v7467
        %v7479 = vadd.f32 %v6745, %v7466
        %v7480 = vadd.f32 %v6747, %v7468
        %v7481 = vadd.f32 %v6763, %v7459
        %v7482 = vadd.f32 %v6762, %v7467
        %v7483 = vadd.f32 %v6764, %v7466
        %v7484 = vadd.f32 %v6772, %v7468
        %v7485 = vadd.f32 %v6780, %v7459
        %v7486 = vadd.f32 %v6779, %v7467
        %v7487 = vadd.f32 %v6781, %v7466
        %v7488 = vadd.f32 %v6789, %v7468
        %v7489 = vadd.f32 %v6796, %v7459
        %v7490 = vadd.f32 %v6797, %v7467
        %v7491 = vadd.f32 %v6805, %v7466
        %v7492 = vadd.f32 %v6813, %v7468
        %v7493 = vadd.f32 %v6812, %v7459
        %v7494 = vadd.f32 %v6814, %v7467
        %v7495 = vadd.f32 %v6822, %v7466
        %v7496 = vadd.f32 %v6830, %v7468
        %v7497 = vadd.f32 %v6831, %v7459
        %v7498 = vadd.f32 %v6839, %v7467
        %v7499 = vadd.f32 %v6847, %v7466
        %v7500 = vadd.f32 %v6846, %v7468
        %v7501 = vadd.f32 %v6848, %v7459
        %v7502 = vadd.f32 %v6856, %v7467
        %v7503 = vadd.f32 %v6864, %v7466
        %v7504 = vadd.f32 %v6863, %v7468
        %v7505 = vadd.f32 %v6872, %v7459
        %v7506 = vadd.f32 %v6880, %v7467
        %v7507 = vadd.f32 %v6879, %v7466
        %v7508 = vadd.f32 %v6881, %v7468
        %v7509 = vadd.f32 %v6889, %v7459
        %v7510 = vadd.f32 %v6897, %v7467
        %v7511 = vadd.f32 %v6896, %v7466
        %v7512 = vadd.f32 %v6898, %v7468
        %v7513 = vadd.f32 %v6914, %v7459
        %v7514 = vadd.f32 %v6913, %v7467
        %v7515 = vadd.f32 %v6915, %v7466
        %v7516 = vadd.f32 %v6923, %v7468
        %v7517 = vadd.f32 %v6931, %v7459
        %v7518 = vadd.f32 %v6930, %v7467
        %v7519 = vadd.f32 %v6932, %v7466
        %v7520 = vadd.f32 %v6940, %v7468
        %v7521 = vadd.f32 %v6947, %v7459
        %v7522 = vadd.f32 %v6948, %v7467
        %v7523 = vadd.f32 %v6956, %v7466
        %v7524 = vadd.f32 %v6964, %v7468
        %v7525 = vadd.f32 %v6963, %v7459
        %v7526 = vadd.f32 %v6965, %v7467
        %v7527 = vadd.f32 %v6973, %v7466
        %v7528 = vadd.f32 %v6981, %v7468
        %v7529 = vadd.f32 %v6982, %v7459
        %v7530 = vadd.f32 %v6990, %v7467
        %v7531 = vadd.f32 %v6998, %v7466
        %v7532 = vadd.f32 %v6997, %v7468
        %v7533 = vadd.f32 %v6999, %v7459
        %v7534 = vadd.f32 %v7007, %v7467
        %v7535 = vadd.f32 %v7015, %v7466
        %v7536 = vadd.f32 %v7014, %v7468
        %v7537 = vadd.f32 %v7023, %v7459
        %v7538 = vadd.f32 %v7031, %v7467
        %v7539 = vadd.f32 %v7030, %v7466
        %v7540 = vadd.f32 %v7032, %v7468
        %v7541 = vadd.f32 %v7040, %v7459
        %v7542 = vadd.f32 %v7048, %v7467
        %v7543 = vadd.f32 %v7047, %v7466
        %v7544 = vadd.f32 %v7049, %v7468
        %v7545 = vadd.f32 %v7065, %v7459
        %v7546 = vadd.f32 %v7064, %v7467
        %v7547 = vadd.f32 %v7066, %v7466
        %v7548 = vadd.f32 %v7074, %v7468
        %v7549 = vadd.f32 %v7082, %v7459
        %v7550 = vadd.f32 %v7081, %v7467
        %v7551 = vadd.f32 %v7083, %v7466
        %v7552 = vadd.f32 %v7091, %v7468
        %v7553 = vadd.f32 %v7098, %v7459
        %v7554 = vadd.f32 %v7099, %v7467
        %v7555 = vadd.f32 %v7107, %v7466
        %v7556 = vadd.f32 %v7115, %v7468
        %v7557 = vadd.f32 %v7114, %v7459
        %v7558 = vadd.f32 %v7116, %v7467
        %v7559 = vadd.f32 %v7124, %v7466
        %v7560 = vadd.f32 %v7132, %v7468
        %v7561 = vadd.f32 %v7133, %v7459
        %v7562 = vadd.f32 %v7141, %v7467
        %v7563 = vadd.f32 %v7149, %v7466
        %v7564 = vadd.f32 %v7148, %v7468
        %v7565 = vadd.f32 %v7150, %v7459
        %v7566 = vadd.f32 %v7158, %v7467
        %v7567 = vadd.f32 %v7166, %v7466
        %v7568 = vadd.f32 %v7165, %v7468
        %v7569 = vadd.f32 %v7174, %v7459
        %v7570 = vadd.f32 %v7182, %v7467
        %v7571 = vadd.f32 %v7181, %v7466
        %v7572 = vadd.f32 %v7183, %v7468
        %v7573 = vadd.f32 %v7191, %v7459
        %v7574 = vadd.f32 %v7199, %v7467
        %v7575 = vadd.f32 %v7198, %v7466
        %v7576 = vadd.f32 %v7200, %v7468
        %v7577 = vadd.f32 %v7216, %v7459
        %v7578 = vadd.f32 %v7215, %v7467
        %v7579 = vadd.f32 %v7217, %v7466
        %v7580 = vadd.f32 %v7225, %v7468
        %v7581 = vadd.f32 %v7233, %v7459
        %v7582 = vadd.f32 %v7232, %v7467
        %v7583 = vadd.f32 %v7234, %v7466
        %v7584 = vadd.f32 %v7242, %v7468
        %v7585 = vadd.f32 %v7249, %v7459
        %v7586 = vadd.f32 %v7250, %v7467
        %v7587 = vadd.f32 %v7258, %v7466
        %v7588 = vadd.f32 %v7266, %v7468
        %v7589 = vadd.f32 %v7265, %v7459
        %v7590 = vadd.f32 %v7267, %v7467
        %v7591 = vadd.f32 %v7275, %v7466
        %v7592 = vadd.f32 %v7283, %v7468
        %v7593 = vadd.f32 %v7284, %v7459
        %v7594 = vadd.f32 %v7292, %v7467
        %v7595 = vadd.f32 %v7300, %v7466
        %v7596 = vadd.f32 %v7299, %v7468
        %v7597 = vadd.f32 %v7301, %v7459
        %v7598 = vadd.f32 %v7309, %v7467
        %v7599 = vadd.f32 %v7317, %v7466
        %v7600 = vadd.f32 %v7316, %v7468
        %v7729 = vcombine.low %v7473, %v7474
        %v7730 = vcombine.low %v7475, %v7476
        %v7732 = vunpack.c.l.s4 1983009808
        %v7733 = vunpack.c.0.s8 %v7732
        %v7734 = vlaneseq
        %v7735 = vshrl.u32 %v7734, 7
        %v7736 = vsub.s32 %v7733, %v7735
        %v7737 = vrot.slane %v7729, %v7736
        %v7739 = vunpack.c.l.s4 1983009808
        %v7740 = vunpack.c.0.s8 %v7739
        %v7741 = vlaneseq
        %v7742 = vshrl.u32 %v7741, 7
        %v7743 = vsub.s32 %v7740, %v7742
        %v7744 = vrot.slane %v7730, %v7743
        %v7745 = vcombine.low %v7737, %v7744
        %v7746 = vcombine.low %v7477, %v7478
        %v7747 = vcombine.low %v7479, %v7480
        %v7749 = vunpack.c.l.s4 1983009808
        %v7750 = vunpack.c.0.s8 %v7749
        %v7751 = vlaneseq
        %v7752 = vshrl.u32 %v7751, 7
        %v7753 = vsub.s32 %v7750, %v7752
        %v7754 = vrot.slane %v7746, %v7753
        %v7756 = vunpack.c.l.s4 1983009808
        %v7757 = vunpack.c.0.s8 %v7756
        %v7758 = vlaneseq
        %v7759 = vshrl.u32 %v7758, 7
        %v7760 = vsub.s32 %v7757, %v7759
        %v7761 = vrot.slane %v7747, %v7760
        %v7762 = vcombine.low %v7754, %v7761
        %v7763 = vcombine.low %v7481, %v7482
        %v7764 = vcombine.low %v7483, %v7484
        %v7766 = vunpack.c.l.s4 1983009808
        %v7767 = vunpack.c.0.s8 %v7766
        %v7768 = vlaneseq
        %v7769 = vshrl.u32 %v7768, 7
        %v7770 = vsub.s32 %v7767, %v7769
        %v7771 = vrot.slane %v7763, %v7770
        %v7773 = vunpack.c.l.s4 1983009808
        %v7774 = vunpack.c.0.s8 %v7773
        %v7775 = vlaneseq
        %v7776 = vshrl.u32 %v7775, 7
        %v7777 = vsub.s32 %v7774, %v7776
        %v7778 = vrot.slane %v7764, %v7777
        %v7779 = vcombine.low %v7771, %v7778
        %v7780 = vcombine.low %v7485, %v7486
        %v7781 = vcombine.low %v7487, %v7488
        %v7783 = vunpack.c.l.s4 1983009808
        %v7784 = vunpack.c.0.s8 %v7783
        %v7785 = vlaneseq
        %v7786 = vshrl.u32 %v7785, 7
        %v7787 = vsub.s32 %v7784, %v7786
        %v7788 = vrot.slane %v7780, %v7787
        %v7790 = vunpack.c.l.s4 1983009808
        %v7791 = vunpack.c.0.s8 %v7790
        %v7792 = vlaneseq
        %v7793 = vshrl.u32 %v7792, 7
        %v7794 = vsub.s32 %v7791, %v7793
        %v7795 = vrot.slane %v7781, %v7794
        %v7796 = vcombine.low %v7788, %v7795
        %v7797 = vcombine.low %v7489, %v7490
        %v7798 = vcombine.low %v7491, %v7492
        %v7800 = vunpack.c.l.s4 1983009808
        %v7801 = vunpack.c.0.s8 %v7800
        %v7802 = vlaneseq
        %v7803 = vshrl.u32 %v7802, 7
        %v7804 = vsub.s32 %v7801, %v7803
        %v7805 = vrot.slane %v7797, %v7804
        %v7807 = vunpack.c.l.s4 1983009808
        %v7808 = vunpack.c.0.s8 %v7807
        %v7809 = vlaneseq
        %v7810 = vshrl.u32 %v7809, 7
        %v7811 = vsub.s32 %v7808, %v7810
        %v7812 = vrot.slane %v7798, %v7811
        %v7813 = vcombine.low %v7805, %v7812
        %v7814 = vcombine.low %v7493, %v7494
        %v7815 = vcombine.low %v7495, %v7496
        %v7817 = vunpack.c.l.s4 1983009808
        %v7818 = vunpack.c.0.s8 %v7817
        %v7819 = vlaneseq
        %v7820 = vshrl.u32 %v7819, 7
        %v7821 = vsub.s32 %v7818, %v7820
        %v7822 = vrot.slane %v7814, %v7821
        %v7824 = vunpack.c.l.s4 1983009808
        %v7825 = vunpack.c.0.s8 %v7824
        %v7826 = vlaneseq
        %v7827 = vshrl.u32 %v7826, 7
        %v7828 = vsub.s32 %v7825, %v7827
        %v7829 = vrot.slane %v7815, %v7828
        %v7830 = vcombine.low %v7822, %v7829
        %v7831 = vcombine.low %v7497, %v7498
        %v7832 = vcombine.low %v7499, %v7500
        %v7834 = vunpack.c.l.s4 1983009808
        %v7835 = vunpack.c.0.s8 %v7834
        %v7836 = vlaneseq
        %v7837 = vshrl.u32 %v7836, 7
        %v7838 = vsub.s32 %v7835, %v7837
        %v7839 = vrot.slane %v7831, %v7838
        %v7841 = vunpack.c.l.s4 1983009808
        %v7842 = vunpack.c.0.s8 %v7841
        %v7843 = vlaneseq
        %v7844 = vshrl.u32 %v7843, 7
        %v7845 = vsub.s32 %v7842, %v7844
        %v7846 = vrot.slane %v7832, %v7845
        %v7847 = vcombine.low %v7839, %v7846
        %v7848 = vcombine.low %v7501, %v7502
        %v7849 = vcombine.low %v7503, %v7504
        %v7851 = vunpack.c.l.s4 1983009808
        %v7852 = vunpack.c.0.s8 %v7851
        %v7853 = vlaneseq
        %v7854 = vshrl.u32 %v7853, 7
        %v7855 = vsub.s32 %v7852, %v7854
        %v7856 = vrot.slane %v7848, %v7855
        %v7858 = vunpack.c.l.s4 1983009808
        %v7859 = vunpack.c.0.s8 %v7858
        %v7860 = vlaneseq
        %v7861 = vshrl.u32 %v7860, 7
        %v7862 = vsub.s32 %v7859, %v7861
        %v7863 = vrot.slane %v7849, %v7862
        %v7864 = vcombine.low %v7856, %v7863
        %v7865 = vcombine.low %v7505, %v7506
        %v7866 = vcombine.low %v7507, %v7508
        %v7868 = vunpack.c.l.s4 1983009808
        %v7869 = vunpack.c.0.s8 %v7868
        %v7870 = vlaneseq
        %v7871 = vshrl.u32 %v7870, 7
        %v7872 = vsub.s32 %v7869, %v7871
        %v7873 = vrot.slane %v7865, %v7872
        %v7875 = vunpack.c.l.s4 1983009808
        %v7876 = vunpack.c.0.s8 %v7875
        %v7877 = vlaneseq
        %v7878 = vshrl.u32 %v7877, 7
        %v7879 = vsub.s32 %v7876, %v7878
        %v7880 = vrot.slane %v7866, %v7879
        %v7881 = vcombine.low %v7873, %v7880
        %v7882 = vcombine.low %v7509, %v7510
        %v7883 = vcombine.low %v7511, %v7512
        %v7885 = vunpack.c.l.s4 1983009808
        %v7886 = vunpack.c.0.s8 %v7885
        %v7887 = vlaneseq
        %v7888 = vshrl.u32 %v7887, 7
        %v7889 = vsub.s32 %v7886, %v7888
        %v7890 = vrot.slane %v7882, %v7889
        %v7892 = vunpack.c.l.s4 1983009808
        %v7893 = vunpack.c.0.s8 %v7892
        %v7894 = vlaneseq
        %v7895 = vshrl.u32 %v7894, 7
        %v7896 = vsub.s32 %v7893, %v7895
        %v7897 = vrot.slane %v7883, %v7896
        %v7898 = vcombine.low %v7890, %v7897
        %v7899 = vcombine.low %v7513, %v7514
        %v7900 = vcombine.low %v7515, %v7516
        %v7902 = vunpack.c.l.s4 1983009808
        %v7903 = vunpack.c.0.s8 %v7902
        %v7904 = vlaneseq
        %v7905 = vshrl.u32 %v7904, 7
        %v7906 = vsub.s32 %v7903, %v7905
        %v7907 = vrot.slane %v7899, %v7906
        %v7909 = vunpack.c.l.s4 1983009808
        %v7910 = vunpack.c.0.s8 %v7909
        %v7911 = vlaneseq
        %v7912 = vshrl.u32 %v7911, 7
        %v7913 = vsub.s32 %v7910, %v7912
        %v7914 = vrot.slane %v7900, %v7913
        %v7915 = vcombine.low %v7907, %v7914
        %v7916 = vcombine.low %v7517, %v7518
        %v7917 = vcombine.low %v7519, %v7520
        %v7919 = vunpack.c.l.s4 1983009808
        %v7920 = vunpack.c.0.s8 %v7919
        %v7921 = vlaneseq
        %v7922 = vshrl.u32 %v7921, 7
        %v7923 = vsub.s32 %v7920, %v7922
        %v7924 = vrot.slane %v7916, %v7923
        %v7926 = vunpack.c.l.s4 1983009808
        %v7927 = vunpack.c.0.s8 %v7926
        %v7928 = vlaneseq
        %v7929 = vshrl.u32 %v7928, 7
        %v7930 = vsub.s32 %v7927, %v7929
        %v7931 = vrot.slane %v7917, %v7930
        %v7932 = vcombine.low %v7924, %v7931
        %v7933 = vcombine.low %v7521, %v7522
        %v7934 = vcombine.low %v7523, %v7524
        %v7936 = vunpack.c.l.s4 1983009808
        %v7937 = vunpack.c.0.s8 %v7936
        %v7938 = vlaneseq
        %v7939 = vshrl.u32 %v7938, 7
        %v7940 = vsub.s32 %v7937, %v7939
        %v7941 = vrot.slane %v7933, %v7940
        %v7943 = vunpack.c.l.s4 1983009808
        %v7944 = vunpack.c.0.s8 %v7943
        %v7945 = vlaneseq
        %v7946 = vshrl.u32 %v7945, 7
        %v7947 = vsub.s32 %v7944, %v7946
        %v7948 = vrot.slane %v7934, %v7947
        %v7949 = vcombine.low %v7941, %v7948
        %v7950 = vcombine.low %v7525, %v7526
        %v7951 = vcombine.low %v7527, %v7528
        %v7953 = vunpack.c.l.s4 1983009808
        %v7954 = vunpack.c.0.s8 %v7953
        %v7955 = vlaneseq
        %v7956 = vshrl.u32 %v7955, 7
        %v7957 = vsub.s32 %v7954, %v7956
        %v7958 = vrot.slane %v7950, %v7957
        %v7960 = vunpack.c.l.s4 1983009808
        %v7961 = vunpack.c.0.s8 %v7960
        %v7962 = vlaneseq
        %v7963 = vshrl.u32 %v7962, 7
        %v7964 = vsub.s32 %v7961, %v7963
        %v7965 = vrot.slane %v7951, %v7964
        %v7966 = vcombine.low %v7958, %v7965
        %v7967 = vcombine.low %v7529, %v7530
        %v7968 = vcombine.low %v7531, %v7532
        %v7970 = vunpack.c.l.s4 1983009808
        %v7971 = vunpack.c.0.s8 %v7970
        %v7972 = vlaneseq
        %v7973 = vshrl.u32 %v7972, 7
        %v7974 = vsub.s32 %v7971, %v7973
        %v7975 = vrot.slane %v7967, %v7974
        %v7977 = vunpack.c.l.s4 1983009808
        %v7978 = vunpack.c.0.s8 %v7977
        %v7979 = vlaneseq
        %v7980 = vshrl.u32 %v7979, 7
        %v7981 = vsub.s32 %v7978, %v7980
        %v7982 = vrot.slane %v7968, %v7981
        %v7983 = vcombine.low %v7975, %v7982
        %v7984 = vcombine.low %v7533, %v7534
        %v7985 = vcombine.low %v7535, %v7536
        %v7987 = vunpack.c.l.s4 1983009808
        %v7988 = vunpack.c.0.s8 %v7987
        %v7989 = vlaneseq
        %v7990 = vshrl.u32 %v7989, 7
        %v7991 = vsub.s32 %v7988, %v7990
        %v7992 = vrot.slane %v7984, %v7991
        %v7994 = vunpack.c.l.s4 1983009808
        %v7995 = vunpack.c.0.s8 %v7994
        %v7996 = vlaneseq
        %v7997 = vshrl.u32 %v7996, 7
        %v7998 = vsub.s32 %v7995, %v7997
        %v7999 = vrot.slane %v7985, %v7998
        %v8000 = vcombine.low %v7992, %v7999
        %v8001 = vcombine.low %v7537, %v7538
        %v8002 = vcombine.low %v7539, %v7540
        %v8004 = vunpack.c.l.s4 1983009808
        %v8005 = vunpack.c.0.s8 %v8004
        %v8006 = vlaneseq
        %v8007 = vshrl.u32 %v8006, 7
        %v8008 = vsub.s32 %v8005, %v8007
        %v8009 = vrot.slane %v8001, %v8008
        %v8011 = vunpack.c.l.s4 1983009808
        %v8012 = vunpack.c.0.s8 %v8011
        %v8013 = vlaneseq
        %v8014 = vshrl.u32 %v8013, 7
        %v8015 = vsub.s32 %v8012, %v8014
        %v8016 = vrot.slane %v8002, %v8015
        %v8017 = vcombine.low %v8009, %v8016
        %v8018 = vcombine.low %v7541, %v7542
        %v8019 = vcombine.low %v7543, %v7544
        %v8021 = vunpack.c.l.s4 1983009808
        %v8022 = vunpack.c.0.s8 %v8021
        %v8023 = vlaneseq
        %v8024 = vshrl.u32 %v8023, 7
        %v8025 = vsub.s32 %v8022, %v8024
        %v8026 = vrot.slane %v8018, %v8025
        %v8028 = vunpack.c.l.s4 1983009808
        %v8029 = vunpack.c.0.s8 %v8028
        %v8030 = vlaneseq
        %v8031 = vshrl.u32 %v8030, 7
        %v8032 = vsub.s32 %v8029, %v8031
        %v8033 = vrot.slane %v8019, %v8032
        %v8034 = vcombine.low %v8026, %v8033
        %v8035 = vcombine.low %v7545, %v7546
        %v8036 = vcombine.low %v7547, %v7548
        %v8038 = vunpack.c.l.s4 1983009808
        %v8039 = vunpack.c.0.s8 %v8038
        %v8040 = vlaneseq
        %v8041 = vshrl.u32 %v8040, 7
        %v8042 = vsub.s32 %v8039, %v8041
        %v8043 = vrot.slane %v8035, %v8042
        %v8045 = vunpack.c.l.s4 1983009808
        %v8046 = vunpack.c.0.s8 %v8045
        %v8047 = vlaneseq
        %v8048 = vshrl.u32 %v8047, 7
        %v8049 = vsub.s32 %v8046, %v8048
        %v8050 = vrot.slane %v8036, %v8049
        %v8051 = vcombine.low %v8043, %v8050
        %v8052 = vcombine.low %v7549, %v7550
        %v8053 = vcombine.low %v7551, %v7552
        %v8055 = vunpack.c.l.s4 1983009808
        %v8056 = vunpack.c.0.s8 %v8055
        %v8057 = vlaneseq
        %v8058 = vshrl.u32 %v8057, 7
        %v8059 = vsub.s32 %v8056, %v8058
        %v8060 = vrot.slane %v8052, %v8059
        %v8062 = vunpack.c.l.s4 1983009808
        %v8063 = vunpack.c.0.s8 %v8062
        %v8064 = vlaneseq
        %v8065 = vshrl.u32 %v8064, 7
        %v8066 = vsub.s32 %v8063, %v8065
        %v8067 = vrot.slane %v8053, %v8066
        %v8068 = vcombine.low %v8060, %v8067
        %v8069 = vcombine.low %v7553, %v7554
        %v8070 = vcombine.low %v7555, %v7556
        %v8072 = vunpack.c.l.s4 1983009808
        %v8073 = vunpack.c.0.s8 %v8072
        %v8074 = vlaneseq
        %v8075 = vshrl.u32 %v8074, 7
        %v8076 = vsub.s32 %v8073, %v8075
        %v8077 = vrot.slane %v8069, %v8076
        %v8079 = vunpack.c.l.s4 1983009808
        %v8080 = vunpack.c.0.s8 %v8079
        %v8081 = vlaneseq
        %v8082 = vshrl.u32 %v8081, 7
        %v8083 = vsub.s32 %v8080, %v8082
        %v8084 = vrot.slane %v8070, %v8083
        %v8085 = vcombine.low %v8077, %v8084
        %v8086 = vcombine.low %v7557, %v7558
        %v8087 = vcombine.low %v7559, %v7560
        %v8089 = vunpack.c.l.s4 1983009808
        %v8090 = vunpack.c.0.s8 %v8089
        %v8091 = vlaneseq
        %v8092 = vshrl.u32 %v8091, 7
        %v8093 = vsub.s32 %v8090, %v8092
        %v8094 = vrot.slane %v8086, %v8093
        %v8096 = vunpack.c.l.s4 1983009808
        %v8097 = vunpack.c.0.s8 %v8096
        %v8098 = vlaneseq
        %v8099 = vshrl.u32 %v8098, 7
        %v8100 = vsub.s32 %v8097, %v8099
        %v8101 = vrot.slane %v8087, %v8100
        %v8102 = vcombine.low %v8094, %v8101
        %v8103 = vcombine.low %v7561, %v7562
        %v8104 = vcombine.low %v7563, %v7564
        %v8106 = vunpack.c.l.s4 1983009808
        %v8107 = vunpack.c.0.s8 %v8106
        %v8108 = vlaneseq
        %v8109 = vshrl.u32 %v8108, 7
        %v8110 = vsub.s32 %v8107, %v8109
        %v8111 = vrot.slane %v8103, %v8110
        %v8113 = vunpack.c.l.s4 1983009808
        %v8114 = vunpack.c.0.s8 %v8113
        %v8115 = vlaneseq
        %v8116 = vshrl.u32 %v8115, 7
        %v8117 = vsub.s32 %v8114, %v8116
        %v8118 = vrot.slane %v8104, %v8117
        %v8119 = vcombine.low %v8111, %v8118
        %v8120 = vcombine.low %v7565, %v7566
        %v8121 = vcombine.low %v7567, %v7568
        %v8123 = vunpack.c.l.s4 1983009808
        %v8124 = vunpack.c.0.s8 %v8123
        %v8125 = vlaneseq
        %v8126 = vshrl.u32 %v8125, 7
        %v8127 = vsub.s32 %v8124, %v8126
        %v8128 = vrot.slane %v8120, %v8127
        %v8130 = vunpack.c.l.s4 1983009808
        %v8131 = vunpack.c.0.s8 %v8130
        %v8132 = vlaneseq
        %v8133 = vshrl.u32 %v8132, 7
        %v8134 = vsub.s32 %v8131, %v8133
        %v8135 = vrot.slane %v8121, %v8134
        %v8136 = vcombine.low %v8128, %v8135
        %v8137 = vcombine.low %v7569, %v7570
        %v8138 = vcombine.low %v7571, %v7572
        %v8140 = vunpack.c.l.s4 1983009808
        %v8141 = vunpack.c.0.s8 %v8140
        %v8142 = vlaneseq
        %v8143 = vshrl.u32 %v8142, 7
        %v8144 = vsub.s32 %v8141, %v8143
        %v8145 = vrot.slane %v8137, %v8144
        %v8147 = vunpack.c.l.s4 1983009808
        %v8148 = vunpack.c.0.s8 %v8147
        %v8149 = vlaneseq
        %v8150 = vshrl.u32 %v8149, 7
        %v8151 = vsub.s32 %v8148, %v8150
        %v8152 = vrot.slane %v8138, %v8151
        %v8153 = vcombine.low %v8145, %v8152
        %v8154 = vcombine.low %v7573, %v7574
        %v8155 = vcombine.low %v7575, %v7576
        %v8157 = vunpack.c.l.s4 1983009808
        %v8158 = vunpack.c.0.s8 %v8157
        %v8159 = vlaneseq
        %v8160 = vshrl.u32 %v8159, 7
        %v8161 = vsub.s32 %v8158, %v8160
        %v8162 = vrot.slane %v8154, %v8161
        %v8164 = vunpack.c.l.s4 1983009808
        %v8165 = vunpack.c.0.s8 %v8164
        %v8166 = vlaneseq
        %v8167 = vshrl.u32 %v8166, 7
        %v8168 = vsub.s32 %v8165, %v8167
        %v8169 = vrot.slane %v8155, %v8168
        %v8170 = vcombine.low %v8162, %v8169
        %v8171 = vcombine.low %v7577, %v7578
        %v8172 = vcombine.low %v7579, %v7580
        %v8174 = vunpack.c.l.s4 1983009808
        %v8175 = vunpack.c.0.s8 %v8174
        %v8176 = vlaneseq
        %v8177 = vshrl.u32 %v8176, 7
        %v8178 = vsub.s32 %v8175, %v8177
        %v8179 = vrot.slane %v8171, %v8178
        %v8181 = vunpack.c.l.s4 1983009808
        %v8182 = vunpack.c.0.s8 %v8181
        %v8183 = vlaneseq
        %v8184 = vshrl.u32 %v8183, 7
        %v8185 = vsub.s32 %v8182, %v8184
        %v8186 = vrot.slane %v8172, %v8185
        %v8187 = vcombine.low %v8179, %v8186
        %v8188 = vcombine.low %v7581, %v7582
        %v8189 = vcombine.low %v7583, %v7584
        %v8191 = vunpack.c.l.s4 1983009808
        %v8192 = vunpack.c.0.s8 %v8191
        %v8193 = vlaneseq
        %v8194 = vshrl.u32 %v8193, 7
        %v8195 = vsub.s32 %v8192, %v8194
        %v8196 = vrot.slane %v8188, %v8195
        %v8198 = vunpack.c.l.s4 1983009808
        %v8199 = vunpack.c.0.s8 %v8198
        %v8200 = vlaneseq
        %v8201 = vshrl.u32 %v8200, 7
        %v8202 = vsub.s32 %v8199, %v8201
        %v8203 = vrot.slane %v8189, %v8202
        %v8204 = vcombine.low %v8196, %v8203
        %v8205 = vcombine.low %v7585, %v7586
        %v8206 = vcombine.low %v7587, %v7588
        %v8208 = vunpack.c.l.s4 1983009808
        %v8209 = vunpack.c.0.s8 %v8208
        %v8210 = vlaneseq
        %v8211 = vshrl.u32 %v8210, 7
        %v8212 = vsub.s32 %v8209, %v8211
        %v8213 = vrot.slane %v8205, %v8212
        %v8215 = vunpack.c.l.s4 1983009808
        %v8216 = vunpack.c.0.s8 %v8215
        %v8217 = vlaneseq
        %v8218 = vshrl.u32 %v8217, 7
        %v8219 = vsub.s32 %v8216, %v8218
        %v8220 = vrot.slane %v8206, %v8219
        %v8221 = vcombine.low %v8213, %v8220
        %v8222 = vcombine.low %v7589, %v7590
        %v8223 = vcombine.low %v7591, %v7592
        %v8225 = vunpack.c.l.s4 1983009808
        %v8226 = vunpack.c.0.s8 %v8225
        %v8227 = vlaneseq
        %v8228 = vshrl.u32 %v8227, 7
        %v8229 = vsub.s32 %v8226, %v8228
        %v8230 = vrot.slane %v8222, %v8229
        %v8232 = vunpack.c.l.s4 1983009808
        %v8233 = vunpack.c.0.s8 %v8232
        %v8234 = vlaneseq
        %v8235 = vshrl.u32 %v8234, 7
        %v8236 = vsub.s32 %v8233, %v8235
        %v8237 = vrot.slane %v8223, %v8236
        %v8238 = vcombine.low %v8230, %v8237
        %v8239 = vcombine.low %v7593, %v7594
        %v8240 = vcombine.low %v7595, %v7596
        %v8242 = vunpack.c.l.s4 1983009808
        %v8243 = vunpack.c.0.s8 %v8242
        %v8244 = vlaneseq
        %v8245 = vshrl.u32 %v8244, 7
        %v8246 = vsub.s32 %v8243, %v8245
        %v8247 = vrot.slane %v8239, %v8246
        %v8249 = vunpack.c.l.s4 1983009808
        %v8250 = vunpack.c.0.s8 %v8249
        %v8251 = vlaneseq
        %v8252 = vshrl.u32 %v8251, 7
        %v8253 = vsub.s32 %v8250, %v8252
        %v8254 = vrot.slane %v8240, %v8253
        %v8255 = vcombine.low %v8247, %v8254
        %v8256 = vcombine.low %v7597, %v7598
        %v8257 = vcombine.low %v7599, %v7600
        %v8259 = vunpack.c.l.s4 1983009808
        %v8260 = vunpack.c.0.s8 %v8259
        %v8261 = vlaneseq
        %v8262 = vshrl.u32 %v8261, 7
        %v8263 = vsub.s32 %v8260, %v8262
        %v8264 = vrot.slane %v8256, %v8263
        %v8266 = vunpack.c.l.s4 1983009808
        %v8267 = vunpack.c.0.s8 %v8266
        %v8268 = vlaneseq
        %v8269 = vshrl.u32 %v8268, 7
        %v8270 = vsub.s32 %v8267, %v8269
        %v8271 = vrot.slane %v8257, %v8270
        %v8272 = vcombine.low %v8264, %v8271
        %v8305 = vpack.c.bf16 %v7762, %v7745
        %v8306 = vpack.c.bf16 %v7796, %v7779
        %v8307 = vpack.c.bf16 %v7830, %v7813
        %v8308 = vpack.c.bf16 %v7864, %v7847
        %v8309 = vpack.c.bf16 %v7898, %v7881
        %v8310 = vpack.c.bf16 %v7932, %v7915
        %v8311 = vpack.c.bf16 %v7966, %v7949
        %v8312 = vpack.c.bf16 %v8000, %v7983
        %v8313 = vpack.c.bf16 %v8034, %v8017
        %v8314 = vpack.c.bf16 %v8068, %v8051
        %v8315 = vpack.c.bf16 %v8102, %v8085
        %v8316 = vpack.c.bf16 %v8136, %v8119
        %v8317 = vpack.c.bf16 %v8170, %v8153
        %v8318 = vpack.c.bf16 %v8204, %v8187
        %v8319 = vpack.c.bf16 %v8238, %v8221
        %v8320 = vpack.c.bf16 %v8272, %v8255
        %v8337 = vunpack.c.l.b16 %v8305
        %v8338 = vunpack.c.h.b16 %v8305
        %v8339 = vunpack.c.l.b16 %v8306
        %v8340 = vunpack.c.h.b16 %v8306
        %v8341 = vunpack.c.l.b16 %v8307
        %v8342 = vunpack.c.h.b16 %v8307
        %v8343 = vunpack.c.l.b16 %v8308
        %v8344 = vunpack.c.h.b16 %v8308
        %v8345 = vunpack.c.l.b16 %v8309
        %v8346 = vunpack.c.h.b16 %v8309
        %v8347 = vunpack.c.l.b16 %v8310
        %v8348 = vunpack.c.h.b16 %v8310
        %v8349 = vunpack.c.l.b16 %v8311
        %v8350 = vunpack.c.h.b16 %v8311
        %v8351 = vunpack.c.l.b16 %v8312
        %v8352 = vunpack.c.h.b16 %v8312
        %v8353 = vunpack.c.l.b16 %v8313
        %v8354 = vunpack.c.h.b16 %v8313
        %v8355 = vunpack.c.l.b16 %v8314
        %v8356 = vunpack.c.h.b16 %v8314
        %v8357 = vunpack.c.l.b16 %v8315
        %v8358 = vunpack.c.h.b16 %v8315
        %v8359 = vunpack.c.l.b16 %v8316
        %v8360 = vunpack.c.h.b16 %v8316
        %v8361 = vunpack.c.l.b16 %v8317
        %v8362 = vunpack.c.h.b16 %v8317
        %v8363 = vunpack.c.l.b16 %v8318
        %v8364 = vunpack.c.h.b16 %v8318
        %v8365 = vunpack.c.l.b16 %v8319
        %v8366 = vunpack.c.h.b16 %v8319
        %v8367 = vunpack.c.l.b16 %v8320
        %v8368 = vunpack.c.h.b16 %v8320
        %v8369 = vpack.c.b16 %v8337, %v8337
        %v8370 = vpack.c.b16 %v8338, %v8338
        %v8371 = vpack.c.b16 %v8339, %v8339
        %v8372 = vpack.c.b16 %v8340, %v8340
        %v8373 = vpack.c.b16 %v8341, %v8341
        %v8374 = vpack.c.b16 %v8342, %v8342
        %v8375 = vpack.c.b16 %v8343, %v8343
        %v8376 = vpack.c.b16 %v8344, %v8344
        %v8377 = vpack.c.b16 %v8345, %v8345
        %v8378 = vpack.c.b16 %v8346, %v8346
        %v8379 = vpack.c.b16 %v8347, %v8347
        %v8380 = vpack.c.b16 %v8348, %v8348
        %v8381 = vpack.c.b16 %v8349, %v8349
        %v8382 = vpack.c.b16 %v8350, %v8350
        %v8383 = vpack.c.b16 %v8351, %v8351
        %v8384 = vpack.c.b16 %v8352, %v8352
        %v8385 = vpack.c.b16 %v8353, %v8353
        %v8386 = vpack.c.b16 %v8354, %v8354
        %v8387 = vpack.c.b16 %v8355, %v8355
        %v8388 = vpack.c.b16 %v8356, %v8356
        %v8389 = vpack.c.b16 %v8357, %v8357
        %v8390 = vpack.c.b16 %v8358, %v8358
        %v8391 = vpack.c.b16 %v8359, %v8359
        %v8392 = vpack.c.b16 %v8360, %v8360
        %v8393 = vpack.c.b16 %v8361, %v8361
        %v8394 = vpack.c.b16 %v8362, %v8362
        %v8395 = vpack.c.b16 %v8363, %v8363
        %v8396 = vpack.c.b16 %v8364, %v8364
        %v8397 = vpack.c.b16 %v8365, %v8365
        %v8398 = vpack.c.b16 %v8366, %v8366
        %v8399 = vpack.c.b16 %v8367, %v8367
        %v8400 = vpack.c.b16 %v8368, %v8368
        %vm8433 = vcmask 125952
        %8434 = vst.msk [vmem:[%s282] sm:$0xf] %vm8433, %v8369
        %8435 = vst.msk [vmem:[%s282 + $0x4] sm:$0xf] %vm8433, %v8370
        %8436 = vst.msk [vmem:[%s282 + $0x8] sm:$0xf] %vm8433, %v8371
        %8437 = vst.msk [vmem:[%s282 + $0xc] sm:$0xf] %vm8433, %v8372
        %8438 = vst.msk [vmem:[%s282 + $0x10] sm:$0xf] %vm8433, %v8373
        %8439 = vst.msk [vmem:[%s282 + $0x14] sm:$0xf] %vm8433, %v8374
        %8440 = vst.msk [vmem:[%s282 + $0x18] sm:$0xf] %vm8433, %v8375
        %8441 = vst.msk [vmem:[%s282 + $0x1c] sm:$0xf] %vm8433, %v8376
        %8442 = vst.msk [vmem:[%s282 + $0x20] sm:$0xf] %vm8433, %v8377
        %8443 = vst.msk [vmem:[%s282 + $0x24] sm:$0xf] %vm8433, %v8378
        %8444 = vst.msk [vmem:[%s282 + $0x28] sm:$0xf] %vm8433, %v8379
        %8445 = vst.msk [vmem:[%s282 + $0x2c] sm:$0xf] %vm8433, %v8380
        %8446 = vst.msk [vmem:[%s282 + $0x30] sm:$0xf] %vm8433, %v8381
        %8447 = vst.msk [vmem:[%s282 + $0x34] sm:$0xf] %vm8433, %v8382
        %8448 = vst.msk [vmem:[%s282 + $0x38] sm:$0xf] %vm8433, %v8383
        %8449 = vst.msk [vmem:[%s282 + $0x3c] sm:$0xf] %vm8433, %v8384
        %8450 = vst.msk [vmem:[%s282 + $0x40] sm:$0xf] %vm8433, %v8385
        %8451 = vst.msk [vmem:[%s282 + $0x44] sm:$0xf] %vm8433, %v8386
        %8452 = vst.msk [vmem:[%s282 + $0x48] sm:$0xf] %vm8433, %v8387
        %8453 = vst.msk [vmem:[%s282 + $0x4c] sm:$0xf] %vm8433, %v8388
        %8454 = vst.msk [vmem:[%s282 + $0x50] sm:$0xf] %vm8433, %v8389
        %8455 = vst.msk [vmem:[%s282 + $0x54] sm:$0xf] %vm8433, %v8390
        %8456 = vst.msk [vmem:[%s282 + $0x58] sm:$0xf] %vm8433, %v8391
        %8457 = vst.msk [vmem:[%s282 + $0x5c] sm:$0xf] %vm8433, %v8392
        %8458 = vst.msk [vmem:[%s282 + $0x60] sm:$0xf] %vm8433, %v8393
        %8459 = vst.msk [vmem:[%s282 + $0x64] sm:$0xf] %vm8433, %v8394
        %8460 = vst.msk [vmem:[%s282 + $0x68] sm:$0xf] %vm8433, %v8395
        %8461 = vst.msk [vmem:[%s282 + $0x6c] sm:$0xf] %vm8433, %v8396
        %8462 = vst.msk [vmem:[%s282 + $0x70] sm:$0xf] %vm8433, %v8397
        %8463 = vst.msk [vmem:[%s282 + $0x74] sm:$0xf] %vm8433, %v8398
        %8464 = vst.msk [vmem:[%s282 + $0x78] sm:$0xf] %vm8433, %v8399
        %8465 = vst.msk [vmem:[%s282 + $0x7c] sm:$0xf] %vm8433, %v8400
        %s8466 = sand.u32 %s183, 1
        %s8467 = scalar_lea.sflag [#allocation4], %s8466
        %s8468 = sand.u32 %s183, 1
        %s8469 = smul.addr %s8468, 128
        %s8470 = scalar_lea.vmem [#allocation3], %s8469
        // Predicated region
        $region49: #{tpu_custom_call.1} parent=43 // pred_check
          %p8471 = pneg %p193
        $region50: #{tpu_custom_call.1} parent=43 // pred_check_branch
          %8473 = sbr.rel (%p8471) target = $region52
        $region51: #{tpu_custom_call.1} parent=43 // pred_region
          %s8475 = ssub.s32 2048, 2048
          %8476 = vsyncadd %s8467, %s8475
          %s8477 = smul.addr %s24, 32
          %s8478 = sadd.s32 %s25, %s8477
          %s8479 = smul.addr %s8478, 64
          %s8480 = scalar_lea.hbm %s6, %s8479
          %s8481 = sshll.u32 %s8470, 4
          %s8482 = int_to_ptr.vmem [resolvable:$true] %s8481
          %8487 = dma.vmem_to_hbm [thread:$0]  %s8482, 2048, %s8480, %s8467, 64, 64, 4
        $region52: #{tpu_custom_call.1} parent=43 // pred_fallthru
          _
      $region44: #{tpu_custom_call.1} parent=5 // pred_fallthru
        _
      %p8488 = scmp.le.s32.totalorder 2, %s15
      // Predicated region
      $region53: #{tpu_custom_call.1} parent=5 // pred_check
        %p8489 = pneg %p8488
      $region54: #{tpu_custom_call.1} parent=5 // pred_check_branch
        %8491 = sbr.rel (%p8489) target = $region56
      $region55: #{tpu_custom_call.1} parent=5 // pred_region
        %s8492 = ssub.s32 %s15, 2
        // Predicated region
        $region57: #{tpu_custom_call.1} parent=55 // pred_check
          %p8493 = pneg %p199
        $region58: #{tpu_custom_call.1} parent=55 // pred_check_branch
          %8495 = sbr.rel (%p8493) target = $region60
        $region59: #{tpu_custom_call.1} parent=55 // pred_region
          %s8496 = sand.u32 %s184, 1
          %s8497 = scalar_lea.sflag [#allocation4], %s8496
          %s8498 = sand.u32 %s184, 1
          %s8499 = smul.addr %s8498, 128
          %s8500 = scalar_lea.vmem [#allocation3], %s8499
          %8501 = dma.done %s8497, 2048
        $region60: #{tpu_custom_call.1} parent=55 // pred_fallthru
          _
      $region56: #{tpu_custom_call.1} parent=5 // pred_fallthru
        _
    $region6: #{tpu_custom_call.1} parent=1 // loop_footer
      %s19 = sadd.s32 1, %s15
    $region7: #{tpu_custom_call.1} parent=1 // loop_footer_branch
      %14 = sbr.rel target = $region3
    $region8: #{tpu_custom_call.1} parent=1 // loop_exit
      _
    %8502 = vsyncpa [#allocation4], 1
    %s8503 = scalar_lea.sflag [#allocation4], 1
    %8504 = vsyncpa %s8503, 1

</llo_original>
